<compile_context>
chip_gen: v7x
topology: tpu7x:2x2x1
jax: 0.10.0
libtpu: 0.0.40
codegen_flags: <defaults>
</compile_context>

<pallas_src>
import jax
import jax.numpy as jnp
from jax.experimental import pallas as pl
from jax.experimental.pallas import tpu as pltpu

OUT_PAD = 128     # lane-dense final store; sliced back to 10 classes in the wrapper
MAX_BLOCK = 32    # images per grid step (Python-unrolled inside the kernel);
                  # at B=32 the per-step MXU work (~200 MFLOP) already dwarfs the
                  # ~0.35 us/step pipeline overhead, keeping the kernel trace small.


def _sig(v):
    # sigmoid(v) == 0.5*(tanh(v/2)+1): single EUP op per vreg, no divide.
    return 0.5 * (jnp.tanh(0.5 * v) + 1.0)


# ------------------------------ Pallas kernel ------------------------------ #

def _lenet_kernel(xs_ref, m1_ref, b1_ref, s1_ref, p1_ref,
                  m2_ref, b2_ref, s2_ref, p2_ref,
                  wf1_ref, bf1_ref, wf2_ref, bf2_ref, wf3_ref, bf3_ref,
                  o_ref, scr_ref):
    f32 = jnp.float32
    B = xs_ref.shape[0]        # images per grid step
    K = m2_ref.shape[0]        # 5
    H2 = s2_ref.shape[1]       # 14  (conv2 output rows)
    HF = wf1_ref.shape[0]      # 7   (pooled rows entering fc1)

    # ---- per-image conv/pool stages (statically unrolled over the block) ----
    for b in range(B):
        # conv1 (5x5, pad 2) as ONE GEMM over the pre-stacked shifted rows.
        acc1 = jnp.dot(xs_ref[b], m1_ref[...],
                       preferred_element_type=f32)                 # (28, 168)
        act1 = _sig(acc1 + b1_ref[...])
        # 2x2 avg-pool + conv2 zero-padding baked in, as two small GEMMs.
        xp2 = jnp.dot(jnp.dot(s1_ref[...], act1, preferred_element_type=f32),
                      p1_ref[...], preferred_element_type=f32)     # (18, 108)

        # conv2 (5x5, pad 2): K row-shifted accumulated GEMMs.
        acc2 = jnp.dot(xp2[0:H2, :], m2_ref[0], preferred_element_type=f32)
        for kh in range(1, K):
            acc2 = acc2 + jnp.dot(xp2[kh:kh + H2, :], m2_ref[kh],
                                  preferred_element_type=f32)
        act2 = _sig(acc2 + b2_ref[...])                            # (14, 224)
        pooled2 = jnp.dot(jnp.dot(s2_ref[...], act2, preferred_element_type=f32),
                          p2_ref[...], preferred_element_type=f32)  # (7, 112)

        # stash this image's pooled rows so the FC layers can run at M = B
        scr_ref[:, b:b + 1, :] = pooled2[:, None, :]

    # ---- batched FC stages (once per grid step, M = B) ----------------------
    acc = jnp.dot(scr_ref[0], wf1_ref[0], preferred_element_type=f32)   # (B, 120)
    for h in range(1, HF):
        acc = acc + jnp.dot(scr_ref[h], wf1_ref[h], preferred_element_type=f32)
    h1 = _sig(acc + bf1_ref[...])                                        # (B, 120)
    h2 = _sig(jnp.dot(h1, wf2_ref[...], preferred_element_type=f32)
              + bf2_ref[...])                                            # (B, 84)
    logits = (jnp.dot(h2, wf3_ref[...], preferred_element_type=f32)
              + bf3_ref[...])                                            # (B, 128)
    o_ref[0] = logits   # lane-dense (B, 128) store


# --------------------- parameter / constant preprocessing ------------------- #

def _band_weights(w, w_out, w_pad):
    """w: (Cout, Cin, K, K) OIHW -> M: (K, w_pad*Cin, w_out*Cout).

    M[kh, (w+kw)*Cin+ci, w*Cout+co] = w[co, ci, kh, kw]; conv output row h is
    sum_kh xp_row[h+kh, :] @ M[kh] over the padded, W/C-flattened input.
    """
    cout, cin, K, _ = w.shape
    onehot = (jnp.arange(w_pad)[:, None, None]
              == jnp.arange(w_out)[None, :, None] + jnp.arange(K)[None, None, :]
              ).astype(w.dtype)                                      # (Wp, Wout, K)
    m = jnp.einsum("pwk,oihk->hpiwo", onehot, w)                     # (K,Wp,Cin,Wout,Cout)
    return m.reshape(K, w_pad * cin, w_out * cout)


def _pool_mats(h, w, c, dtype, pad=0):
    """S: (h//2 + 2*pad, h) row-pool (carries the 0.25); P: (w*c, (w//2+2*pad)*c)
    column/channel pool.  `pad` bakes the next conv's zero-padding into the output."""
    s = 0.25 * (jnp.arange(h // 2)[:, None] == jnp.arange(h)[None, :] // 2).astype(dtype)
    s = jnp.pad(s, ((pad, pad), (0, 0)))
    pw = (jnp.arange(w)[:, None] // 2 == jnp.arange(w // 2)[None, :]).astype(dtype)
    eyec = jnp.eye(c, dtype=dtype)
    p = (pw[:, None, :, None] * eyec[None, :, None, :]).reshape(w * c, (w // 2) * c)
    p = jnp.pad(p, ((0, 0), (pad * c, pad * c)))
    return s, p


# ---------------------------------- wrapper --------------------------------- #

def lenet_forward(x_nchw, params, block=MAX_BLOCK):
    """Forward pass matching LeNet_VarKernel(kernel_size=5). x: (N, 1, 28, 28)."""
    f32 = jnp.float32
    N, _, H1, W1 = x_nchw.shape                       # 28, 28
    K = params["w1"].shape[-1]                        # 5
    pad = (K - 1) // 2

    w1, b1 = params["w1"].astype(f32), params["b1"].astype(f32)
    w2, b2 = params["w2"].astype(f32), params["b2"].astype(f32)
    C1, C2 = w1.shape[0], w2.shape[0]                 # 6, 16
    H2, W2 = H1 // 2, W1 // 2                         # 14, 14
    HF, WF = H2 // 2, W2 // 2                         # 7, 7
    Wp = W1 + 2 * pad                                 # 32

    # conv weights as banded GEMM matrices; conv1's K matrices collapsed to one.
    m1_3d = _band_weights(w1, W1, Wp)                 # (5, 32, 168)
    m1 = m1_3d.reshape(K * Wp, W1 * C1)               # (160, 168)
    m2 = _band_weights(w2, W2, W2 + 2 * pad)          # (5, 108, 224)
    b1row = jnp.tile(b1, W1)[None, :]                 # (1, 168)
    b2row = jnp.tile(b2, W2)[None, :]                 # (1, 224)

    # pooling matrices; stage-1 also produces conv2's zero-padded input.
    s1, p1 = _pool_mats(H1, W1, C1, f32, pad=pad)     # (18, 28), (168, 108)
    s2, p2 = _pool_mats(H2, W2, C2, f32, pad=0)       # (7, 14),  (224, 112)

    # fc1 weights permuted once so the (h, w*C+c) activation layout matches
    # PyTorch's (C, H, W) flatten order; split per pooled row h for the kernel.
    dfc1 = params["fc1_w"].shape[0]                   # 120
    wf1 = (params["fc1_w"].astype(f32)
           .reshape(dfc1, C2, HF, WF)
           .transpose(2, 3, 1, 0)
           .reshape(HF, WF * C2, dfc1))               # (7, 112, 120)
    bf1 = params["fc1_b"].astype(f32)[None, :]        # (1, 120)
    wf2 = params["fc2_w"].T.astype(f32)               # (120, 84)
    bf2 = params["fc2_b"].astype(f32)[None, :]        # (1, 84)
    ncls = params["fc3_w"].shape[0]                   # 10
    wf3 = jnp.pad(params["fc3_w"].T.astype(f32), ((0, 0), (0, OUT_PAD - ncls)))  # (84, 128)
    bf3 = jnp.pad(params["fc3_b"].astype(f32), (0, OUT_PAD - ncls))[None, :]     # (1, 128)

    # ---- block/grid sizing: B images per step, >= 2 steps and even (v7x) ----
    B = max(1, min(block, -(-N // 2)))
    steps = -(-N // B)
    steps += steps % 2                                # keep both v7x TCs busy
    Np = steps * B

    # padded input, then pre-stack the kh-shifted rows so conv1 is ONE GEMM:
    # x_shift[n, h, kh*Wp + p] = xp[n, h+kh, p]   -> (Np, 28, 160)
    xp = jnp.pad(x_nchw[:, 0, :, :].astype(f32),
                 ((0, Np - N), (pad, pad), (pad, pad)))              # (Np, 32, 32)
    x_shift = jnp.concatenate([xp[:, kh:kh + H1, :] for kh in range(K)], axis=-1)

    def full_spec(a):
        return pl.BlockSpec(a.shape, lambda i, nd=a.ndim: (0,) * nd)

    weights = (m1, b1row, s1, p1, m2, b2row, s2, p2, wf1, bf1, wf2, bf2, wf3, bf3)

    out = pl.pallas_call(
        _lenet_kernel,
        out_shape=jax.ShapeDtypeStruct((steps, B, OUT_PAD), f32),
        grid=(steps,),
        in_specs=[pl.BlockSpec((B, H1, K * Wp), lambda i: (i, 0, 0))]
                 + [full_spec(a) for a in weights],
        out_specs=pl.BlockSpec((1, B, OUT_PAD), lambda i: (i, 0, 0)),
        scratch_shapes=[pltpu.VMEM((HF, B, WF * C2), f32)],
        compiler_params=pltpu.CompilerParams(dimension_semantics=("parallel",)),
    )(x_shift, *weights)

    return out.reshape(Np, OUT_PAD)[:N, :ncls]        # (N, 10)


# ------------------------ pure-JAX reference (check) ------------------------ #

def lenet_reference(x_nchw, params):
    def conv(x, w, b):
        y = jax.lax.conv_general_dilated(
            x, w, window_strides=(1, 1), padding=((2, 2), (2, 2)),
            dimension_numbers=("NCHW", "OIHW", "NCHW"))
        return jax.nn.sigmoid(y + b[None, :, None, None])

    def pool(x):
        n, c, hh, ww = x.shape
        return x.reshape(n, c, hh // 2, 2, ww // 2, 2).mean(axis=(3, 5))

    h = pool(conv(x_nchw, params["w1"], params["b1"]))
    h = pool(conv(h, params["w2"], params["b2"]))
    h = h.reshape(x_nchw.shape[0], -1)
    h = jax.nn.sigmoid(h @ params["fc1_w"].T + params["fc1_b"])
    h = jax.nn.sigmoid(h @ params["fc2_w"].T + params["fc2_b"])
    return h @ params["fc3_w"].T + params["fc3_b"]


# ----------------------------------- main ----------------------------------- #

if __name__ == "__main__":
    key = jax.random.PRNGKey(0)
    ks = jax.random.split(key, 11)

    def init(k, shape, fan_in):
        bound = 1.0 / (fan_in ** 0.5)
        return jax.random.uniform(k, shape, jnp.float32, -bound, bound)

    # Shapes mirror LeNet_VarKernel(kernel_size=5).__init__ (deterministic init).
    params = {
        "w1": init(ks[0], (6, 1, 5, 5), 1 * 5 * 5),
        "b1": init(ks[1], (6,), 1 * 5 * 5),
        "w2": init(ks[2], (16, 6, 5, 5), 6 * 5 * 5),
        "b2": init(ks[3], (16,), 6 * 5 * 5),
        "fc1_w": init(ks[4], (120, 16 * 7 * 7), 16 * 7 * 7),
        "fc1_b": init(ks[5], (120,), 16 * 7 * 7),
        "fc2_w": init(ks[6], (84, 120), 120),
        "fc2_b": init(ks[7], (84,), 120),
        "fc3_w": init(ks[8], (10, 84), 84),
        "fc3_b": init(ks[9], (10,), 84),
    }

    # MNIST-like input implied by fc1 = Linear(16*7*7, 120): (N, 1, 28, 28).
    # N=8 exercises the batched path: B=4 images/step, 2 parallel grid steps.
    N = 8
    x = jax.random.normal(ks[10], (N, 1, 28, 28), jnp.float32)

    out = jax.block_until_ready(jax.jit(lenet_forward)(x, params))

    ref = lenet_reference(x, params)
    assert out.shape == (N, 10), out.shape
    assert jnp.allclose(out, ref, rtol=1e-3, atol=1e-4), (out, ref)

    print("KERNEL_OK")
</pallas_src>

<mosaic_0001>
module attributes {stable_mosaic.version = 11 : i64} {
  func.func @_lenet_kernel(%arg0: i32, %arg1: memref<4x28x160xf32, #tpu.memory_space<vmem>>, %arg2: memref<160x168xf32, #tpu.memory_space<vmem>>, %arg3: memref<1x168xf32, #tpu.memory_space<vmem>>, %arg4: memref<18x28xf32, #tpu.memory_space<vmem>>, %arg5: memref<168x108xf32, #tpu.memory_space<vmem>>, %arg6: memref<5x108x224xf32, #tpu.memory_space<vmem>>, %arg7: memref<1x224xf32, #tpu.memory_space<vmem>>, %arg8: memref<7x14xf32, #tpu.memory_space<vmem>>, %arg9: memref<224x112xf32, #tpu.memory_space<vmem>>, %arg10: memref<7x112x120xf32, #tpu.memory_space<vmem>>, %arg11: memref<1x120xf32, #tpu.memory_space<vmem>>, %arg12: memref<120x84xf32, #tpu.memory_space<vmem>>, %arg13: memref<1x84xf32, #tpu.memory_space<vmem>>, %arg14: memref<84x128xf32, #tpu.memory_space<vmem>>, %arg15: memref<1x128xf32, #tpu.memory_space<vmem>>, %arg16: memref<1x4x128xf32, #tpu.memory_space<vmem>>, %arg17: memref<7x4x112xf32, #tpu.memory_space<vmem>>) attributes {dimension_semantics = [#tpu.dimension_semantics<parallel>], iteration_bounds = array<i64: 2>, scalar_prefetch = 0 : i64, scratch_operands = 1 : i64, tpu.core_type = #tpu.core_type<tc>, window_params = [{transform_indices = @transform_0, window_bounds = array<i64: 4, 28, 160>}, {pipeline_mode = #tpu.pipeline_mode<synchronous>, transform_indices = @transform_1, window_bounds = array<i64: 160, 168>}, {pipeline_mode = #tpu.pipeline_mode<synchronous>, transform_indices = @transform_2, window_bounds = array<i64: 1, 168>}, {pipeline_mode = #tpu.pipeline_mode<synchronous>, transform_indices = @transform_3, window_bounds = array<i64: 18, 28>}, {pipeline_mode = #tpu.pipeline_mode<synchronous>, transform_indices = @transform_4, window_bounds = array<i64: 168, 108>}, {pipeline_mode = #tpu.pipeline_mode<synchronous>, transform_indices = @transform_5, window_bounds = array<i64: 5, 108, 224>}, {pipeline_mode = #tpu.pipeline_mode<synchronous>, transform_indices = @transform_6, window_bounds = array<i64: 1, 224>}, {pipeline_mode = #tpu.pipeline_mode<synchronous>, transform_indices = @transform_7, window_bounds = array<i64: 7, 14>}, {pipeline_mode = #tpu.pipeline_mode<synchronous>, transform_indices = @transform_8, window_bounds = array<i64: 224, 112>}, {pipeline_mode = #tpu.pipeline_mode<synchronous>, transform_indices = @transform_9, window_bounds = array<i64: 7, 112, 120>}, {pipeline_mode = #tpu.pipeline_mode<synchronous>, transform_indices = @transform_10, window_bounds = array<i64: 1, 120>}, {pipeline_mode = #tpu.pipeline_mode<synchronous>, transform_indices = @transform_11, window_bounds = array<i64: 120, 84>}, {pipeline_mode = #tpu.pipeline_mode<synchronous>, transform_indices = @transform_12, window_bounds = array<i64: 1, 84>}, {pipeline_mode = #tpu.pipeline_mode<synchronous>, transform_indices = @transform_13, window_bounds = array<i64: 84, 128>}, {pipeline_mode = #tpu.pipeline_mode<synchronous>, transform_indices = @transform_14, window_bounds = array<i64: 1, 128>}, {transform_indices = @transform_15, window_bounds = array<i64: 1, 4, 128>}]} {
    %c0 = arith.constant 0 : index
    %c0_0 = arith.constant 0 : index
    %c0_1 = arith.constant 0 : index
    %0 = vector.load %arg1[%c0, %c0_0, %c0_1] : memref<4x28x160xf32, #tpu.memory_space<vmem>>, vector<1x28x160xf32>
    %1 = vector.shape_cast %0 : vector<1x28x160xf32> to vector<28x160xf32>
    %c0_2 = arith.constant 0 : index
    %c0_3 = arith.constant 0 : index
    %2 = vector.load %arg2[%c0_2, %c0_3] : memref<160x168xf32, #tpu.memory_space<vmem>>, vector<160x168xf32>
    %cst = arith.constant dense<0.000000e+00> : vector<28x168xf32>
    %3 = tpu.matmul %1, %2, %cst {dimension_numbers = #tpu.dot_dimension_numbers<[1], [0], [0], [1], [0, 0, 1, 1], [], []>} : vector<28x160xf32>, vector<160x168xf32>, vector<28x168xf32> -> vector<28x168xf32>
    %c0_4 = arith.constant 0 : index
    %c0_5 = arith.constant 0 : index
    %4 = vector.load %arg3[%c0_4, %c0_5] : memref<1x168xf32, #tpu.memory_space<vmem>>, vector<1x168xf32>
    %5 = vector.broadcast %4 : vector<1x168xf32> to vector<28x168xf32>
    %6 = arith.addf %3, %5 : vector<28x168xf32>
    %cst_6 = arith.constant 5.000000e-01 : f32
    %7 = vector.broadcast %cst_6 : f32 to vector<28x168xf32>
    %8 = arith.mulf %7, %6 : vector<28x168xf32>
    %9 = math.tanh %8 : vector<28x168xf32>
    %cst_7 = arith.constant 1.000000e+00 : f32
    %10 = vector.broadcast %cst_7 : f32 to vector<28x168xf32>
    %11 = arith.addf %9, %10 : vector<28x168xf32>
    %cst_8 = arith.constant 5.000000e-01 : f32
    %12 = vector.broadcast %cst_8 : f32 to vector<28x168xf32>
    %13 = arith.mulf %12, %11 : vector<28x168xf32>
    %c0_9 = arith.constant 0 : index
    %c0_10 = arith.constant 0 : index
    %14 = vector.load %arg4[%c0_9, %c0_10] : memref<18x28xf32, #tpu.memory_space<vmem>>, vector<18x28xf32>
    %cst_11 = arith.constant dense<0.000000e+00> : vector<18x168xf32>
    %15 = tpu.matmul %14, %13, %cst_11 {dimension_numbers = #tpu.dot_dimension_numbers<[1], [0], [0], [1], [0, 0, 1, 1], [], []>} : vector<18x28xf32>, vector<28x168xf32>, vector<18x168xf32> -> vector<18x168xf32>
    %c0_12 = arith.constant 0 : index
    %c0_13 = arith.constant 0 : index
    %16 = vector.load %arg5[%c0_12, %c0_13] : memref<168x108xf32, #tpu.memory_space<vmem>>, vector<168x108xf32>
    %cst_14 = arith.constant dense<0.000000e+00> : vector<18x108xf32>
    %17 = tpu.matmul %15, %16, %cst_14 {dimension_numbers = #tpu.dot_dimension_numbers<[1], [0], [0], [1], [0, 0, 1, 1], [], []>} : vector<18x168xf32>, vector<168x108xf32>, vector<18x108xf32> -> vector<18x108xf32>
    %18 = vector.extract_strided_slice %17 {offsets = [0, 0], sizes = [14, 108], strides = [1, 1]} : vector<18x108xf32> to vector<14x108xf32>
    %c0_15 = arith.constant 0 : index
    %c0_16 = arith.constant 0 : index
    %c0_17 = arith.constant 0 : index
    %19 = vector.load %arg6[%c0_15, %c0_16, %c0_17] : memref<5x108x224xf32, #tpu.memory_space<vmem>>, vector<1x108x224xf32>
    %20 = vector.shape_cast %19 : vector<1x108x224xf32> to vector<108x224xf32>
    %cst_18 = arith.constant dense<0.000000e+00> : vector<14x224xf32>
    %21 = tpu.matmul %18, %20, %cst_18 {dimension_numbers = #tpu.dot_dimension_numbers<[1], [0], [0], [1], [0, 0, 1, 1], [], []>} : vector<14x108xf32>, vector<108x224xf32>, vector<14x224xf32> -> vector<14x224xf32>
    %22 = vector.extract_strided_slice %17 {offsets = [1, 0], sizes = [14, 108], strides = [1, 1]} : vector<18x108xf32> to vector<14x108xf32>
    %c1 = arith.constant 1 : index
    %c0_19 = arith.constant 0 : index
    %c0_20 = arith.constant 0 : index
    %23 = vector.load %arg6[%c1, %c0_19, %c0_20] : memref<5x108x224xf32, #tpu.memory_space<vmem>>, vector<1x108x224xf32>
    %24 = vector.shape_cast %23 : vector<1x108x224xf32> to vector<108x224xf32>
    %cst_21 = arith.constant dense<0.000000e+00> : vector<14x224xf32>
    %25 = tpu.matmul %22, %24, %cst_21 {dimension_numbers = #tpu.dot_dimension_numbers<[1], [0], [0], [1], [0, 0, 1, 1], [], []>} : vector<14x108xf32>, vector<108x224xf32>, vector<14x224xf32> -> vector<14x224xf32>
    %26 = arith.addf %21, %25 : vector<14x224xf32>
    %27 = vector.extract_strided_slice %17 {offsets = [2, 0], sizes = [14, 108], strides = [1, 1]} : vector<18x108xf32> to vector<14x108xf32>
    %c2 = arith.constant 2 : index
    %c0_22 = arith.constant 0 : index
    %c0_23 = arith.constant 0 : index
    %28 = vector.load %arg6[%c2, %c0_22, %c0_23] : memref<5x108x224xf32, #tpu.memory_space<vmem>>, vector<1x108x224xf32>
    %29 = vector.shape_cast %28 : vector<1x108x224xf32> to vector<108x224xf32>
    %cst_24 = arith.constant dense<0.000000e+00> : vector<14x224xf32>
    %30 = tpu.matmul %27, %29, %cst_24 {dimension_numbers = #tpu.dot_dimension_numbers<[1], [0], [0], [1], [0, 0, 1, 1], [], []>} : vector<14x108xf32>, vector<108x224xf32>, vector<14x224xf32> -> vector<14x224xf32>
    %31 = arith.addf %26, %30 : vector<14x224xf32>
    %32 = vector.extract_strided_slice %17 {offsets = [3, 0], sizes = [14, 108], strides = [1, 1]} : vector<18x108xf32> to vector<14x108xf32>
    %c3 = arith.constant 3 : index
    %c0_25 = arith.constant 0 : index
    %c0_26 = arith.constant 0 : index
    %33 = vector.load %arg6[%c3, %c0_25, %c0_26] : memref<5x108x224xf32, #tpu.memory_space<vmem>>, vector<1x108x224xf32>
    %34 = vector.shape_cast %33 : vector<1x108x224xf32> to vector<108x224xf32>
    %cst_27 = arith.constant dense<0.000000e+00> : vector<14x224xf32>
    %35 = tpu.matmul %32, %34, %cst_27 {dimension_numbers = #tpu.dot_dimension_numbers<[1], [0], [0], [1], [0, 0, 1, 1], [], []>} : vector<14x108xf32>, vector<108x224xf32>, vector<14x224xf32> -> vector<14x224xf32>
    %36 = arith.addf %31, %35 : vector<14x224xf32>
    %37 = vector.extract_strided_slice %17 {offsets = [4, 0], sizes = [14, 108], strides = [1, 1]} : vector<18x108xf32> to vector<14x108xf32>
    %c4 = arith.constant 4 : index
    %c0_28 = arith.constant 0 : index
    %c0_29 = arith.constant 0 : index
    %38 = vector.load %arg6[%c4, %c0_28, %c0_29] : memref<5x108x224xf32, #tpu.memory_space<vmem>>, vector<1x108x224xf32>
    %39 = vector.shape_cast %38 : vector<1x108x224xf32> to vector<108x224xf32>
    %cst_30 = arith.constant dense<0.000000e+00> : vector<14x224xf32>
    %40 = tpu.matmul %37, %39, %cst_30 {dimension_numbers = #tpu.dot_dimension_numbers<[1], [0], [0], [1], [0, 0, 1, 1], [], []>} : vector<14x108xf32>, vector<108x224xf32>, vector<14x224xf32> -> vector<14x224xf32>
    %41 = arith.addf %36, %40 : vector<14x224xf32>
    %c0_31 = arith.constant 0 : index
    %c0_32 = arith.constant 0 : index
    %42 = vector.load %arg7[%c0_31, %c0_32] : memref<1x224xf32, #tpu.memory_space<vmem>>, vector<1x224xf32>
    %43 = vector.broadcast %42 : vector<1x224xf32> to vector<14x224xf32>
    %44 = arith.addf %41, %43 : vector<14x224xf32>
    %cst_33 = arith.constant 5.000000e-01 : f32
    %45 = vector.broadcast %cst_33 : f32 to vector<14x224xf32>
    %46 = arith.mulf %45, %44 : vector<14x224xf32>
    %47 = math.tanh %46 : vector<14x224xf32>
    %cst_34 = arith.constant 1.000000e+00 : f32
    %48 = vector.broadcast %cst_34 : f32 to vector<14x224xf32>
    %49 = arith.addf %47, %48 : vector<14x224xf32>
    %cst_35 = arith.constant 5.000000e-01 : f32
    %50 = vector.broadcast %cst_35 : f32 to vector<14x224xf32>
    %51 = arith.mulf %50, %49 : vector<14x224xf32>
    %c0_36 = arith.constant 0 : index
    %c0_37 = arith.constant 0 : index
    %52 = vector.load %arg8[%c0_36, %c0_37] : memref<7x14xf32, #tpu.memory_space<vmem>>, vector<7x14xf32>
    %cst_38 = arith.constant dense<0.000000e+00> : vector<7x224xf32>
    %53 = tpu.matmul %52, %51, %cst_38 {dimension_numbers = #tpu.dot_dimension_numbers<[1], [0], [0], [1], [0, 0, 1, 1], [], []>} : vector<7x14xf32>, vector<14x224xf32>, vector<7x224xf32> -> vector<7x224xf32>
    %c0_39 = arith.constant 0 : index
    %c0_40 = arith.constant 0 : index
    %54 = vector.load %arg9[%c0_39, %c0_40] : memref<224x112xf32, #tpu.memory_space<vmem>>, vector<224x112xf32>
    %cst_41 = arith.constant dense<0.000000e+00> : vector<7x112xf32>
    %55 = tpu.matmul %53, %54, %cst_41 {dimension_numbers = #tpu.dot_dimension_numbers<[1], [0], [0], [1], [0, 0, 1, 1], [], []>} : vector<7x224xf32>, vector<224x112xf32>, vector<7x112xf32> -> vector<7x112xf32>
    %56 = vector.shape_cast %55 : vector<7x112xf32> to vector<7x1x112xf32>
    %c0_42 = arith.constant 0 : index
    %c0_43 = arith.constant 0 : index
    %c0_44 = arith.constant 0 : index
    %57 = vector.load %arg17[%c0_42, %c0_43, %c0_44] : memref<7x4x112xf32, #tpu.memory_space<vmem>>, vector<7x1x112xf32>
    tpu.vector_store %arg17[%c0_42, %c0_43, %c0_44], %56 {strides = array<i32>} : memref<7x4x112xf32, #tpu.memory_space<vmem>>, vector<7x1x112xf32>,
    %c1_45 = arith.constant 1 : index
    %c0_46 = arith.constant 0 : index
    %c0_47 = arith.constant 0 : index
    %58 = vector.load %arg1[%c1_45, %c0_46, %c0_47] : memref<4x28x160xf32, #tpu.memory_space<vmem>>, vector<1x28x160xf32>
    %59 = vector.shape_cast %58 : vector<1x28x160xf32> to vector<28x160xf32>
    %c0_48 = arith.constant 0 : index
    %c0_49 = arith.constant 0 : index
    %60 = vector.load %arg2[%c0_48, %c0_49] : memref<160x168xf32, #tpu.memory_space<vmem>>, vector<160x168xf32>
    %cst_50 = arith.constant dense<0.000000e+00> : vector<28x168xf32>
    %61 = tpu.matmul %59, %60, %cst_50 {dimension_numbers = #tpu.dot_dimension_numbers<[1], [0], [0], [1], [0, 0, 1, 1], [], []>} : vector<28x160xf32>, vector<160x168xf32>, vector<28x168xf32> -> vector<28x168xf32>
    %c0_51 = arith.constant 0 : index
    %c0_52 = arith.constant 0 : index
    %62 = vector.load %arg3[%c0_51, %c0_52] : memref<1x168xf32, #tpu.memory_space<vmem>>, vector<1x168xf32>
    %63 = vector.broadcast %62 : vector<1x168xf32> to vector<28x168xf32>
    %64 = arith.addf %61, %63 : vector<28x168xf32>
    %cst_53 = arith.constant 5.000000e-01 : f32
    %65 = vector.broadcast %cst_53 : f32 to vector<28x168xf32>
    %66 = arith.mulf %65, %64 : vector<28x168xf32>
    %67 = math.tanh %66 : vector<28x168xf32>
    %cst_54 = arith.constant 1.000000e+00 : f32
    %68 = vector.broadcast %cst_54 : f32 to vector<28x168xf32>
    %69 = arith.addf %67, %68 : vector<28x168xf32>
    %cst_55 = arith.constant 5.000000e-01 : f32
    %70 = vector.broadcast %cst_55 : f32 to vector<28x168xf32>
    %71 = arith.mulf %70, %69 : vector<28x168xf32>
    %c0_56 = arith.constant 0 : index
    %c0_57 = arith.constant 0 : index
    %72 = vector.load %arg4[%c0_56, %c0_57] : memref<18x28xf32, #tpu.memory_space<vmem>>, vector<18x28xf32>
    %cst_58 = arith.constant dense<0.000000e+00> : vector<18x168xf32>
    %73 = tpu.matmul %72, %71, %cst_58 {dimension_numbers = #tpu.dot_dimension_numbers<[1], [0], [0], [1], [0, 0, 1, 1], [], []>} : vector<18x28xf32>, vector<28x168xf32>, vector<18x168xf32> -> vector<18x168xf32>
    %c0_59 = arith.constant 0 : index
    %c0_60 = arith.constant 0 : index
    %74 = vector.load %arg5[%c0_59, %c0_60] : memref<168x108xf32, #tpu.memory_space<vmem>>, vector<168x108xf32>
    %cst_61 = arith.constant dense<0.000000e+00> : vector<18x108xf32>
    %75 = tpu.matmul %73, %74, %cst_61 {dimension_numbers = #tpu.dot_dimension_numbers<[1], [0], [0], [1], [0, 0, 1, 1], [], []>} : vector<18x168xf32>, vector<168x108xf32>, vector<18x108xf32> -> vector<18x108xf32>
    %76 = vector.extract_strided_slice %75 {offsets = [0, 0], sizes = [14, 108], strides = [1, 1]} : vector<18x108xf32> to vector<14x108xf32>
    %c0_62 = arith.constant 0 : index
    %c0_63 = arith.constant 0 : index
    %c0_64 = arith.constant 0 : index
    %77 = vector.load %arg6[%c0_62, %c0_63, %c0_64] : memref<5x108x224xf32, #tpu.memory_space<vmem>>, vector<1x108x224xf32>
    %78 = vector.shape_cast %77 : vector<1x108x224xf32> to vector<108x224xf32>
    %cst_65 = arith.constant dense<0.000000e+00> : vector<14x224xf32>
    %79 = tpu.matmul %76, %78, %cst_65 {dimension_numbers = #tpu.dot_dimension_numbers<[1], [0], [0], [1], [0, 0, 1, 1], [], []>} : vector<14x108xf32>, vector<108x224xf32>, vector<14x224xf32> -> vector<14x224xf32>
    %80 = vector.extract_strided_slice %75 {offsets = [1, 0], sizes = [14, 108], strides = [1, 1]} : vector<18x108xf32> to vector<14x108xf32>
    %c1_66 = arith.constant 1 : index
    %c0_67 = arith.constant 0 : index
    %c0_68 = arith.constant 0 : index
    %81 = vector.load %arg6[%c1_66, %c0_67, %c0_68] : memref<5x108x224xf32, #tpu.memory_space<vmem>>, vector<1x108x224xf32>
    %82 = vector.shape_cast %81 : vector<1x108x224xf32> to vector<108x224xf32>
    %cst_69 = arith.constant dense<0.000000e+00> : vector<14x224xf32>
    %83 = tpu.matmul %80, %82, %cst_69 {dimension_numbers = #tpu.dot_dimension_numbers<[1], [0], [0], [1], [0, 0, 1, 1], [], []>} : vector<14x108xf32>, vector<108x224xf32>, vector<14x224xf32> -> vector<14x224xf32>
    %84 = arith.addf %79, %83 : vector<14x224xf32>
    %85 = vector.extract_strided_slice %75 {offsets = [2, 0], sizes = [14, 108], strides = [1, 1]} : vector<18x108xf32> to vector<14x108xf32>
    %c2_70 = arith.constant 2 : index
    %c0_71 = arith.constant 0 : index
    %c0_72 = arith.constant 0 : index
    %86 = vector.load %arg6[%c2_70, %c0_71, %c0_72] : memref<5x108x224xf32, #tpu.memory_space<vmem>>, vector<1x108x224xf32>
    %87 = vector.shape_cast %86 : vector<1x108x224xf32> to vector<108x224xf32>
    %cst_73 = arith.constant dense<0.000000e+00> : vector<14x224xf32>
    %88 = tpu.matmul %85, %87, %cst_73 {dimension_numbers = #tpu.dot_dimension_numbers<[1], [0], [0], [1], [0, 0, 1, 1], [], []>} : vector<14x108xf32>, vector<108x224xf32>, vector<14x224xf32> -> vector<14x224xf32>
    %89 = arith.addf %84, %88 : vector<14x224xf32>
    %90 = vector.extract_strided_slice %75 {offsets = [3, 0], sizes = [14, 108], strides = [1, 1]} : vector<18x108xf32> to vector<14x108xf32>
    %c3_74 = arith.constant 3 : index
    %c0_75 = arith.constant 0 : index
    %c0_76 = arith.constant 0 : index
    %91 = vector.load %arg6[%c3_74, %c0_75, %c0_76] : memref<5x108x224xf32, #tpu.memory_space<vmem>>, vector<1x108x224xf32>
    %92 = vector.shape_cast %91 : vector<1x108x224xf32> to vector<108x224xf32>
    %cst_77 = arith.constant dense<0.000000e+00> : vector<14x224xf32>
    %93 = tpu.matmul %90, %92, %cst_77 {dimension_numbers = #tpu.dot_dimension_numbers<[1], [0], [0], [1], [0, 0, 1, 1], [], []>} : vector<14x108xf32>, vector<108x224xf32>, vector<14x224xf32> -> vector<14x224xf32>
    %94 = arith.addf %89, %93 : vector<14x224xf32>
    %95 = vector.extract_strided_slice %75 {offsets = [4, 0], sizes = [14, 108], strides = [1, 1]} : vector<18x108xf32> to vector<14x108xf32>
    %c4_78 = arith.constant 4 : index
    %c0_79 = arith.constant 0 : index
    %c0_80 = arith.constant 0 : index
    %96 = vector.load %arg6[%c4_78, %c0_79, %c0_80] : memref<5x108x224xf32, #tpu.memory_space<vmem>>, vector<1x108x224xf32>
    %97 = vector.shape_cast %96 : vector<1x108x224xf32> to vector<108x224xf32>
    %cst_81 = arith.constant dense<0.000000e+00> : vector<14x224xf32>
    %98 = tpu.matmul %95, %97, %cst_81 {dimension_numbers = #tpu.dot_dimension_numbers<[1], [0], [0], [1], [0, 0, 1, 1], [], []>} : vector<14x108xf32>, vector<108x224xf32>, vector<14x224xf32> -> vector<14x224xf32>
    %99 = arith.addf %94, %98 : vector<14x224xf32>
    %c0_82 = arith.constant 0 : index
    %c0_83 = arith.constant 0 : index
    %100 = vector.load %arg7[%c0_82, %c0_83] : memref<1x224xf32, #tpu.memory_space<vmem>>, vector<1x224xf32>
    %101 = vector.broadcast %100 : vector<1x224xf32> to vector<14x224xf32>
    %102 = arith.addf %99, %101 : vector<14x224xf32>
    %cst_84 = arith.constant 5.000000e-01 : f32
    %103 = vector.broadcast %cst_84 : f32 to vector<14x224xf32>
    %104 = arith.mulf %103, %102 : vector<14x224xf32>
    %105 = math.tanh %104 : vector<14x224xf32>
    %cst_85 = arith.constant 1.000000e+00 : f32
    %106 = vector.broadcast %cst_85 : f32 to vector<14x224xf32>
    %107 = arith.addf %105, %106 : vector<14x224xf32>
    %cst_86 = arith.constant 5.000000e-01 : f32
    %108 = vector.broadcast %cst_86 : f32 to vector<14x224xf32>
    %109 = arith.mulf %108, %107 : vector<14x224xf32>
    %c0_87 = arith.constant 0 : index
    %c0_88 = arith.constant 0 : index
    %110 = vector.load %arg8[%c0_87, %c0_88] : memref<7x14xf32, #tpu.memory_space<vmem>>, vector<7x14xf32>
    %cst_89 = arith.constant dense<0.000000e+00> : vector<7x224xf32>
    %111 = tpu.matmul %110, %109, %cst_89 {dimension_numbers = #tpu.dot_dimension_numbers<[1], [0], [0], [1], [0, 0, 1, 1], [], []>} : vector<7x14xf32>, vector<14x224xf32>, vector<7x224xf32> -> vector<7x224xf32>
    %c0_90 = arith.constant 0 : index
    %c0_91 = arith.constant 0 : index
    %112 = vector.load %arg9[%c0_90, %c0_91] : memref<224x112xf32, #tpu.memory_space<vmem>>, vector<224x112xf32>
    %cst_92 = arith.constant dense<0.000000e+00> : vector<7x112xf32>
    %113 = tpu.matmul %111, %112, %cst_92 {dimension_numbers = #tpu.dot_dimension_numbers<[1], [0], [0], [1], [0, 0, 1, 1], [], []>} : vector<7x224xf32>, vector<224x112xf32>, vector<7x112xf32> -> vector<7x112xf32>
    %114 = vector.shape_cast %113 : vector<7x112xf32> to vector<7x1x112xf32>
    %c0_93 = arith.constant 0 : index
    %c1_94 = arith.constant 1 : index
    %c0_95 = arith.constant 0 : index
    %115 = vector.load %arg17[%c0_93, %c1_94, %c0_95] : memref<7x4x112xf32, #tpu.memory_space<vmem>>, vector<7x1x112xf32>
    tpu.vector_store %arg17[%c0_93, %c1_94, %c0_95], %114 {strides = array<i32>} : memref<7x4x112xf32, #tpu.memory_space<vmem>>, vector<7x1x112xf32>,
    %c2_96 = arith.constant 2 : index
    %c0_97 = arith.constant 0 : index
    %c0_98 = arith.constant 0 : index
    %116 = vector.load %arg1[%c2_96, %c0_97, %c0_98] : memref<4x28x160xf32, #tpu.memory_space<vmem>>, vector<1x28x160xf32>
    %117 = vector.shape_cast %116 : vector<1x28x160xf32> to vector<28x160xf32>
    %c0_99 = arith.constant 0 : index
    %c0_100 = arith.constant 0 : index
    %118 = vector.load %arg2[%c0_99, %c0_100] : memref<160x168xf32, #tpu.memory_space<vmem>>, vector<160x168xf32>
    %cst_101 = arith.constant dense<0.000000e+00> : vector<28x168xf32>
    %119 = tpu.matmul %117, %118, %cst_101 {dimension_numbers = #tpu.dot_dimension_numbers<[1], [0], [0], [1], [0, 0, 1, 1], [], []>} : vector<28x160xf32>, vector<160x168xf32>, vector<28x168xf32> -> vector<28x168xf32>
    %c0_102 = arith.constant 0 : index
    %c0_103 = arith.constant 0 : index
    %120 = vector.load %arg3[%c0_102, %c0_103] : memref<1x168xf32, #tpu.memory_space<vmem>>, vector<1x168xf32>
    %121 = vector.broadcast %120 : vector<1x168xf32> to vector<28x168xf32>
    %122 = arith.addf %119, %121 : vector<28x168xf32>
    %cst_104 = arith.constant 5.000000e-01 : f32
    %123 = vector.broadcast %cst_104 : f32 to vector<28x168xf32>
    %124 = arith.mulf %123, %122 : vector<28x168xf32>
    %125 = math.tanh %124 : vector<28x168xf32>
    %cst_105 = arith.constant 1.000000e+00 : f32
    %126 = vector.broadcast %cst_105 : f32 to vector<28x168xf32>
    %127 = arith.addf %125, %126 : vector<28x168xf32>
    %cst_106 = arith.constant 5.000000e-01 : f32
    %128 = vector.broadcast %cst_106 : f32 to vector<28x168xf32>
    %129 = arith.mulf %128, %127 : vector<28x168xf32>
    %c0_107 = arith.constant 0 : index
    %c0_108 = arith.constant 0 : index
    %130 = vector.load %arg4[%c0_107, %c0_108] : memref<18x28xf32, #tpu.memory_space<vmem>>, vector<18x28xf32>
    %cst_109 = arith.constant dense<0.000000e+00> : vector<18x168xf32>
    %131 = tpu.matmul %130, %129, %cst_109 {dimension_numbers = #tpu.dot_dimension_numbers<[1], [0], [0], [1], [0, 0, 1, 1], [], []>} : vector<18x28xf32>, vector<28x168xf32>, vector<18x168xf32> -> vector<18x168xf32>
    %c0_110 = arith.constant 0 : index
    %c0_111 = arith.constant 0 : index
    %132 = vector.load %arg5[%c0_110, %c0_111] : memref<168x108xf32, #tpu.memory_space<vmem>>, vector<168x108xf32>
    %cst_112 = arith.constant dense<0.000000e+00> : vector<18x108xf32>
    %133 = tpu.matmul %131, %132, %cst_112 {dimension_numbers = #tpu.dot_dimension_numbers<[1], [0], [0], [1], [0, 0, 1, 1], [], []>} : vector<18x168xf32>, vector<168x108xf32>, vector<18x108xf32> -> vector<18x108xf32>
    %134 = vector.extract_strided_slice %133 {offsets = [0, 0], sizes = [14, 108], strides = [1, 1]} : vector<18x108xf32> to vector<14x108xf32>
    %c0_113 = arith.constant 0 : index
    %c0_114 = arith.constant 0 : index
    %c0_115 = arith.constant 0 : index
    %135 = vector.load %arg6[%c0_113, %c0_114, %c0_115] : memref<5x108x224xf32, #tpu.memory_space<vmem>>, vector<1x108x224xf32>
    %136 = vector.shape_cast %135 : vector<1x108x224xf32> to vector<108x224xf32>
    %cst_116 = arith.constant dense<0.000000e+00> : vector<14x224xf32>
    %137 = tpu.matmul %134, %136, %cst_116 {dimension_numbers = #tpu.dot_dimension_numbers<[1], [0], [0], [1], [0, 0, 1, 1], [], []>} : vector<14x108xf32>, vector<108x224xf32>, vector<14x224xf32> -> vector<14x224xf32>
    %138 = vector.extract_strided_slice %133 {offsets = [1, 0], sizes = [14, 108], strides = [1, 1]} : vector<18x108xf32> to vector<14x108xf32>
    %c1_117 = arith.constant 1 : index
    %c0_118 = arith.constant 0 : index
    %c0_119 = arith.constant 0 : index
    %139 = vector.load %arg6[%c1_117, %c0_118, %c0_119] : memref<5x108x224xf32, #tpu.memory_space<vmem>>, vector<1x108x224xf32>
    %140 = vector.shape_cast %139 : vector<1x108x224xf32> to vector<108x224xf32>
    %cst_120 = arith.constant dense<0.000000e+00> : vector<14x224xf32>
    %141 = tpu.matmul %138, %140, %cst_120 {dimension_numbers = #tpu.dot_dimension_numbers<[1], [0], [0], [1], [0, 0, 1, 1], [], []>} : vector<14x108xf32>, vector<108x224xf32>, vector<14x224xf32> -> vector<14x224xf32>
    %142 = arith.addf %137, %141 : vector<14x224xf32>
    %143 = vector.extract_strided_slice %133 {offsets = [2, 0], sizes = [14, 108], strides = [1, 1]} : vector<18x108xf32> to vector<14x108xf32>
    %c2_121 = arith.constant 2 : index
    %c0_122 = arith.constant 0 : index
    %c0_123 = arith.constant 0 : index
    %144 = vector.load %arg6[%c2_121, %c0_122, %c0_123] : memref<5x108x224xf32, #tpu.memory_space<vmem>>, vector<1x108x224xf32>
    %145 = vector.shape_cast %144 : vector<1x108x224xf32> to vector<108x224xf32>
    %cst_124 = arith.constant dense<0.000000e+00> : vector<14x224xf32>
    %146 = tpu.matmul %143, %145, %cst_124 {dimension_numbers = #tpu.dot_dimension_numbers<[1], [0], [0], [1], [0, 0, 1, 1], [], []>} : vector<14x108xf32>, vector<108x224xf32>, vector<14x224xf32> -> vector<14x224xf32>
    %147 = arith.addf %142, %146 : vector<14x224xf32>
    %148 = vector.extract_strided_slice %133 {offsets = [3, 0], sizes = [14, 108], strides = [1, 1]} : vector<18x108xf32> to vector<14x108xf32>
    %c3_125 = arith.constant 3 : index
    %c0_126 = arith.constant 0 : index
    %c0_127 = arith.constant 0 : index
    %149 = vector.load %arg6[%c3_125, %c0_126, %c0_127] : memref<5x108x224xf32, #tpu.memory_space<vmem>>, vector<1x108x224xf32>
    %150 = vector.shape_cast %149 : vector<1x108x224xf32> to vector<108x224xf32>
    %cst_128 = arith.constant dense<0.000000e+00> : vector<14x224xf32>
    %151 = tpu.matmul %148, %150, %cst_128 {dimension_numbers = #tpu.dot_dimension_numbers<[1], [0], [0], [1], [0, 0, 1, 1], [], []>} : vector<14x108xf32>, vector<108x224xf32>, vector<14x224xf32> -> vector<14x224xf32>
    %152 = arith.addf %147, %151 : vector<14x224xf32>
    %153 = vector.extract_strided_slice %133 {offsets = [4, 0], sizes = [14, 108], strides = [1, 1]} : vector<18x108xf32> to vector<14x108xf32>
    %c4_129 = arith.constant 4 : index
    %c0_130 = arith.constant 0 : index
    %c0_131 = arith.constant 0 : index
    %154 = vector.load %arg6[%c4_129, %c0_130, %c0_131] : memref<5x108x224xf32, #tpu.memory_space<vmem>>, vector<1x108x224xf32>
    %155 = vector.shape_cast %154 : vector<1x108x224xf32> to vector<108x224xf32>
    %cst_132 = arith.constant dense<0.000000e+00> : vector<14x224xf32>
    %156 = tpu.matmul %153, %155, %cst_132 {dimension_numbers = #tpu.dot_dimension_numbers<[1], [0], [0], [1], [0, 0, 1, 1], [], []>} : vector<14x108xf32>, vector<108x224xf32>, vector<14x224xf32> -> vector<14x224xf32>
    %157 = arith.addf %152, %156 : vector<14x224xf32>
    %c0_133 = arith.constant 0 : index
    %c0_134 = arith.constant 0 : index
    %158 = vector.load %arg7[%c0_133, %c0_134] : memref<1x224xf32, #tpu.memory_space<vmem>>, vector<1x224xf32>
    %159 = vector.broadcast %158 : vector<1x224xf32> to vector<14x224xf32>
    %160 = arith.addf %157, %159 : vector<14x224xf32>
    %cst_135 = arith.constant 5.000000e-01 : f32
    %161 = vector.broadcast %cst_135 : f32 to vector<14x224xf32>
    %162 = arith.mulf %161, %160 : vector<14x224xf32>
    %163 = math.tanh %162 : vector<14x224xf32>
    %cst_136 = arith.constant 1.000000e+00 : f32
    %164 = vector.broadcast %cst_136 : f32 to vector<14x224xf32>
    %165 = arith.addf %163, %164 : vector<14x224xf32>
    %cst_137 = arith.constant 5.000000e-01 : f32
    %166 = vector.broadcast %cst_137 : f32 to vector<14x224xf32>
    %167 = arith.mulf %166, %165 : vector<14x224xf32>
    %c0_138 = arith.constant 0 : index
    %c0_139 = arith.constant 0 : index
    %168 = vector.load %arg8[%c0_138, %c0_139] : memref<7x14xf32, #tpu.memory_space<vmem>>, vector<7x14xf32>
    %cst_140 = arith.constant dense<0.000000e+00> : vector<7x224xf32>
    %169 = tpu.matmul %168, %167, %cst_140 {dimension_numbers = #tpu.dot_dimension_numbers<[1], [0], [0], [1], [0, 0, 1, 1], [], []>} : vector<7x14xf32>, vector<14x224xf32>, vector<7x224xf32> -> vector<7x224xf32>
    %c0_141 = arith.constant 0 : index
    %c0_142 = arith.constant 0 : index
    %170 = vector.load %arg9[%c0_141, %c0_142] : memref<224x112xf32, #tpu.memory_space<vmem>>, vector<224x112xf32>
    %cst_143 = arith.constant dense<0.000000e+00> : vector<7x112xf32>
    %171 = tpu.matmul %169, %170, %cst_143 {dimension_numbers = #tpu.dot_dimension_numbers<[1], [0], [0], [1], [0, 0, 1, 1], [], []>} : vector<7x224xf32>, vector<224x112xf32>, vector<7x112xf32> -> vector<7x112xf32>
    %172 = vector.shape_cast %171 : vector<7x112xf32> to vector<7x1x112xf32>
    %c0_144 = arith.constant 0 : index
    %c2_145 = arith.constant 2 : index
    %c0_146 = arith.constant 0 : index
    %173 = vector.load %arg17[%c0_144, %c2_145, %c0_146] : memref<7x4x112xf32, #tpu.memory_space<vmem>>, vector<7x1x112xf32>
    tpu.vector_store %arg17[%c0_144, %c2_145, %c0_146], %172 {strides = array<i32>} : memref<7x4x112xf32, #tpu.memory_space<vmem>>, vector<7x1x112xf32>,
    %c3_147 = arith.constant 3 : index
    %c0_148 = arith.constant 0 : index
    %c0_149 = arith.constant 0 : index
    %174 = vector.load %arg1[%c3_147, %c0_148, %c0_149] : memref<4x28x160xf32, #tpu.memory_space<vmem>>, vector<1x28x160xf32>
    %175 = vector.shape_cast %174 : vector<1x28x160xf32> to vector<28x160xf32>
    %c0_150 = arith.constant 0 : index
    %c0_151 = arith.constant 0 : index
    %176 = vector.load %arg2[%c0_150, %c0_151] : memref<160x168xf32, #tpu.memory_space<vmem>>, vector<160x168xf32>
    %cst_152 = arith.constant dense<0.000000e+00> : vector<28x168xf32>
    %177 = tpu.matmul %175, %176, %cst_152 {dimension_numbers = #tpu.dot_dimension_numbers<[1], [0], [0], [1], [0, 0, 1, 1], [], []>} : vector<28x160xf32>, vector<160x168xf32>, vector<28x168xf32> -> vector<28x168xf32>
    %c0_153 = arith.constant 0 : index
    %c0_154 = arith.constant 0 : index
    %178 = vector.load %arg3[%c0_153, %c0_154] : memref<1x168xf32, #tpu.memory_space<vmem>>, vector<1x168xf32>
    %179 = vector.broadcast %178 : vector<1x168xf32> to vector<28x168xf32>
    %180 = arith.addf %177, %179 : vector<28x168xf32>
    %cst_155 = arith.constant 5.000000e-01 : f32
    %181 = vector.broadcast %cst_155 : f32 to vector<28x168xf32>
    %182 = arith.mulf %181, %180 : vector<28x168xf32>
    %183 = math.tanh %182 : vector<28x168xf32>
    %cst_156 = arith.constant 1.000000e+00 : f32
    %184 = vector.broadcast %cst_156 : f32 to vector<28x168xf32>
    %185 = arith.addf %183, %184 : vector<28x168xf32>
    %cst_157 = arith.constant 5.000000e-01 : f32
    %186 = vector.broadcast %cst_157 : f32 to vector<28x168xf32>
    %187 = arith.mulf %186, %185 : vector<28x168xf32>
    %c0_158 = arith.constant 0 : index
    %c0_159 = arith.constant 0 : index
    %188 = vector.load %arg4[%c0_158, %c0_159] : memref<18x28xf32, #tpu.memory_space<vmem>>, vector<18x28xf32>
    %cst_160 = arith.constant dense<0.000000e+00> : vector<18x168xf32>
    %189 = tpu.matmul %188, %187, %cst_160 {dimension_numbers = #tpu.dot_dimension_numbers<[1], [0], [0], [1], [0, 0, 1, 1], [], []>} : vector<18x28xf32>, vector<28x168xf32>, vector<18x168xf32> -> vector<18x168xf32>
    %c0_161 = arith.constant 0 : index
    %c0_162 = arith.constant 0 : index
    %190 = vector.load %arg5[%c0_161, %c0_162] : memref<168x108xf32, #tpu.memory_space<vmem>>, vector<168x108xf32>
    %cst_163 = arith.constant dense<0.000000e+00> : vector<18x108xf32>
    %191 = tpu.matmul %189, %190, %cst_163 {dimension_numbers = #tpu.dot_dimension_numbers<[1], [0], [0], [1], [0, 0, 1, 1], [], []>} : vector<18x168xf32>, vector<168x108xf32>, vector<18x108xf32> -> vector<18x108xf32>
    %192 = vector.extract_strided_slice %191 {offsets = [0, 0], sizes = [14, 108], strides = [1, 1]} : vector<18x108xf32> to vector<14x108xf32>
    %c0_164 = arith.constant 0 : index
    %c0_165 = arith.constant 0 : index
    %c0_166 = arith.constant 0 : index
    %193 = vector.load %arg6[%c0_164, %c0_165, %c0_166] : memref<5x108x224xf32, #tpu.memory_space<vmem>>, vector<1x108x224xf32>
    %194 = vector.shape_cast %193 : vector<1x108x224xf32> to vector<108x224xf32>
    %cst_167 = arith.constant dense<0.000000e+00> : vector<14x224xf32>
    %195 = tpu.matmul %192, %194, %cst_167 {dimension_numbers = #tpu.dot_dimension_numbers<[1], [0], [0], [1], [0, 0, 1, 1], [], []>} : vector<14x108xf32>, vector<108x224xf32>, vector<14x224xf32> -> vector<14x224xf32>
    %196 = vector.extract_strided_slice %191 {offsets = [1, 0], sizes = [14, 108], strides = [1, 1]} : vector<18x108xf32> to vector<14x108xf32>
    %c1_168 = arith.constant 1 : index
    %c0_169 = arith.constant 0 : index
    %c0_170 = arith.constant 0 : index
    %197 = vector.load %arg6[%c1_168, %c0_169, %c0_170] : memref<5x108x224xf32, #tpu.memory_space<vmem>>, vector<1x108x224xf32>
    %198 = vector.shape_cast %197 : vector<1x108x224xf32> to vector<108x224xf32>
    %cst_171 = arith.constant dense<0.000000e+00> : vector<14x224xf32>
    %199 = tpu.matmul %196, %198, %cst_171 {dimension_numbers = #tpu.dot_dimension_numbers<[1], [0], [0], [1], [0, 0, 1, 1], [], []>} : vector<14x108xf32>, vector<108x224xf32>, vector<14x224xf32> -> vector<14x224xf32>
    %200 = arith.addf %195, %199 : vector<14x224xf32>
    %201 = vector.extract_strided_slice %191 {offsets = [2, 0], sizes = [14, 108], strides = [1, 1]} : vector<18x108xf32> to vector<14x108xf32>
    %c2_172 = arith.constant 2 : index
    %c0_173 = arith.constant 0 : index
    %c0_174 = arith.constant 0 : index
    %202 = vector.load %arg6[%c2_172, %c0_173, %c0_174] : memref<5x108x224xf32, #tpu.memory_space<vmem>>, vector<1x108x224xf32>
    %203 = vector.shape_cast %202 : vector<1x108x224xf32> to vector<108x224xf32>
    %cst_175 = arith.constant dense<0.000000e+00> : vector<14x224xf32>
    %204 = tpu.matmul %201, %203, %cst_175 {dimension_numbers = #tpu.dot_dimension_numbers<[1], [0], [0], [1], [0, 0, 1, 1], [], []>} : vector<14x108xf32>, vector<108x224xf32>, vector<14x224xf32> -> vector<14x224xf32>
    %205 = arith.addf %200, %204 : vector<14x224xf32>
    %206 = vector.extract_strided_slice %191 {offsets = [3, 0], sizes = [14, 108], strides = [1, 1]} : vector<18x108xf32> to vector<14x108xf32>
    %c3_176 = arith.constant 3 : index
    %c0_177 = arith.constant 0 : index
    %c0_178 = arith.constant 0 : index
    %207 = vector.load %arg6[%c3_176, %c0_177, %c0_178] : memref<5x108x224xf32, #tpu.memory_space<vmem>>, vector<1x108x224xf32>
    %208 = vector.shape_cast %207 : vector<1x108x224xf32> to vector<108x224xf32>
    %cst_179 = arith.constant dense<0.000000e+00> : vector<14x224xf32>
    %209 = tpu.matmul %206, %208, %cst_179 {dimension_numbers = #tpu.dot_dimension_numbers<[1], [0], [0], [1], [0, 0, 1, 1], [], []>} : vector<14x108xf32>, vector<108x224xf32>, vector<14x224xf32> -> vector<14x224xf32>
    %210 = arith.addf %205, %209 : vector<14x224xf32>
    %211 = vector.extract_strided_slice %191 {offsets = [4, 0], sizes = [14, 108], strides = [1, 1]} : vector<18x108xf32> to vector<14x108xf32>
    %c4_180 = arith.constant 4 : index
    %c0_181 = arith.constant 0 : index
    %c0_182 = arith.constant 0 : index
    %212 = vector.load %arg6[%c4_180, %c0_181, %c0_182] : memref<5x108x224xf32, #tpu.memory_space<vmem>>, vector<1x108x224xf32>
    %213 = vector.shape_cast %212 : vector<1x108x224xf32> to vector<108x224xf32>
    %cst_183 = arith.constant dense<0.000000e+00> : vector<14x224xf32>
    %214 = tpu.matmul %211, %213, %cst_183 {dimension_numbers = #tpu.dot_dimension_numbers<[1], [0], [0], [1], [0, 0, 1, 1], [], []>} : vector<14x108xf32>, vector<108x224xf32>, vector<14x224xf32> -> vector<14x224xf32>
    %215 = arith.addf %210, %214 : vector<14x224xf32>
    %c0_184 = arith.constant 0 : index
    %c0_185 = arith.constant 0 : index
    %216 = vector.load %arg7[%c0_184, %c0_185] : memref<1x224xf32, #tpu.memory_space<vmem>>, vector<1x224xf32>
    %217 = vector.broadcast %216 : vector<1x224xf32> to vector<14x224xf32>
    %218 = arith.addf %215, %217 : vector<14x224xf32>
    %cst_186 = arith.constant 5.000000e-01 : f32
    %219 = vector.broadcast %cst_186 : f32 to vector<14x224xf32>
    %220 = arith.mulf %219, %218 : vector<14x224xf32>
    %221 = math.tanh %220 : vector<14x224xf32>
    %cst_187 = arith.constant 1.000000e+00 : f32
    %222 = vector.broadcast %cst_187 : f32 to vector<14x224xf32>
    %223 = arith.addf %221, %222 : vector<14x224xf32>
    %cst_188 = arith.constant 5.000000e-01 : f32
    %224 = vector.broadcast %cst_188 : f32 to vector<14x224xf32>
    %225 = arith.mulf %224, %223 : vector<14x224xf32>
    %c0_189 = arith.constant 0 : index
    %c0_190 = arith.constant 0 : index
    %226 = vector.load %arg8[%c0_189, %c0_190] : memref<7x14xf32, #tpu.memory_space<vmem>>, vector<7x14xf32>
    %cst_191 = arith.constant dense<0.000000e+00> : vector<7x224xf32>
    %227 = tpu.matmul %226, %225, %cst_191 {dimension_numbers = #tpu.dot_dimension_numbers<[1], [0], [0], [1], [0, 0, 1, 1], [], []>} : vector<7x14xf32>, vector<14x224xf32>, vector<7x224xf32> -> vector<7x224xf32>
    %c0_192 = arith.constant 0 : index
    %c0_193 = arith.constant 0 : index
    %228 = vector.load %arg9[%c0_192, %c0_193] : memref<224x112xf32, #tpu.memory_space<vmem>>, vector<224x112xf32>
    %cst_194 = arith.constant dense<0.000000e+00> : vector<7x112xf32>
    %229 = tpu.matmul %227, %228, %cst_194 {dimension_numbers = #tpu.dot_dimension_numbers<[1], [0], [0], [1], [0, 0, 1, 1], [], []>} : vector<7x224xf32>, vector<224x112xf32>, vector<7x112xf32> -> vector<7x112xf32>
    %230 = vector.shape_cast %229 : vector<7x112xf32> to vector<7x1x112xf32>
    %c0_195 = arith.constant 0 : index
    %c3_196 = arith.constant 3 : index
    %c0_197 = arith.constant 0 : index
    %231 = vector.load %arg17[%c0_195, %c3_196, %c0_197] : memref<7x4x112xf32, #tpu.memory_space<vmem>>, vector<7x1x112xf32>
    tpu.vector_store %arg17[%c0_195, %c3_196, %c0_197], %230 {strides = array<i32>} : memref<7x4x112xf32, #tpu.memory_space<vmem>>, vector<7x1x112xf32>,
    %c0_198 = arith.constant 0 : index
    %c0_199 = arith.constant 0 : index
    %c0_200 = arith.constant 0 : index
    %232 = vector.load %arg17[%c0_198, %c0_199, %c0_200] : memref<7x4x112xf32, #tpu.memory_space<vmem>>, vector<1x4x112xf32>
    %233 = vector.shape_cast %232 : vector<1x4x112xf32> to vector<4x112xf32>
    %c0_201 = arith.constant 0 : index
    %c0_202 = arith.constant 0 : index
    %c0_203 = arith.constant 0 : index
    %234 = vector.load %arg10[%c0_201, %c0_202, %c0_203] : memref<7x112x120xf32, #tpu.memory_space<vmem>>, vector<1x112x120xf32>
    %235 = vector.shape_cast %234 : vector<1x112x120xf32> to vector<112x120xf32>
    %cst_204 = arith.constant dense<0.000000e+00> : vector<4x120xf32>
    %236 = tpu.matmul %233, %235, %cst_204 {dimension_numbers = #tpu.dot_dimension_numbers<[1], [0], [0], [1], [0, 0, 1, 1], [], []>} : vector<4x112xf32>, vector<112x120xf32>, vector<4x120xf32> -> vector<4x120xf32>
    %c1_205 = arith.constant 1 : index
    %c0_206 = arith.constant 0 : index
    %c0_207 = arith.constant 0 : index
    %237 = vector.load %arg17[%c1_205, %c0_206, %c0_207] : memref<7x4x112xf32, #tpu.memory_space<vmem>>, vector<1x4x112xf32>
    %238 = vector.shape_cast %237 : vector<1x4x112xf32> to vector<4x112xf32>
    %c1_208 = arith.constant 1 : index
    %c0_209 = arith.constant 0 : index
    %c0_210 = arith.constant 0 : index
    %239 = vector.load %arg10[%c1_208, %c0_209, %c0_210] : memref<7x112x120xf32, #tpu.memory_space<vmem>>, vector<1x112x120xf32>
    %240 = vector.shape_cast %239 : vector<1x112x120xf32> to vector<112x120xf32>
    %cst_211 = arith.constant dense<0.000000e+00> : vector<4x120xf32>
    %241 = tpu.matmul %238, %240, %cst_211 {dimension_numbers = #tpu.dot_dimension_numbers<[1], [0], [0], [1], [0, 0, 1, 1], [], []>} : vector<4x112xf32>, vector<112x120xf32>, vector<4x120xf32> -> vector<4x120xf32>
    %242 = arith.addf %236, %241 : vector<4x120xf32>
    %c2_212 = arith.constant 2 : index
    %c0_213 = arith.constant 0 : index
    %c0_214 = arith.constant 0 : index
    %243 = vector.load %arg17[%c2_212, %c0_213, %c0_214] : memref<7x4x112xf32, #tpu.memory_space<vmem>>, vector<1x4x112xf32>
    %244 = vector.shape_cast %243 : vector<1x4x112xf32> to vector<4x112xf32>
    %c2_215 = arith.constant 2 : index
    %c0_216 = arith.constant 0 : index
    %c0_217 = arith.constant 0 : index
    %245 = vector.load %arg10[%c2_215, %c0_216, %c0_217] : memref<7x112x120xf32, #tpu.memory_space<vmem>>, vector<1x112x120xf32>
    %246 = vector.shape_cast %245 : vector<1x112x120xf32> to vector<112x120xf32>
    %cst_218 = arith.constant dense<0.000000e+00> : vector<4x120xf32>
    %247 = tpu.matmul %244, %246, %cst_218 {dimension_numbers = #tpu.dot_dimension_numbers<[1], [0], [0], [1], [0, 0, 1, 1], [], []>} : vector<4x112xf32>, vector<112x120xf32>, vector<4x120xf32> -> vector<4x120xf32>
    %248 = arith.addf %242, %247 : vector<4x120xf32>
    %c3_219 = arith.constant 3 : index
    %c0_220 = arith.constant 0 : index
    %c0_221 = arith.constant 0 : index
    %249 = vector.load %arg17[%c3_219, %c0_220, %c0_221] : memref<7x4x112xf32, #tpu.memory_space<vmem>>, vector<1x4x112xf32>
    %250 = vector.shape_cast %249 : vector<1x4x112xf32> to vector<4x112xf32>
    %c3_222 = arith.constant 3 : index
    %c0_223 = arith.constant 0 : index
    %c0_224 = arith.constant 0 : index
    %251 = vector.load %arg10[%c3_222, %c0_223, %c0_224] : memref<7x112x120xf32, #tpu.memory_space<vmem>>, vector<1x112x120xf32>
    %252 = vector.shape_cast %251 : vector<1x112x120xf32> to vector<112x120xf32>
    %cst_225 = arith.constant dense<0.000000e+00> : vector<4x120xf32>
    %253 = tpu.matmul %250, %252, %cst_225 {dimension_numbers = #tpu.dot_dimension_numbers<[1], [0], [0], [1], [0, 0, 1, 1], [], []>} : vector<4x112xf32>, vector<112x120xf32>, vector<4x120xf32> -> vector<4x120xf32>
    %254 = arith.addf %248, %253 : vector<4x120xf32>
    %c4_226 = arith.constant 4 : index
    %c0_227 = arith.constant 0 : index
    %c0_228 = arith.constant 0 : index
    %255 = vector.load %arg17[%c4_226, %c0_227, %c0_228] : memref<7x4x112xf32, #tpu.memory_space<vmem>>, vector<1x4x112xf32>
    %256 = vector.shape_cast %255 : vector<1x4x112xf32> to vector<4x112xf32>
    %c4_229 = arith.constant 4 : index
    %c0_230 = arith.constant 0 : index
    %c0_231 = arith.constant 0 : index
    %257 = vector.load %arg10[%c4_229, %c0_230, %c0_231] : memref<7x112x120xf32, #tpu.memory_space<vmem>>, vector<1x112x120xf32>
    %258 = vector.shape_cast %257 : vector<1x112x120xf32> to vector<112x120xf32>
    %cst_232 = arith.constant dense<0.000000e+00> : vector<4x120xf32>
    %259 = tpu.matmul %256, %258, %cst_232 {dimension_numbers = #tpu.dot_dimension_numbers<[1], [0], [0], [1], [0, 0, 1, 1], [], []>} : vector<4x112xf32>, vector<112x120xf32>, vector<4x120xf32> -> vector<4x120xf32>
    %260 = arith.addf %254, %259 : vector<4x120xf32>
    %c5 = arith.constant 5 : index
    %c0_233 = arith.constant 0 : index
    %c0_234 = arith.constant 0 : index
    %261 = vector.load %arg17[%c5, %c0_233, %c0_234] : memref<7x4x112xf32, #tpu.memory_space<vmem>>, vector<1x4x112xf32>
    %262 = vector.shape_cast %261 : vector<1x4x112xf32> to vector<4x112xf32>
    %c5_235 = arith.constant 5 : index
    %c0_236 = arith.constant 0 : index
    %c0_237 = arith.constant 0 : index
    %263 = vector.load %arg10[%c5_235, %c0_236, %c0_237] : memref<7x112x120xf32, #tpu.memory_space<vmem>>, vector<1x112x120xf32>
    %264 = vector.shape_cast %263 : vector<1x112x120xf32> to vector<112x120xf32>
    %cst_238 = arith.constant dense<0.000000e+00> : vector<4x120xf32>
    %265 = tpu.matmul %262, %264, %cst_238 {dimension_numbers = #tpu.dot_dimension_numbers<[1], [0], [0], [1], [0, 0, 1, 1], [], []>} : vector<4x112xf32>, vector<112x120xf32>, vector<4x120xf32> -> vector<4x120xf32>
    %266 = arith.addf %260, %265 : vector<4x120xf32>
    %c6 = arith.constant 6 : index
    %c0_239 = arith.constant 0 : index
    %c0_240 = arith.constant 0 : index
    %267 = vector.load %arg17[%c6, %c0_239, %c0_240] : memref<7x4x112xf32, #tpu.memory_space<vmem>>, vector<1x4x112xf32>
    %268 = vector.shape_cast %267 : vector<1x4x112xf32> to vector<4x112xf32>
    %c6_241 = arith.constant 6 : index
    %c0_242 = arith.constant 0 : index
    %c0_243 = arith.constant 0 : index
    %269 = vector.load %arg10[%c6_241, %c0_242, %c0_243] : memref<7x112x120xf32, #tpu.memory_space<vmem>>, vector<1x112x120xf32>
    %270 = vector.shape_cast %269 : vector<1x112x120xf32> to vector<112x120xf32>
    %cst_244 = arith.constant dense<0.000000e+00> : vector<4x120xf32>
    %271 = tpu.matmul %268, %270, %cst_244 {dimension_numbers = #tpu.dot_dimension_numbers<[1], [0], [0], [1], [0, 0, 1, 1], [], []>} : vector<4x112xf32>, vector<112x120xf32>, vector<4x120xf32> -> vector<4x120xf32>
    %272 = arith.addf %266, %271 : vector<4x120xf32>
    %c0_245 = arith.constant 0 : index
    %c0_246 = arith.constant 0 : index
    %273 = vector.load %arg11[%c0_245, %c0_246] : memref<1x120xf32, #tpu.memory_space<vmem>>, vector<1x120xf32>
    %274 = vector.broadcast %273 : vector<1x120xf32> to vector<4x120xf32>
    %275 = arith.addf %272, %274 : vector<4x120xf32>
    %cst_247 = arith.constant 5.000000e-01 : f32
    %276 = vector.broadcast %cst_247 : f32 to vector<4x120xf32>
    %277 = arith.mulf %276, %275 : vector<4x120xf32>
    %278 = math.tanh %277 : vector<4x120xf32>
    %cst_248 = arith.constant 1.000000e+00 : f32
    %279 = vector.broadcast %cst_248 : f32 to vector<4x120xf32>
    %280 = arith.addf %278, %279 : vector<4x120xf32>
    %cst_249 = arith.constant 5.000000e-01 : f32
    %281 = vector.broadcast %cst_249 : f32 to vector<4x120xf32>
    %282 = arith.mulf %281, %280 : vector<4x120xf32>
    %c0_250 = arith.constant 0 : index
    %c0_251 = arith.constant 0 : index
    %283 = vector.load %arg12[%c0_250, %c0_251] : memref<120x84xf32, #tpu.memory_space<vmem>>, vector<120x84xf32>
    %cst_252 = arith.constant dense<0.000000e+00> : vector<4x84xf32>
    %284 = tpu.matmul %282, %283, %cst_252 {dimension_numbers = #tpu.dot_dimension_numbers<[1], [0], [0], [1], [0, 0, 1, 1], [], []>} : vector<4x120xf32>, vector<120x84xf32>, vector<4x84xf32> -> vector<4x84xf32>
    %c0_253 = arith.constant 0 : index
    %c0_254 = arith.constant 0 : index
    %285 = vector.load %arg13[%c0_253, %c0_254] : memref<1x84xf32, #tpu.memory_space<vmem>>, vector<1x84xf32>
    %286 = vector.broadcast %285 : vector<1x84xf32> to vector<4x84xf32>
    %287 = arith.addf %284, %286 : vector<4x84xf32>
    %cst_255 = arith.constant 5.000000e-01 : f32
    %288 = vector.broadcast %cst_255 : f32 to vector<4x84xf32>
    %289 = arith.mulf %288, %287 : vector<4x84xf32>
    %290 = math.tanh %289 : vector<4x84xf32>
    %cst_256 = arith.constant 1.000000e+00 : f32
    %291 = vector.broadcast %cst_256 : f32 to vector<4x84xf32>
    %292 = arith.addf %290, %291 : vector<4x84xf32>
    %cst_257 = arith.constant 5.000000e-01 : f32
    %293 = vector.broadcast %cst_257 : f32 to vector<4x84xf32>
    %294 = arith.mulf %293, %292 : vector<4x84xf32>
    %c0_258 = arith.constant 0 : index
    %c0_259 = arith.constant 0 : index
    %295 = vector.load %arg14[%c0_258, %c0_259] : memref<84x128xf32, #tpu.memory_space<vmem>>, vector<84x128xf32>
    %cst_260 = arith.constant dense<0.000000e+00> : vector<4x128xf32>
    %296 = tpu.matmul %294, %295, %cst_260 {dimension_numbers = #tpu.dot_dimension_numbers<[1], [0], [0], [1], [0, 0, 1, 1], [], []>} : vector<4x84xf32>, vector<84x128xf32>, vector<4x128xf32> -> vector<4x128xf32>
    %c0_261 = arith.constant 0 : index
    %c0_262 = arith.constant 0 : index
    %297 = vector.load %arg15[%c0_261, %c0_262] : memref<1x128xf32, #tpu.memory_space<vmem>>, vector<1x128xf32>
    %298 = vector.broadcast %297 : vector<1x128xf32> to vector<4x128xf32>
    %299 = arith.addf %296, %298 : vector<4x128xf32>
    %c0_263 = arith.constant 0 : index
    %c0_264 = arith.constant 0 : index
    %c0_265 = arith.constant 0 : index
    %300 = vector.load %arg16[%c0_263, %c0_264, %c0_265] : memref<1x4x128xf32, #tpu.memory_space<vmem>>, vector<1x4x128xf32>
    %301 = vector.shape_cast %300 : vector<1x4x128xf32> to vector<4x128xf32>
    %302 = vector.shape_cast %299 : vector<4x128xf32> to vector<1x4x128xf32>
    tpu.vector_store %arg16[%c0_263, %c0_264, %c0_265], %302 {strides = array<i32>} : memref<1x4x128xf32, #tpu.memory_space<vmem>>, vector<1x4x128xf32>,
    return
  }
  func.func @transform_0(%arg0: i32) -> (i32, i32, i32) {
    %c0_i32 = arith.constant 0 : i32
    %c0_i32_0 = arith.constant 0 : i32
    %c0_i32_1 = arith.constant 0 : i32
    return %arg0, %c0_i32, %c0_i32_0 : i32, i32, i32
  }
  func.func @transform_1(%arg0: i32) -> (i32, i32) {
    %c0_i32 = arith.constant 0 : i32
    %c0_i32_0 = arith.constant 0 : i32
    %c0_i32_1 = arith.constant 0 : i32
    return %c0_i32, %c0_i32_0 : i32, i32
  }
  func.func @transform_2(%arg0: i32) -> (i32, i32) {
    %c0_i32 = arith.constant 0 : i32
    %c0_i32_0 = arith.constant 0 : i32
    %c0_i32_1 = arith.constant 0 : i32
    return %c0_i32, %c0_i32_0 : i32, i32
  }
  func.func @transform_3(%arg0: i32) -> (i32, i32) {
    %c0_i32 = arith.constant 0 : i32
    %c0_i32_0 = arith.constant 0 : i32
    %c0_i32_1 = arith.constant 0 : i32
    return %c0_i32, %c0_i32_0 : i32, i32
  }
  func.func @transform_4(%arg0: i32) -> (i32, i32) {
    %c0_i32 = arith.constant 0 : i32
    %c0_i32_0 = arith.constant 0 : i32
    %c0_i32_1 = arith.constant 0 : i32
    return %c0_i32, %c0_i32_0 : i32, i32
  }
  func.func @transform_5(%arg0: i32) -> (i32, i32, i32) {
    %c0_i32 = arith.constant 0 : i32
    %c0_i32_0 = arith.constant 0 : i32
    %c0_i32_1 = arith.constant 0 : i32
    %c0_i32_2 = arith.constant 0 : i32
    return %c0_i32, %c0_i32_0, %c0_i32_1 : i32, i32, i32
  }
  func.func @transform_6(%arg0: i32) -> (i32, i32) {
    %c0_i32 = arith.constant 0 : i32
    %c0_i32_0 = arith.constant 0 : i32
    %c0_i32_1 = arith.constant 0 : i32
    return %c0_i32, %c0_i32_0 : i32, i32
  }
  func.func @transform_7(%arg0: i32) -> (i32, i32) {
    %c0_i32 = arith.constant 0 : i32
    %c0_i32_0 = arith.constant 0 : i32
    %c0_i32_1 = arith.constant 0 : i32
    return %c0_i32, %c0_i32_0 : i32, i32
  }
  func.func @transform_8(%arg0: i32) -> (i32, i32) {
    %c0_i32 = arith.constant 0 : i32
    %c0_i32_0 = arith.constant 0 : i32
    %c0_i32_1 = arith.constant 0 : i32
    return %c0_i32, %c0_i32_0 : i32, i32
  }
  func.func @transform_9(%arg0: i32) -> (i32, i32, i32) {
    %c0_i32 = arith.constant 0 : i32
    %c0_i32_0 = arith.constant 0 : i32
    %c0_i32_1 = arith.constant 0 : i32
    %c0_i32_2 = arith.constant 0 : i32
    return %c0_i32, %c0_i32_0, %c0_i32_1 : i32, i32, i32
  }
  func.func @transform_10(%arg0: i32) -> (i32, i32) {
    %c0_i32 = arith.constant 0 : i32
    %c0_i32_0 = arith.constant 0 : i32
    %c0_i32_1 = arith.constant 0 : i32
    return %c0_i32, %c0_i32_0 : i32, i32
  }
  func.func @transform_11(%arg0: i32) -> (i32, i32) {
    %c0_i32 = arith.constant 0 : i32
    %c0_i32_0 = arith.constant 0 : i32
    %c0_i32_1 = arith.constant 0 : i32
    return %c0_i32, %c0_i32_0 : i32, i32
  }
  func.func @transform_12(%arg0: i32) -> (i32, i32) {
    %c0_i32 = arith.constant 0 : i32
    %c0_i32_0 = arith.constant 0 : i32
    %c0_i32_1 = arith.constant 0 : i32
    return %c0_i32, %c0_i32_0 : i32, i32
  }
  func.func @transform_13(%arg0: i32) -> (i32, i32) {
    %c0_i32 = arith.constant 0 : i32
    %c0_i32_0 = arith.constant 0 : i32
    %c0_i32_1 = arith.constant 0 : i32
    return %c0_i32, %c0_i32_0 : i32, i32
  }
  func.func @transform_14(%arg0: i32) -> (i32, i32) {
    %c0_i32 = arith.constant 0 : i32
    %c0_i32_0 = arith.constant 0 : i32
    %c0_i32_1 = arith.constant 0 : i32
    return %c0_i32, %c0_i32_0 : i32, i32
  }
  func.func @transform_15(%arg0: i32) -> (i32, i32, i32) {
    %c0_i32 = arith.constant 0 : i32
    %c0_i32_0 = arith.constant 0 : i32
    %c0_i32_1 = arith.constant 0 : i32
    return %arg0, %c0_i32, %c0_i32_0 : i32, i32, i32
  }
}

</mosaic_0001>

<llo_original>
// kernel: tile.13
$region0: #{tile.13}
  #allocation0 [shape = 's32[1]{0}', space=sflag, size = 0x4, scoped, tag = 'scoped memory for tile.13']
  %s0 = inlined_call_operand.vmem [shape: f32[6], index: 0, kind: input, shape index: {}]
  %s1 = inlined_call_operand.vmem [shape: f32[28,6], index: 1, kind: output, shape index: {}]
  // Predicated region
  $region2: #{tile.13} parent=0 // pred_check
    _
  $region3: #{tile.13} parent=0 // pred_check_branch
    %3 = sbr.rel (0) target = $region5
  $region4: #{tile.13} parent=0 // pred_region
    _
  $region5: #{tile.13} parent=0 // pred_fallthru
    _
  %v4 = vld [vmem:[%s0] ss:$0 sm:$0xff]
  %5 = vst [vmem:[%s1] sm:$0xff] %v4
  %s6 = scalar_lea.vmem %s1, 8
  %7 = vst [vmem:[%s6] sm:$0xff] %v4
  %s8 = scalar_lea.vmem %s1, 16
  %9 = vst [vmem:[%s8] sm:$0xff] %v4
  %s10 = scalar_lea.vmem %s1, 24
  %11 = vst [vmem:[%s10] sm:$0xff] %v4

// kernel: tile.14
$region0: #{tile.14}
  %s0 = inlined_call_operand.vmem [shape: f32[28,6], index: 0, kind: input, shape index: {}]
  %s1 = inlined_call_operand.vmem [shape: f32[1,168], index: 1, kind: output, shape index: {}]
  $region1: #{tile.14} parent=0
    #allocation0 [shape = 'u8[8192]{0}', space=vmem, size = 0x2000, scoped, tag = 'scoped mem for output reshape']
    %v2 = vld [vmem:[%s0] sm:$0x1]
    %vm3 = vcmask 48128
    %4 = vst.msk [vmem:[#allocation0] sm:$0x1] %vm3, %v2
    %s5 = scalar_lea.vmem %s0, 21
    %v6 = vld [vmem:[%s5] sm:$0x1]
    %s7 = scalar_lea.vmem %s0, 21
    %v8 = vld [vmem:[%s7] sm:$0x1]
    %vm9 = vcmask 15360
    %v10 = vsel %vm9, %v8, %v6
    %11 = vrot.lane.b32.xlu0 %v10, 126
    %v12 = vpop.permute.xlu0 %11
    %vm13 = vcmask 31744
    %s14 = scalar_lea.vmem [#allocation0], 8
    %15 = vst.msk [vmem:[%s14] sm:$0x1] %vm13, %v12
    %vm16 = vcmask 1048560
    %17 = vst.msk [vmem:[#allocation0] sm:$0x1] %vm16, %v12
    %s18 = scalar_lea.vmem %s0, 20
    %v19 = vld [vmem:[%s18] sm:$0x1]
    %20 = vrot.lane.b32.xlu0 %v19, 120
    %v21 = vpop.permute.xlu0 %20
    %vm22 = vcmask 1032128
    %23 = vst.msk [vmem:[#allocation0] sm:$0x1] %vm22, %v21
    %s24 = scalar_lea.vmem %s0, 19
    %v25 = vld [vmem:[%s24] sm:$0x1]
    %26 = vrot.lane.b32.xlu0 %v25, 114
    %v27 = vpop.permute.xlu0 %26
    %vm28 = vcmask 982928
    %29 = vst.msk [vmem:[#allocation0] sm:$0x1] %vm28, %v27
    %s30 = scalar_lea.vmem %s0, 18
    %v31 = vld [vmem:[%s30] sm:$0x1]
    %32 = vrot.lane.b32.xlu0 %v31, 108
    %v33 = vpop.permute.xlu0 %32
    %vm34 = vcmask 933728
    %35 = vst.msk [vmem:[#allocation0] sm:$0x1] %vm34, %v33
    %s36 = scalar_lea.vmem %s0, 17
    %v37 = vld [vmem:[%s36] sm:$0x1]
    %38 = vrot.lane.b32.xlu0 %v37, 102
    %v39 = vpop.permute.xlu0 %38
    %vm40 = vcmask 884528
    %41 = vst.msk [vmem:[#allocation0] sm:$0x1] %vm40, %v39
    %s42 = scalar_lea.vmem %s0, 16
    %v43 = vld [vmem:[%s42] sm:$0x1]
    %44 = vrot.lane.b32.xlu0 %v43, 96
    %v45 = vpop.permute.xlu0 %44
    %vm46 = vcmask 835328
    %47 = vst.msk [vmem:[#allocation0] sm:$0x1] %vm46, %v45
    %s48 = scalar_lea.vmem %s0, 15
    %v49 = vld [vmem:[%s48] sm:$0x1]
    %50 = vrot.lane.b32.xlu0 %v49, 90
    %v51 = vpop.permute.xlu0 %50
    %vm52 = vcmask 786128
    %53 = vst.msk [vmem:[#allocation0] sm:$0x1] %vm52, %v51
    %s54 = scalar_lea.vmem %s0, 14
    %v55 = vld [vmem:[%s54] sm:$0x1]
    %56 = vrot.lane.b32.xlu0 %v55, 84
    %v57 = vpop.permute.xlu0 %56
    %vm58 = vcmask 736928
    %59 = vst.msk [vmem:[#allocation0] sm:$0x1] %vm58, %v57
    %s60 = scalar_lea.vmem %s0, 13
    %v61 = vld [vmem:[%s60] sm:$0x1]
    %62 = vrot.lane.b32.xlu0 %v61, 78
    %v63 = vpop.permute.xlu0 %62
    %vm64 = vcmask 687728
    %65 = vst.msk [vmem:[#allocation0] sm:$0x1] %vm64, %v63
    %s66 = scalar_lea.vmem %s0, 12
    %v67 = vld [vmem:[%s66] sm:$0x1]
    %68 = vrot.lane.b32.xlu0 %v67, 72
    %v69 = vpop.permute.xlu0 %68
    %vm70 = vcmask 638528
    %71 = vst.msk [vmem:[#allocation0] sm:$0x1] %vm70, %v69
    %s72 = scalar_lea.vmem %s0, 11
    %v73 = vld [vmem:[%s72] sm:$0x1]
    %74 = vrot.lane.b32.xlu0 %v73, 66
    %v75 = vpop.permute.xlu0 %74
    %vm76 = vcmask 589328
    %77 = vst.msk [vmem:[#allocation0] sm:$0x1] %vm76, %v75
    %s78 = scalar_lea.vmem %s0, 10
    %v79 = vld [vmem:[%s78] sm:$0x1]
    %80 = vrot.lane.b32.xlu0 %v79, 60
    %v81 = vpop.permute.xlu0 %80
    %vm82 = vcmask 540128
    %83 = vst.msk [vmem:[#allocation0] sm:$0x1] %vm82, %v81
    %s84 = scalar_lea.vmem %s0, 9
    %v85 = vld [vmem:[%s84] sm:$0x1]
    %86 = vrot.lane.b32.xlu0 %v85, 54
    %v87 = vpop.permute.xlu0 %86
    %vm88 = vcmask 490928
    %89 = vst.msk [vmem:[#allocation0] sm:$0x1] %vm88, %v87
    %s90 = scalar_lea.vmem %s0, 8
    %v91 = vld [vmem:[%s90] sm:$0x1]
    %92 = vrot.lane.b32.xlu0 %v91, 48
    %v93 = vpop.permute.xlu0 %92
    %vm94 = vcmask 441728
    %95 = vst.msk [vmem:[#allocation0] sm:$0x1] %vm94, %v93
    %s96 = scalar_lea.vmem %s0, 7
    %v97 = vld [vmem:[%s96] sm:$0x1]
    %98 = vrot.lane.b32.xlu0 %v97, 42
    %v99 = vpop.permute.xlu0 %98
    %vm100 = vcmask 392528
    %101 = vst.msk [vmem:[#allocation0] sm:$0x1] %vm100, %v99
    %s102 = scalar_lea.vmem %s0, 6
    %v103 = vld [vmem:[%s102] sm:$0x1]
    %104 = vrot.lane.b32.xlu0 %v103, 36
    %v105 = vpop.permute.xlu0 %104
    %vm106 = vcmask 343328
    %107 = vst.msk [vmem:[#allocation0] sm:$0x1] %vm106, %v105
    %s108 = scalar_lea.vmem %s0, 27
    %v109 = vld [vmem:[%s108] sm:$0x1]
    %110 = vrot.lane.b32.xlu0 %v109, 34
    %v111 = vpop.permute.xlu0 %110
    %vm112 = vcmask 326928
    %s113 = scalar_lea.vmem [#allocation0], 8
    %114 = vst.msk [vmem:[%s113] sm:$0x1] %vm112, %v111
    %s115 = scalar_lea.vmem %s0, 5
    %v116 = vld [vmem:[%s115] sm:$0x1]
    %117 = vrot.lane.b32.xlu0 %v116, 30
    %v118 = vpop.permute.xlu0 %117
    %vm119 = vcmask 294128
    %120 = vst.msk [vmem:[#allocation0] sm:$0x1] %vm119, %v118
    %s121 = scalar_lea.vmem %s0, 26
    %v122 = vld [vmem:[%s121] sm:$0x1]
    %123 = vrot.lane.b32.xlu0 %v122, 28
    %v124 = vpop.permute.xlu0 %123
    %vm125 = vcmask 277728
    %s126 = scalar_lea.vmem [#allocation0], 8
    %127 = vst.msk [vmem:[%s126] sm:$0x1] %vm125, %v124
    %s128 = scalar_lea.vmem %s0, 4
    %v129 = vld [vmem:[%s128] sm:$0x1]
    %130 = vrot.lane.b32.xlu0 %v129, 24
    %v131 = vpop.permute.xlu0 %130
    %vm132 = vcmask 244928
    %133 = vst.msk [vmem:[#allocation0] sm:$0x1] %vm132, %v131
    %s134 = scalar_lea.vmem %s0, 25
    %v135 = vld [vmem:[%s134] sm:$0x1]
    %136 = vrot.lane.b32.xlu0 %v135, 22
    %v137 = vpop.permute.xlu0 %136
    %vm138 = vcmask 228528
    %s139 = scalar_lea.vmem [#allocation0], 8
    %140 = vst.msk [vmem:[%s139] sm:$0x1] %vm138, %v137
    %s141 = scalar_lea.vmem %s0, 3
    %v142 = vld [vmem:[%s141] sm:$0x1]
    %143 = vrot.lane.b32.xlu0 %v142, 18
    %v144 = vpop.permute.xlu0 %143
    %vm145 = vcmask 195728
    %146 = vst.msk [vmem:[#allocation0] sm:$0x1] %vm145, %v144
    %s147 = scalar_lea.vmem %s0, 24
    %v148 = vld [vmem:[%s147] sm:$0x1]
    %149 = vrot.lane.b32.xlu0 %v148, 16
    %v150 = vpop.permute.xlu0 %149
    %vm151 = vcmask 179328
    %s152 = scalar_lea.vmem [#allocation0], 8
    %153 = vst.msk [vmem:[%s152] sm:$0x1] %vm151, %v150
    %s154 = scalar_lea.vmem %s0, 2
    %v155 = vld [vmem:[%s154] sm:$0x1]
    %156 = vrot.lane.b32.xlu0 %v155, 12
    %v157 = vpop.permute.xlu0 %156
    %vm158 = vcmask 146528
    %159 = vst.msk [vmem:[#allocation0] sm:$0x1] %vm158, %v157
    %s160 = scalar_lea.vmem %s0, 23
    %v161 = vld [vmem:[%s160] sm:$0x1]
    %162 = vrot.lane.b32.xlu0 %v161, 10
    %v163 = vpop.permute.xlu0 %162
    %vm164 = vcmask 130128
    %s165 = scalar_lea.vmem [#allocation0], 8
    %166 = vst.msk [vmem:[%s165] sm:$0x1] %vm164, %v163
    %s167 = scalar_lea.vmem %s0, 1
    %v168 = vld [vmem:[%s167] sm:$0x1]
    %169 = vrot.lane.b32.xlu0 %v168, 6
    %v170 = vpop.permute.xlu0 %169
    %vm171 = vcmask 97328
    %172 = vst.msk [vmem:[#allocation0] sm:$0x1] %vm171, %v170
    %s173 = scalar_lea.vmem %s0, 22
    %v174 = vld [vmem:[%s173] sm:$0x1]
    %175 = vrot.lane.b32.xlu0 %v174, 4
    %v176 = vpop.permute.xlu0 %175
    %vm177 = vcmask 80928
    %s178 = scalar_lea.vmem [#allocation0], 8
    %179 = vst.msk [vmem:[%s178] sm:$0x1] %vm177, %v176
    %s181 = sshllo.u32 0, 1
    %v183 = vld [vmem:[#allocation0] sm:%s181]
    %s184 = sshllo.u32 0, 1
    %185 = vst [vmem:[%s1] sm:%s184] %v183
    %s186 = scalar_lea.vmem [#allocation0], 8
    %v187 = vld [vmem:[%s186] sm:%s181]
    %s188 = sshllo.u32 0, 1
    %s189 = scalar_lea.vmem %s1, 1
    %190 = vst [vmem:[%s189] sm:%s188] %v187

// kernel: tile.18
$region0: #{tile.18}
  #allocation0 [shape = 's32[1]{0}', space=sflag, size = 0x4, scoped, tag = 'scoped memory for tile.18']
  %s0 = inlined_call_operand.vmem [shape: f32[16], index: 0, kind: input, shape index: {}]
  %s1 = inlined_call_operand.vmem [shape: f32[14,16], index: 1, kind: output, shape index: {}]
  // Predicated region
  $region2: #{tile.18} parent=0 // pred_check
    _
  $region3: #{tile.18} parent=0 // pred_check_branch
    %3 = sbr.rel (0) target = $region5
  $region4: #{tile.18} parent=0 // pred_region
    _
  $region5: #{tile.18} parent=0 // pred_fallthru
    _
  %v4 = vld [vmem:[%s0] ss:$0 sm:$0xff]
  %5 = vst [vmem:[%s1] sm:$0xff] %v4
  %s6 = scalar_lea.vmem %s1, 8
  %7 = vst [vmem:[%s6] sm:$0xff] %v4

// kernel: tile.19
$region0: #{tile.19}
  %s0 = inlined_call_operand.vmem [shape: f32[14,16], index: 0, kind: input, shape index: {}]
  %s1 = inlined_call_operand.vmem [shape: f32[1,224], index: 1, kind: output, shape index: {}]
  $region1: #{tile.19} parent=0
    #allocation0 [shape = 'u8[8192]{0}', space=vmem, size = 0x2000, scoped, tag = 'scoped mem for output reshape']
    %s2 = smov 3
    %v3 = vld [vmem:[%s0] ss:$8 sm:%s2]
    %vm4 = vcmask 130048
    %5 = vst.msk [vmem:[#allocation0] ss:$8 sm:$0x3] %vm4, %v3
    %s6 = scalar_lea.vmem %s0, 7
    %v7 = vld [vmem:[%s6] sm:$0x1]
    %8 = vrot.lane.b32.xlu0 %v7, 112
    %v9 = vpop.permute.xlu0 %8
    %vm10 = vcmask 1048448
    %11 = vst.msk [vmem:[#allocation0] sm:$0x1] %vm10, %v9
    %s12 = scalar_lea.vmem %s0, 6
    %v13 = vld [vmem:[%s12] sm:$0x1]
    %14 = vrot.lane.b32.xlu0 %v13, 96
    %v15 = vpop.permute.xlu0 %14
    %vm16 = vcmask 917248
    %17 = vst.msk [vmem:[#allocation0] sm:$0x1] %vm16, %v15
    %s18 = scalar_lea.vmem %s0, 5
    %s19 = smov 3
    %v20 = vld [vmem:[%s18] ss:$8 sm:%s19]
    %21 = vrot.lane.b32.xlu0 %v20, 80
    %v22 = vpop.permute.xlu0 %21
    %vm23 = vcmask 786048
    %24 = vst.msk [vmem:[#allocation0] ss:$8 sm:$0x3] %vm23, %v22
    %s25 = scalar_lea.vmem %s0, 4
    %s26 = smov 3
    %v27 = vld [vmem:[%s25] ss:$8 sm:%s26]
    %28 = vrot.lane.b32.xlu0 %v27, 64
    %v29 = vpop.permute.xlu0 %28
    %vm30 = vcmask 654848
    %31 = vst.msk [vmem:[#allocation0] ss:$8 sm:$0x3] %vm30, %v29
    %s32 = scalar_lea.vmem %s0, 3
    %s33 = smov 3
    %v34 = vld [vmem:[%s32] ss:$8 sm:%s33]
    %35 = vrot.lane.b32.xlu0 %v34, 48
    %v36 = vpop.permute.xlu0 %35
    %vm37 = vcmask 523648
    %38 = vst.msk [vmem:[#allocation0] ss:$8 sm:$0x3] %vm37, %v36
    %s39 = scalar_lea.vmem %s0, 2
    %s40 = smov 3
    %v41 = vld [vmem:[%s39] ss:$8 sm:%s40]
    %42 = vrot.lane.b32.xlu0 %v41, 32
    %v43 = vpop.permute.xlu0 %42
    %vm44 = vcmask 392448
    %45 = vst.msk [vmem:[#allocation0] ss:$8 sm:$0x3] %vm44, %v43
    %s46 = scalar_lea.vmem %s0, 1
    %s47 = smov 3
    %v48 = vld [vmem:[%s46] ss:$8 sm:%s47]
    %49 = vrot.lane.b32.xlu0 %v48, 16
    %v50 = vpop.permute.xlu0 %49
    %vm51 = vcmask 261248
    %52 = vst.msk [vmem:[#allocation0] ss:$8 sm:$0x3] %vm51, %v50
    %s54 = sshllo.u32 0, 1
    %v56 = vld [vmem:[#allocation0] sm:%s54]
    %s57 = sshllo.u32 0, 1
    %58 = vst [vmem:[%s1] sm:%s57] %v56
    %s59 = scalar_lea.vmem [#allocation0], 8
    %v60 = vld [vmem:[%s59] sm:%s54]
    %s61 = sshllo.u32 0, 1
    %s62 = scalar_lea.vmem %s1, 1
    %63 = vst [vmem:[%s62] sm:%s61] %v60

// kernel: lenet_forward.1
$region0: #{lenet_forward.1}
  #allocation0 [shape = 'u32[]', space=smem, size = 0x4, offset = 0x4, fixed_abs, tag = 'smem constant byte address 0x4 - core index']
  #allocation1 [shape = 'u32[144,128]{1,0:T(1,128)}', space=vmem, size = 0x12000, scoped, tag = 'internal scratch']
  #allocation2 [shape = 'f32[7,4,112]{2,1,0:T(4,128)}', space=vmem, size = 0x3800, scoped, tag = 'scratch operand']
  %s0 = inlined_call_operand.vmem [shape: f32[8,28,160], index: 0, kind: input, shape index: {}]
  %s1 = inlined_call_operand.vmem [shape: f32[160,168], index: 1, kind: input, shape index: {}]
  %s2 = inlined_call_operand.vmem [shape: f32[1,168], index: 2, kind: input, shape index: {}]
  %s3 = inlined_call_operand.vmem [shape: f32[18,28], index: 3, kind: input, shape index: {}]
  %s4 = inlined_call_operand.vmem [shape: f32[168,108], index: 4, kind: input, shape index: {}]
  %s5 = inlined_call_operand.vmem [shape: f32[5,108,224], index: 5, kind: input, shape index: {}]
  %s6 = inlined_call_operand.vmem [shape: f32[1,224], index: 6, kind: input, shape index: {}]
  %s7 = inlined_call_operand.vmem [shape: f32[7,14], index: 7, kind: input, shape index: {}]
  %s8 = inlined_call_operand.vmem [shape: f32[224,112], index: 8, kind: input, shape index: {}]
  %s9 = inlined_call_operand.vmem [shape: f32[7,112,120], index: 9, kind: input, shape index: {}]
  %s10 = inlined_call_operand.vmem [shape: f32[1,120], index: 10, kind: input, shape index: {}]
  %s11 = inlined_call_operand.vmem [shape: f32[120,84], index: 11, kind: input, shape index: {}]
  %s12 = inlined_call_operand.vmem [shape: f32[1,84], index: 12, kind: input, shape index: {}]
  %s13 = inlined_call_operand.vmem [shape: f32[84,128], index: 13, kind: input, shape index: {}]
  %s14 = inlined_call_operand.vmem [shape: f32[1,128], index: 14, kind: input, shape index: {}]
  %s15 = inlined_call_operand.hbm [shape: f32[2,4,128], index: 15, kind: output, shape index: {}]
  %s16 = sld [smem:[#allocation0]]
  $region93: #{lenet_forward.1} parent=0
    _
  %s18 = ssub.s32 1, %s16
  %s19 = scalar_select 0, %s18, %s16
  $region1: #{lenet_forward.1} parent=0
    #allocation3 [shape = 'u8[4096]{0}', space=vmem, size = 0x1000, scoped, tag = 'output window, operand 0']
    #allocation4 [shape = 's32[2]{0}', space=sflag, size = 0x8, scoped, tag = 'scoped memory for lenet_forward.1']
    %20 = vsyncpa [#allocation4], 0
    %s21 = scalar_lea.sflag [#allocation4], 1
    %22 = vsyncpa %s21, 0
    loop: start=0, step=1, limit=4
    $region2: #{lenet_forward.1} parent=1 // loop_pre_header
      _
    $region3: #{lenet_forward.1} parent=1 // loop_header
      %s24 = sphi 0, %s28
      %p25 = scmp.ge.s32.totalorder %s24, 4
      %s34 = sphi 0, %s36
      %s37 = sphi 0, %s34
      %s38 = sphi 0, %s37
      %s54 = sphi 0, %s38
      %s58 = sphi 0, %s58
      %s60 = sphi 0, %s58
      %s61 = sphi 0, %s60
      %s75 = sphi 0, %s61
      %s79 = sphi 0, %s79
      %s81 = sphi 0, %s79
      %s82 = sphi 0, %s81
      %s96 = sphi 0, %s82
      %s100 = sphi 0, %s100
      %s102 = sphi 0, %s100
      %s103 = sphi 0, %s102
      %s117 = sphi 0, %s103
      %s121 = sphi 0, %s121
      %s123 = sphi 0, %s121
      %s124 = sphi 0, %s123
      %s138 = sphi 0, %s124
      %s142 = sphi 0, %s142
      %s144 = sphi 0, %s142
      %s145 = sphi 0, %s144
      %s159 = sphi 0, %s145
      %s163 = sphi 0, %s163
      %s165 = sphi 0, %s163
      %s166 = sphi 0, %s165
      %s180 = sphi 0, %s166
      %s184 = sphi 0, %s184
      %s186 = sphi 0, %s184
      %s187 = sphi 0, %s186
      %s201 = sphi 0, %s187
      %s205 = sphi 0, %s205
      %s207 = sphi 0, %s205
      %s208 = sphi 0, %s207
      %s222 = sphi 0, %s208
      %s226 = sphi 0, %s226
      %s228 = sphi 0, %s226
      %s229 = sphi 0, %s228
      %s243 = sphi 0, %s229
      %s247 = sphi 0, %s247
      %s249 = sphi 0, %s247
      %s250 = sphi 0, %s249
      %s264 = sphi 0, %s250
      %s268 = sphi 0, %s268
      %s270 = sphi 0, %s268
      %s271 = sphi 0, %s270
      %s285 = sphi 0, %s271
      %s289 = sphi 0, %s289
      %s291 = sphi 0, %s289
      %s292 = sphi 0, %s291
      %s306 = sphi 0, %s292
      %s310 = sphi 0, %s310
      %s312 = sphi 0, %s310
      %s313 = sphi 0, %s312
      %s327 = sphi 0, %s313
      %s331 = sphi 0, %s331
      %s333 = sphi 0, %s331
      %s334 = sphi 0, %s333
      %s348 = sphi 0, %s334
      %s354 = sphi 0, %s356
      %s357 = sphi 0, %s354
      %s358 = sphi 0, %s357
      %s374 = sphi 0, %s358
    $region4: #{lenet_forward.1} parent=1 // loop_header_branch
      %27 = sbr.rel (%p25) target = $region8
    $region5: #{lenet_forward.1} parent=1 // loop_body
      %s29 = ssub.s32 %s24, 1
      %s30 = ssub.s32 %s24, 2
      %s31 = sadd.s32 %s24, 1
      %s32 = ssub.s32 %s24, %s31
      %p33 = scmp.eq.s32.totalorder %s32, 0
      %s35 = sadd.s32 %s34, 1
      %s36 = scalar_select %p33, %s34, %s35
      %p39 = pneg %p33
      %p40 = scmp.eq.s32.totalorder %s24, 1
      %p41 = por %p39, %p40
      %p42 = scmp.ne.s32.totalorder %s34, %s37
      %p43 = scmp.eq.s32.totalorder %s24, 0
      %p44 = por %p42, %p43
      %p45 = scmp.ne.s32.totalorder %s34, %s37
      %p46 = scmp.eq.s32.totalorder %s29, 1
      %p47 = por %p45, %p46
      %p48 = scmp.ne.s32.totalorder %s37, %s38
      %p49 = scmp.eq.s32.totalorder %s29, 0
      %p50 = por %p48, %p49
      %p51 = scmp.ne.s32.totalorder %s37, %s38
      %p52 = scmp.eq.s32.totalorder %s30, 1
      %p53 = por %p51, %p52
      %p55 = scmp.ne.s32.totalorder %s38, %s54
      %p56 = scmp.eq.s32.totalorder %s30, 0
      %p57 = por %p55, %p56
      %s59 = sadd.s32 %s58, 1
      %p62 = scmp.eq.s32.totalorder %s24, 1
      %p63 = scmp.ne.s32.totalorder %s58, %s60
      %p64 = scmp.eq.s32.totalorder %s24, 0
      %p65 = por %p63, %p64
      %p66 = scmp.ne.s32.totalorder %s58, %s60
      %p67 = scmp.eq.s32.totalorder %s29, 1
      %p68 = por %p66, %p67
      %p69 = scmp.ne.s32.totalorder %s60, %s61
      %p70 = scmp.eq.s32.totalorder %s29, 0
      %p71 = por %p69, %p70
      %p72 = scmp.ne.s32.totalorder %s60, %s61
      %p73 = scmp.eq.s32.totalorder %s30, 1
      %p74 = por %p72, %p73
      %p76 = scmp.ne.s32.totalorder %s61, %s75
      %p77 = scmp.eq.s32.totalorder %s30, 0
      %p78 = por %p76, %p77
      %s80 = sadd.s32 %s79, 1
      %p83 = scmp.eq.s32.totalorder %s24, 1
      %p84 = scmp.ne.s32.totalorder %s79, %s81
      %p85 = scmp.eq.s32.totalorder %s24, 0
      %p86 = por %p84, %p85
      %p87 = scmp.ne.s32.totalorder %s79, %s81
      %p88 = scmp.eq.s32.totalorder %s29, 1
      %p89 = por %p87, %p88
      %p90 = scmp.ne.s32.totalorder %s81, %s82
      %p91 = scmp.eq.s32.totalorder %s29, 0
      %p92 = por %p90, %p91
      %p93 = scmp.ne.s32.totalorder %s81, %s82
      %p94 = scmp.eq.s32.totalorder %s30, 1
      %p95 = por %p93, %p94
      %p97 = scmp.ne.s32.totalorder %s82, %s96
      %p98 = scmp.eq.s32.totalorder %s30, 0
      %p99 = por %p97, %p98
      %s101 = sadd.s32 %s100, 1
      %p104 = scmp.eq.s32.totalorder %s24, 1
      %p105 = scmp.ne.s32.totalorder %s100, %s102
      %p106 = scmp.eq.s32.totalorder %s24, 0
      %p107 = por %p105, %p106
      %p108 = scmp.ne.s32.totalorder %s100, %s102
      %p109 = scmp.eq.s32.totalorder %s29, 1
      %p110 = por %p108, %p109
      %p111 = scmp.ne.s32.totalorder %s102, %s103
      %p112 = scmp.eq.s32.totalorder %s29, 0
      %p113 = por %p111, %p112
      %p114 = scmp.ne.s32.totalorder %s102, %s103
      %p115 = scmp.eq.s32.totalorder %s30, 1
      %p116 = por %p114, %p115
      %p118 = scmp.ne.s32.totalorder %s103, %s117
      %p119 = scmp.eq.s32.totalorder %s30, 0
      %p120 = por %p118, %p119
      %s122 = sadd.s32 %s121, 1
      %p125 = scmp.eq.s32.totalorder %s24, 1
      %p126 = scmp.ne.s32.totalorder %s121, %s123
      %p127 = scmp.eq.s32.totalorder %s24, 0
      %p128 = por %p126, %p127
      %p129 = scmp.ne.s32.totalorder %s121, %s123
      %p130 = scmp.eq.s32.totalorder %s29, 1
      %p131 = por %p129, %p130
      %p132 = scmp.ne.s32.totalorder %s123, %s124
      %p133 = scmp.eq.s32.totalorder %s29, 0
      %p134 = por %p132, %p133
      %p135 = scmp.ne.s32.totalorder %s123, %s124
      %p136 = scmp.eq.s32.totalorder %s30, 1
      %p137 = por %p135, %p136
      %p139 = scmp.ne.s32.totalorder %s124, %s138
      %p140 = scmp.eq.s32.totalorder %s30, 0
      %p141 = por %p139, %p140
      %s143 = sadd.s32 %s142, 1
      %p146 = scmp.eq.s32.totalorder %s24, 1
      %p147 = scmp.ne.s32.totalorder %s142, %s144
      %p148 = scmp.eq.s32.totalorder %s24, 0
      %p149 = por %p147, %p148
      %p150 = scmp.ne.s32.totalorder %s142, %s144
      %p151 = scmp.eq.s32.totalorder %s29, 1
      %p152 = por %p150, %p151
      %p153 = scmp.ne.s32.totalorder %s144, %s145
      %p154 = scmp.eq.s32.totalorder %s29, 0
      %p155 = por %p153, %p154
      %p156 = scmp.ne.s32.totalorder %s144, %s145
      %p157 = scmp.eq.s32.totalorder %s30, 1
      %p158 = por %p156, %p157
      %p160 = scmp.ne.s32.totalorder %s145, %s159
      %p161 = scmp.eq.s32.totalorder %s30, 0
      %p162 = por %p160, %p161
      %s164 = sadd.s32 %s163, 1
      %p167 = scmp.eq.s32.totalorder %s24, 1
      %p168 = scmp.ne.s32.totalorder %s163, %s165
      %p169 = scmp.eq.s32.totalorder %s24, 0
      %p170 = por %p168, %p169
      %p171 = scmp.ne.s32.totalorder %s163, %s165
      %p172 = scmp.eq.s32.totalorder %s29, 1
      %p173 = por %p171, %p172
      %p174 = scmp.ne.s32.totalorder %s165, %s166
      %p175 = scmp.eq.s32.totalorder %s29, 0
      %p176 = por %p174, %p175
      %p177 = scmp.ne.s32.totalorder %s165, %s166
      %p178 = scmp.eq.s32.totalorder %s30, 1
      %p179 = por %p177, %p178
      %p181 = scmp.ne.s32.totalorder %s166, %s180
      %p182 = scmp.eq.s32.totalorder %s30, 0
      %p183 = por %p181, %p182
      %s185 = sadd.s32 %s184, 1
      %p188 = scmp.eq.s32.totalorder %s24, 1
      %p189 = scmp.ne.s32.totalorder %s184, %s186
      %p190 = scmp.eq.s32.totalorder %s24, 0
      %p191 = por %p189, %p190
      %p192 = scmp.ne.s32.totalorder %s184, %s186
      %p193 = scmp.eq.s32.totalorder %s29, 1
      %p194 = por %p192, %p193
      %p195 = scmp.ne.s32.totalorder %s186, %s187
      %p196 = scmp.eq.s32.totalorder %s29, 0
      %p197 = por %p195, %p196
      %p198 = scmp.ne.s32.totalorder %s186, %s187
      %p199 = scmp.eq.s32.totalorder %s30, 1
      %p200 = por %p198, %p199
      %p202 = scmp.ne.s32.totalorder %s187, %s201
      %p203 = scmp.eq.s32.totalorder %s30, 0
      %p204 = por %p202, %p203
      %s206 = sadd.s32 %s205, 1
      %p209 = scmp.eq.s32.totalorder %s24, 1
      %p210 = scmp.ne.s32.totalorder %s205, %s207
      %p211 = scmp.eq.s32.totalorder %s24, 0
      %p212 = por %p210, %p211
      %p213 = scmp.ne.s32.totalorder %s205, %s207
      %p214 = scmp.eq.s32.totalorder %s29, 1
      %p215 = por %p213, %p214
      %p216 = scmp.ne.s32.totalorder %s207, %s208
      %p217 = scmp.eq.s32.totalorder %s29, 0
      %p218 = por %p216, %p217
      %p219 = scmp.ne.s32.totalorder %s207, %s208
      %p220 = scmp.eq.s32.totalorder %s30, 1
      %p221 = por %p219, %p220
      %p223 = scmp.ne.s32.totalorder %s208, %s222
      %p224 = scmp.eq.s32.totalorder %s30, 0
      %p225 = por %p223, %p224
      %s227 = sadd.s32 %s226, 1
      %p230 = scmp.eq.s32.totalorder %s24, 1
      %p231 = scmp.ne.s32.totalorder %s226, %s228
      %p232 = scmp.eq.s32.totalorder %s24, 0
      %p233 = por %p231, %p232
      %p234 = scmp.ne.s32.totalorder %s226, %s228
      %p235 = scmp.eq.s32.totalorder %s29, 1
      %p236 = por %p234, %p235
      %p237 = scmp.ne.s32.totalorder %s228, %s229
      %p238 = scmp.eq.s32.totalorder %s29, 0
      %p239 = por %p237, %p238
      %p240 = scmp.ne.s32.totalorder %s228, %s229
      %p241 = scmp.eq.s32.totalorder %s30, 1
      %p242 = por %p240, %p241
      %p244 = scmp.ne.s32.totalorder %s229, %s243
      %p245 = scmp.eq.s32.totalorder %s30, 0
      %p246 = por %p244, %p245
      %s248 = sadd.s32 %s247, 1
      %p251 = scmp.eq.s32.totalorder %s24, 1
      %p252 = scmp.ne.s32.totalorder %s247, %s249
      %p253 = scmp.eq.s32.totalorder %s24, 0
      %p254 = por %p252, %p253
      %p255 = scmp.ne.s32.totalorder %s247, %s249
      %p256 = scmp.eq.s32.totalorder %s29, 1
      %p257 = por %p255, %p256
      %p258 = scmp.ne.s32.totalorder %s249, %s250
      %p259 = scmp.eq.s32.totalorder %s29, 0
      %p260 = por %p258, %p259
      %p261 = scmp.ne.s32.totalorder %s249, %s250
      %p262 = scmp.eq.s32.totalorder %s30, 1
      %p263 = por %p261, %p262
      %p265 = scmp.ne.s32.totalorder %s250, %s264
      %p266 = scmp.eq.s32.totalorder %s30, 0
      %p267 = por %p265, %p266
      %s269 = sadd.s32 %s268, 1
      %p272 = scmp.eq.s32.totalorder %s24, 1
      %p273 = scmp.ne.s32.totalorder %s268, %s270
      %p274 = scmp.eq.s32.totalorder %s24, 0
      %p275 = por %p273, %p274
      %p276 = scmp.ne.s32.totalorder %s268, %s270
      %p277 = scmp.eq.s32.totalorder %s29, 1
      %p278 = por %p276, %p277
      %p279 = scmp.ne.s32.totalorder %s270, %s271
      %p280 = scmp.eq.s32.totalorder %s29, 0
      %p281 = por %p279, %p280
      %p282 = scmp.ne.s32.totalorder %s270, %s271
      %p283 = scmp.eq.s32.totalorder %s30, 1
      %p284 = por %p282, %p283
      %p286 = scmp.ne.s32.totalorder %s271, %s285
      %p287 = scmp.eq.s32.totalorder %s30, 0
      %p288 = por %p286, %p287
      %s290 = sadd.s32 %s289, 1
      %p293 = scmp.eq.s32.totalorder %s24, 1
      %p294 = scmp.ne.s32.totalorder %s289, %s291
      %p295 = scmp.eq.s32.totalorder %s24, 0
      %p296 = por %p294, %p295
      %p297 = scmp.ne.s32.totalorder %s289, %s291
      %p298 = scmp.eq.s32.totalorder %s29, 1
      %p299 = por %p297, %p298
      %p300 = scmp.ne.s32.totalorder %s291, %s292
      %p301 = scmp.eq.s32.totalorder %s29, 0
      %p302 = por %p300, %p301
      %p303 = scmp.ne.s32.totalorder %s291, %s292
      %p304 = scmp.eq.s32.totalorder %s30, 1
      %p305 = por %p303, %p304
      %p307 = scmp.ne.s32.totalorder %s292, %s306
      %p308 = scmp.eq.s32.totalorder %s30, 0
      %p309 = por %p307, %p308
      %s311 = sadd.s32 %s310, 1
      %p314 = scmp.eq.s32.totalorder %s24, 1
      %p315 = scmp.ne.s32.totalorder %s310, %s312
      %p316 = scmp.eq.s32.totalorder %s24, 0
      %p317 = por %p315, %p316
      %p318 = scmp.ne.s32.totalorder %s310, %s312
      %p319 = scmp.eq.s32.totalorder %s29, 1
      %p320 = por %p318, %p319
      %p321 = scmp.ne.s32.totalorder %s312, %s313
      %p322 = scmp.eq.s32.totalorder %s29, 0
      %p323 = por %p321, %p322
      %p324 = scmp.ne.s32.totalorder %s312, %s313
      %p325 = scmp.eq.s32.totalorder %s30, 1
      %p326 = por %p324, %p325
      %p328 = scmp.ne.s32.totalorder %s313, %s327
      %p329 = scmp.eq.s32.totalorder %s30, 0
      %p330 = por %p328, %p329
      %s332 = sadd.s32 %s331, 1
      %p335 = scmp.eq.s32.totalorder %s24, 1
      %p336 = scmp.ne.s32.totalorder %s331, %s333
      %p337 = scmp.eq.s32.totalorder %s24, 0
      %p338 = por %p336, %p337
      %p339 = scmp.ne.s32.totalorder %s331, %s333
      %p340 = scmp.eq.s32.totalorder %s29, 1
      %p341 = por %p339, %p340
      %p342 = scmp.ne.s32.totalorder %s333, %s334
      %p343 = scmp.eq.s32.totalorder %s29, 0
      %p344 = por %p342, %p343
      %p345 = scmp.ne.s32.totalorder %s333, %s334
      %p346 = scmp.eq.s32.totalorder %s30, 1
      %p347 = por %p345, %p346
      %p349 = scmp.ne.s32.totalorder %s334, %s348
      %p350 = scmp.eq.s32.totalorder %s30, 0
      %p351 = por %p349, %p350
      %s352 = ssub.s32 %s24, %s31
      %p353 = scmp.eq.s32.totalorder %s352, 0
      %s355 = sadd.s32 %s354, 1
      %s356 = scalar_select %p353, %s354, %s355
      %p359 = pneg %p353
      %p360 = scmp.eq.s32.totalorder %s24, 1
      %p361 = por %p359, %p360
      %p362 = scmp.ne.s32.totalorder %s354, %s357
      %p363 = scmp.eq.s32.totalorder %s24, 0
      %p364 = por %p362, %p363
      %p365 = scmp.ne.s32.totalorder %s354, %s357
      %p366 = scmp.eq.s32.totalorder %s29, 1
      %p367 = por %p365, %p366
      %p368 = scmp.ne.s32.totalorder %s357, %s358
      %p369 = scmp.eq.s32.totalorder %s29, 0
      %p370 = por %p368, %p369
      %p371 = scmp.ne.s32.totalorder %s357, %s358
      %p372 = scmp.eq.s32.totalorder %s30, 1
      %p373 = por %p371, %p372
      %p375 = scmp.ne.s32.totalorder %s358, %s374
      %p376 = scmp.eq.s32.totalorder %s30, 0
      %p377 = por %p375, %p376
      %p378 = scmp.le.s32.totalorder 1, %s24
      %p379 = scmp.lt.s32.totalorder %s24, 3
      %p380 = pnand %p378, %p379
      %p381 = pneg %p380
      // Predicated region
      $region9: #{lenet_forward.1} parent=5 // pred_check
        _
      $region10: #{lenet_forward.1} parent=5 // pred_check_branch
        %383 = sbr.rel (%p380) target = $region12
      $region11: #{lenet_forward.1} parent=5 // pred_region
        %s384 = ssub.s32 %s24, 1
        // Predicated region
        $region13: #{lenet_forward.1} parent=11 // pred_check
          %p385 = pneg %p71
        $region14: #{lenet_forward.1} parent=11 // pred_check_branch
          %387 = sbr.rel (%p385) target = $region16
        $region15: #{lenet_forward.1} parent=11 // pred_region
          _
        $region16: #{lenet_forward.1} parent=11 // pred_fallthru
          _
        // Predicated region
        $region17: #{lenet_forward.1} parent=11 // pred_check
          %p388 = pneg %p92
        $region18: #{lenet_forward.1} parent=11 // pred_check_branch
          %390 = sbr.rel (%p388) target = $region20
        $region19: #{lenet_forward.1} parent=11 // pred_region
          _
        $region20: #{lenet_forward.1} parent=11 // pred_fallthru
          _
        // Predicated region
        $region21: #{lenet_forward.1} parent=11 // pred_check
          %p391 = pneg %p113
        $region22: #{lenet_forward.1} parent=11 // pred_check_branch
          %393 = sbr.rel (%p391) target = $region24
        $region23: #{lenet_forward.1} parent=11 // pred_region
          _
        $region24: #{lenet_forward.1} parent=11 // pred_fallthru
          _
        // Predicated region
        $region25: #{lenet_forward.1} parent=11 // pred_check
          %p394 = pneg %p134
        $region26: #{lenet_forward.1} parent=11 // pred_check_branch
          %396 = sbr.rel (%p394) target = $region28
        $region27: #{lenet_forward.1} parent=11 // pred_region
          _
        $region28: #{lenet_forward.1} parent=11 // pred_fallthru
          _
        // Predicated region
        $region29: #{lenet_forward.1} parent=11 // pred_check
          %p397 = pneg %p155
        $region30: #{lenet_forward.1} parent=11 // pred_check_branch
          %399 = sbr.rel (%p397) target = $region32
        $region31: #{lenet_forward.1} parent=11 // pred_region
          _
        $region32: #{lenet_forward.1} parent=11 // pred_fallthru
          _
        // Predicated region
        $region33: #{lenet_forward.1} parent=11 // pred_check
          %p400 = pneg %p176
        $region34: #{lenet_forward.1} parent=11 // pred_check_branch
          %402 = sbr.rel (%p400) target = $region36
        $region35: #{lenet_forward.1} parent=11 // pred_region
          _
        $region36: #{lenet_forward.1} parent=11 // pred_fallthru
          _
        // Predicated region
        $region37: #{lenet_forward.1} parent=11 // pred_check
          %p403 = pneg %p197
        $region38: #{lenet_forward.1} parent=11 // pred_check_branch
          %405 = sbr.rel (%p403) target = $region40
        $region39: #{lenet_forward.1} parent=11 // pred_region
          _
        $region40: #{lenet_forward.1} parent=11 // pred_fallthru
          _
        // Predicated region
        $region41: #{lenet_forward.1} parent=11 // pred_check
          %p406 = pneg %p218
        $region42: #{lenet_forward.1} parent=11 // pred_check_branch
          %408 = sbr.rel (%p406) target = $region44
        $region43: #{lenet_forward.1} parent=11 // pred_region
          _
        $region44: #{lenet_forward.1} parent=11 // pred_fallthru
          _
        // Predicated region
        $region45: #{lenet_forward.1} parent=11 // pred_check
          %p409 = pneg %p239
        $region46: #{lenet_forward.1} parent=11 // pred_check_branch
          %411 = sbr.rel (%p409) target = $region48
        $region47: #{lenet_forward.1} parent=11 // pred_region
          _
        $region48: #{lenet_forward.1} parent=11 // pred_fallthru
          _
        // Predicated region
        $region49: #{lenet_forward.1} parent=11 // pred_check
          %p412 = pneg %p260
        $region50: #{lenet_forward.1} parent=11 // pred_check_branch
          %414 = sbr.rel (%p412) target = $region52
        $region51: #{lenet_forward.1} parent=11 // pred_region
          _
        $region52: #{lenet_forward.1} parent=11 // pred_fallthru
          _
        // Predicated region
        $region53: #{lenet_forward.1} parent=11 // pred_check
          %p415 = pneg %p281
        $region54: #{lenet_forward.1} parent=11 // pred_check_branch
          %417 = sbr.rel (%p415) target = $region56
        $region55: #{lenet_forward.1} parent=11 // pred_region
          _
        $region56: #{lenet_forward.1} parent=11 // pred_fallthru
          _
        // Predicated region
        $region57: #{lenet_forward.1} parent=11 // pred_check
          %p418 = pneg %p302
        $region58: #{lenet_forward.1} parent=11 // pred_check_branch
          %420 = sbr.rel (%p418) target = $region60
        $region59: #{lenet_forward.1} parent=11 // pred_region
          _
        $region60: #{lenet_forward.1} parent=11 // pred_fallthru
          _
        // Predicated region
        $region61: #{lenet_forward.1} parent=11 // pred_check
          %p421 = pneg %p323
        $region62: #{lenet_forward.1} parent=11 // pred_check_branch
          %423 = sbr.rel (%p421) target = $region64
        $region63: #{lenet_forward.1} parent=11 // pred_region
          _
        $region64: #{lenet_forward.1} parent=11 // pred_fallthru
          _
        // Predicated region
        $region65: #{lenet_forward.1} parent=11 // pred_check
          %p424 = pneg %p344
        $region66: #{lenet_forward.1} parent=11 // pred_check_branch
          %426 = sbr.rel (%p424) target = $region68
        $region67: #{lenet_forward.1} parent=11 // pred_region
          _
        $region68: #{lenet_forward.1} parent=11 // pred_fallthru
          _
      $region12: #{lenet_forward.1} parent=5 // pred_fallthru
        _
      %p427 = scmp.lt.s32.totalorder %s24, 2
      // Predicated region
      $region69: #{lenet_forward.1} parent=5 // pred_check
        %p428 = pneg %p427
      $region70: #{lenet_forward.1} parent=5 // pred_check_branch
        %430 = sbr.rel (%p428) target = $region72
      $region71: #{lenet_forward.1} parent=5 // pred_region
        // Predicated region
        $region73: #{lenet_forward.1} parent=71 // pred_check
          %p431 = pneg %p44
        $region74: #{lenet_forward.1} parent=71 // pred_check_branch
          %433 = sbr.rel (%p431) target = $region76
        $region75: #{lenet_forward.1} parent=71 // pred_region
          %s434 = smul.u32 4, %s24
          %p435 = scmp.lt.s32.totalorder %s434, 7
          %s436 = scalar_select %p435, %s434, 7
          %s437 = smul.addr %s436, 8
          %s438 = smul.addr %s437, 8
          %s439 = scalar_lea.vmem %s0, %s438
          %s440 = smul.u32 4, %s24
        $region76: #{lenet_forward.1} parent=71 // pred_fallthru
          _
      $region72: #{lenet_forward.1} parent=5 // pred_fallthru
        _
      %p441 = scmp.le.s32.totalorder 1, %s24
      %p442 = scmp.lt.s32.totalorder %s24, 3
      %p443 = pnand %p441, %p442
      %p444 = pneg %p443
      // Predicated region
      $region77: #{lenet_forward.1} parent=5 // pred_check
        _
      $region78: #{lenet_forward.1} parent=5 // pred_check_branch
        %446 = sbr.rel (%p443) target = $region80
      $region79: #{lenet_forward.1} parent=5 // pred_region
        %s447 = ssub.s32 %s24, 1
        %s448 = smul.u32 4, %s29
        %p449 = scmp.lt.s32.totalorder %s448, 7
        %s450 = scalar_select %p449, %s448, 7
        %s451 = smul.addr %s450, 8
        %s452 = smul.addr %s451, 8
        %s453 = scalar_lea.vmem %s0, %s452
        %p454 = pneg %p50
        %p455 = pneg %p47
        %p456 = pneg %p71
        %p457 = pneg %p68
        %p458 = pneg %p92
        %p459 = pneg %p89
        %p460 = pneg %p113
        %p461 = pneg %p110
        %p462 = pneg %p134
        %p463 = pneg %p131
        %p464 = pneg %p155
        %p465 = pneg %p152
        %p466 = pneg %p176
        %p467 = pneg %p173
        %p468 = pneg %p197
        %p469 = pneg %p194
        %p470 = pneg %p218
        %p471 = pneg %p215
        %p472 = pneg %p239
        %p473 = pneg %p236
        %p474 = pneg %p260
        %p475 = pneg %p257
        %p476 = pneg %p281
        %p477 = pneg %p278
        %p478 = pneg %p302
        %p479 = pneg %p299
        %p480 = pneg %p323
        %p481 = pneg %p320
        %p482 = pneg %p344
        %p483 = pneg %p341
        %p484 = pneg %p370
        %p485 = pneg %p367
        %s486 = sand.u32 %s357, 1
        %s487 = scalar_lea.sflag [#allocation4], %s486
        %s488 = sand.u32 %s357, 1
        %s489 = smul.addr %s488, 4
        %s490 = scalar_lea.vmem [#allocation3], %s489
        %s491 = smul.u32 4, %s29
        %p492 = scmp.lt.s32.totalorder %s491, 7
        %s493 = scalar_select %p492, %s491, 7
        %s494 = smul.addr %s493, 8
        %s495 = smul.addr %s494, 8
        %s496 = scalar_lea.vmem %s0, %s495
        %s497 = smul.u32 4, %s29
        %v498 = vld [vmem:[%s496] sm:$0xff]
        %v499 = vld [vmem:[%s496 + $0x8] sm:$0xff]
        %v500 = vld [vmem:[%s496 + $0x10] sm:$0xff]
        %v501 = vld [vmem:[%s496 + $0x18] sm:$0xff]
        %v502 = vld [vmem:[%s496 + $0x20] sm:$0xff]
        %v503 = vld [vmem:[%s496 + $0x28] sm:$0xff]
        %v504 = vld [vmem:[%s496 + $0x30] sm:$0xf]
        %v505 = vld [vmem:[%s496 + $0x38] sm:$0xf]
        %v506 = vld [vmem:[%s1] sm:$0xff]
        %v507 = vld [vmem:[%s1 + $0x8] sm:$0xff]
        %v508 = vld [vmem:[%s1 + $0x10] sm:$0xff]
        %v509 = vld [vmem:[%s1 + $0x18] sm:$0xff]
        %v510 = vld [vmem:[%s1 + $0x20] sm:$0xff]
        %v511 = vld [vmem:[%s1 + $0x28] sm:$0xff]
        %v512 = vld [vmem:[%s1 + $0x30] sm:$0xff]
        %v513 = vld [vmem:[%s1 + $0x38] sm:$0xff]
        %v514 = vld [vmem:[%s1 + $0x40] sm:$0xff]
        %v515 = vld [vmem:[%s1 + $0x48] sm:$0xff]
        %v516 = vld [vmem:[%s1 + $0x50] sm:$0xff]
        %v517 = vld [vmem:[%s1 + $0x58] sm:$0xff]
        %v518 = vld [vmem:[%s1 + $0x60] sm:$0xff]
        %v519 = vld [vmem:[%s1 + $0x68] sm:$0xff]
        %v520 = vld [vmem:[%s1 + $0x70] sm:$0xff]
        %v521 = vld [vmem:[%s1 + $0x78] sm:$0xff]
        %v522 = vld [vmem:[%s1 + $0x80] sm:$0xff]
        %v523 = vld [vmem:[%s1 + $0x88] sm:$0xff]
        %v524 = vld [vmem:[%s1 + $0x90] sm:$0xff]
        %v525 = vld [vmem:[%s1 + $0x98] sm:$0xff]
        %v526 = vld [vmem:[%s1 + $0xa0] sm:$0xff]
        %v527 = vld [vmem:[%s1 + $0xa8] sm:$0xff]
        %v528 = vld [vmem:[%s1 + $0xb0] sm:$0xff]
        %v529 = vld [vmem:[%s1 + $0xb8] sm:$0xff]
        %v530 = vld [vmem:[%s1 + $0xc0] sm:$0xff]
        %v531 = vld [vmem:[%s1 + $0xc8] sm:$0xff]
        %v532 = vld [vmem:[%s1 + $0xd0] sm:$0xff]
        %v533 = vld [vmem:[%s1 + $0xd8] sm:$0xff]
        %v534 = vld [vmem:[%s1 + $0xe0] sm:$0xff]
        %v535 = vld [vmem:[%s1 + $0xe8] sm:$0xff]
        %v536 = vld [vmem:[%s1 + $0xf0] sm:$0xff]
        %v537 = vld [vmem:[%s1 + $0xf8] sm:$0xff]
        %v538 = vld [vmem:[%s1 + $0x100] sm:$0xff]
        %v539 = vld [vmem:[%s1 + $0x108] sm:$0xff]
        %v540 = vld [vmem:[%s1 + $0x110] sm:$0xff]
        %v541 = vld [vmem:[%s1 + $0x118] sm:$0xff]
        %v542 = vld [vmem:[%s1 + $0x120] sm:$0xff]
        %v543 = vld [vmem:[%s1 + $0x128] sm:$0xff]
        %v544 = vld [vmem:[%s1 + $0x130] sm:$0xff]
        %v545 = vld [vmem:[%s1 + $0x138] sm:$0xff]
        %v546 = vld [vmem:[%s2] sm:$0x3]
        %v548 = vlaneseq
        %v549 = vshrl.u32 %v548, 7
        %v550 = vsub.s32 0, %v549
        %v551 = vrot.slane %v546, %v550
        %v552 = vlaneseq
        %v553 = vshrl.u32 %v552, 7
        %v554 = vsub.s32 1, %v553
        %v555 = vrot.slane %v546, %v554
        %vm558 = vcmask 261120
        %v560 = vsel %vm558, %v499, 0
        %v563 = vsel %vm558, %v501, 0
        %v566 = vsel %vm558, %v503, 0
        %v569 = vsel %vm558, %v505, 0
        %571 = vmatprep.subr.mxu0 %v507
        %572 = vmatpush1.msra.mxu0 %v506
        %573 = vmatprep.subr.mxu0 %v509
        %574 = vmatpush1.msra.mxu0 %v508
        %575 = vmatprep.subr.mxu0 %v511
        %576 = vmatpush1.msra.mxu0 %v510
        %577 = vmatprep.subr.mxu0 %v513
        %578 = vmatpush1.msra.mxu0 %v512
        %579 = vmatprep.subr.mxu0 %v515
        %580 = vmatpush1.msra.mxu0 %v514
        %581 = vmatprep.subr.mxu0 %v517
        %582 = vmatpush1.msra.mxu0 %v516
        %583 = vmatprep.subr.mxu0 %v519
        %584 = vmatpush1.msra.mxu0 %v518
        %585 = vmatprep.subr.mxu0 %v521
        %586 = vmatpush1.msra.mxu0 %v520
        %587 = vmatprep.subr.mxu0 %v523
        %588 = vmatpush1.msra.mxu0 %v522
        %589 = vmatprep.subr.mxu0 %v525
        %590 = vmatpush1.msra.mxu0 %v524
        %591 = vmatprep.subr.mxu0 %v527
        %592 = vmatpush1.msra.mxu0 %v526
        %593 = vmatprep.subr.mxu0 %v529
        %594 = vmatpush1.msra.mxu0 %v528
        %595 = vmatprep.subr.mxu0 %v531
        %596 = vmatpush1.msra.mxu0 %v530
        %597 = vmatprep.subr.mxu0 %v533
        %598 = vmatpush1.msra.mxu0 %v532
        %599 = vmatprep.subr.mxu0 %v535
        %600 = vmatpush1.msra.mxu0 %v534
        %601 = vmatprep.subr.mxu0 %v537
        %602 = vmatpush1.msra.mxu0 %v536
        %603 = vmatprep.subr.mxu0 %v539
        %604 = vmatpush1.msra.mxu0 %v538
        %605 = vmatprep.subr.mxu0 %v541
        %606 = vmatpush1.msra.mxu0 %v540
        %607 = vmatprep.subr.mxu0 %v543
        %608 = vmatpush1.msra.mxu0 %v542
        %609 = vmatprep.subr.mxu0 %v545
        %610 = vmatpush1.msra.mxu0 %v544
        %611 = vmatprep.subr.mxu0 0.0
        %612 = vmatpush1.msra.mxu0 0.0
        %613 = vmatprep.subr.mxu0 0.0
        %614 = vmatpush1.msra.mxu0 0.0
        %615 = vmatprep.subr.mxu0 0.0
        %616 = vmatpush1.msra.mxu0 0.0
        %617 = vmatprep.subr.mxu0 0.0
        %618 = vmatpush1.msra.mxu0 0.0
        %619 = vmatprep.subr.mxu0 0.0
        %620 = vmatpush1.msra.mxu0 0.0
        %621 = vmatprep.subr.mxu0 0.0
        %622 = vmatpush1.msra.mxu0 0.0
        %623 = vmatprep.subr.mxu0 0.0
        %624 = vmatpush1.msra.mxu0 0.0
        %625 = vmatprep.subr.mxu0 0.0
        %626 = vmatpush1.msra.mxu0 0.0
        %627 = vmatprep.subr.mxu0 0.0
        %628 = vmatpush1.msra.mxu0 0.0
        %629 = vmatprep.subr.mxu0 0.0
        %630 = vmatpush1.msra.mxu0 0.0
        %631 = vmatprep.subr.mxu0 0.0
        %632 = vmatpush1.msra.mxu0 0.0
        %633 = vmatprep.subr.mxu0 0.0
        %634 = vmatpush1.msra.mxu0 0.0
        %635 = vmatprep.mubr.f32.mxu0 %v560
        %636 = vmatmul.mubr.f32.gmra.mrb[0].mxu0 %v498
        %v637 = vpop.f32.mrb[0].mxu0
        %v638 = vadd.f32 %v551, %v637
        %v639 = vpop.f32.mrb[0].mxu0
        %v640 = vadd.f32 %v555, %v639
        %641 = vmatprep.mubr.f32.mxu0 %v563
        %642 = vmatmul.mubr.f32.gmra.mrb[0].mxu0 %v500
        %v643 = vpop.f32.mrb[0].mxu0
        %v644 = vadd.f32 %v551, %v643
        %v645 = vpop.f32.mrb[0].mxu0
        %v646 = vadd.f32 %v555, %v645
        %647 = vmatprep.mubr.f32.mxu0 %v566
        %648 = vmatmul.mubr.f32.gmra.mrb[0].mxu0 %v502
        %v649 = vpop.f32.mrb[0].mxu0
        %v650 = vadd.f32 %v551, %v649
        %v651 = vpop.f32.mrb[0].mxu0
        %v652 = vadd.f32 %v555, %v651
        %653 = vmatprep.mubr.f32.mxu0 %v569
        %654 = vmatmul.mubr.f32.gmra.mrb[0].mxu0 %v504
        %v655 = vpop.f32.mrb[0].mxu0
        %v656 = vadd.f32 %v551, %v655
        %v657 = vpop.f32.mrb[0].mxu0
        %v658 = vadd.f32 %v555, %v657
        %659 = vdwg.mxu0
        %v660 = vmul.f32 %v638, 0.5
        %v661 = vmul.f32 %v640, 0.5
        %v662 = vmul.f32 %v644, 0.5
        %v663 = vmul.f32 %v646, 0.5
        %v664 = vmul.f32 %v650, 0.5
        %v665 = vmul.f32 %v652, 0.5
        %v666 = vmul.f32 %v656, 0.5
        %v667 = vmul.f32 %v658, 0.5
        %v668 = vtanh.pop %v660
        %v669 = vtanh.pop %v661
        %v670 = vtanh.pop %v662
        %v671 = vtanh.pop %v663
        %v672 = vtanh.pop %v664
        %v673 = vtanh.pop %v665
        %v674 = vtanh.pop %v666
        %v675 = vtanh.pop %v667
        %v676 = vadd.f32 %v668, 1.0
        %v677 = vadd.f32 %v669, 1.0
        %v678 = vadd.f32 %v670, 1.0
        %v679 = vadd.f32 %v671, 1.0
        %v680 = vadd.f32 %v672, 1.0
        %v681 = vadd.f32 %v673, 1.0
        %v682 = vadd.f32 %v674, 1.0
        %v683 = vadd.f32 %v675, 1.0
        %v684 = vmul.f32 %v676, 0.5
        %v685 = vmul.f32 %v677, 0.5
        %v686 = vmul.f32 %v678, 0.5
        %v687 = vmul.f32 %v679, 0.5
        %v688 = vmul.f32 %v680, 0.5
        %v689 = vmul.f32 %v681, 0.5
        %v690 = vmul.f32 %v682, 0.5
        %v691 = vmul.f32 %v683, 0.5
        %v692 = vld [vmem:[%s3] sm:$0xff]
        %v693 = vld [vmem:[%s3 + $0x8] sm:$0xff]
        %v694 = vld [vmem:[%s3 + $0x10] sm:$0x3]
        %vm695 = vcmask 228352
        %v697 = vsel %vm695, %v692, 0
        %v700 = vsel %vm695, %v693, 0
        %v703 = vsel %vm695, %v694, 0
        %vm705 = vcmask 1043456
        %v707 = vsel %vm705, %v690, 0
        %v710 = vsel %vm705, %v691, 0
        %712 = vmatprep.subr.mxu0 %v685
        %713 = vmatpush1.msra.mxu0 %v684
        %714 = vmatprep.subr.mxu0 %v687
        %715 = vmatpush1.msra.mxu0 %v686
        %716 = vmatprep.subr.mxu0 %v689
        %717 = vmatpush1.msra.mxu0 %v688
        %718 = vmatprep.subr.mxu0 %v710
        %719 = vmatpush1.msra.mxu0 %v707
        %720 = vmatprep.subr.mxu0 0.0
        %721 = vmatpush1.msra.mxu0 0.0
        %722 = vmatprep.subr.mxu0 0.0
        %723 = vmatpush1.msra.mxu0 0.0
        %724 = vmatprep.subr.mxu0 0.0
        %725 = vmatpush1.msra.mxu0 0.0
        %726 = vmatprep.subr.mxu0 0.0
        %727 = vmatpush1.msra.mxu0 0.0
        %728 = vmatprep.subr.mxu0 0.0
        %729 = vmatpush1.msra.mxu0 0.0
        %730 = vmatprep.subr.mxu0 0.0
        %731 = vmatpush1.msra.mxu0 0.0
        %732 = vmatprep.subr.mxu0 0.0
        %733 = vmatpush1.msra.mxu0 0.0
        %734 = vmatprep.subr.mxu0 0.0
        %735 = vmatpush1.msra.mxu0 0.0
        %736 = vmatprep.subr.mxu0 0.0
        %737 = vmatpush1.msra.mxu0 0.0
        %738 = vmatprep.subr.mxu0 0.0
        %739 = vmatpush1.msra.mxu0 0.0
        %740 = vmatprep.subr.mxu0 0.0
        %741 = vmatpush1.msra.mxu0 0.0
        %742 = vmatprep.subr.mxu0 0.0
        %743 = vmatpush1.msra.mxu0 0.0
        %744 = vmatprep.subr.mxu0 0.0
        %745 = vmatpush1.msra.mxu0 0.0
        %746 = vmatprep.subr.mxu0 0.0
        %747 = vmatpush1.msra.mxu0 0.0
        %748 = vmatprep.subr.mxu0 0.0
        %749 = vmatpush1.msra.mxu0 0.0
        %750 = vmatprep.subr.mxu0 0.0
        %751 = vmatpush1.msra.mxu0 0.0
        %752 = vmatprep.subr.mxu0 0.0
        %753 = vmatpush1.msra.mxu0 0.0
        %754 = vmatprep.subr.mxu0 0.0
        %755 = vmatpush1.msra.mxu0 0.0
        %756 = vmatprep.subr.mxu0 0.0
        %757 = vmatpush1.msra.mxu0 0.0
        %758 = vmatprep.subr.mxu0 0.0
        %759 = vmatpush1.msra.mxu0 0.0
        %760 = vmatprep.subr.mxu0 0.0
        %761 = vmatpush1.msra.mxu0 0.0
        %762 = vmatprep.subr.mxu0 0.0
        %763 = vmatpush1.msra.mxu0 0.0
        %764 = vmatprep.subr.mxu0 0.0
        %765 = vmatpush1.msra.mxu0 0.0
        %766 = vmatprep.subr.mxu0 0.0
        %767 = vmatpush1.msra.mxu0 0.0
        %768 = vmatprep.subr.mxu0 0.0
        %769 = vmatpush1.msra.mxu0 0.0
        %770 = vmatprep.subr.mxu0 0.0
        %771 = vmatpush1.msra.mxu0 0.0
        %772 = vmatprep.subr.mxu0 0.0
        %773 = vmatpush1.msra.mxu0 0.0
        %774 = vmatprep.subr.mxu0 0.0
        %775 = vmatpush1.msra.mxu0 0.0
        %776 = vmatprep.mubr.f32.mxu0 0.0
        %777 = vmatmul.mubr.f32.gmra.mrb[0].mxu0 %v697
        %v778 = vpop.f32.mrb[0].mxu0
        %v779 = vadd.f32 0.0, %v778
        %v780 = vpop.f32.mrb[0].mxu0
        %v781 = vadd.f32 0.0, %v780
        %782 = vmatprep.mubr.f32.mxu0 0.0
        %783 = vmatmul.mubr.f32.gmra.mrb[0].mxu0 %v700
        %v784 = vpop.f32.mrb[0].mxu0
        %v785 = vadd.f32 0.0, %v784
        %v786 = vpop.f32.mrb[0].mxu0
        %v787 = vadd.f32 0.0, %v786
        %788 = vmatprep.mubr.f32.mxu0 0.0
        %789 = vmatmul.mubr.f32.gmra.mrb[0].mxu0 %v703
        %v790 = vpop.f32.mrb[0].mxu0
        %v791 = vadd.f32 0.0, %v790
        %v792 = vpop.f32.mrb[0].mxu0
        %v793 = vadd.f32 0.0, %v792
        %794 = vdwg.mxu0
        %v795 = vld [vmem:[%s4] sm:$0xff]
        %v796 = vld [vmem:[%s4 + $0x8] sm:$0xff]
        %v797 = vld [vmem:[%s4 + $0x10] sm:$0xff]
        %v798 = vld [vmem:[%s4 + $0x18] sm:$0xff]
        %v799 = vld [vmem:[%s4 + $0x20] sm:$0xff]
        %v800 = vld [vmem:[%s4 + $0x28] sm:$0xff]
        %v801 = vld [vmem:[%s4 + $0x30] sm:$0xff]
        %v802 = vld [vmem:[%s4 + $0x38] sm:$0xff]
        %v803 = vld [vmem:[%s4 + $0x40] sm:$0xff]
        %v804 = vld [vmem:[%s4 + $0x48] sm:$0xff]
        %v805 = vld [vmem:[%s4 + $0x50] sm:$0xff]
        %v806 = vld [vmem:[%s4 + $0x58] sm:$0xff]
        %v807 = vld [vmem:[%s4 + $0x60] sm:$0xff]
        %v808 = vld [vmem:[%s4 + $0x68] sm:$0xff]
        %v809 = vld [vmem:[%s4 + $0x70] sm:$0xff]
        %v810 = vld [vmem:[%s4 + $0x78] sm:$0xff]
        %v811 = vld [vmem:[%s4 + $0x80] sm:$0xff]
        %v812 = vld [vmem:[%s4 + $0x88] sm:$0xff]
        %v813 = vld [vmem:[%s4 + $0x90] sm:$0xff]
        %v814 = vld [vmem:[%s4 + $0x98] sm:$0xff]
        %v815 = vld [vmem:[%s4 + $0xa0] sm:$0xff]
        %vm816 = vcmask 326656
        %v818 = vsel %vm816, %v781, 0
        %v821 = vsel %vm816, %v787, 0
        %v824 = vsel %vm816, %v793, 0
        %826 = vmatprep.subr.mxu0 0.0
        %827 = vmatpush1.msra.mxu0 %v795
        %828 = vmatprep.subr.mxu0 0.0
        %829 = vmatpush1.msra.mxu0 %v796
        %830 = vmatprep.subr.mxu0 0.0
        %831 = vmatpush1.msra.mxu0 %v797
        %832 = vmatprep.subr.mxu0 0.0
        %833 = vmatpush1.msra.mxu0 %v798
        %834 = vmatprep.subr.mxu0 0.0
        %835 = vmatpush1.msra.mxu0 %v799
        %836 = vmatprep.subr.mxu0 0.0
        %837 = vmatpush1.msra.mxu0 %v800
        %838 = vmatprep.subr.mxu0 0.0
        %839 = vmatpush1.msra.mxu0 %v801
        %840 = vmatprep.subr.mxu0 0.0
        %841 = vmatpush1.msra.mxu0 %v802
        %842 = vmatprep.subr.mxu0 0.0
        %843 = vmatpush1.msra.mxu0 %v803
        %844 = vmatprep.subr.mxu0 0.0
        %845 = vmatpush1.msra.mxu0 %v804
        %846 = vmatprep.subr.mxu0 0.0
        %847 = vmatpush1.msra.mxu0 %v805
        %848 = vmatprep.subr.mxu0 0.0
        %849 = vmatpush1.msra.mxu0 %v806
        %850 = vmatprep.subr.mxu0 0.0
        %851 = vmatpush1.msra.mxu0 %v807
        %852 = vmatprep.subr.mxu0 0.0
        %853 = vmatpush1.msra.mxu0 %v808
        %854 = vmatprep.subr.mxu0 0.0
        %855 = vmatpush1.msra.mxu0 %v809
        %856 = vmatprep.subr.mxu0 0.0
        %857 = vmatpush1.msra.mxu0 %v810
        %858 = vmatprep.subr.mxu0 0.0
        %859 = vmatpush1.msra.mxu0 %v811
        %860 = vmatprep.subr.mxu0 0.0
        %861 = vmatpush1.msra.mxu0 %v812
        %862 = vmatprep.subr.mxu0 0.0
        %863 = vmatpush1.msra.mxu0 %v813
        %864 = vmatprep.subr.mxu0 0.0
        %865 = vmatpush1.msra.mxu0 %v814
        %866 = vmatprep.subr.mxu0 0.0
        %867 = vmatpush1.msra.mxu0 %v815
        %868 = vmatprep.subr.mxu0 0.0
        %869 = vmatpush1.msra.mxu0 0.0
        %870 = vmatprep.subr.mxu0 0.0
        %871 = vmatpush1.msra.mxu0 0.0
        %872 = vmatprep.subr.mxu0 0.0
        %873 = vmatpush1.msra.mxu0 0.0
        %874 = vmatprep.subr.mxu0 0.0
        %875 = vmatpush1.msra.mxu0 0.0
        %876 = vmatprep.subr.mxu0 0.0
        %877 = vmatpush1.msra.mxu0 0.0
        %878 = vmatprep.subr.mxu0 0.0
        %879 = vmatpush1.msra.mxu0 0.0
        %880 = vmatprep.subr.mxu0 0.0
        %881 = vmatpush1.msra.mxu0 0.0
        %882 = vmatprep.subr.mxu0 0.0
        %883 = vmatpush1.msra.mxu0 0.0
        %884 = vmatprep.subr.mxu0 0.0
        %885 = vmatpush1.msra.mxu0 0.0
        %886 = vmatprep.subr.mxu0 0.0
        %887 = vmatpush1.msra.mxu0 0.0
        %888 = vmatprep.subr.mxu0 0.0
        %889 = vmatpush1.msra.mxu0 0.0
        %890 = vmatprep.mubr.f32.mxu0 %v818
        %891 = vmatmul.mubr.f32.gmra.mrb[0].mxu0 %v779
        %v892 = vpop.f32.mrb[0].mxu0
        %v893 = vadd.f32 0.0, %v892
        %v894 = vpop.f32.mrb[0].mxu0
        %895 = vmatprep.mubr.f32.mxu0 %v821
        %896 = vmatmul.mubr.f32.gmra.mrb[0].mxu0 %v785
        %v897 = vpop.f32.mrb[0].mxu0
        %v898 = vadd.f32 0.0, %v897
        %v899 = vpop.f32.mrb[0].mxu0
        %900 = vmatprep.mubr.f32.mxu0 %v824
        %901 = vmatmul.mubr.f32.gmra.mrb[0].mxu0 %v791
        %v902 = vpop.f32.mrb[0].mxu0
        %v903 = vadd.f32 0.0, %v902
        %v904 = vpop.f32.mrb[0].mxu0
        %905 = vdwg.mxu0
        %v906 = vld [vmem:[%s5] sm:$0xff]
        %v907 = vld [vmem:[%s5 + $0x8] sm:$0xff]
        %v908 = vld [vmem:[%s5 + $0x10] sm:$0xff]
        %v909 = vld [vmem:[%s5 + $0x18] sm:$0xff]
        %v910 = vld [vmem:[%s5 + $0x20] sm:$0xff]
        %v911 = vld [vmem:[%s5 + $0x28] sm:$0xff]
        %v912 = vld [vmem:[%s5 + $0x30] sm:$0xff]
        %v913 = vld [vmem:[%s5 + $0x38] sm:$0xff]
        %v914 = vld [vmem:[%s5 + $0x40] sm:$0xff]
        %v915 = vld [vmem:[%s5 + $0x48] sm:$0xff]
        %v916 = vld [vmem:[%s5 + $0x50] sm:$0xff]
        %v917 = vld [vmem:[%s5 + $0x58] sm:$0xff]
        %v918 = vld [vmem:[%s5 + $0x60] sm:$0xff]
        %v919 = vld [vmem:[%s5 + $0x68] sm:$0xff]
        %v920 = vld [vmem:[%s5 + $0x70] sm:$0xff]
        %v921 = vld [vmem:[%s5 + $0x78] sm:$0xff]
        %v922 = vld [vmem:[%s5 + $0x80] sm:$0xff]
        %v923 = vld [vmem:[%s5 + $0x88] sm:$0xff]
        %v924 = vld [vmem:[%s5 + $0x90] sm:$0xff]
        %v925 = vld [vmem:[%s5 + $0x98] sm:$0xff]
        %v926 = vld [vmem:[%s5 + $0xa0] sm:$0xff]
        %v927 = vld [vmem:[%s5 + $0xa8] sm:$0xff]
        %v928 = vld [vmem:[%s5 + $0xb0] sm:$0xff]
        %v929 = vld [vmem:[%s5 + $0xb8] sm:$0xff]
        %v930 = vld [vmem:[%s5 + $0xc0] sm:$0xff]
        %v931 = vld [vmem:[%s5 + $0xc8] sm:$0xff]
        %v932 = vld [vmem:[%s5 + $0xd0] sm:$0xf]
        %v933 = vld [vmem:[%s5 + $0xd8] sm:$0xf]
        %s934 = scalar_lea.vmem %s5, 224
        %v935 = vld [vmem:[%s934] sm:$0xff]
        %v936 = vld [vmem:[%s934 + $0x8] sm:$0xff]
        %v937 = vld [vmem:[%s934 + $0x10] sm:$0xff]
        %v938 = vld [vmem:[%s934 + $0x18] sm:$0xff]
        %v939 = vld [vmem:[%s934 + $0x20] sm:$0xff]
        %v940 = vld [vmem:[%s934 + $0x28] sm:$0xff]
        %v941 = vld [vmem:[%s934 + $0x30] sm:$0xff]
        %v942 = vld [vmem:[%s934 + $0x38] sm:$0xff]
        %v943 = vld [vmem:[%s934 + $0x40] sm:$0xff]
        %v944 = vld [vmem:[%s934 + $0x48] sm:$0xff]
        %v945 = vld [vmem:[%s934 + $0x50] sm:$0xff]
        %v946 = vld [vmem:[%s934 + $0x58] sm:$0xff]
        %v947 = vld [vmem:[%s934 + $0x60] sm:$0xff]
        %v948 = vld [vmem:[%s934 + $0x68] sm:$0xff]
        %v949 = vld [vmem:[%s934 + $0x70] sm:$0xff]
        %v950 = vld [vmem:[%s934 + $0x78] sm:$0xff]
        %v951 = vld [vmem:[%s934 + $0x80] sm:$0xff]
        %v952 = vld [vmem:[%s934 + $0x88] sm:$0xff]
        %v953 = vld [vmem:[%s934 + $0x90] sm:$0xff]
        %v954 = vld [vmem:[%s934 + $0x98] sm:$0xff]
        %v955 = vld [vmem:[%s934 + $0xa0] sm:$0xff]
        %v956 = vld [vmem:[%s934 + $0xa8] sm:$0xff]
        %v957 = vld [vmem:[%s934 + $0xb0] sm:$0xff]
        %v958 = vld [vmem:[%s934 + $0xb8] sm:$0xff]
        %v959 = vld [vmem:[%s934 + $0xc0] sm:$0xff]
        %v960 = vld [vmem:[%s934 + $0xc8] sm:$0xff]
        %v961 = vld [vmem:[%s934 + $0xd0] sm:$0xf]
        %v962 = vld [vmem:[%s934 + $0xd8] sm:$0xf]
        %vm965 = vcmask 1046528
        %v966 = vrot.slane %v893, 1
        %v967 = vrot.slane %v898, 1
        %v968 = vsel %vm965, %v966, %v967
        %vm969 = vcmask 883712
        %v970 = vsel %vm969, %v968, 0
        %v972 = vsel %vm969, %v967, 0
        %v975 = vsel %vm705, %v961, 0
        %v978 = vsel %vm705, %v962, 0
        %980 = vmatprep.subr.mxu0 %v936
        %981 = vmatpush1.msra.mxu0 %v935
        %982 = vmatprep.subr.mxu0 %v938
        %983 = vmatpush1.msra.mxu0 %v937
        %984 = vmatprep.subr.mxu0 %v940
        %985 = vmatpush1.msra.mxu0 %v939
        %986 = vmatprep.subr.mxu0 %v942
        %987 = vmatpush1.msra.mxu0 %v941
        %988 = vmatprep.subr.mxu0 %v944
        %989 = vmatpush1.msra.mxu0 %v943
        %990 = vmatprep.subr.mxu0 %v946
        %991 = vmatpush1.msra.mxu0 %v945
        %992 = vmatprep.subr.mxu0 %v948
        %993 = vmatpush1.msra.mxu0 %v947
        %994 = vmatprep.subr.mxu0 %v950
        %995 = vmatpush1.msra.mxu0 %v949
        %996 = vmatprep.subr.mxu0 %v952
        %997 = vmatpush1.msra.mxu0 %v951
        %998 = vmatprep.subr.mxu0 %v954
        %999 = vmatpush1.msra.mxu0 %v953
        %1000 = vmatprep.subr.mxu0 %v956
        %1001 = vmatpush1.msra.mxu0 %v955
        %1002 = vmatprep.subr.mxu0 %v958
        %1003 = vmatpush1.msra.mxu0 %v957
        %1004 = vmatprep.subr.mxu0 %v960
        %1005 = vmatpush1.msra.mxu0 %v959
        %1006 = vmatprep.subr.mxu0 %v978
        %1007 = vmatpush1.msra.mxu0 %v975
        %1008 = vmatprep.subr.mxu0 0.0
        %1009 = vmatpush1.msra.mxu0 0.0
        %1010 = vmatprep.subr.mxu0 0.0
        %1011 = vmatpush1.msra.mxu0 0.0
        %1012 = vmatprep.subr.mxu0 0.0
        %1013 = vmatpush1.msra.mxu0 0.0
        %1014 = vmatprep.subr.mxu0 0.0
        %1015 = vmatpush1.msra.mxu0 0.0
        %1016 = vmatprep.subr.mxu0 0.0
        %1017 = vmatpush1.msra.mxu0 0.0
        %1018 = vmatprep.subr.mxu0 0.0
        %1019 = vmatpush1.msra.mxu0 0.0
        %1020 = vmatprep.subr.mxu0 0.0
        %1021 = vmatpush1.msra.mxu0 0.0
        %1022 = vmatprep.subr.mxu0 0.0
        %1023 = vmatpush1.msra.mxu0 0.0
        %1024 = vmatprep.subr.mxu0 0.0
        %1025 = vmatpush1.msra.mxu0 0.0
        %1026 = vmatprep.subr.mxu0 0.0
        %1027 = vmatpush1.msra.mxu0 0.0
        %1028 = vmatprep.subr.mxu0 0.0
        %1029 = vmatpush1.msra.mxu0 0.0
        %1030 = vmatprep.subr.mxu0 0.0
        %1031 = vmatpush1.msra.mxu0 0.0
        %1032 = vmatprep.subr.mxu0 0.0
        %1033 = vmatpush1.msra.mxu0 0.0
        %1034 = vmatprep.subr.mxu0 0.0
        %1035 = vmatpush1.msra.mxu0 0.0
        %1036 = vmatprep.subr.mxu0 0.0
        %1037 = vmatpush1.msra.mxu0 0.0
        %1038 = vmatprep.subr.mxu0 0.0
        %1039 = vmatpush1.msra.mxu0 0.0
        %1040 = vmatprep.subr.mxu0 0.0
        %1041 = vmatpush1.msra.mxu0 0.0
        %1042 = vmatprep.subr.mxu0 0.0
        %1043 = vmatpush1.msra.mxu0 0.0
        %1044 = vmatprep.mubr.f32.mxu0 0.0
        %1045 = vmatmul.mubr.f32.gmra.mrb[0].mxu0 %v970
        %v1046 = vpop.f32.mrb[0].mxu0
        %v1047 = vadd.f32 0.0, %v1046
        %v1048 = vpop.f32.mrb[0].mxu0
        %v1049 = vadd.f32 0.0, %v1048
        %1050 = vmatprep.mubr.f32.mxu0 0.0
        %1051 = vmatmul.mubr.f32.gmra.mrb[0].mxu0 %v972
        %v1052 = vpop.f32.mrb[0].mxu0
        %v1053 = vadd.f32 0.0, %v1052
        %v1054 = vpop.f32.mrb[0].mxu0
        %v1055 = vadd.f32 0.0, %v1054
        %1056 = vdwg.mxu0
        %v1057 = vsel %vm969, %v893, 0
        %v1059 = vsel %vm969, %v898, 0
        %v1062 = vsel %vm705, %v932, 0
        %v1065 = vsel %vm705, %v933, 0
        %1067 = vmatprep.subr.mxu0 %v907
        %1068 = vmatpush1.msra.mxu0 %v906
        %1069 = vmatprep.subr.mxu0 %v909
        %1070 = vmatpush1.msra.mxu0 %v908
        %1071 = vmatprep.subr.mxu0 %v911
        %1072 = vmatpush1.msra.mxu0 %v910
        %1073 = vmatprep.subr.mxu0 %v913
        %1074 = vmatpush1.msra.mxu0 %v912
        %1075 = vmatprep.subr.mxu0 %v915
        %1076 = vmatpush1.msra.mxu0 %v914
        %1077 = vmatprep.subr.mxu0 %v917
        %1078 = vmatpush1.msra.mxu0 %v916
        %1079 = vmatprep.subr.mxu0 %v919
        %1080 = vmatpush1.msra.mxu0 %v918
        %1081 = vmatprep.subr.mxu0 %v921
        %1082 = vmatpush1.msra.mxu0 %v920
        %1083 = vmatprep.subr.mxu0 %v923
        %1084 = vmatpush1.msra.mxu0 %v922
        %1085 = vmatprep.subr.mxu0 %v925
        %1086 = vmatpush1.msra.mxu0 %v924
        %1087 = vmatprep.subr.mxu0 %v927
        %1088 = vmatpush1.msra.mxu0 %v926
        %1089 = vmatprep.subr.mxu0 %v929
        %1090 = vmatpush1.msra.mxu0 %v928
        %1091 = vmatprep.subr.mxu0 %v931
        %1092 = vmatpush1.msra.mxu0 %v930
        %1093 = vmatprep.subr.mxu0 %v1065
        %1094 = vmatpush1.msra.mxu0 %v1062
        %1095 = vmatprep.subr.mxu0 0.0
        %1096 = vmatpush1.msra.mxu0 0.0
        %1097 = vmatprep.subr.mxu0 0.0
        %1098 = vmatpush1.msra.mxu0 0.0
        %1099 = vmatprep.subr.mxu0 0.0
        %1100 = vmatpush1.msra.mxu0 0.0
        %1101 = vmatprep.subr.mxu0 0.0
        %1102 = vmatpush1.msra.mxu0 0.0
        %1103 = vmatprep.subr.mxu0 0.0
        %1104 = vmatpush1.msra.mxu0 0.0
        %1105 = vmatprep.subr.mxu0 0.0
        %1106 = vmatpush1.msra.mxu0 0.0
        %1107 = vmatprep.subr.mxu0 0.0
        %1108 = vmatpush1.msra.mxu0 0.0
        %1109 = vmatprep.subr.mxu0 0.0
        %1110 = vmatpush1.msra.mxu0 0.0
        %1111 = vmatprep.subr.mxu0 0.0
        %1112 = vmatpush1.msra.mxu0 0.0
        %1113 = vmatprep.subr.mxu0 0.0
        %1114 = vmatpush1.msra.mxu0 0.0
        %1115 = vmatprep.subr.mxu0 0.0
        %1116 = vmatpush1.msra.mxu0 0.0
        %1117 = vmatprep.subr.mxu0 0.0
        %1118 = vmatpush1.msra.mxu0 0.0
        %1119 = vmatprep.subr.mxu0 0.0
        %1120 = vmatpush1.msra.mxu0 0.0
        %1121 = vmatprep.subr.mxu0 0.0
        %1122 = vmatpush1.msra.mxu0 0.0
        %1123 = vmatprep.subr.mxu0 0.0
        %1124 = vmatpush1.msra.mxu0 0.0
        %1125 = vmatprep.subr.mxu0 0.0
        %1126 = vmatpush1.msra.mxu0 0.0
        %1127 = vmatprep.subr.mxu0 0.0
        %1128 = vmatpush1.msra.mxu0 0.0
        %1129 = vmatprep.subr.mxu0 0.0
        %1130 = vmatpush1.msra.mxu0 0.0
        %1131 = vmatprep.mubr.f32.mxu0 0.0
        %1132 = vmatmul.mubr.f32.gmra.mrb[0].mxu0 %v1057
        %v1133 = vpop.f32.mrb[0].mxu0
        %v1134 = vadd.f32 %v1047, %v1133
        %v1135 = vpop.f32.mrb[0].mxu0
        %v1136 = vadd.f32 %v1049, %v1135
        %1137 = vmatprep.mubr.f32.mxu0 0.0
        %1138 = vmatmul.mubr.f32.gmra.mrb[0].mxu0 %v1059
        %v1139 = vpop.f32.mrb[0].mxu0
        %v1140 = vadd.f32 %v1053, %v1139
        %v1141 = vpop.f32.mrb[0].mxu0
        %v1142 = vadd.f32 %v1055, %v1141
        %1143 = vdwg.mxu0
        %s1144 = scalar_lea.vmem %s5, 448
        %v1145 = vld [vmem:[%s1144] sm:$0xff]
        %v1146 = vld [vmem:[%s1144 + $0x8] sm:$0xff]
        %v1147 = vld [vmem:[%s1144 + $0x10] sm:$0xff]
        %v1148 = vld [vmem:[%s1144 + $0x18] sm:$0xff]
        %v1149 = vld [vmem:[%s1144 + $0x20] sm:$0xff]
        %v1150 = vld [vmem:[%s1144 + $0x28] sm:$0xff]
        %v1151 = vld [vmem:[%s1144 + $0x30] sm:$0xff]
        %v1152 = vld [vmem:[%s1144 + $0x38] sm:$0xff]
        %v1153 = vld [vmem:[%s1144 + $0x40] sm:$0xff]
        %v1154 = vld [vmem:[%s1144 + $0x48] sm:$0xff]
        %v1155 = vld [vmem:[%s1144 + $0x50] sm:$0xff]
        %v1156 = vld [vmem:[%s1144 + $0x58] sm:$0xff]
        %v1157 = vld [vmem:[%s1144 + $0x60] sm:$0xff]
        %v1158 = vld [vmem:[%s1144 + $0x68] sm:$0xff]
        %v1159 = vld [vmem:[%s1144 + $0x70] sm:$0xff]
        %v1160 = vld [vmem:[%s1144 + $0x78] sm:$0xff]
        %v1161 = vld [vmem:[%s1144 + $0x80] sm:$0xff]
        %v1162 = vld [vmem:[%s1144 + $0x88] sm:$0xff]
        %v1163 = vld [vmem:[%s1144 + $0x90] sm:$0xff]
        %v1164 = vld [vmem:[%s1144 + $0x98] sm:$0xff]
        %v1165 = vld [vmem:[%s1144 + $0xa0] sm:$0xff]
        %v1166 = vld [vmem:[%s1144 + $0xa8] sm:$0xff]
        %v1167 = vld [vmem:[%s1144 + $0xb0] sm:$0xff]
        %v1168 = vld [vmem:[%s1144 + $0xb8] sm:$0xff]
        %v1169 = vld [vmem:[%s1144 + $0xc0] sm:$0xff]
        %v1170 = vld [vmem:[%s1144 + $0xc8] sm:$0xff]
        %v1171 = vld [vmem:[%s1144 + $0xd0] sm:$0xf]
        %v1172 = vld [vmem:[%s1144 + $0xd8] sm:$0xf]
        %vm1173 = vcmask 1045504
        %v1174 = vrot.slane %v893, 2
        %v1175 = vrot.slane %v898, 2
        %v1176 = vsel %vm1173, %v1174, %v1175
        %v1177 = vsel %vm969, %v1176, 0
        %v1179 = vsel %vm969, %v1175, 0
        %v1182 = vsel %vm705, %v1171, 0
        %v1185 = vsel %vm705, %v1172, 0
        %1187 = vmatprep.subr.mxu0 %v1146
        %1188 = vmatpush1.msra.mxu0 %v1145
        %1189 = vmatprep.subr.mxu0 %v1148
        %1190 = vmatpush1.msra.mxu0 %v1147
        %1191 = vmatprep.subr.mxu0 %v1150
        %1192 = vmatpush1.msra.mxu0 %v1149
        %1193 = vmatprep.subr.mxu0 %v1152
        %1194 = vmatpush1.msra.mxu0 %v1151
        %1195 = vmatprep.subr.mxu0 %v1154
        %1196 = vmatpush1.msra.mxu0 %v1153
        %1197 = vmatprep.subr.mxu0 %v1156
        %1198 = vmatpush1.msra.mxu0 %v1155
        %1199 = vmatprep.subr.mxu0 %v1158
        %1200 = vmatpush1.msra.mxu0 %v1157
        %1201 = vmatprep.subr.mxu0 %v1160
        %1202 = vmatpush1.msra.mxu0 %v1159
        %1203 = vmatprep.subr.mxu0 %v1162
        %1204 = vmatpush1.msra.mxu0 %v1161
        %1205 = vmatprep.subr.mxu0 %v1164
        %1206 = vmatpush1.msra.mxu0 %v1163
        %1207 = vmatprep.subr.mxu0 %v1166
        %1208 = vmatpush1.msra.mxu0 %v1165
        %1209 = vmatprep.subr.mxu0 %v1168
        %1210 = vmatpush1.msra.mxu0 %v1167
        %1211 = vmatprep.subr.mxu0 %v1170
        %1212 = vmatpush1.msra.mxu0 %v1169
        %1213 = vmatprep.subr.mxu0 %v1185
        %1214 = vmatpush1.msra.mxu0 %v1182
        %1215 = vmatprep.subr.mxu0 0.0
        %1216 = vmatpush1.msra.mxu0 0.0
        %1217 = vmatprep.subr.mxu0 0.0
        %1218 = vmatpush1.msra.mxu0 0.0
        %1219 = vmatprep.subr.mxu0 0.0
        %1220 = vmatpush1.msra.mxu0 0.0
        %1221 = vmatprep.subr.mxu0 0.0
        %1222 = vmatpush1.msra.mxu0 0.0
        %1223 = vmatprep.subr.mxu0 0.0
        %1224 = vmatpush1.msra.mxu0 0.0
        %1225 = vmatprep.subr.mxu0 0.0
        %1226 = vmatpush1.msra.mxu0 0.0
        %1227 = vmatprep.subr.mxu0 0.0
        %1228 = vmatpush1.msra.mxu0 0.0
        %1229 = vmatprep.subr.mxu0 0.0
        %1230 = vmatpush1.msra.mxu0 0.0
        %1231 = vmatprep.subr.mxu0 0.0
        %1232 = vmatpush1.msra.mxu0 0.0
        %1233 = vmatprep.subr.mxu0 0.0
        %1234 = vmatpush1.msra.mxu0 0.0
        %1235 = vmatprep.subr.mxu0 0.0
        %1236 = vmatpush1.msra.mxu0 0.0
        %1237 = vmatprep.subr.mxu0 0.0
        %1238 = vmatpush1.msra.mxu0 0.0
        %1239 = vmatprep.subr.mxu0 0.0
        %1240 = vmatpush1.msra.mxu0 0.0
        %1241 = vmatprep.subr.mxu0 0.0
        %1242 = vmatpush1.msra.mxu0 0.0
        %1243 = vmatprep.subr.mxu0 0.0
        %1244 = vmatpush1.msra.mxu0 0.0
        %1245 = vmatprep.subr.mxu0 0.0
        %1246 = vmatpush1.msra.mxu0 0.0
        %1247 = vmatprep.subr.mxu0 0.0
        %1248 = vmatpush1.msra.mxu0 0.0
        %1249 = vmatprep.subr.mxu0 0.0
        %1250 = vmatpush1.msra.mxu0 0.0
        %1251 = vmatprep.mubr.f32.mxu0 0.0
        %1252 = vmatmul.mubr.f32.gmra.mrb[0].mxu0 %v1177
        %v1253 = vpop.f32.mrb[0].mxu0
        %v1254 = vadd.f32 0.0, %v1253
        %v1255 = vpop.f32.mrb[0].mxu0
        %v1256 = vadd.f32 0.0, %v1255
        %1257 = vmatprep.mubr.f32.mxu0 0.0
        %1258 = vmatmul.mubr.f32.gmra.mrb[0].mxu0 %v1179
        %v1259 = vpop.f32.mrb[0].mxu0
        %v1260 = vadd.f32 0.0, %v1259
        %v1261 = vpop.f32.mrb[0].mxu0
        %v1262 = vadd.f32 0.0, %v1261
        %1263 = vdwg.mxu0
        %v1264 = vadd.f32 %v1134, %v1254
        %v1265 = vadd.f32 %v1136, %v1256
        %v1266 = vadd.f32 %v1140, %v1260
        %v1267 = vadd.f32 %v1142, %v1262
        %s1268 = scalar_lea.vmem %s5, 672
        %v1269 = vld [vmem:[%s1268] sm:$0xff]
        %v1270 = vld [vmem:[%s1268 + $0x8] sm:$0xff]
        %v1271 = vld [vmem:[%s1268 + $0x10] sm:$0xff]
        %v1272 = vld [vmem:[%s1268 + $0x18] sm:$0xff]
        %v1273 = vld [vmem:[%s1268 + $0x20] sm:$0xff]
        %v1274 = vld [vmem:[%s1268 + $0x28] sm:$0xff]
        %v1275 = vld [vmem:[%s1268 + $0x30] sm:$0xff]
        %v1276 = vld [vmem:[%s1268 + $0x38] sm:$0xff]
        %v1277 = vld [vmem:[%s1268 + $0x40] sm:$0xff]
        %v1278 = vld [vmem:[%s1268 + $0x48] sm:$0xff]
        %v1279 = vld [vmem:[%s1268 + $0x50] sm:$0xff]
        %v1280 = vld [vmem:[%s1268 + $0x58] sm:$0xff]
        %v1281 = vld [vmem:[%s1268 + $0x60] sm:$0xff]
        %v1282 = vld [vmem:[%s1268 + $0x68] sm:$0xff]
        %v1283 = vld [vmem:[%s1268 + $0x70] sm:$0xff]
        %v1284 = vld [vmem:[%s1268 + $0x78] sm:$0xff]
        %v1285 = vld [vmem:[%s1268 + $0x80] sm:$0xff]
        %v1286 = vld [vmem:[%s1268 + $0x88] sm:$0xff]
        %v1287 = vld [vmem:[%s1268 + $0x90] sm:$0xff]
        %v1288 = vld [vmem:[%s1268 + $0x98] sm:$0xff]
        %v1289 = vld [vmem:[%s1268 + $0xa0] sm:$0xff]
        %v1290 = vld [vmem:[%s1268 + $0xa8] sm:$0xff]
        %v1291 = vld [vmem:[%s1268 + $0xb0] sm:$0xff]
        %v1292 = vld [vmem:[%s1268 + $0xb8] sm:$0xff]
        %v1293 = vld [vmem:[%s1268 + $0xc0] sm:$0xff]
        %v1294 = vld [vmem:[%s1268 + $0xc8] sm:$0xff]
        %v1295 = vld [vmem:[%s1268 + $0xd0] sm:$0xf]
        %v1296 = vld [vmem:[%s1268 + $0xd8] sm:$0xf]
        %vm1298 = vcmask 1044480
        %v1299 = vrot.slane %v893, 3
        %v1300 = vrot.slane %v898, 3
        %v1301 = vsel %vm1298, %v1299, %v1300
        %v1302 = vrot.slane %v903, 3
        %v1303 = vsel %vm1298, %v1300, %v1302
        %v1304 = vsel %vm969, %v1301, 0
        %v1306 = vsel %vm969, %v1303, 0
        %v1309 = vsel %vm705, %v1295, 0
        %v1312 = vsel %vm705, %v1296, 0
        %1314 = vmatprep.subr.mxu0 %v1270
        %1315 = vmatpush1.msra.mxu0 %v1269
        %1316 = vmatprep.subr.mxu0 %v1272
        %1317 = vmatpush1.msra.mxu0 %v1271
        %1318 = vmatprep.subr.mxu0 %v1274
        %1319 = vmatpush1.msra.mxu0 %v1273
        %1320 = vmatprep.subr.mxu0 %v1276
        %1321 = vmatpush1.msra.mxu0 %v1275
        %1322 = vmatprep.subr.mxu0 %v1278
        %1323 = vmatpush1.msra.mxu0 %v1277
        %1324 = vmatprep.subr.mxu0 %v1280
        %1325 = vmatpush1.msra.mxu0 %v1279
        %1326 = vmatprep.subr.mxu0 %v1282
        %1327 = vmatpush1.msra.mxu0 %v1281
        %1328 = vmatprep.subr.mxu0 %v1284
        %1329 = vmatpush1.msra.mxu0 %v1283
        %1330 = vmatprep.subr.mxu0 %v1286
        %1331 = vmatpush1.msra.mxu0 %v1285
        %1332 = vmatprep.subr.mxu0 %v1288
        %1333 = vmatpush1.msra.mxu0 %v1287
        %1334 = vmatprep.subr.mxu0 %v1290
        %1335 = vmatpush1.msra.mxu0 %v1289
        %1336 = vmatprep.subr.mxu0 %v1292
        %1337 = vmatpush1.msra.mxu0 %v1291
        %1338 = vmatprep.subr.mxu0 %v1294
        %1339 = vmatpush1.msra.mxu0 %v1293
        %1340 = vmatprep.subr.mxu0 %v1312
        %1341 = vmatpush1.msra.mxu0 %v1309
        %1342 = vmatprep.subr.mxu0 0.0
        %1343 = vmatpush1.msra.mxu0 0.0
        %1344 = vmatprep.subr.mxu0 0.0
        %1345 = vmatpush1.msra.mxu0 0.0
        %1346 = vmatprep.subr.mxu0 0.0
        %1347 = vmatpush1.msra.mxu0 0.0
        %1348 = vmatprep.subr.mxu0 0.0
        %1349 = vmatpush1.msra.mxu0 0.0
        %1350 = vmatprep.subr.mxu0 0.0
        %1351 = vmatpush1.msra.mxu0 0.0
        %1352 = vmatprep.subr.mxu0 0.0
        %1353 = vmatpush1.msra.mxu0 0.0
        %1354 = vmatprep.subr.mxu0 0.0
        %1355 = vmatpush1.msra.mxu0 0.0
        %1356 = vmatprep.subr.mxu0 0.0
        %1357 = vmatpush1.msra.mxu0 0.0
        %1358 = vmatprep.subr.mxu0 0.0
        %1359 = vmatpush1.msra.mxu0 0.0
        %1360 = vmatprep.subr.mxu0 0.0
        %1361 = vmatpush1.msra.mxu0 0.0
        %1362 = vmatprep.subr.mxu0 0.0
        %1363 = vmatpush1.msra.mxu0 0.0
        %1364 = vmatprep.subr.mxu0 0.0
        %1365 = vmatpush1.msra.mxu0 0.0
        %1366 = vmatprep.subr.mxu0 0.0
        %1367 = vmatpush1.msra.mxu0 0.0
        %1368 = vmatprep.subr.mxu0 0.0
        %1369 = vmatpush1.msra.mxu0 0.0
        %1370 = vmatprep.subr.mxu0 0.0
        %1371 = vmatpush1.msra.mxu0 0.0
        %1372 = vmatprep.subr.mxu0 0.0
        %1373 = vmatpush1.msra.mxu0 0.0
        %1374 = vmatprep.subr.mxu0 0.0
        %1375 = vmatpush1.msra.mxu0 0.0
        %1376 = vmatprep.subr.mxu0 0.0
        %1377 = vmatpush1.msra.mxu0 0.0
        %1378 = vmatprep.mubr.f32.mxu0 0.0
        %1379 = vmatmul.mubr.f32.gmra.mrb[0].mxu0 %v1304
        %v1380 = vpop.f32.mrb[0].mxu0
        %v1381 = vadd.f32 0.0, %v1380
        %v1382 = vpop.f32.mrb[0].mxu0
        %v1383 = vadd.f32 0.0, %v1382
        %1384 = vmatprep.mubr.f32.mxu0 0.0
        %1385 = vmatmul.mubr.f32.gmra.mrb[0].mxu0 %v1306
        %v1386 = vpop.f32.mrb[0].mxu0
        %v1387 = vadd.f32 0.0, %v1386
        %v1388 = vpop.f32.mrb[0].mxu0
        %v1389 = vadd.f32 0.0, %v1388
        %1390 = vdwg.mxu0
        %v1391 = vadd.f32 %v1264, %v1381
        %v1392 = vadd.f32 %v1265, %v1383
        %v1393 = vadd.f32 %v1266, %v1387
        %v1394 = vadd.f32 %v1267, %v1389
        %s1395 = scalar_lea.vmem %s5, 896
        %v1396 = vld [vmem:[%s1395] sm:$0xff]
        %v1397 = vld [vmem:[%s1395 + $0x8] sm:$0xff]
        %v1398 = vld [vmem:[%s1395 + $0x10] sm:$0xff]
        %v1399 = vld [vmem:[%s1395 + $0x18] sm:$0xff]
        %v1400 = vld [vmem:[%s1395 + $0x20] sm:$0xff]
        %v1401 = vld [vmem:[%s1395 + $0x28] sm:$0xff]
        %v1402 = vld [vmem:[%s1395 + $0x30] sm:$0xff]
        %v1403 = vld [vmem:[%s1395 + $0x38] sm:$0xff]
        %v1404 = vld [vmem:[%s1395 + $0x40] sm:$0xff]
        %v1405 = vld [vmem:[%s1395 + $0x48] sm:$0xff]
        %v1406 = vld [vmem:[%s1395 + $0x50] sm:$0xff]
        %v1407 = vld [vmem:[%s1395 + $0x58] sm:$0xff]
        %v1408 = vld [vmem:[%s1395 + $0x60] sm:$0xff]
        %v1409 = vld [vmem:[%s1395 + $0x68] sm:$0xff]
        %v1410 = vld [vmem:[%s1395 + $0x70] sm:$0xff]
        %v1411 = vld [vmem:[%s1395 + $0x78] sm:$0xff]
        %v1412 = vld [vmem:[%s1395 + $0x80] sm:$0xff]
        %v1413 = vld [vmem:[%s1395 + $0x88] sm:$0xff]
        %v1414 = vld [vmem:[%s1395 + $0x90] sm:$0xff]
        %v1415 = vld [vmem:[%s1395 + $0x98] sm:$0xff]
        %v1416 = vld [vmem:[%s1395 + $0xa0] sm:$0xff]
        %v1417 = vld [vmem:[%s1395 + $0xa8] sm:$0xff]
        %v1418 = vld [vmem:[%s1395 + $0xb0] sm:$0xff]
        %v1419 = vld [vmem:[%s1395 + $0xb8] sm:$0xff]
        %v1420 = vld [vmem:[%s1395 + $0xc0] sm:$0xff]
        %v1421 = vld [vmem:[%s1395 + $0xc8] sm:$0xff]
        %v1422 = vld [vmem:[%s1395 + $0xd0] sm:$0xf]
        %v1423 = vld [vmem:[%s1395 + $0xd8] sm:$0xf]
        %v1424 = vrot.slane %v893, 4
        %v1425 = vrot.slane %v898, 4
        %v1426 = vsel %vm705, %v1424, %v1425
        %v1427 = vrot.slane %v903, 4
        %v1428 = vsel %vm705, %v1425, %v1427
        %v1429 = vsel %vm969, %v1426, 0
        %v1431 = vsel %vm969, %v1428, 0
        %v1434 = vsel %vm705, %v1422, 0
        %v1437 = vsel %vm705, %v1423, 0
        %1439 = vmatprep.subr.mxu0 %v1397
        %1440 = vmatpush1.msra.mxu0 %v1396
        %1441 = vmatprep.subr.mxu0 %v1399
        %1442 = vmatpush1.msra.mxu0 %v1398
        %1443 = vmatprep.subr.mxu0 %v1401
        %1444 = vmatpush1.msra.mxu0 %v1400
        %1445 = vmatprep.subr.mxu0 %v1403
        %1446 = vmatpush1.msra.mxu0 %v1402
        %1447 = vmatprep.subr.mxu0 %v1405
        %1448 = vmatpush1.msra.mxu0 %v1404
        %1449 = vmatprep.subr.mxu0 %v1407
        %1450 = vmatpush1.msra.mxu0 %v1406
        %1451 = vmatprep.subr.mxu0 %v1409
        %1452 = vmatpush1.msra.mxu0 %v1408
        %1453 = vmatprep.subr.mxu0 %v1411
        %1454 = vmatpush1.msra.mxu0 %v1410
        %1455 = vmatprep.subr.mxu0 %v1413
        %1456 = vmatpush1.msra.mxu0 %v1412
        %1457 = vmatprep.subr.mxu0 %v1415
        %1458 = vmatpush1.msra.mxu0 %v1414
        %1459 = vmatprep.subr.mxu0 %v1417
        %1460 = vmatpush1.msra.mxu0 %v1416
        %1461 = vmatprep.subr.mxu0 %v1419
        %1462 = vmatpush1.msra.mxu0 %v1418
        %1463 = vmatprep.subr.mxu0 %v1421
        %1464 = vmatpush1.msra.mxu0 %v1420
        %1465 = vmatprep.subr.mxu0 %v1437
        %1466 = vmatpush1.msra.mxu0 %v1434
        %1467 = vmatprep.subr.mxu0 0.0
        %1468 = vmatpush1.msra.mxu0 0.0
        %1469 = vmatprep.subr.mxu0 0.0
        %1470 = vmatpush1.msra.mxu0 0.0
        %1471 = vmatprep.subr.mxu0 0.0
        %1472 = vmatpush1.msra.mxu0 0.0
        %1473 = vmatprep.subr.mxu0 0.0
        %1474 = vmatpush1.msra.mxu0 0.0
        %1475 = vmatprep.subr.mxu0 0.0
        %1476 = vmatpush1.msra.mxu0 0.0
        %1477 = vmatprep.subr.mxu0 0.0
        %1478 = vmatpush1.msra.mxu0 0.0
        %1479 = vmatprep.subr.mxu0 0.0
        %1480 = vmatpush1.msra.mxu0 0.0
        %1481 = vmatprep.subr.mxu0 0.0
        %1482 = vmatpush1.msra.mxu0 0.0
        %1483 = vmatprep.subr.mxu0 0.0
        %1484 = vmatpush1.msra.mxu0 0.0
        %1485 = vmatprep.subr.mxu0 0.0
        %1486 = vmatpush1.msra.mxu0 0.0
        %1487 = vmatprep.subr.mxu0 0.0
        %1488 = vmatpush1.msra.mxu0 0.0
        %1489 = vmatprep.subr.mxu0 0.0
        %1490 = vmatpush1.msra.mxu0 0.0
        %1491 = vmatprep.subr.mxu0 0.0
        %1492 = vmatpush1.msra.mxu0 0.0
        %1493 = vmatprep.subr.mxu0 0.0
        %1494 = vmatpush1.msra.mxu0 0.0
        %1495 = vmatprep.subr.mxu0 0.0
        %1496 = vmatpush1.msra.mxu0 0.0
        %1497 = vmatprep.subr.mxu0 0.0
        %1498 = vmatpush1.msra.mxu0 0.0
        %1499 = vmatprep.subr.mxu0 0.0
        %1500 = vmatpush1.msra.mxu0 0.0
        %1501 = vmatprep.subr.mxu0 0.0
        %1502 = vmatpush1.msra.mxu0 0.0
        %1503 = vmatprep.mubr.f32.mxu0 0.0
        %1504 = vmatmul.mubr.f32.gmra.mrb[0].mxu0 %v1429
        %v1505 = vpop.f32.mrb[0].mxu0
        %v1506 = vadd.f32 0.0, %v1505
        %v1507 = vpop.f32.mrb[0].mxu0
        %v1508 = vadd.f32 0.0, %v1507
        %1509 = vmatprep.mubr.f32.mxu0 0.0
        %1510 = vmatmul.mubr.f32.gmra.mrb[0].mxu0 %v1431
        %v1511 = vpop.f32.mrb[0].mxu0
        %v1512 = vadd.f32 0.0, %v1511
        %v1513 = vpop.f32.mrb[0].mxu0
        %v1514 = vadd.f32 0.0, %v1513
        %1515 = vdwg.mxu0
        %v1516 = vadd.f32 %v1391, %v1506
        %v1517 = vadd.f32 %v1392, %v1508
        %v1518 = vadd.f32 %v1393, %v1512
        %v1519 = vadd.f32 %v1394, %v1514
        %v1520 = vld [vmem:[%s6] sm:$0x3]
        %v1522 = vlaneseq
        %v1523 = vshrl.u32 %v1522, 7
        %v1524 = vsub.s32 0, %v1523
        %v1525 = vrot.slane %v1520, %v1524
        %v1526 = vlaneseq
        %v1527 = vshrl.u32 %v1526, 7
        %v1528 = vsub.s32 1, %v1527
        %v1529 = vrot.slane %v1520, %v1528
        %v1532 = vadd.f32 %v1516, %v1525
        %v1533 = vadd.f32 %v1517, %v1529
        %v1534 = vadd.f32 %v1518, %v1525
        %v1535 = vadd.f32 %v1519, %v1529
        %v1536 = vmul.f32 %v1532, 0.5
        %v1537 = vmul.f32 %v1533, 0.5
        %v1538 = vmul.f32 %v1534, 0.5
        %v1539 = vmul.f32 %v1535, 0.5
        %v1540 = vtanh.pop %v1536
        %v1541 = vtanh.pop %v1537
        %v1542 = vtanh.pop %v1538
        %v1543 = vtanh.pop %v1539
        %v1544 = vadd.f32 %v1540, 1.0
        %v1545 = vadd.f32 %v1541, 1.0
        %v1546 = vadd.f32 %v1542, 1.0
        %v1547 = vadd.f32 %v1543, 1.0
        %v1548 = vmul.f32 %v1544, 0.5
        %v1549 = vmul.f32 %v1545, 0.5
        %v1550 = vmul.f32 %v1546, 0.5
        %v1551 = vmul.f32 %v1547, 0.5
        %v1552 = vld [vmem:[%s7] sm:$0x7f]
        %vm1553 = vcmask 113664
        %v1555 = vsel %vm1553, %v1552, 0
        %v1558 = vsel %vm1173, %v1550, 0
        %v1561 = vsel %vm1173, %v1551, 0
        %1563 = vmatprep.subr.mxu0 %v1549
        %1564 = vmatpush1.msra.mxu0 %v1548
        %1565 = vmatprep.subr.mxu0 %v1561
        %1566 = vmatpush1.msra.mxu0 %v1558
        %1567 = vmatprep.subr.mxu0 0.0
        %1568 = vmatpush1.msra.mxu0 0.0
        %1569 = vmatprep.subr.mxu0 0.0
        %1570 = vmatpush1.msra.mxu0 0.0
        %1571 = vmatprep.subr.mxu0 0.0
        %1572 = vmatpush1.msra.mxu0 0.0
        %1573 = vmatprep.subr.mxu0 0.0
        %1574 = vmatpush1.msra.mxu0 0.0
        %1575 = vmatprep.subr.mxu0 0.0
        %1576 = vmatpush1.msra.mxu0 0.0
        %1577 = vmatprep.subr.mxu0 0.0
        %1578 = vmatpush1.msra.mxu0 0.0
        %1579 = vmatprep.subr.mxu0 0.0
        %1580 = vmatpush1.msra.mxu0 0.0
        %1581 = vmatprep.subr.mxu0 0.0
        %1582 = vmatpush1.msra.mxu0 0.0
        %1583 = vmatprep.subr.mxu0 0.0
        %1584 = vmatpush1.msra.mxu0 0.0
        %1585 = vmatprep.subr.mxu0 0.0
        %1586 = vmatpush1.msra.mxu0 0.0
        %1587 = vmatprep.subr.mxu0 0.0
        %1588 = vmatpush1.msra.mxu0 0.0
        %1589 = vmatprep.subr.mxu0 0.0
        %1590 = vmatpush1.msra.mxu0 0.0
        %1591 = vmatprep.subr.mxu0 0.0
        %1592 = vmatpush1.msra.mxu0 0.0
        %1593 = vmatprep.subr.mxu0 0.0
        %1594 = vmatpush1.msra.mxu0 0.0
        %1595 = vmatprep.subr.mxu0 0.0
        %1596 = vmatpush1.msra.mxu0 0.0
        %1597 = vmatprep.subr.mxu0 0.0
        %1598 = vmatpush1.msra.mxu0 0.0
        %1599 = vmatprep.subr.mxu0 0.0
        %1600 = vmatpush1.msra.mxu0 0.0
        %1601 = vmatprep.subr.mxu0 0.0
        %1602 = vmatpush1.msra.mxu0 0.0
        %1603 = vmatprep.subr.mxu0 0.0
        %1604 = vmatpush1.msra.mxu0 0.0
        %1605 = vmatprep.subr.mxu0 0.0
        %1606 = vmatpush1.msra.mxu0 0.0
        %1607 = vmatprep.subr.mxu0 0.0
        %1608 = vmatpush1.msra.mxu0 0.0
        %1609 = vmatprep.subr.mxu0 0.0
        %1610 = vmatpush1.msra.mxu0 0.0
        %1611 = vmatprep.subr.mxu0 0.0
        %1612 = vmatpush1.msra.mxu0 0.0
        %1613 = vmatprep.subr.mxu0 0.0
        %1614 = vmatpush1.msra.mxu0 0.0
        %1615 = vmatprep.subr.mxu0 0.0
        %1616 = vmatpush1.msra.mxu0 0.0
        %1617 = vmatprep.subr.mxu0 0.0
        %1618 = vmatpush1.msra.mxu0 0.0
        %1619 = vmatprep.subr.mxu0 0.0
        %1620 = vmatpush1.msra.mxu0 0.0
        %1621 = vmatprep.subr.mxu0 0.0
        %1622 = vmatpush1.msra.mxu0 0.0
        %1623 = vmatprep.subr.mxu0 0.0
        %1624 = vmatpush1.msra.mxu0 0.0
        %1625 = vmatprep.subr.mxu0 0.0
        %1626 = vmatpush1.msra.mxu0 0.0
        %1627 = vmatprep.mubr.f32.mxu0 0.0
        %1628 = vmatmul.mubr.f32.gmra.mrb[0].mxu0 %v1555
        %v1629 = vpop.f32.mrb[0].mxu0
        %v1630 = vadd.f32 0.0, %v1629
        %v1631 = vpop.f32.mrb[0].mxu0
        %v1632 = vadd.f32 0.0, %v1631
        %1633 = vdwg.mxu0
        %v1634 = vld [vmem:[%s8] sm:$0xff]
        %v1635 = vld [vmem:[%s8 + $0x8] sm:$0xff]
        %v1636 = vld [vmem:[%s8 + $0x10] sm:$0xff]
        %v1637 = vld [vmem:[%s8 + $0x18] sm:$0xff]
        %v1638 = vld [vmem:[%s8 + $0x20] sm:$0xff]
        %v1639 = vld [vmem:[%s8 + $0x28] sm:$0xff]
        %v1640 = vld [vmem:[%s8 + $0x30] sm:$0xff]
        %v1641 = vld [vmem:[%s8 + $0x38] sm:$0xff]
        %v1642 = vld [vmem:[%s8 + $0x40] sm:$0xff]
        %v1643 = vld [vmem:[%s8 + $0x48] sm:$0xff]
        %v1644 = vld [vmem:[%s8 + $0x50] sm:$0xff]
        %v1645 = vld [vmem:[%s8 + $0x58] sm:$0xff]
        %v1646 = vld [vmem:[%s8 + $0x60] sm:$0xff]
        %v1647 = vld [vmem:[%s8 + $0x68] sm:$0xff]
        %v1648 = vld [vmem:[%s8 + $0x70] sm:$0xff]
        %v1649 = vld [vmem:[%s8 + $0x78] sm:$0xff]
        %v1650 = vld [vmem:[%s8 + $0x80] sm:$0xff]
        %v1651 = vld [vmem:[%s8 + $0x88] sm:$0xff]
        %v1652 = vld [vmem:[%s8 + $0x90] sm:$0xff]
        %v1653 = vld [vmem:[%s8 + $0x98] sm:$0xff]
        %v1654 = vld [vmem:[%s8 + $0xa0] sm:$0xff]
        %v1655 = vld [vmem:[%s8 + $0xa8] sm:$0xff]
        %v1656 = vld [vmem:[%s8 + $0xb0] sm:$0xff]
        %v1657 = vld [vmem:[%s8 + $0xb8] sm:$0xff]
        %v1658 = vld [vmem:[%s8 + $0xc0] sm:$0xff]
        %v1659 = vld [vmem:[%s8 + $0xc8] sm:$0xff]
        %v1660 = vld [vmem:[%s8 + $0xd0] sm:$0xff]
        %v1661 = vld [vmem:[%s8 + $0xd8] sm:$0xff]
        %vm1662 = vcmask 785408
        %v1664 = vsel %vm1662, %v1632, 0
        %1666 = vmatprep.subr.mxu0 0.0
        %1667 = vmatpush1.msra.mxu0 %v1634
        %1668 = vmatprep.subr.mxu0 0.0
        %1669 = vmatpush1.msra.mxu0 %v1635
        %1670 = vmatprep.subr.mxu0 0.0
        %1671 = vmatpush1.msra.mxu0 %v1636
        %1672 = vmatprep.subr.mxu0 0.0
        %1673 = vmatpush1.msra.mxu0 %v1637
        %1674 = vmatprep.subr.mxu0 0.0
        %1675 = vmatpush1.msra.mxu0 %v1638
        %1676 = vmatprep.subr.mxu0 0.0
        %1677 = vmatpush1.msra.mxu0 %v1639
        %1678 = vmatprep.subr.mxu0 0.0
        %1679 = vmatpush1.msra.mxu0 %v1640
        %1680 = vmatprep.subr.mxu0 0.0
        %1681 = vmatpush1.msra.mxu0 %v1641
        %1682 = vmatprep.subr.mxu0 0.0
        %1683 = vmatpush1.msra.mxu0 %v1642
        %1684 = vmatprep.subr.mxu0 0.0
        %1685 = vmatpush1.msra.mxu0 %v1643
        %1686 = vmatprep.subr.mxu0 0.0
        %1687 = vmatpush1.msra.mxu0 %v1644
        %1688 = vmatprep.subr.mxu0 0.0
        %1689 = vmatpush1.msra.mxu0 %v1645
        %1690 = vmatprep.subr.mxu0 0.0
        %1691 = vmatpush1.msra.mxu0 %v1646
        %1692 = vmatprep.subr.mxu0 0.0
        %1693 = vmatpush1.msra.mxu0 %v1647
        %1694 = vmatprep.subr.mxu0 0.0
        %1695 = vmatpush1.msra.mxu0 %v1648
        %1696 = vmatprep.subr.mxu0 0.0
        %1697 = vmatpush1.msra.mxu0 %v1649
        %1698 = vmatprep.subr.mxu0 0.0
        %1699 = vmatpush1.msra.mxu0 %v1650
        %1700 = vmatprep.subr.mxu0 0.0
        %1701 = vmatpush1.msra.mxu0 %v1651
        %1702 = vmatprep.subr.mxu0 0.0
        %1703 = vmatpush1.msra.mxu0 %v1652
        %1704 = vmatprep.subr.mxu0 0.0
        %1705 = vmatpush1.msra.mxu0 %v1653
        %1706 = vmatprep.subr.mxu0 0.0
        %1707 = vmatpush1.msra.mxu0 %v1654
        %1708 = vmatprep.subr.mxu0 0.0
        %1709 = vmatpush1.msra.mxu0 %v1655
        %1710 = vmatprep.subr.mxu0 0.0
        %1711 = vmatpush1.msra.mxu0 %v1656
        %1712 = vmatprep.subr.mxu0 0.0
        %1713 = vmatpush1.msra.mxu0 %v1657
        %1714 = vmatprep.subr.mxu0 0.0
        %1715 = vmatpush1.msra.mxu0 %v1658
        %1716 = vmatprep.subr.mxu0 0.0
        %1717 = vmatpush1.msra.mxu0 %v1659
        %1718 = vmatprep.subr.mxu0 0.0
        %1719 = vmatpush1.msra.mxu0 %v1660
        %1720 = vmatprep.subr.mxu0 0.0
        %1721 = vmatpush1.msra.mxu0 %v1661
        %1722 = vmatprep.subr.mxu0 0.0
        %1723 = vmatpush1.msra.mxu0 0.0
        %1724 = vmatprep.subr.mxu0 0.0
        %1725 = vmatpush1.msra.mxu0 0.0
        %1726 = vmatprep.subr.mxu0 0.0
        %1727 = vmatpush1.msra.mxu0 0.0
        %1728 = vmatprep.subr.mxu0 0.0
        %1729 = vmatpush1.msra.mxu0 0.0
        %1730 = vmatprep.mubr.f32.mxu0 %v1664
        %1731 = vmatmul.mubr.f32.gmra.mrb[0].mxu0 %v1630
        %v1732 = vpop.f32.mrb[0].mxu0
        %v1733 = vadd.f32 0.0, %v1732
        %v1734 = vpop.f32.mrb[0].mxu0
        %1735 = vdwg.mxu0
        %v1737 = vcombine.high %v1733, %v1733
        %v1739 = vunpack.c.l.s4 1966171168
        %v1740 = vunpack.c.0.s8 %v1739
        %v1741 = vlaneseq
        %v1742 = vshrl.u32 %v1741, 7
        %v1743 = vsub.s32 %v1740, %v1742
        %v1744 = vrot.slane %v1733, %v1743
        %v1746 = vunpack.c.l.s4 1966171168
        %v1747 = vunpack.c.0.s8 %v1746
        %v1748 = vlaneseq
        %v1749 = vshrl.u32 %v1748, 7
        %v1750 = vsub.s32 %v1747, %v1749
        %v1751 = vrot.slane %v1737, %v1750
        %v1752 = vcombine.high %v1744, %v1744
        %v1753 = vcombine.high %v1751, %v1751
        %v1755 = vunpack.c.l.s4 1966171168
        %v1756 = vunpack.c.0.s8 %v1755
        %v1757 = vlaneseq
        %v1758 = vshrl.u32 %v1757, 7
        %v1759 = vsub.s32 %v1756, %v1758
        %v1760 = vrot.slane %v1744, %v1759
        %v1762 = vunpack.c.l.s4 1966171168
        %v1763 = vunpack.c.0.s8 %v1762
        %v1764 = vlaneseq
        %v1765 = vshrl.u32 %v1764, 7
        %v1766 = vsub.s32 %v1763, %v1765
        %v1767 = vrot.slane %v1751, %v1766
        %v1769 = vunpack.c.l.s4 1966171168
        %v1770 = vunpack.c.0.s8 %v1769
        %v1771 = vlaneseq
        %v1772 = vshrl.u32 %v1771, 7
        %v1773 = vsub.s32 %v1770, %v1772
        %v1774 = vrot.slane %v1752, %v1773
        %v1776 = vunpack.c.l.s4 1966171168
        %v1777 = vunpack.c.0.s8 %v1776
        %v1778 = vlaneseq
        %v1779 = vshrl.u32 %v1778, 7
        %v1780 = vsub.s32 %v1777, %v1779
        %v1781 = vrot.slane %v1753, %v1780
        %v1782 = vcombine.high %v1760, %v1760
        %v1783 = vcombine.high %v1767, %v1767
        %v1784 = vcombine.high %v1774, %v1774
        %vm1792 = vcmask 909312
        %1793 = vst.msk [vmem:[#allocation2] sm:$0x1] %vm1792, %v1760
        %1794 = vst.msk [vmem:[#allocation2 + $0x4] sm:$0x1] %vm1792, %v1774
        %1795 = vst.msk [vmem:[#allocation2 + $0x8] sm:$0x1] %vm1792, %v1782
        %1796 = vst.msk [vmem:[#allocation2 + $0xc] sm:$0x1] %vm1792, %v1784
        %1797 = vst.msk [vmem:[#allocation2 + $0x10] sm:$0x1] %vm1792, %v1767
        %1798 = vst.msk [vmem:[#allocation2 + $0x14] sm:$0x1] %vm1792, %v1781
        %1799 = vst.msk [vmem:[#allocation2 + $0x18] sm:$0x1] %vm1792, %v1783
        %s1800 = scalar_lea.vmem %s496, 64
        %v1801 = vld [vmem:[%s1800] sm:$0xff]
        %v1802 = vld [vmem:[%s1800 + $0x8] sm:$0xff]
        %v1803 = vld [vmem:[%s1800 + $0x10] sm:$0xff]
        %v1804 = vld [vmem:[%s1800 + $0x18] sm:$0xff]
        %v1805 = vld [vmem:[%s1800 + $0x20] sm:$0xff]
        %v1806 = vld [vmem:[%s1800 + $0x28] sm:$0xff]
        %v1807 = vld [vmem:[%s1800 + $0x30] sm:$0xf]
        %v1808 = vld [vmem:[%s1800 + $0x38] sm:$0xf]
        %v1809 = vld [vmem:[%s1] sm:$0xff]
        %v1810 = vld [vmem:[%s1 + $0x8] sm:$0xff]
        %v1811 = vld [vmem:[%s1 + $0x10] sm:$0xff]
        %v1812 = vld [vmem:[%s1 + $0x18] sm:$0xff]
        %v1813 = vld [vmem:[%s1 + $0x20] sm:$0xff]
        %v1814 = vld [vmem:[%s1 + $0x28] sm:$0xff]
        %v1815 = vld [vmem:[%s1 + $0x30] sm:$0xff]
        %v1816 = vld [vmem:[%s1 + $0x38] sm:$0xff]
        %v1817 = vld [vmem:[%s1 + $0x40] sm:$0xff]
        %v1818 = vld [vmem:[%s1 + $0x48] sm:$0xff]
        %v1819 = vld [vmem:[%s1 + $0x50] sm:$0xff]
        %v1820 = vld [vmem:[%s1 + $0x58] sm:$0xff]
        %v1821 = vld [vmem:[%s1 + $0x60] sm:$0xff]
        %v1822 = vld [vmem:[%s1 + $0x68] sm:$0xff]
        %v1823 = vld [vmem:[%s1 + $0x70] sm:$0xff]
        %v1824 = vld [vmem:[%s1 + $0x78] sm:$0xff]
        %v1825 = vld [vmem:[%s1 + $0x80] sm:$0xff]
        %v1826 = vld [vmem:[%s1 + $0x88] sm:$0xff]
        %v1827 = vld [vmem:[%s1 + $0x90] sm:$0xff]
        %v1828 = vld [vmem:[%s1 + $0x98] sm:$0xff]
        %v1829 = vld [vmem:[%s1 + $0xa0] sm:$0xff]
        %v1830 = vld [vmem:[%s1 + $0xa8] sm:$0xff]
        %v1831 = vld [vmem:[%s1 + $0xb0] sm:$0xff]
        %v1832 = vld [vmem:[%s1 + $0xb8] sm:$0xff]
        %v1833 = vld [vmem:[%s1 + $0xc0] sm:$0xff]
        %v1834 = vld [vmem:[%s1 + $0xc8] sm:$0xff]
        %v1835 = vld [vmem:[%s1 + $0xd0] sm:$0xff]
        %v1836 = vld [vmem:[%s1 + $0xd8] sm:$0xff]
        %v1837 = vld [vmem:[%s1 + $0xe0] sm:$0xff]
        %v1838 = vld [vmem:[%s1 + $0xe8] sm:$0xff]
        %v1839 = vld [vmem:[%s1 + $0xf0] sm:$0xff]
        %v1840 = vld [vmem:[%s1 + $0xf8] sm:$0xff]
        %v1841 = vld [vmem:[%s1 + $0x100] sm:$0xff]
        %v1842 = vld [vmem:[%s1 + $0x108] sm:$0xff]
        %v1843 = vld [vmem:[%s1 + $0x110] sm:$0xff]
        %v1844 = vld [vmem:[%s1 + $0x118] sm:$0xff]
        %v1845 = vld [vmem:[%s1 + $0x120] sm:$0xff]
        %v1846 = vld [vmem:[%s1 + $0x128] sm:$0xff]
        %v1847 = vld [vmem:[%s1 + $0x130] sm:$0xff]
        %v1848 = vld [vmem:[%s1 + $0x138] sm:$0xff]
        %v1849 = vld [vmem:[%s2] sm:$0x3]
        %v1851 = vlaneseq
        %v1852 = vshrl.u32 %v1851, 7
        %v1853 = vsub.s32 0, %v1852
        %v1854 = vrot.slane %v1849, %v1853
        %v1855 = vlaneseq
        %v1856 = vshrl.u32 %v1855, 7
        %v1857 = vsub.s32 1, %v1856
        %v1858 = vrot.slane %v1849, %v1857
        %v1862 = vsel %vm558, %v1802, 0
        %v1865 = vsel %vm558, %v1804, 0
        %v1868 = vsel %vm558, %v1806, 0
        %v1871 = vsel %vm558, %v1808, 0
        %1873 = vmatprep.subr.mxu0 %v1810
        %1874 = vmatpush1.msra.mxu0 %v1809
        %1875 = vmatprep.subr.mxu0 %v1812
        %1876 = vmatpush1.msra.mxu0 %v1811
        %1877 = vmatprep.subr.mxu0 %v1814
        %1878 = vmatpush1.msra.mxu0 %v1813
        %1879 = vmatprep.subr.mxu0 %v1816
        %1880 = vmatpush1.msra.mxu0 %v1815
        %1881 = vmatprep.subr.mxu0 %v1818
        %1882 = vmatpush1.msra.mxu0 %v1817
        %1883 = vmatprep.subr.mxu0 %v1820
        %1884 = vmatpush1.msra.mxu0 %v1819
        %1885 = vmatprep.subr.mxu0 %v1822
        %1886 = vmatpush1.msra.mxu0 %v1821
        %1887 = vmatprep.subr.mxu0 %v1824
        %1888 = vmatpush1.msra.mxu0 %v1823
        %1889 = vmatprep.subr.mxu0 %v1826
        %1890 = vmatpush1.msra.mxu0 %v1825
        %1891 = vmatprep.subr.mxu0 %v1828
        %1892 = vmatpush1.msra.mxu0 %v1827
        %1893 = vmatprep.subr.mxu0 %v1830
        %1894 = vmatpush1.msra.mxu0 %v1829
        %1895 = vmatprep.subr.mxu0 %v1832
        %1896 = vmatpush1.msra.mxu0 %v1831
        %1897 = vmatprep.subr.mxu0 %v1834
        %1898 = vmatpush1.msra.mxu0 %v1833
        %1899 = vmatprep.subr.mxu0 %v1836
        %1900 = vmatpush1.msra.mxu0 %v1835
        %1901 = vmatprep.subr.mxu0 %v1838
        %1902 = vmatpush1.msra.mxu0 %v1837
        %1903 = vmatprep.subr.mxu0 %v1840
        %1904 = vmatpush1.msra.mxu0 %v1839
        %1905 = vmatprep.subr.mxu0 %v1842
        %1906 = vmatpush1.msra.mxu0 %v1841
        %1907 = vmatprep.subr.mxu0 %v1844
        %1908 = vmatpush1.msra.mxu0 %v1843
        %1909 = vmatprep.subr.mxu0 %v1846
        %1910 = vmatpush1.msra.mxu0 %v1845
        %1911 = vmatprep.subr.mxu0 %v1848
        %1912 = vmatpush1.msra.mxu0 %v1847
        %1913 = vmatprep.subr.mxu0 0.0
        %1914 = vmatpush1.msra.mxu0 0.0
        %1915 = vmatprep.subr.mxu0 0.0
        %1916 = vmatpush1.msra.mxu0 0.0
        %1917 = vmatprep.subr.mxu0 0.0
        %1918 = vmatpush1.msra.mxu0 0.0
        %1919 = vmatprep.subr.mxu0 0.0
        %1920 = vmatpush1.msra.mxu0 0.0
        %1921 = vmatprep.subr.mxu0 0.0
        %1922 = vmatpush1.msra.mxu0 0.0
        %1923 = vmatprep.subr.mxu0 0.0
        %1924 = vmatpush1.msra.mxu0 0.0
        %1925 = vmatprep.subr.mxu0 0.0
        %1926 = vmatpush1.msra.mxu0 0.0
        %1927 = vmatprep.subr.mxu0 0.0
        %1928 = vmatpush1.msra.mxu0 0.0
        %1929 = vmatprep.subr.mxu0 0.0
        %1930 = vmatpush1.msra.mxu0 0.0
        %1931 = vmatprep.subr.mxu0 0.0
        %1932 = vmatpush1.msra.mxu0 0.0
        %1933 = vmatprep.subr.mxu0 0.0
        %1934 = vmatpush1.msra.mxu0 0.0
        %1935 = vmatprep.subr.mxu0 0.0
        %1936 = vmatpush1.msra.mxu0 0.0
        %1937 = vmatprep.mubr.f32.mxu0 %v1862
        %1938 = vmatmul.mubr.f32.gmra.mrb[0].mxu0 %v1801
        %v1939 = vpop.f32.mrb[0].mxu0
        %v1940 = vadd.f32 %v1854, %v1939
        %v1941 = vpop.f32.mrb[0].mxu0
        %v1942 = vadd.f32 %v1858, %v1941
        %1943 = vmatprep.mubr.f32.mxu0 %v1865
        %1944 = vmatmul.mubr.f32.gmra.mrb[0].mxu0 %v1803
        %v1945 = vpop.f32.mrb[0].mxu0
        %v1946 = vadd.f32 %v1854, %v1945
        %v1947 = vpop.f32.mrb[0].mxu0
        %v1948 = vadd.f32 %v1858, %v1947
        %1949 = vmatprep.mubr.f32.mxu0 %v1868
        %1950 = vmatmul.mubr.f32.gmra.mrb[0].mxu0 %v1805
        %v1951 = vpop.f32.mrb[0].mxu0
        %v1952 = vadd.f32 %v1854, %v1951
        %v1953 = vpop.f32.mrb[0].mxu0
        %v1954 = vadd.f32 %v1858, %v1953
        %1955 = vmatprep.mubr.f32.mxu0 %v1871
        %1956 = vmatmul.mubr.f32.gmra.mrb[0].mxu0 %v1807
        %v1957 = vpop.f32.mrb[0].mxu0
        %v1958 = vadd.f32 %v1854, %v1957
        %v1959 = vpop.f32.mrb[0].mxu0
        %v1960 = vadd.f32 %v1858, %v1959
        %1961 = vdwg.mxu0
        %v1962 = vmul.f32 %v1940, 0.5
        %v1963 = vmul.f32 %v1942, 0.5
        %v1964 = vmul.f32 %v1946, 0.5
        %v1965 = vmul.f32 %v1948, 0.5
        %v1966 = vmul.f32 %v1952, 0.5
        %v1967 = vmul.f32 %v1954, 0.5
        %v1968 = vmul.f32 %v1958, 0.5
        %v1969 = vmul.f32 %v1960, 0.5
        %v1970 = vtanh.pop %v1962
        %v1971 = vtanh.pop %v1963
        %v1972 = vtanh.pop %v1964
        %v1973 = vtanh.pop %v1965
        %v1974 = vtanh.pop %v1966
        %v1975 = vtanh.pop %v1967
        %v1976 = vtanh.pop %v1968
        %v1977 = vtanh.pop %v1969
        %v1978 = vadd.f32 %v1970, 1.0
        %v1979 = vadd.f32 %v1971, 1.0
        %v1980 = vadd.f32 %v1972, 1.0
        %v1981 = vadd.f32 %v1973, 1.0
        %v1982 = vadd.f32 %v1974, 1.0
        %v1983 = vadd.f32 %v1975, 1.0
        %v1984 = vadd.f32 %v1976, 1.0
        %v1985 = vadd.f32 %v1977, 1.0
        %v1986 = vmul.f32 %v1978, 0.5
        %v1987 = vmul.f32 %v1979, 0.5
        %v1988 = vmul.f32 %v1980, 0.5
        %v1989 = vmul.f32 %v1981, 0.5
        %v1990 = vmul.f32 %v1982, 0.5
        %v1991 = vmul.f32 %v1983, 0.5
        %v1992 = vmul.f32 %v1984, 0.5
        %v1993 = vmul.f32 %v1985, 0.5
        %v1994 = vld [vmem:[%s3] sm:$0xff]
        %v1995 = vld [vmem:[%s3 + $0x8] sm:$0xff]
        %v1996 = vld [vmem:[%s3 + $0x10] sm:$0x3]
        %v1998 = vsel %vm695, %v1994, 0
        %v2001 = vsel %vm695, %v1995, 0
        %v2004 = vsel %vm695, %v1996, 0
        %v2007 = vsel %vm705, %v1992, 0
        %v2010 = vsel %vm705, %v1993, 0
        %2012 = vmatprep.subr.mxu0 %v1987
        %2013 = vmatpush1.msra.mxu0 %v1986
        %2014 = vmatprep.subr.mxu0 %v1989
        %2015 = vmatpush1.msra.mxu0 %v1988
        %2016 = vmatprep.subr.mxu0 %v1991
        %2017 = vmatpush1.msra.mxu0 %v1990
        %2018 = vmatprep.subr.mxu0 %v2010
        %2019 = vmatpush1.msra.mxu0 %v2007
        %2020 = vmatprep.subr.mxu0 0.0
        %2021 = vmatpush1.msra.mxu0 0.0
        %2022 = vmatprep.subr.mxu0 0.0
        %2023 = vmatpush1.msra.mxu0 0.0
        %2024 = vmatprep.subr.mxu0 0.0
        %2025 = vmatpush1.msra.mxu0 0.0
        %2026 = vmatprep.subr.mxu0 0.0
        %2027 = vmatpush1.msra.mxu0 0.0
        %2028 = vmatprep.subr.mxu0 0.0
        %2029 = vmatpush1.msra.mxu0 0.0
        %2030 = vmatprep.subr.mxu0 0.0
        %2031 = vmatpush1.msra.mxu0 0.0
        %2032 = vmatprep.subr.mxu0 0.0
        %2033 = vmatpush1.msra.mxu0 0.0
        %2034 = vmatprep.subr.mxu0 0.0
        %2035 = vmatpush1.msra.mxu0 0.0
        %2036 = vmatprep.subr.mxu0 0.0
        %2037 = vmatpush1.msra.mxu0 0.0
        %2038 = vmatprep.subr.mxu0 0.0
        %2039 = vmatpush1.msra.mxu0 0.0
        %2040 = vmatprep.subr.mxu0 0.0
        %2041 = vmatpush1.msra.mxu0 0.0
        %2042 = vmatprep.subr.mxu0 0.0
        %2043 = vmatpush1.msra.mxu0 0.0
        %2044 = vmatprep.subr.mxu0 0.0
        %2045 = vmatpush1.msra.mxu0 0.0
        %2046 = vmatprep.subr.mxu0 0.0
        %2047 = vmatpush1.msra.mxu0 0.0
        %2048 = vmatprep.subr.mxu0 0.0
        %2049 = vmatpush1.msra.mxu0 0.0
        %2050 = vmatprep.subr.mxu0 0.0
        %2051 = vmatpush1.msra.mxu0 0.0
        %2052 = vmatprep.subr.mxu0 0.0
        %2053 = vmatpush1.msra.mxu0 0.0
        %2054 = vmatprep.subr.mxu0 0.0
        %2055 = vmatpush1.msra.mxu0 0.0
        %2056 = vmatprep.subr.mxu0 0.0
        %2057 = vmatpush1.msra.mxu0 0.0
        %2058 = vmatprep.subr.mxu0 0.0
        %2059 = vmatpush1.msra.mxu0 0.0
        %2060 = vmatprep.subr.mxu0 0.0
        %2061 = vmatpush1.msra.mxu0 0.0
        %2062 = vmatprep.subr.mxu0 0.0
        %2063 = vmatpush1.msra.mxu0 0.0
        %2064 = vmatprep.subr.mxu0 0.0
        %2065 = vmatpush1.msra.mxu0 0.0
        %2066 = vmatprep.subr.mxu0 0.0
        %2067 = vmatpush1.msra.mxu0 0.0
        %2068 = vmatprep.subr.mxu0 0.0
        %2069 = vmatpush1.msra.mxu0 0.0
        %2070 = vmatprep.subr.mxu0 0.0
        %2071 = vmatpush1.msra.mxu0 0.0
        %2072 = vmatprep.subr.mxu0 0.0
        %2073 = vmatpush1.msra.mxu0 0.0
        %2074 = vmatprep.subr.mxu0 0.0
        %2075 = vmatpush1.msra.mxu0 0.0
        %2076 = vmatprep.mubr.f32.mxu0 0.0
        %2077 = vmatmul.mubr.f32.gmra.mrb[0].mxu0 %v1998
        %v2078 = vpop.f32.mrb[0].mxu0
        %v2079 = vadd.f32 0.0, %v2078
        %v2080 = vpop.f32.mrb[0].mxu0
        %v2081 = vadd.f32 0.0, %v2080
        %2082 = vmatprep.mubr.f32.mxu0 0.0
        %2083 = vmatmul.mubr.f32.gmra.mrb[0].mxu0 %v2001
        %v2084 = vpop.f32.mrb[0].mxu0
        %v2085 = vadd.f32 0.0, %v2084
        %v2086 = vpop.f32.mrb[0].mxu0
        %v2087 = vadd.f32 0.0, %v2086
        %2088 = vmatprep.mubr.f32.mxu0 0.0
        %2089 = vmatmul.mubr.f32.gmra.mrb[0].mxu0 %v2004
        %v2090 = vpop.f32.mrb[0].mxu0
        %v2091 = vadd.f32 0.0, %v2090
        %v2092 = vpop.f32.mrb[0].mxu0
        %v2093 = vadd.f32 0.0, %v2092
        %2094 = vdwg.mxu0
        %v2095 = vld [vmem:[%s4] sm:$0xff]
        %v2096 = vld [vmem:[%s4 + $0x8] sm:$0xff]
        %v2097 = vld [vmem:[%s4 + $0x10] sm:$0xff]
        %v2098 = vld [vmem:[%s4 + $0x18] sm:$0xff]
        %v2099 = vld [vmem:[%s4 + $0x20] sm:$0xff]
        %v2100 = vld [vmem:[%s4 + $0x28] sm:$0xff]
        %v2101 = vld [vmem:[%s4 + $0x30] sm:$0xff]
        %v2102 = vld [vmem:[%s4 + $0x38] sm:$0xff]
        %v2103 = vld [vmem:[%s4 + $0x40] sm:$0xff]
        %v2104 = vld [vmem:[%s4 + $0x48] sm:$0xff]
        %v2105 = vld [vmem:[%s4 + $0x50] sm:$0xff]
        %v2106 = vld [vmem:[%s4 + $0x58] sm:$0xff]
        %v2107 = vld [vmem:[%s4 + $0x60] sm:$0xff]
        %v2108 = vld [vmem:[%s4 + $0x68] sm:$0xff]
        %v2109 = vld [vmem:[%s4 + $0x70] sm:$0xff]
        %v2110 = vld [vmem:[%s4 + $0x78] sm:$0xff]
        %v2111 = vld [vmem:[%s4 + $0x80] sm:$0xff]
        %v2112 = vld [vmem:[%s4 + $0x88] sm:$0xff]
        %v2113 = vld [vmem:[%s4 + $0x90] sm:$0xff]
        %v2114 = vld [vmem:[%s4 + $0x98] sm:$0xff]
        %v2115 = vld [vmem:[%s4 + $0xa0] sm:$0xff]
        %v2117 = vsel %vm816, %v2081, 0
        %v2120 = vsel %vm816, %v2087, 0
        %v2123 = vsel %vm816, %v2093, 0
        %2125 = vmatprep.subr.mxu0 0.0
        %2126 = vmatpush1.msra.mxu0 %v2095
        %2127 = vmatprep.subr.mxu0 0.0
        %2128 = vmatpush1.msra.mxu0 %v2096
        %2129 = vmatprep.subr.mxu0 0.0
        %2130 = vmatpush1.msra.mxu0 %v2097
        %2131 = vmatprep.subr.mxu0 0.0
        %2132 = vmatpush1.msra.mxu0 %v2098
        %2133 = vmatprep.subr.mxu0 0.0
        %2134 = vmatpush1.msra.mxu0 %v2099
        %2135 = vmatprep.subr.mxu0 0.0
        %2136 = vmatpush1.msra.mxu0 %v2100
        %2137 = vmatprep.subr.mxu0 0.0
        %2138 = vmatpush1.msra.mxu0 %v2101
        %2139 = vmatprep.subr.mxu0 0.0
        %2140 = vmatpush1.msra.mxu0 %v2102
        %2141 = vmatprep.subr.mxu0 0.0
        %2142 = vmatpush1.msra.mxu0 %v2103
        %2143 = vmatprep.subr.mxu0 0.0
        %2144 = vmatpush1.msra.mxu0 %v2104
        %2145 = vmatprep.subr.mxu0 0.0
        %2146 = vmatpush1.msra.mxu0 %v2105
        %2147 = vmatprep.subr.mxu0 0.0
        %2148 = vmatpush1.msra.mxu0 %v2106
        %2149 = vmatprep.subr.mxu0 0.0
        %2150 = vmatpush1.msra.mxu0 %v2107
        %2151 = vmatprep.subr.mxu0 0.0
        %2152 = vmatpush1.msra.mxu0 %v2108
        %2153 = vmatprep.subr.mxu0 0.0
        %2154 = vmatpush1.msra.mxu0 %v2109
        %2155 = vmatprep.subr.mxu0 0.0
        %2156 = vmatpush1.msra.mxu0 %v2110
        %2157 = vmatprep.subr.mxu0 0.0
        %2158 = vmatpush1.msra.mxu0 %v2111
        %2159 = vmatprep.subr.mxu0 0.0
        %2160 = vmatpush1.msra.mxu0 %v2112
        %2161 = vmatprep.subr.mxu0 0.0
        %2162 = vmatpush1.msra.mxu0 %v2113
        %2163 = vmatprep.subr.mxu0 0.0
        %2164 = vmatpush1.msra.mxu0 %v2114
        %2165 = vmatprep.subr.mxu0 0.0
        %2166 = vmatpush1.msra.mxu0 %v2115
        %2167 = vmatprep.subr.mxu0 0.0
        %2168 = vmatpush1.msra.mxu0 0.0
        %2169 = vmatprep.subr.mxu0 0.0
        %2170 = vmatpush1.msra.mxu0 0.0
        %2171 = vmatprep.subr.mxu0 0.0
        %2172 = vmatpush1.msra.mxu0 0.0
        %2173 = vmatprep.subr.mxu0 0.0
        %2174 = vmatpush1.msra.mxu0 0.0
        %2175 = vmatprep.subr.mxu0 0.0
        %2176 = vmatpush1.msra.mxu0 0.0
        %2177 = vmatprep.subr.mxu0 0.0
        %2178 = vmatpush1.msra.mxu0 0.0
        %2179 = vmatprep.subr.mxu0 0.0
        %2180 = vmatpush1.msra.mxu0 0.0
        %2181 = vmatprep.subr.mxu0 0.0
        %2182 = vmatpush1.msra.mxu0 0.0
        %2183 = vmatprep.subr.mxu0 0.0
        %2184 = vmatpush1.msra.mxu0 0.0
        %2185 = vmatprep.subr.mxu0 0.0
        %2186 = vmatpush1.msra.mxu0 0.0
        %2187 = vmatprep.subr.mxu0 0.0
        %2188 = vmatpush1.msra.mxu0 0.0
        %2189 = vmatprep.mubr.f32.mxu0 %v2117
        %2190 = vmatmul.mubr.f32.gmra.mrb[0].mxu0 %v2079
        %v2191 = vpop.f32.mrb[0].mxu0
        %v2192 = vadd.f32 0.0, %v2191
        %v2193 = vpop.f32.mrb[0].mxu0
        %2194 = vmatprep.mubr.f32.mxu0 %v2120
        %2195 = vmatmul.mubr.f32.gmra.mrb[0].mxu0 %v2085
        %v2196 = vpop.f32.mrb[0].mxu0
        %v2197 = vadd.f32 0.0, %v2196
        %v2198 = vpop.f32.mrb[0].mxu0
        %2199 = vmatprep.mubr.f32.mxu0 %v2123
        %2200 = vmatmul.mubr.f32.gmra.mrb[0].mxu0 %v2091
        %v2201 = vpop.f32.mrb[0].mxu0
        %v2202 = vadd.f32 0.0, %v2201
        %v2203 = vpop.f32.mrb[0].mxu0
        %2204 = vdwg.mxu0
        %v2205 = vld [vmem:[%s5] sm:$0xff]
        %v2206 = vld [vmem:[%s5 + $0x8] sm:$0xff]
        %v2207 = vld [vmem:[%s5 + $0x10] sm:$0xff]
        %v2208 = vld [vmem:[%s5 + $0x18] sm:$0xff]
        %v2209 = vld [vmem:[%s5 + $0x20] sm:$0xff]
        %v2210 = vld [vmem:[%s5 + $0x28] sm:$0xff]
        %v2211 = vld [vmem:[%s5 + $0x30] sm:$0xff]
        %v2212 = vld [vmem:[%s5 + $0x38] sm:$0xff]
        %v2213 = vld [vmem:[%s5 + $0x40] sm:$0xff]
        %v2214 = vld [vmem:[%s5 + $0x48] sm:$0xff]
        %v2215 = vld [vmem:[%s5 + $0x50] sm:$0xff]
        %v2216 = vld [vmem:[%s5 + $0x58] sm:$0xff]
        %v2217 = vld [vmem:[%s5 + $0x60] sm:$0xff]
        %v2218 = vld [vmem:[%s5 + $0x68] sm:$0xff]
        %v2219 = vld [vmem:[%s5 + $0x70] sm:$0xff]
        %v2220 = vld [vmem:[%s5 + $0x78] sm:$0xff]
        %v2221 = vld [vmem:[%s5 + $0x80] sm:$0xff]
        %v2222 = vld [vmem:[%s5 + $0x88] sm:$0xff]
        %v2223 = vld [vmem:[%s5 + $0x90] sm:$0xff]
        %v2224 = vld [vmem:[%s5 + $0x98] sm:$0xff]
        %v2225 = vld [vmem:[%s5 + $0xa0] sm:$0xff]
        %v2226 = vld [vmem:[%s5 + $0xa8] sm:$0xff]
        %v2227 = vld [vmem:[%s5 + $0xb0] sm:$0xff]
        %v2228 = vld [vmem:[%s5 + $0xb8] sm:$0xff]
        %v2229 = vld [vmem:[%s5 + $0xc0] sm:$0xff]
        %v2230 = vld [vmem:[%s5 + $0xc8] sm:$0xff]
        %v2231 = vld [vmem:[%s5 + $0xd0] sm:$0xf]
        %v2232 = vld [vmem:[%s5 + $0xd8] sm:$0xf]
        %v2233 = vld [vmem:[%s934] sm:$0xff]
        %v2234 = vld [vmem:[%s934 + $0x8] sm:$0xff]
        %v2235 = vld [vmem:[%s934 + $0x10] sm:$0xff]
        %v2236 = vld [vmem:[%s934 + $0x18] sm:$0xff]
        %v2237 = vld [vmem:[%s934 + $0x20] sm:$0xff]
        %v2238 = vld [vmem:[%s934 + $0x28] sm:$0xff]
        %v2239 = vld [vmem:[%s934 + $0x30] sm:$0xff]
        %v2240 = vld [vmem:[%s934 + $0x38] sm:$0xff]
        %v2241 = vld [vmem:[%s934 + $0x40] sm:$0xff]
        %v2242 = vld [vmem:[%s934 + $0x48] sm:$0xff]
        %v2243 = vld [vmem:[%s934 + $0x50] sm:$0xff]
        %v2244 = vld [vmem:[%s934 + $0x58] sm:$0xff]
        %v2245 = vld [vmem:[%s934 + $0x60] sm:$0xff]
        %v2246 = vld [vmem:[%s934 + $0x68] sm:$0xff]
        %v2247 = vld [vmem:[%s934 + $0x70] sm:$0xff]
        %v2248 = vld [vmem:[%s934 + $0x78] sm:$0xff]
        %v2249 = vld [vmem:[%s934 + $0x80] sm:$0xff]
        %v2250 = vld [vmem:[%s934 + $0x88] sm:$0xff]
        %v2251 = vld [vmem:[%s934 + $0x90] sm:$0xff]
        %v2252 = vld [vmem:[%s934 + $0x98] sm:$0xff]
        %v2253 = vld [vmem:[%s934 + $0xa0] sm:$0xff]
        %v2254 = vld [vmem:[%s934 + $0xa8] sm:$0xff]
        %v2255 = vld [vmem:[%s934 + $0xb0] sm:$0xff]
        %v2256 = vld [vmem:[%s934 + $0xb8] sm:$0xff]
        %v2257 = vld [vmem:[%s934 + $0xc0] sm:$0xff]
        %v2258 = vld [vmem:[%s934 + $0xc8] sm:$0xff]
        %v2259 = vld [vmem:[%s934 + $0xd0] sm:$0xf]
        %v2260 = vld [vmem:[%s934 + $0xd8] sm:$0xf]
        %v2263 = vrot.slane %v2192, 1
        %v2264 = vrot.slane %v2197, 1
        %v2265 = vsel %vm965, %v2263, %v2264
        %v2266 = vsel %vm969, %v2265, 0
        %v2268 = vsel %vm969, %v2264, 0
        %v2271 = vsel %vm705, %v2259, 0
        %v2274 = vsel %vm705, %v2260, 0
        %2276 = vmatprep.subr.mxu0 %v2234
        %2277 = vmatpush1.msra.mxu0 %v2233
        %2278 = vmatprep.subr.mxu0 %v2236
        %2279 = vmatpush1.msra.mxu0 %v2235
        %2280 = vmatprep.subr.mxu0 %v2238
        %2281 = vmatpush1.msra.mxu0 %v2237
        %2282 = vmatprep.subr.mxu0 %v2240
        %2283 = vmatpush1.msra.mxu0 %v2239
        %2284 = vmatprep.subr.mxu0 %v2242
        %2285 = vmatpush1.msra.mxu0 %v2241
        %2286 = vmatprep.subr.mxu0 %v2244
        %2287 = vmatpush1.msra.mxu0 %v2243
        %2288 = vmatprep.subr.mxu0 %v2246
        %2289 = vmatpush1.msra.mxu0 %v2245
        %2290 = vmatprep.subr.mxu0 %v2248
        %2291 = vmatpush1.msra.mxu0 %v2247
        %2292 = vmatprep.subr.mxu0 %v2250
        %2293 = vmatpush1.msra.mxu0 %v2249
        %2294 = vmatprep.subr.mxu0 %v2252
        %2295 = vmatpush1.msra.mxu0 %v2251
        %2296 = vmatprep.subr.mxu0 %v2254
        %2297 = vmatpush1.msra.mxu0 %v2253
        %2298 = vmatprep.subr.mxu0 %v2256
        %2299 = vmatpush1.msra.mxu0 %v2255
        %2300 = vmatprep.subr.mxu0 %v2258
        %2301 = vmatpush1.msra.mxu0 %v2257
        %2302 = vmatprep.subr.mxu0 %v2274
        %2303 = vmatpush1.msra.mxu0 %v2271
        %2304 = vmatprep.subr.mxu0 0.0
        %2305 = vmatpush1.msra.mxu0 0.0
        %2306 = vmatprep.subr.mxu0 0.0
        %2307 = vmatpush1.msra.mxu0 0.0
        %2308 = vmatprep.subr.mxu0 0.0
        %2309 = vmatpush1.msra.mxu0 0.0
        %2310 = vmatprep.subr.mxu0 0.0
        %2311 = vmatpush1.msra.mxu0 0.0
        %2312 = vmatprep.subr.mxu0 0.0
        %2313 = vmatpush1.msra.mxu0 0.0
        %2314 = vmatprep.subr.mxu0 0.0
        %2315 = vmatpush1.msra.mxu0 0.0
        %2316 = vmatprep.subr.mxu0 0.0
        %2317 = vmatpush1.msra.mxu0 0.0
        %2318 = vmatprep.subr.mxu0 0.0
        %2319 = vmatpush1.msra.mxu0 0.0
        %2320 = vmatprep.subr.mxu0 0.0
        %2321 = vmatpush1.msra.mxu0 0.0
        %2322 = vmatprep.subr.mxu0 0.0
        %2323 = vmatpush1.msra.mxu0 0.0
        %2324 = vmatprep.subr.mxu0 0.0
        %2325 = vmatpush1.msra.mxu0 0.0
        %2326 = vmatprep.subr.mxu0 0.0
        %2327 = vmatpush1.msra.mxu0 0.0
        %2328 = vmatprep.subr.mxu0 0.0
        %2329 = vmatpush1.msra.mxu0 0.0
        %2330 = vmatprep.subr.mxu0 0.0
        %2331 = vmatpush1.msra.mxu0 0.0
        %2332 = vmatprep.subr.mxu0 0.0
        %2333 = vmatpush1.msra.mxu0 0.0
        %2334 = vmatprep.subr.mxu0 0.0
        %2335 = vmatpush1.msra.mxu0 0.0
        %2336 = vmatprep.subr.mxu0 0.0
        %2337 = vmatpush1.msra.mxu0 0.0
        %2338 = vmatprep.subr.mxu0 0.0
        %2339 = vmatpush1.msra.mxu0 0.0
        %2340 = vmatprep.mubr.f32.mxu0 0.0
        %2341 = vmatmul.mubr.f32.gmra.mrb[0].mxu0 %v2266
        %v2342 = vpop.f32.mrb[0].mxu0
        %v2343 = vadd.f32 0.0, %v2342
        %v2344 = vpop.f32.mrb[0].mxu0
        %v2345 = vadd.f32 0.0, %v2344
        %2346 = vmatprep.mubr.f32.mxu0 0.0
        %2347 = vmatmul.mubr.f32.gmra.mrb[0].mxu0 %v2268
        %v2348 = vpop.f32.mrb[0].mxu0
        %v2349 = vadd.f32 0.0, %v2348
        %v2350 = vpop.f32.mrb[0].mxu0
        %v2351 = vadd.f32 0.0, %v2350
        %2352 = vdwg.mxu0
        %v2353 = vsel %vm969, %v2192, 0
        %v2355 = vsel %vm969, %v2197, 0
        %v2358 = vsel %vm705, %v2231, 0
        %v2361 = vsel %vm705, %v2232, 0
        %2363 = vmatprep.subr.mxu0 %v2206
        %2364 = vmatpush1.msra.mxu0 %v2205
        %2365 = vmatprep.subr.mxu0 %v2208
        %2366 = vmatpush1.msra.mxu0 %v2207
        %2367 = vmatprep.subr.mxu0 %v2210
        %2368 = vmatpush1.msra.mxu0 %v2209
        %2369 = vmatprep.subr.mxu0 %v2212
        %2370 = vmatpush1.msra.mxu0 %v2211
        %2371 = vmatprep.subr.mxu0 %v2214
        %2372 = vmatpush1.msra.mxu0 %v2213
        %2373 = vmatprep.subr.mxu0 %v2216
        %2374 = vmatpush1.msra.mxu0 %v2215
        %2375 = vmatprep.subr.mxu0 %v2218
        %2376 = vmatpush1.msra.mxu0 %v2217
        %2377 = vmatprep.subr.mxu0 %v2220
        %2378 = vmatpush1.msra.mxu0 %v2219
        %2379 = vmatprep.subr.mxu0 %v2222
        %2380 = vmatpush1.msra.mxu0 %v2221
        %2381 = vmatprep.subr.mxu0 %v2224
        %2382 = vmatpush1.msra.mxu0 %v2223
        %2383 = vmatprep.subr.mxu0 %v2226
        %2384 = vmatpush1.msra.mxu0 %v2225
        %2385 = vmatprep.subr.mxu0 %v2228
        %2386 = vmatpush1.msra.mxu0 %v2227
        %2387 = vmatprep.subr.mxu0 %v2230
        %2388 = vmatpush1.msra.mxu0 %v2229
        %2389 = vmatprep.subr.mxu0 %v2361
        %2390 = vmatpush1.msra.mxu0 %v2358
        %2391 = vmatprep.subr.mxu0 0.0
        %2392 = vmatpush1.msra.mxu0 0.0
        %2393 = vmatprep.subr.mxu0 0.0
        %2394 = vmatpush1.msra.mxu0 0.0
        %2395 = vmatprep.subr.mxu0 0.0
        %2396 = vmatpush1.msra.mxu0 0.0
        %2397 = vmatprep.subr.mxu0 0.0
        %2398 = vmatpush1.msra.mxu0 0.0
        %2399 = vmatprep.subr.mxu0 0.0
        %2400 = vmatpush1.msra.mxu0 0.0
        %2401 = vmatprep.subr.mxu0 0.0
        %2402 = vmatpush1.msra.mxu0 0.0
        %2403 = vmatprep.subr.mxu0 0.0
        %2404 = vmatpush1.msra.mxu0 0.0
        %2405 = vmatprep.subr.mxu0 0.0
        %2406 = vmatpush1.msra.mxu0 0.0
        %2407 = vmatprep.subr.mxu0 0.0
        %2408 = vmatpush1.msra.mxu0 0.0
        %2409 = vmatprep.subr.mxu0 0.0
        %2410 = vmatpush1.msra.mxu0 0.0
        %2411 = vmatprep.subr.mxu0 0.0
        %2412 = vmatpush1.msra.mxu0 0.0
        %2413 = vmatprep.subr.mxu0 0.0
        %2414 = vmatpush1.msra.mxu0 0.0
        %2415 = vmatprep.subr.mxu0 0.0
        %2416 = vmatpush1.msra.mxu0 0.0
        %2417 = vmatprep.subr.mxu0 0.0
        %2418 = vmatpush1.msra.mxu0 0.0
        %2419 = vmatprep.subr.mxu0 0.0
        %2420 = vmatpush1.msra.mxu0 0.0
        %2421 = vmatprep.subr.mxu0 0.0
        %2422 = vmatpush1.msra.mxu0 0.0
        %2423 = vmatprep.subr.mxu0 0.0
        %2424 = vmatpush1.msra.mxu0 0.0
        %2425 = vmatprep.subr.mxu0 0.0
        %2426 = vmatpush1.msra.mxu0 0.0
        %2427 = vmatprep.mubr.f32.mxu0 0.0
        %2428 = vmatmul.mubr.f32.gmra.mrb[0].mxu0 %v2353
        %v2429 = vpop.f32.mrb[0].mxu0
        %v2430 = vadd.f32 %v2343, %v2429
        %v2431 = vpop.f32.mrb[0].mxu0
        %v2432 = vadd.f32 %v2345, %v2431
        %2433 = vmatprep.mubr.f32.mxu0 0.0
        %2434 = vmatmul.mubr.f32.gmra.mrb[0].mxu0 %v2355
        %v2435 = vpop.f32.mrb[0].mxu0
        %v2436 = vadd.f32 %v2349, %v2435
        %v2437 = vpop.f32.mrb[0].mxu0
        %v2438 = vadd.f32 %v2351, %v2437
        %2439 = vdwg.mxu0
        %v2440 = vld [vmem:[%s1144] sm:$0xff]
        %v2441 = vld [vmem:[%s1144 + $0x8] sm:$0xff]
        %v2442 = vld [vmem:[%s1144 + $0x10] sm:$0xff]
        %v2443 = vld [vmem:[%s1144 + $0x18] sm:$0xff]
        %v2444 = vld [vmem:[%s1144 + $0x20] sm:$0xff]
        %v2445 = vld [vmem:[%s1144 + $0x28] sm:$0xff]
        %v2446 = vld [vmem:[%s1144 + $0x30] sm:$0xff]
        %v2447 = vld [vmem:[%s1144 + $0x38] sm:$0xff]
        %v2448 = vld [vmem:[%s1144 + $0x40] sm:$0xff]
        %v2449 = vld [vmem:[%s1144 + $0x48] sm:$0xff]
        %v2450 = vld [vmem:[%s1144 + $0x50] sm:$0xff]
        %v2451 = vld [vmem:[%s1144 + $0x58] sm:$0xff]
        %v2452 = vld [vmem:[%s1144 + $0x60] sm:$0xff]
        %v2453 = vld [vmem:[%s1144 + $0x68] sm:$0xff]
        %v2454 = vld [vmem:[%s1144 + $0x70] sm:$0xff]
        %v2455 = vld [vmem:[%s1144 + $0x78] sm:$0xff]
        %v2456 = vld [vmem:[%s1144 + $0x80] sm:$0xff]
        %v2457 = vld [vmem:[%s1144 + $0x88] sm:$0xff]
        %v2458 = vld [vmem:[%s1144 + $0x90] sm:$0xff]
        %v2459 = vld [vmem:[%s1144 + $0x98] sm:$0xff]
        %v2460 = vld [vmem:[%s1144 + $0xa0] sm:$0xff]
        %v2461 = vld [vmem:[%s1144 + $0xa8] sm:$0xff]
        %v2462 = vld [vmem:[%s1144 + $0xb0] sm:$0xff]
        %v2463 = vld [vmem:[%s1144 + $0xb8] sm:$0xff]
        %v2464 = vld [vmem:[%s1144 + $0xc0] sm:$0xff]
        %v2465 = vld [vmem:[%s1144 + $0xc8] sm:$0xff]
        %v2466 = vld [vmem:[%s1144 + $0xd0] sm:$0xf]
        %v2467 = vld [vmem:[%s1144 + $0xd8] sm:$0xf]
        %v2468 = vrot.slane %v2192, 2
        %v2469 = vrot.slane %v2197, 2
        %v2470 = vsel %vm1173, %v2468, %v2469
        %v2471 = vsel %vm969, %v2470, 0
        %v2473 = vsel %vm969, %v2469, 0
        %v2476 = vsel %vm705, %v2466, 0
        %v2479 = vsel %vm705, %v2467, 0
        %2481 = vmatprep.subr.mxu0 %v2441
        %2482 = vmatpush1.msra.mxu0 %v2440
        %2483 = vmatprep.subr.mxu0 %v2443
        %2484 = vmatpush1.msra.mxu0 %v2442
        %2485 = vmatprep.subr.mxu0 %v2445
        %2486 = vmatpush1.msra.mxu0 %v2444
        %2487 = vmatprep.subr.mxu0 %v2447
        %2488 = vmatpush1.msra.mxu0 %v2446
        %2489 = vmatprep.subr.mxu0 %v2449
        %2490 = vmatpush1.msra.mxu0 %v2448
        %2491 = vmatprep.subr.mxu0 %v2451
        %2492 = vmatpush1.msra.mxu0 %v2450
        %2493 = vmatprep.subr.mxu0 %v2453
        %2494 = vmatpush1.msra.mxu0 %v2452
        %2495 = vmatprep.subr.mxu0 %v2455
        %2496 = vmatpush1.msra.mxu0 %v2454
        %2497 = vmatprep.subr.mxu0 %v2457
        %2498 = vmatpush1.msra.mxu0 %v2456
        %2499 = vmatprep.subr.mxu0 %v2459
        %2500 = vmatpush1.msra.mxu0 %v2458
        %2501 = vmatprep.subr.mxu0 %v2461
        %2502 = vmatpush1.msra.mxu0 %v2460
        %2503 = vmatprep.subr.mxu0 %v2463
        %2504 = vmatpush1.msra.mxu0 %v2462
        %2505 = vmatprep.subr.mxu0 %v2465
        %2506 = vmatpush1.msra.mxu0 %v2464
        %2507 = vmatprep.subr.mxu0 %v2479
        %2508 = vmatpush1.msra.mxu0 %v2476
        %2509 = vmatprep.subr.mxu0 0.0
        %2510 = vmatpush1.msra.mxu0 0.0
        %2511 = vmatprep.subr.mxu0 0.0
        %2512 = vmatpush1.msra.mxu0 0.0
        %2513 = vmatprep.subr.mxu0 0.0
        %2514 = vmatpush1.msra.mxu0 0.0
        %2515 = vmatprep.subr.mxu0 0.0
        %2516 = vmatpush1.msra.mxu0 0.0
        %2517 = vmatprep.subr.mxu0 0.0
        %2518 = vmatpush1.msra.mxu0 0.0
        %2519 = vmatprep.subr.mxu0 0.0
        %2520 = vmatpush1.msra.mxu0 0.0
        %2521 = vmatprep.subr.mxu0 0.0
        %2522 = vmatpush1.msra.mxu0 0.0
        %2523 = vmatprep.subr.mxu0 0.0
        %2524 = vmatpush1.msra.mxu0 0.0
        %2525 = vmatprep.subr.mxu0 0.0
        %2526 = vmatpush1.msra.mxu0 0.0
        %2527 = vmatprep.subr.mxu0 0.0
        %2528 = vmatpush1.msra.mxu0 0.0
        %2529 = vmatprep.subr.mxu0 0.0
        %2530 = vmatpush1.msra.mxu0 0.0
        %2531 = vmatprep.subr.mxu0 0.0
        %2532 = vmatpush1.msra.mxu0 0.0
        %2533 = vmatprep.subr.mxu0 0.0
        %2534 = vmatpush1.msra.mxu0 0.0
        %2535 = vmatprep.subr.mxu0 0.0
        %2536 = vmatpush1.msra.mxu0 0.0
        %2537 = vmatprep.subr.mxu0 0.0
        %2538 = vmatpush1.msra.mxu0 0.0
        %2539 = vmatprep.subr.mxu0 0.0
        %2540 = vmatpush1.msra.mxu0 0.0
        %2541 = vmatprep.subr.mxu0 0.0
        %2542 = vmatpush1.msra.mxu0 0.0
        %2543 = vmatprep.subr.mxu0 0.0
        %2544 = vmatpush1.msra.mxu0 0.0
        %2545 = vmatprep.mubr.f32.mxu0 0.0
        %2546 = vmatmul.mubr.f32.gmra.mrb[0].mxu0 %v2471
        %v2547 = vpop.f32.mrb[0].mxu0
        %v2548 = vadd.f32 0.0, %v2547
        %v2549 = vpop.f32.mrb[0].mxu0
        %v2550 = vadd.f32 0.0, %v2549
        %2551 = vmatprep.mubr.f32.mxu0 0.0
        %2552 = vmatmul.mubr.f32.gmra.mrb[0].mxu0 %v2473
        %v2553 = vpop.f32.mrb[0].mxu0
        %v2554 = vadd.f32 0.0, %v2553
        %v2555 = vpop.f32.mrb[0].mxu0
        %v2556 = vadd.f32 0.0, %v2555
        %2557 = vdwg.mxu0
        %v2558 = vadd.f32 %v2430, %v2548
        %v2559 = vadd.f32 %v2432, %v2550
        %v2560 = vadd.f32 %v2436, %v2554
        %v2561 = vadd.f32 %v2438, %v2556
        %v2562 = vld [vmem:[%s1268] sm:$0xff]
        %v2563 = vld [vmem:[%s1268 + $0x8] sm:$0xff]
        %v2564 = vld [vmem:[%s1268 + $0x10] sm:$0xff]
        %v2565 = vld [vmem:[%s1268 + $0x18] sm:$0xff]
        %v2566 = vld [vmem:[%s1268 + $0x20] sm:$0xff]
        %v2567 = vld [vmem:[%s1268 + $0x28] sm:$0xff]
        %v2568 = vld [vmem:[%s1268 + $0x30] sm:$0xff]
        %v2569 = vld [vmem:[%s1268 + $0x38] sm:$0xff]
        %v2570 = vld [vmem:[%s1268 + $0x40] sm:$0xff]
        %v2571 = vld [vmem:[%s1268 + $0x48] sm:$0xff]
        %v2572 = vld [vmem:[%s1268 + $0x50] sm:$0xff]
        %v2573 = vld [vmem:[%s1268 + $0x58] sm:$0xff]
        %v2574 = vld [vmem:[%s1268 + $0x60] sm:$0xff]
        %v2575 = vld [vmem:[%s1268 + $0x68] sm:$0xff]
        %v2576 = vld [vmem:[%s1268 + $0x70] sm:$0xff]
        %v2577 = vld [vmem:[%s1268 + $0x78] sm:$0xff]
        %v2578 = vld [vmem:[%s1268 + $0x80] sm:$0xff]
        %v2579 = vld [vmem:[%s1268 + $0x88] sm:$0xff]
        %v2580 = vld [vmem:[%s1268 + $0x90] sm:$0xff]
        %v2581 = vld [vmem:[%s1268 + $0x98] sm:$0xff]
        %v2582 = vld [vmem:[%s1268 + $0xa0] sm:$0xff]
        %v2583 = vld [vmem:[%s1268 + $0xa8] sm:$0xff]
        %v2584 = vld [vmem:[%s1268 + $0xb0] sm:$0xff]
        %v2585 = vld [vmem:[%s1268 + $0xb8] sm:$0xff]
        %v2586 = vld [vmem:[%s1268 + $0xc0] sm:$0xff]
        %v2587 = vld [vmem:[%s1268 + $0xc8] sm:$0xff]
        %v2588 = vld [vmem:[%s1268 + $0xd0] sm:$0xf]
        %v2589 = vld [vmem:[%s1268 + $0xd8] sm:$0xf]
        %v2591 = vrot.slane %v2192, 3
        %v2592 = vrot.slane %v2197, 3
        %v2593 = vsel %vm1298, %v2591, %v2592
        %v2594 = vrot.slane %v2202, 3
        %v2595 = vsel %vm1298, %v2592, %v2594
        %v2596 = vsel %vm969, %v2593, 0
        %v2598 = vsel %vm969, %v2595, 0
        %v2601 = vsel %vm705, %v2588, 0
        %v2604 = vsel %vm705, %v2589, 0
        %2606 = vmatprep.subr.mxu0 %v2563
        %2607 = vmatpush1.msra.mxu0 %v2562
        %2608 = vmatprep.subr.mxu0 %v2565
        %2609 = vmatpush1.msra.mxu0 %v2564
        %2610 = vmatprep.subr.mxu0 %v2567
        %2611 = vmatpush1.msra.mxu0 %v2566
        %2612 = vmatprep.subr.mxu0 %v2569
        %2613 = vmatpush1.msra.mxu0 %v2568
        %2614 = vmatprep.subr.mxu0 %v2571
        %2615 = vmatpush1.msra.mxu0 %v2570
        %2616 = vmatprep.subr.mxu0 %v2573
        %2617 = vmatpush1.msra.mxu0 %v2572
        %2618 = vmatprep.subr.mxu0 %v2575
        %2619 = vmatpush1.msra.mxu0 %v2574
        %2620 = vmatprep.subr.mxu0 %v2577
        %2621 = vmatpush1.msra.mxu0 %v2576
        %2622 = vmatprep.subr.mxu0 %v2579
        %2623 = vmatpush1.msra.mxu0 %v2578
        %2624 = vmatprep.subr.mxu0 %v2581
        %2625 = vmatpush1.msra.mxu0 %v2580
        %2626 = vmatprep.subr.mxu0 %v2583
        %2627 = vmatpush1.msra.mxu0 %v2582
        %2628 = vmatprep.subr.mxu0 %v2585
        %2629 = vmatpush1.msra.mxu0 %v2584
        %2630 = vmatprep.subr.mxu0 %v2587
        %2631 = vmatpush1.msra.mxu0 %v2586
        %2632 = vmatprep.subr.mxu0 %v2604
        %2633 = vmatpush1.msra.mxu0 %v2601
        %2634 = vmatprep.subr.mxu0 0.0
        %2635 = vmatpush1.msra.mxu0 0.0
        %2636 = vmatprep.subr.mxu0 0.0
        %2637 = vmatpush1.msra.mxu0 0.0
        %2638 = vmatprep.subr.mxu0 0.0
        %2639 = vmatpush1.msra.mxu0 0.0
        %2640 = vmatprep.subr.mxu0 0.0
        %2641 = vmatpush1.msra.mxu0 0.0
        %2642 = vmatprep.subr.mxu0 0.0
        %2643 = vmatpush1.msra.mxu0 0.0
        %2644 = vmatprep.subr.mxu0 0.0
        %2645 = vmatpush1.msra.mxu0 0.0
        %2646 = vmatprep.subr.mxu0 0.0
        %2647 = vmatpush1.msra.mxu0 0.0
        %2648 = vmatprep.subr.mxu0 0.0
        %2649 = vmatpush1.msra.mxu0 0.0
        %2650 = vmatprep.subr.mxu0 0.0
        %2651 = vmatpush1.msra.mxu0 0.0
        %2652 = vmatprep.subr.mxu0 0.0
        %2653 = vmatpush1.msra.mxu0 0.0
        %2654 = vmatprep.subr.mxu0 0.0
        %2655 = vmatpush1.msra.mxu0 0.0
        %2656 = vmatprep.subr.mxu0 0.0
        %2657 = vmatpush1.msra.mxu0 0.0
        %2658 = vmatprep.subr.mxu0 0.0
        %2659 = vmatpush1.msra.mxu0 0.0
        %2660 = vmatprep.subr.mxu0 0.0
        %2661 = vmatpush1.msra.mxu0 0.0
        %2662 = vmatprep.subr.mxu0 0.0
        %2663 = vmatpush1.msra.mxu0 0.0
        %2664 = vmatprep.subr.mxu0 0.0
        %2665 = vmatpush1.msra.mxu0 0.0
        %2666 = vmatprep.subr.mxu0 0.0
        %2667 = vmatpush1.msra.mxu0 0.0
        %2668 = vmatprep.subr.mxu0 0.0
        %2669 = vmatpush1.msra.mxu0 0.0
        %2670 = vmatprep.mubr.f32.mxu0 0.0
        %2671 = vmatmul.mubr.f32.gmra.mrb[0].mxu0 %v2596
        %v2672 = vpop.f32.mrb[0].mxu0
        %v2673 = vadd.f32 0.0, %v2672
        %v2674 = vpop.f32.mrb[0].mxu0
        %v2675 = vadd.f32 0.0, %v2674
        %2676 = vmatprep.mubr.f32.mxu0 0.0
        %2677 = vmatmul.mubr.f32.gmra.mrb[0].mxu0 %v2598
        %v2678 = vpop.f32.mrb[0].mxu0
        %v2679 = vadd.f32 0.0, %v2678
        %v2680 = vpop.f32.mrb[0].mxu0
        %v2681 = vadd.f32 0.0, %v2680
        %2682 = vdwg.mxu0
        %v2683 = vadd.f32 %v2558, %v2673
        %v2684 = vadd.f32 %v2559, %v2675
        %v2685 = vadd.f32 %v2560, %v2679
        %v2686 = vadd.f32 %v2561, %v2681
        %v2687 = vld [vmem:[%s1395] sm:$0xff]
        %v2688 = vld [vmem:[%s1395 + $0x8] sm:$0xff]
        %v2689 = vld [vmem:[%s1395 + $0x10] sm:$0xff]
        %v2690 = vld [vmem:[%s1395 + $0x18] sm:$0xff]
        %v2691 = vld [vmem:[%s1395 + $0x20] sm:$0xff]
        %v2692 = vld [vmem:[%s1395 + $0x28] sm:$0xff]
        %v2693 = vld [vmem:[%s1395 + $0x30] sm:$0xff]
        %v2694 = vld [vmem:[%s1395 + $0x38] sm:$0xff]
        %v2695 = vld [vmem:[%s1395 + $0x40] sm:$0xff]
        %v2696 = vld [vmem:[%s1395 + $0x48] sm:$0xff]
        %v2697 = vld [vmem:[%s1395 + $0x50] sm:$0xff]
        %v2698 = vld [vmem:[%s1395 + $0x58] sm:$0xff]
        %v2699 = vld [vmem:[%s1395 + $0x60] sm:$0xff]
        %v2700 = vld [vmem:[%s1395 + $0x68] sm:$0xff]
        %v2701 = vld [vmem:[%s1395 + $0x70] sm:$0xff]
        %v2702 = vld [vmem:[%s1395 + $0x78] sm:$0xff]
        %v2703 = vld [vmem:[%s1395 + $0x80] sm:$0xff]
        %v2704 = vld [vmem:[%s1395 + $0x88] sm:$0xff]
        %v2705 = vld [vmem:[%s1395 + $0x90] sm:$0xff]
        %v2706 = vld [vmem:[%s1395 + $0x98] sm:$0xff]
        %v2707 = vld [vmem:[%s1395 + $0xa0] sm:$0xff]
        %v2708 = vld [vmem:[%s1395 + $0xa8] sm:$0xff]
        %v2709 = vld [vmem:[%s1395 + $0xb0] sm:$0xff]
        %v2710 = vld [vmem:[%s1395 + $0xb8] sm:$0xff]
        %v2711 = vld [vmem:[%s1395 + $0xc0] sm:$0xff]
        %v2712 = vld [vmem:[%s1395 + $0xc8] sm:$0xff]
        %v2713 = vld [vmem:[%s1395 + $0xd0] sm:$0xf]
        %v2714 = vld [vmem:[%s1395 + $0xd8] sm:$0xf]
        %v2715 = vrot.slane %v2192, 4
        %v2716 = vrot.slane %v2197, 4
        %v2717 = vsel %vm705, %v2715, %v2716
        %v2718 = vrot.slane %v2202, 4
        %v2719 = vsel %vm705, %v2716, %v2718
        %v2720 = vsel %vm969, %v2717, 0
        %v2722 = vsel %vm969, %v2719, 0
        %v2725 = vsel %vm705, %v2713, 0
        %v2728 = vsel %vm705, %v2714, 0
        %2730 = vmatprep.subr.mxu0 %v2688
        %2731 = vmatpush1.msra.mxu0 %v2687
        %2732 = vmatprep.subr.mxu0 %v2690
        %2733 = vmatpush1.msra.mxu0 %v2689
        %2734 = vmatprep.subr.mxu0 %v2692
        %2735 = vmatpush1.msra.mxu0 %v2691
        %2736 = vmatprep.subr.mxu0 %v2694
        %2737 = vmatpush1.msra.mxu0 %v2693
        %2738 = vmatprep.subr.mxu0 %v2696
        %2739 = vmatpush1.msra.mxu0 %v2695
        %2740 = vmatprep.subr.mxu0 %v2698
        %2741 = vmatpush1.msra.mxu0 %v2697
        %2742 = vmatprep.subr.mxu0 %v2700
        %2743 = vmatpush1.msra.mxu0 %v2699
        %2744 = vmatprep.subr.mxu0 %v2702
        %2745 = vmatpush1.msra.mxu0 %v2701
        %2746 = vmatprep.subr.mxu0 %v2704
        %2747 = vmatpush1.msra.mxu0 %v2703
        %2748 = vmatprep.subr.mxu0 %v2706
        %2749 = vmatpush1.msra.mxu0 %v2705
        %2750 = vmatprep.subr.mxu0 %v2708
        %2751 = vmatpush1.msra.mxu0 %v2707
        %2752 = vmatprep.subr.mxu0 %v2710
        %2753 = vmatpush1.msra.mxu0 %v2709
        %2754 = vmatprep.subr.mxu0 %v2712
        %2755 = vmatpush1.msra.mxu0 %v2711
        %2756 = vmatprep.subr.mxu0 %v2728
        %2757 = vmatpush1.msra.mxu0 %v2725
        %2758 = vmatprep.subr.mxu0 0.0
        %2759 = vmatpush1.msra.mxu0 0.0
        %2760 = vmatprep.subr.mxu0 0.0
        %2761 = vmatpush1.msra.mxu0 0.0
        %2762 = vmatprep.subr.mxu0 0.0
        %2763 = vmatpush1.msra.mxu0 0.0
        %2764 = vmatprep.subr.mxu0 0.0
        %2765 = vmatpush1.msra.mxu0 0.0
        %2766 = vmatprep.subr.mxu0 0.0
        %2767 = vmatpush1.msra.mxu0 0.0
        %2768 = vmatprep.subr.mxu0 0.0
        %2769 = vmatpush1.msra.mxu0 0.0
        %2770 = vmatprep.subr.mxu0 0.0
        %2771 = vmatpush1.msra.mxu0 0.0
        %2772 = vmatprep.subr.mxu0 0.0
        %2773 = vmatpush1.msra.mxu0 0.0
        %2774 = vmatprep.subr.mxu0 0.0
        %2775 = vmatpush1.msra.mxu0 0.0
        %2776 = vmatprep.subr.mxu0 0.0
        %2777 = vmatpush1.msra.mxu0 0.0
        %2778 = vmatprep.subr.mxu0 0.0
        %2779 = vmatpush1.msra.mxu0 0.0
        %2780 = vmatprep.subr.mxu0 0.0
        %2781 = vmatpush1.msra.mxu0 0.0
        %2782 = vmatprep.subr.mxu0 0.0
        %2783 = vmatpush1.msra.mxu0 0.0
        %2784 = vmatprep.subr.mxu0 0.0
        %2785 = vmatpush1.msra.mxu0 0.0
        %2786 = vmatprep.subr.mxu0 0.0
        %2787 = vmatpush1.msra.mxu0 0.0
        %2788 = vmatprep.subr.mxu0 0.0
        %2789 = vmatpush1.msra.mxu0 0.0
        %2790 = vmatprep.subr.mxu0 0.0
        %2791 = vmatpush1.msra.mxu0 0.0
        %2792 = vmatprep.subr.mxu0 0.0
        %2793 = vmatpush1.msra.mxu0 0.0
        %2794 = vmatprep.mubr.f32.mxu0 0.0
        %2795 = vmatmul.mubr.f32.gmra.mrb[0].mxu0 %v2720
        %v2796 = vpop.f32.mrb[0].mxu0
        %v2797 = vadd.f32 0.0, %v2796
        %v2798 = vpop.f32.mrb[0].mxu0
        %v2799 = vadd.f32 0.0, %v2798
        %2800 = vmatprep.mubr.f32.mxu0 0.0
        %2801 = vmatmul.mubr.f32.gmra.mrb[0].mxu0 %v2722
        %v2802 = vpop.f32.mrb[0].mxu0
        %v2803 = vadd.f32 0.0, %v2802
        %v2804 = vpop.f32.mrb[0].mxu0
        %v2805 = vadd.f32 0.0, %v2804
        %2806 = vdwg.mxu0
        %v2807 = vadd.f32 %v2683, %v2797
        %v2808 = vadd.f32 %v2684, %v2799
        %v2809 = vadd.f32 %v2685, %v2803
        %v2810 = vadd.f32 %v2686, %v2805
        %v2811 = vld [vmem:[%s6] sm:$0x3]
        %v2813 = vlaneseq
        %v2814 = vshrl.u32 %v2813, 7
        %v2815 = vsub.s32 0, %v2814
        %v2816 = vrot.slane %v2811, %v2815
        %v2817 = vlaneseq
        %v2818 = vshrl.u32 %v2817, 7
        %v2819 = vsub.s32 1, %v2818
        %v2820 = vrot.slane %v2811, %v2819
        %v2823 = vadd.f32 %v2807, %v2816
        %v2824 = vadd.f32 %v2808, %v2820
        %v2825 = vadd.f32 %v2809, %v2816
        %v2826 = vadd.f32 %v2810, %v2820
        %v2827 = vmul.f32 %v2823, 0.5
        %v2828 = vmul.f32 %v2824, 0.5
        %v2829 = vmul.f32 %v2825, 0.5
        %v2830 = vmul.f32 %v2826, 0.5
        %v2831 = vtanh.pop %v2827
        %v2832 = vtanh.pop %v2828
        %v2833 = vtanh.pop %v2829
        %v2834 = vtanh.pop %v2830
        %v2835 = vadd.f32 %v2831, 1.0
        %v2836 = vadd.f32 %v2832, 1.0
        %v2837 = vadd.f32 %v2833, 1.0
        %v2838 = vadd.f32 %v2834, 1.0
        %v2839 = vmul.f32 %v2835, 0.5
        %v2840 = vmul.f32 %v2836, 0.5
        %v2841 = vmul.f32 %v2837, 0.5
        %v2842 = vmul.f32 %v2838, 0.5
        %v2843 = vld [vmem:[%s7] sm:$0x7f]
        %v2845 = vsel %vm1553, %v2843, 0
        %v2848 = vsel %vm1173, %v2841, 0
        %v2851 = vsel %vm1173, %v2842, 0
        %2853 = vmatprep.subr.mxu0 %v2840
        %2854 = vmatpush1.msra.mxu0 %v2839
        %2855 = vmatprep.subr.mxu0 %v2851
        %2856 = vmatpush1.msra.mxu0 %v2848
        %2857 = vmatprep.subr.mxu0 0.0
        %2858 = vmatpush1.msra.mxu0 0.0
        %2859 = vmatprep.subr.mxu0 0.0
        %2860 = vmatpush1.msra.mxu0 0.0
        %2861 = vmatprep.subr.mxu0 0.0
        %2862 = vmatpush1.msra.mxu0 0.0
        %2863 = vmatprep.subr.mxu0 0.0
        %2864 = vmatpush1.msra.mxu0 0.0
        %2865 = vmatprep.subr.mxu0 0.0
        %2866 = vmatpush1.msra.mxu0 0.0
        %2867 = vmatprep.subr.mxu0 0.0
        %2868 = vmatpush1.msra.mxu0 0.0
        %2869 = vmatprep.subr.mxu0 0.0
        %2870 = vmatpush1.msra.mxu0 0.0
        %2871 = vmatprep.subr.mxu0 0.0
        %2872 = vmatpush1.msra.mxu0 0.0
        %2873 = vmatprep.subr.mxu0 0.0
        %2874 = vmatpush1.msra.mxu0 0.0
        %2875 = vmatprep.subr.mxu0 0.0
        %2876 = vmatpush1.msra.mxu0 0.0
        %2877 = vmatprep.subr.mxu0 0.0
        %2878 = vmatpush1.msra.mxu0 0.0
        %2879 = vmatprep.subr.mxu0 0.0
        %2880 = vmatpush1.msra.mxu0 0.0
        %2881 = vmatprep.subr.mxu0 0.0
        %2882 = vmatpush1.msra.mxu0 0.0
        %2883 = vmatprep.subr.mxu0 0.0
        %2884 = vmatpush1.msra.mxu0 0.0
        %2885 = vmatprep.subr.mxu0 0.0
        %2886 = vmatpush1.msra.mxu0 0.0
        %2887 = vmatprep.subr.mxu0 0.0
        %2888 = vmatpush1.msra.mxu0 0.0
        %2889 = vmatprep.subr.mxu0 0.0
        %2890 = vmatpush1.msra.mxu0 0.0
        %2891 = vmatprep.subr.mxu0 0.0
        %2892 = vmatpush1.msra.mxu0 0.0
        %2893 = vmatprep.subr.mxu0 0.0
        %2894 = vmatpush1.msra.mxu0 0.0
        %2895 = vmatprep.subr.mxu0 0.0
        %2896 = vmatpush1.msra.mxu0 0.0
        %2897 = vmatprep.subr.mxu0 0.0
        %2898 = vmatpush1.msra.mxu0 0.0
        %2899 = vmatprep.subr.mxu0 0.0
        %2900 = vmatpush1.msra.mxu0 0.0
        %2901 = vmatprep.subr.mxu0 0.0
        %2902 = vmatpush1.msra.mxu0 0.0
        %2903 = vmatprep.subr.mxu0 0.0
        %2904 = vmatpush1.msra.mxu0 0.0
        %2905 = vmatprep.subr.mxu0 0.0
        %2906 = vmatpush1.msra.mxu0 0.0
        %2907 = vmatprep.subr.mxu0 0.0
        %2908 = vmatpush1.msra.mxu0 0.0
        %2909 = vmatprep.subr.mxu0 0.0
        %2910 = vmatpush1.msra.mxu0 0.0
        %2911 = vmatprep.subr.mxu0 0.0
        %2912 = vmatpush1.msra.mxu0 0.0
        %2913 = vmatprep.subr.mxu0 0.0
        %2914 = vmatpush1.msra.mxu0 0.0
        %2915 = vmatprep.subr.mxu0 0.0
        %2916 = vmatpush1.msra.mxu0 0.0
        %2917 = vmatprep.mubr.f32.mxu0 0.0
        %2918 = vmatmul.mubr.f32.gmra.mrb[0].mxu0 %v2845
        %v2919 = vpop.f32.mrb[0].mxu0
        %v2920 = vadd.f32 0.0, %v2919
        %v2921 = vpop.f32.mrb[0].mxu0
        %v2922 = vadd.f32 0.0, %v2921
        %2923 = vdwg.mxu0
        %v2924 = vld [vmem:[%s8] sm:$0xff]
        %v2925 = vld [vmem:[%s8 + $0x8] sm:$0xff]
        %v2926 = vld [vmem:[%s8 + $0x10] sm:$0xff]
        %v2927 = vld [vmem:[%s8 + $0x18] sm:$0xff]
        %v2928 = vld [vmem:[%s8 + $0x20] sm:$0xff]
        %v2929 = vld [vmem:[%s8 + $0x28] sm:$0xff]
        %v2930 = vld [vmem:[%s8 + $0x30] sm:$0xff]
        %v2931 = vld [vmem:[%s8 + $0x38] sm:$0xff]
        %v2932 = vld [vmem:[%s8 + $0x40] sm:$0xff]
        %v2933 = vld [vmem:[%s8 + $0x48] sm:$0xff]
        %v2934 = vld [vmem:[%s8 + $0x50] sm:$0xff]
        %v2935 = vld [vmem:[%s8 + $0x58] sm:$0xff]
        %v2936 = vld [vmem:[%s8 + $0x60] sm:$0xff]
        %v2937 = vld [vmem:[%s8 + $0x68] sm:$0xff]
        %v2938 = vld [vmem:[%s8 + $0x70] sm:$0xff]
        %v2939 = vld [vmem:[%s8 + $0x78] sm:$0xff]
        %v2940 = vld [vmem:[%s8 + $0x80] sm:$0xff]
        %v2941 = vld [vmem:[%s8 + $0x88] sm:$0xff]
        %v2942 = vld [vmem:[%s8 + $0x90] sm:$0xff]
        %v2943 = vld [vmem:[%s8 + $0x98] sm:$0xff]
        %v2944 = vld [vmem:[%s8 + $0xa0] sm:$0xff]
        %v2945 = vld [vmem:[%s8 + $0xa8] sm:$0xff]
        %v2946 = vld [vmem:[%s8 + $0xb0] sm:$0xff]
        %v2947 = vld [vmem:[%s8 + $0xb8] sm:$0xff]
        %v2948 = vld [vmem:[%s8 + $0xc0] sm:$0xff]
        %v2949 = vld [vmem:[%s8 + $0xc8] sm:$0xff]
        %v2950 = vld [vmem:[%s8 + $0xd0] sm:$0xff]
        %v2951 = vld [vmem:[%s8 + $0xd8] sm:$0xff]
        %v2953 = vsel %vm1662, %v2922, 0
        %2955 = vmatprep.subr.mxu0 0.0
        %2956 = vmatpush1.msra.mxu0 %v2924
        %2957 = vmatprep.subr.mxu0 0.0
        %2958 = vmatpush1.msra.mxu0 %v2925
        %2959 = vmatprep.subr.mxu0 0.0
        %2960 = vmatpush1.msra.mxu0 %v2926
        %2961 = vmatprep.subr.mxu0 0.0
        %2962 = vmatpush1.msra.mxu0 %v2927
        %2963 = vmatprep.subr.mxu0 0.0
        %2964 = vmatpush1.msra.mxu0 %v2928
        %2965 = vmatprep.subr.mxu0 0.0
        %2966 = vmatpush1.msra.mxu0 %v2929
        %2967 = vmatprep.subr.mxu0 0.0
        %2968 = vmatpush1.msra.mxu0 %v2930
        %2969 = vmatprep.subr.mxu0 0.0
        %2970 = vmatpush1.msra.mxu0 %v2931
        %2971 = vmatprep.subr.mxu0 0.0
        %2972 = vmatpush1.msra.mxu0 %v2932
        %2973 = vmatprep.subr.mxu0 0.0
        %2974 = vmatpush1.msra.mxu0 %v2933
        %2975 = vmatprep.subr.mxu0 0.0
        %2976 = vmatpush1.msra.mxu0 %v2934
        %2977 = vmatprep.subr.mxu0 0.0
        %2978 = vmatpush1.msra.mxu0 %v2935
        %2979 = vmatprep.subr.mxu0 0.0
        %2980 = vmatpush1.msra.mxu0 %v2936
        %2981 = vmatprep.subr.mxu0 0.0
        %2982 = vmatpush1.msra.mxu0 %v2937
        %2983 = vmatprep.subr.mxu0 0.0
        %2984 = vmatpush1.msra.mxu0 %v2938
        %2985 = vmatprep.subr.mxu0 0.0
        %2986 = vmatpush1.msra.mxu0 %v2939
        %2987 = vmatprep.subr.mxu0 0.0
        %2988 = vmatpush1.msra.mxu0 %v2940
        %2989 = vmatprep.subr.mxu0 0.0
        %2990 = vmatpush1.msra.mxu0 %v2941
        %2991 = vmatprep.subr.mxu0 0.0
        %2992 = vmatpush1.msra.mxu0 %v2942
        %2993 = vmatprep.subr.mxu0 0.0
        %2994 = vmatpush1.msra.mxu0 %v2943
        %2995 = vmatprep.subr.mxu0 0.0
        %2996 = vmatpush1.msra.mxu0 %v2944
        %2997 = vmatprep.subr.mxu0 0.0
        %2998 = vmatpush1.msra.mxu0 %v2945
        %2999 = vmatprep.subr.mxu0 0.0
        %3000 = vmatpush1.msra.mxu0 %v2946
        %3001 = vmatprep.subr.mxu0 0.0
        %3002 = vmatpush1.msra.mxu0 %v2947
        %3003 = vmatprep.subr.mxu0 0.0
        %3004 = vmatpush1.msra.mxu0 %v2948
        %3005 = vmatprep.subr.mxu0 0.0
        %3006 = vmatpush1.msra.mxu0 %v2949
        %3007 = vmatprep.subr.mxu0 0.0
        %3008 = vmatpush1.msra.mxu0 %v2950
        %3009 = vmatprep.subr.mxu0 0.0
        %3010 = vmatpush1.msra.mxu0 %v2951
        %3011 = vmatprep.subr.mxu0 0.0
        %3012 = vmatpush1.msra.mxu0 0.0
        %3013 = vmatprep.subr.mxu0 0.0
        %3014 = vmatpush1.msra.mxu0 0.0
        %3015 = vmatprep.subr.mxu0 0.0
        %3016 = vmatpush1.msra.mxu0 0.0
        %3017 = vmatprep.subr.mxu0 0.0
        %3018 = vmatpush1.msra.mxu0 0.0
        %3019 = vmatprep.mubr.f32.mxu0 %v2953
        %3020 = vmatmul.mubr.f32.gmra.mrb[0].mxu0 %v2920
        %v3021 = vpop.f32.mrb[0].mxu0
        %v3022 = vadd.f32 0.0, %v3021
        %v3023 = vpop.f32.mrb[0].mxu0
        %3024 = vdwg.mxu0
        %v3026 = vcombine.high %v3022, %v3022
        %v3028 = vunpack.c.l.s4 1966171168
        %v3029 = vunpack.c.0.s8 %v3028
        %v3030 = vlaneseq
        %v3031 = vshrl.u32 %v3030, 7
        %v3032 = vsub.s32 %v3029, %v3031
        %v3033 = vrot.slane %v3022, %v3032
        %v3035 = vunpack.c.l.s4 1966171168
        %v3036 = vunpack.c.0.s8 %v3035
        %v3037 = vlaneseq
        %v3038 = vshrl.u32 %v3037, 7
        %v3039 = vsub.s32 %v3036, %v3038
        %v3040 = vrot.slane %v3026, %v3039
        %v3041 = vcombine.high %v3033, %v3033
        %v3042 = vcombine.high %v3040, %v3040
        %v3044 = vunpack.c.l.s4 1966171168
        %v3045 = vunpack.c.0.s8 %v3044
        %v3046 = vlaneseq
        %v3047 = vshrl.u32 %v3046, 7
        %v3048 = vsub.s32 %v3045, %v3047
        %v3049 = vrot.slane %v3033, %v3048
        %v3051 = vunpack.c.l.s4 1966171168
        %v3052 = vunpack.c.0.s8 %v3051
        %v3053 = vlaneseq
        %v3054 = vshrl.u32 %v3053, 7
        %v3055 = vsub.s32 %v3052, %v3054
        %v3056 = vrot.slane %v3040, %v3055
        %v3058 = vunpack.c.l.s4 1966171168
        %v3059 = vunpack.c.0.s8 %v3058
        %v3060 = vlaneseq
        %v3061 = vshrl.u32 %v3060, 7
        %v3062 = vsub.s32 %v3059, %v3061
        %v3063 = vrot.slane %v3041, %v3062
        %v3065 = vunpack.c.l.s4 1966171168
        %v3066 = vunpack.c.0.s8 %v3065
        %v3067 = vlaneseq
        %v3068 = vshrl.u32 %v3067, 7
        %v3069 = vsub.s32 %v3066, %v3068
        %v3070 = vrot.slane %v3042, %v3069
        %v3071 = vcombine.high %v3049, %v3049
        %v3072 = vcombine.high %v3056, %v3056
        %v3073 = vcombine.high %v3063, %v3063
        %3081 = vst.msk [vmem:[#allocation2 + $0x1] sm:$0x1] %vm1792, %v3049
        %3082 = vst.msk [vmem:[#allocation2 + $0x5] sm:$0x1] %vm1792, %v3063
        %3083 = vst.msk [vmem:[#allocation2 + $0x9] sm:$0x1] %vm1792, %v3071
        %3084 = vst.msk [vmem:[#allocation2 + $0xd] sm:$0x1] %vm1792, %v3073
        %3085 = vst.msk [vmem:[#allocation2 + $0x11] sm:$0x1] %vm1792, %v3056
        %3086 = vst.msk [vmem:[#allocation2 + $0x15] sm:$0x1] %vm1792, %v3070
        %3087 = vst.msk [vmem:[#allocation2 + $0x19] sm:$0x1] %vm1792, %v3072
        %s3088 = scalar_lea.vmem %s496, 128
        %v3089 = vld [vmem:[%s3088] sm:$0xff]
        %v3090 = vld [vmem:[%s3088 + $0x8] sm:$0xff]
        %v3091 = vld [vmem:[%s3088 + $0x10] sm:$0xff]
        %v3092 = vld [vmem:[%s3088 + $0x18] sm:$0xff]
        %v3093 = vld [vmem:[%s3088 + $0x20] sm:$0xff]
        %v3094 = vld [vmem:[%s3088 + $0x28] sm:$0xff]
        %v3095 = vld [vmem:[%s3088 + $0x30] sm:$0xf]
        %v3096 = vld [vmem:[%s3088 + $0x38] sm:$0xf]
        %v3097 = vld [vmem:[%s1] sm:$0xff]
        %v3098 = vld [vmem:[%s1 + $0x8] sm:$0xff]
        %v3099 = vld [vmem:[%s1 + $0x10] sm:$0xff]
        %v3100 = vld [vmem:[%s1 + $0x18] sm:$0xff]
        %v3101 = vld [vmem:[%s1 + $0x20] sm:$0xff]
        %v3102 = vld [vmem:[%s1 + $0x28] sm:$0xff]
        %v3103 = vld [vmem:[%s1 + $0x30] sm:$0xff]
        %v3104 = vld [vmem:[%s1 + $0x38] sm:$0xff]
        %v3105 = vld [vmem:[%s1 + $0x40] sm:$0xff]
        %v3106 = vld [vmem:[%s1 + $0x48] sm:$0xff]
        %v3107 = vld [vmem:[%s1 + $0x50] sm:$0xff]
        %v3108 = vld [vmem:[%s1 + $0x58] sm:$0xff]
        %v3109 = vld [vmem:[%s1 + $0x60] sm:$0xff]
        %v3110 = vld [vmem:[%s1 + $0x68] sm:$0xff]
        %v3111 = vld [vmem:[%s1 + $0x70] sm:$0xff]
        %v3112 = vld [vmem:[%s1 + $0x78] sm:$0xff]
        %v3113 = vld [vmem:[%s1 + $0x80] sm:$0xff]
        %v3114 = vld [vmem:[%s1 + $0x88] sm:$0xff]
        %v3115 = vld [vmem:[%s1 + $0x90] sm:$0xff]
        %v3116 = vld [vmem:[%s1 + $0x98] sm:$0xff]
        %v3117 = vld [vmem:[%s1 + $0xa0] sm:$0xff]
        %v3118 = vld [vmem:[%s1 + $0xa8] sm:$0xff]
        %v3119 = vld [vmem:[%s1 + $0xb0] sm:$0xff]
        %v3120 = vld [vmem:[%s1 + $0xb8] sm:$0xff]
        %v3121 = vld [vmem:[%s1 + $0xc0] sm:$0xff]
        %v3122 = vld [vmem:[%s1 + $0xc8] sm:$0xff]
        %v3123 = vld [vmem:[%s1 + $0xd0] sm:$0xff]
        %v3124 = vld [vmem:[%s1 + $0xd8] sm:$0xff]
        %v3125 = vld [vmem:[%s1 + $0xe0] sm:$0xff]
        %v3126 = vld [vmem:[%s1 + $0xe8] sm:$0xff]
        %v3127 = vld [vmem:[%s1 + $0xf0] sm:$0xff]
        %v3128 = vld [vmem:[%s1 + $0xf8] sm:$0xff]
        %v3129 = vld [vmem:[%s1 + $0x100] sm:$0xff]
        %v3130 = vld [vmem:[%s1 + $0x108] sm:$0xff]
        %v3131 = vld [vmem:[%s1 + $0x110] sm:$0xff]
        %v3132 = vld [vmem:[%s1 + $0x118] sm:$0xff]
        %v3133 = vld [vmem:[%s1 + $0x120] sm:$0xff]
        %v3134 = vld [vmem:[%s1 + $0x128] sm:$0xff]
        %v3135 = vld [vmem:[%s1 + $0x130] sm:$0xff]
        %v3136 = vld [vmem:[%s1 + $0x138] sm:$0xff]
        %v3137 = vld [vmem:[%s2] sm:$0x3]
        %v3139 = vlaneseq
        %v3140 = vshrl.u32 %v3139, 7
        %v3141 = vsub.s32 0, %v3140
        %v3142 = vrot.slane %v3137, %v3141
        %v3143 = vlaneseq
        %v3144 = vshrl.u32 %v3143, 7
        %v3145 = vsub.s32 1, %v3144
        %v3146 = vrot.slane %v3137, %v3145
        %v3150 = vsel %vm558, %v3090, 0
        %v3153 = vsel %vm558, %v3092, 0
        %v3156 = vsel %vm558, %v3094, 0
        %v3159 = vsel %vm558, %v3096, 0
        %3161 = vmatprep.subr.mxu0 %v3098
        %3162 = vmatpush1.msra.mxu0 %v3097
        %3163 = vmatprep.subr.mxu0 %v3100
        %3164 = vmatpush1.msra.mxu0 %v3099
        %3165 = vmatprep.subr.mxu0 %v3102
        %3166 = vmatpush1.msra.mxu0 %v3101
        %3167 = vmatprep.subr.mxu0 %v3104
        %3168 = vmatpush1.msra.mxu0 %v3103
        %3169 = vmatprep.subr.mxu0 %v3106
        %3170 = vmatpush1.msra.mxu0 %v3105
        %3171 = vmatprep.subr.mxu0 %v3108
        %3172 = vmatpush1.msra.mxu0 %v3107
        %3173 = vmatprep.subr.mxu0 %v3110
        %3174 = vmatpush1.msra.mxu0 %v3109
        %3175 = vmatprep.subr.mxu0 %v3112
        %3176 = vmatpush1.msra.mxu0 %v3111
        %3177 = vmatprep.subr.mxu0 %v3114
        %3178 = vmatpush1.msra.mxu0 %v3113
        %3179 = vmatprep.subr.mxu0 %v3116
        %3180 = vmatpush1.msra.mxu0 %v3115
        %3181 = vmatprep.subr.mxu0 %v3118
        %3182 = vmatpush1.msra.mxu0 %v3117
        %3183 = vmatprep.subr.mxu0 %v3120
        %3184 = vmatpush1.msra.mxu0 %v3119
        %3185 = vmatprep.subr.mxu0 %v3122
        %3186 = vmatpush1.msra.mxu0 %v3121
        %3187 = vmatprep.subr.mxu0 %v3124
        %3188 = vmatpush1.msra.mxu0 %v3123
        %3189 = vmatprep.subr.mxu0 %v3126
        %3190 = vmatpush1.msra.mxu0 %v3125
        %3191 = vmatprep.subr.mxu0 %v3128
        %3192 = vmatpush1.msra.mxu0 %v3127
        %3193 = vmatprep.subr.mxu0 %v3130
        %3194 = vmatpush1.msra.mxu0 %v3129
        %3195 = vmatprep.subr.mxu0 %v3132
        %3196 = vmatpush1.msra.mxu0 %v3131
        %3197 = vmatprep.subr.mxu0 %v3134
        %3198 = vmatpush1.msra.mxu0 %v3133
        %3199 = vmatprep.subr.mxu0 %v3136
        %3200 = vmatpush1.msra.mxu0 %v3135
        %3201 = vmatprep.subr.mxu0 0.0
        %3202 = vmatpush1.msra.mxu0 0.0
        %3203 = vmatprep.subr.mxu0 0.0
        %3204 = vmatpush1.msra.mxu0 0.0
        %3205 = vmatprep.subr.mxu0 0.0
        %3206 = vmatpush1.msra.mxu0 0.0
        %3207 = vmatprep.subr.mxu0 0.0
        %3208 = vmatpush1.msra.mxu0 0.0
        %3209 = vmatprep.subr.mxu0 0.0
        %3210 = vmatpush1.msra.mxu0 0.0
        %3211 = vmatprep.subr.mxu0 0.0
        %3212 = vmatpush1.msra.mxu0 0.0
        %3213 = vmatprep.subr.mxu0 0.0
        %3214 = vmatpush1.msra.mxu0 0.0
        %3215 = vmatprep.subr.mxu0 0.0
        %3216 = vmatpush1.msra.mxu0 0.0
        %3217 = vmatprep.subr.mxu0 0.0
        %3218 = vmatpush1.msra.mxu0 0.0
        %3219 = vmatprep.subr.mxu0 0.0
        %3220 = vmatpush1.msra.mxu0 0.0
        %3221 = vmatprep.subr.mxu0 0.0
        %3222 = vmatpush1.msra.mxu0 0.0
        %3223 = vmatprep.subr.mxu0 0.0
        %3224 = vmatpush1.msra.mxu0 0.0
        %3225 = vmatprep.mubr.f32.mxu0 %v3150
        %3226 = vmatmul.mubr.f32.gmra.mrb[0].mxu0 %v3089
        %v3227 = vpop.f32.mrb[0].mxu0
        %v3228 = vadd.f32 %v3142, %v3227
        %v3229 = vpop.f32.mrb[0].mxu0
        %v3230 = vadd.f32 %v3146, %v3229
        %3231 = vmatprep.mubr.f32.mxu0 %v3153
        %3232 = vmatmul.mubr.f32.gmra.mrb[0].mxu0 %v3091
        %v3233 = vpop.f32.mrb[0].mxu0
        %v3234 = vadd.f32 %v3142, %v3233
        %v3235 = vpop.f32.mrb[0].mxu0
        %v3236 = vadd.f32 %v3146, %v3235
        %3237 = vmatprep.mubr.f32.mxu0 %v3156
        %3238 = vmatmul.mubr.f32.gmra.mrb[0].mxu0 %v3093
        %v3239 = vpop.f32.mrb[0].mxu0
        %v3240 = vadd.f32 %v3142, %v3239
        %v3241 = vpop.f32.mrb[0].mxu0
        %v3242 = vadd.f32 %v3146, %v3241
        %3243 = vmatprep.mubr.f32.mxu0 %v3159
        %3244 = vmatmul.mubr.f32.gmra.mrb[0].mxu0 %v3095
        %v3245 = vpop.f32.mrb[0].mxu0
        %v3246 = vadd.f32 %v3142, %v3245
        %v3247 = vpop.f32.mrb[0].mxu0
        %v3248 = vadd.f32 %v3146, %v3247
        %3249 = vdwg.mxu0
        %v3250 = vmul.f32 %v3228, 0.5
        %v3251 = vmul.f32 %v3230, 0.5
        %v3252 = vmul.f32 %v3234, 0.5
        %v3253 = vmul.f32 %v3236, 0.5
        %v3254 = vmul.f32 %v3240, 0.5
        %v3255 = vmul.f32 %v3242, 0.5
        %v3256 = vmul.f32 %v3246, 0.5
        %v3257 = vmul.f32 %v3248, 0.5
        %v3258 = vtanh.pop %v3250
        %v3259 = vtanh.pop %v3251
        %v3260 = vtanh.pop %v3252
        %v3261 = vtanh.pop %v3253
        %v3262 = vtanh.pop %v3254
        %v3263 = vtanh.pop %v3255
        %v3264 = vtanh.pop %v3256
        %v3265 = vtanh.pop %v3257
        %v3266 = vadd.f32 %v3258, 1.0
        %v3267 = vadd.f32 %v3259, 1.0
        %v3268 = vadd.f32 %v3260, 1.0
        %v3269 = vadd.f32 %v3261, 1.0
        %v3270 = vadd.f32 %v3262, 1.0
        %v3271 = vadd.f32 %v3263, 1.0
        %v3272 = vadd.f32 %v3264, 1.0
        %v3273 = vadd.f32 %v3265, 1.0
        %v3274 = vmul.f32 %v3266, 0.5
        %v3275 = vmul.f32 %v3267, 0.5
        %v3276 = vmul.f32 %v3268, 0.5
        %v3277 = vmul.f32 %v3269, 0.5
        %v3278 = vmul.f32 %v3270, 0.5
        %v3279 = vmul.f32 %v3271, 0.5
        %v3280 = vmul.f32 %v3272, 0.5
        %v3281 = vmul.f32 %v3273, 0.5
        %v3282 = vld [vmem:[%s3] sm:$0xff]
        %v3283 = vld [vmem:[%s3 + $0x8] sm:$0xff]
        %v3284 = vld [vmem:[%s3 + $0x10] sm:$0x3]
        %v3286 = vsel %vm695, %v3282, 0
        %v3289 = vsel %vm695, %v3283, 0
        %v3292 = vsel %vm695, %v3284, 0
        %v3295 = vsel %vm705, %v3280, 0
        %v3298 = vsel %vm705, %v3281, 0
        %3300 = vmatprep.subr.mxu0 %v3275
        %3301 = vmatpush1.msra.mxu0 %v3274
        %3302 = vmatprep.subr.mxu0 %v3277
        %3303 = vmatpush1.msra.mxu0 %v3276
        %3304 = vmatprep.subr.mxu0 %v3279
        %3305 = vmatpush1.msra.mxu0 %v3278
        %3306 = vmatprep.subr.mxu0 %v3298
        %3307 = vmatpush1.msra.mxu0 %v3295
        %3308 = vmatprep.subr.mxu0 0.0
        %3309 = vmatpush1.msra.mxu0 0.0
        %3310 = vmatprep.subr.mxu0 0.0
        %3311 = vmatpush1.msra.mxu0 0.0
        %3312 = vmatprep.subr.mxu0 0.0
        %3313 = vmatpush1.msra.mxu0 0.0
        %3314 = vmatprep.subr.mxu0 0.0
        %3315 = vmatpush1.msra.mxu0 0.0
        %3316 = vmatprep.subr.mxu0 0.0
        %3317 = vmatpush1.msra.mxu0 0.0
        %3318 = vmatprep.subr.mxu0 0.0
        %3319 = vmatpush1.msra.mxu0 0.0
        %3320 = vmatprep.subr.mxu0 0.0
        %3321 = vmatpush1.msra.mxu0 0.0
        %3322 = vmatprep.subr.mxu0 0.0
        %3323 = vmatpush1.msra.mxu0 0.0
        %3324 = vmatprep.subr.mxu0 0.0
        %3325 = vmatpush1.msra.mxu0 0.0
        %3326 = vmatprep.subr.mxu0 0.0
        %3327 = vmatpush1.msra.mxu0 0.0
        %3328 = vmatprep.subr.mxu0 0.0
        %3329 = vmatpush1.msra.mxu0 0.0
        %3330 = vmatprep.subr.mxu0 0.0
        %3331 = vmatpush1.msra.mxu0 0.0
        %3332 = vmatprep.subr.mxu0 0.0
        %3333 = vmatpush1.msra.mxu0 0.0
        %3334 = vmatprep.subr.mxu0 0.0
        %3335 = vmatpush1.msra.mxu0 0.0
        %3336 = vmatprep.subr.mxu0 0.0
        %3337 = vmatpush1.msra.mxu0 0.0
        %3338 = vmatprep.subr.mxu0 0.0
        %3339 = vmatpush1.msra.mxu0 0.0
        %3340 = vmatprep.subr.mxu0 0.0
        %3341 = vmatpush1.msra.mxu0 0.0
        %3342 = vmatprep.subr.mxu0 0.0
        %3343 = vmatpush1.msra.mxu0 0.0
        %3344 = vmatprep.subr.mxu0 0.0
        %3345 = vmatpush1.msra.mxu0 0.0
        %3346 = vmatprep.subr.mxu0 0.0
        %3347 = vmatpush1.msra.mxu0 0.0
        %3348 = vmatprep.subr.mxu0 0.0
        %3349 = vmatpush1.msra.mxu0 0.0
        %3350 = vmatprep.subr.mxu0 0.0
        %3351 = vmatpush1.msra.mxu0 0.0
        %3352 = vmatprep.subr.mxu0 0.0
        %3353 = vmatpush1.msra.mxu0 0.0
        %3354 = vmatprep.subr.mxu0 0.0
        %3355 = vmatpush1.msra.mxu0 0.0
        %3356 = vmatprep.subr.mxu0 0.0
        %3357 = vmatpush1.msra.mxu0 0.0
        %3358 = vmatprep.subr.mxu0 0.0
        %3359 = vmatpush1.msra.mxu0 0.0
        %3360 = vmatprep.subr.mxu0 0.0
        %3361 = vmatpush1.msra.mxu0 0.0
        %3362 = vmatprep.subr.mxu0 0.0
        %3363 = vmatpush1.msra.mxu0 0.0
        %3364 = vmatprep.mubr.f32.mxu0 0.0
        %3365 = vmatmul.mubr.f32.gmra.mrb[0].mxu0 %v3286
        %v3366 = vpop.f32.mrb[0].mxu0
        %v3367 = vadd.f32 0.0, %v3366
        %v3368 = vpop.f32.mrb[0].mxu0
        %v3369 = vadd.f32 0.0, %v3368
        %3370 = vmatprep.mubr.f32.mxu0 0.0
        %3371 = vmatmul.mubr.f32.gmra.mrb[0].mxu0 %v3289
        %v3372 = vpop.f32.mrb[0].mxu0
        %v3373 = vadd.f32 0.0, %v3372
        %v3374 = vpop.f32.mrb[0].mxu0
        %v3375 = vadd.f32 0.0, %v3374
        %3376 = vmatprep.mubr.f32.mxu0 0.0
        %3377 = vmatmul.mubr.f32.gmra.mrb[0].mxu0 %v3292
        %v3378 = vpop.f32.mrb[0].mxu0
        %v3379 = vadd.f32 0.0, %v3378
        %v3380 = vpop.f32.mrb[0].mxu0
        %v3381 = vadd.f32 0.0, %v3380
        %3382 = vdwg.mxu0
        %v3383 = vld [vmem:[%s4] sm:$0xff]
        %v3384 = vld [vmem:[%s4 + $0x8] sm:$0xff]
        %v3385 = vld [vmem:[%s4 + $0x10] sm:$0xff]
        %v3386 = vld [vmem:[%s4 + $0x18] sm:$0xff]
        %v3387 = vld [vmem:[%s4 + $0x20] sm:$0xff]
        %v3388 = vld [vmem:[%s4 + $0x28] sm:$0xff]
        %v3389 = vld [vmem:[%s4 + $0x30] sm:$0xff]
        %v3390 = vld [vmem:[%s4 + $0x38] sm:$0xff]
        %v3391 = vld [vmem:[%s4 + $0x40] sm:$0xff]
        %v3392 = vld [vmem:[%s4 + $0x48] sm:$0xff]
        %v3393 = vld [vmem:[%s4 + $0x50] sm:$0xff]
        %v3394 = vld [vmem:[%s4 + $0x58] sm:$0xff]
        %v3395 = vld [vmem:[%s4 + $0x60] sm:$0xff]
        %v3396 = vld [vmem:[%s4 + $0x68] sm:$0xff]
        %v3397 = vld [vmem:[%s4 + $0x70] sm:$0xff]
        %v3398 = vld [vmem:[%s4 + $0x78] sm:$0xff]
        %v3399 = vld [vmem:[%s4 + $0x80] sm:$0xff]
        %v3400 = vld [vmem:[%s4 + $0x88] sm:$0xff]
        %v3401 = vld [vmem:[%s4 + $0x90] sm:$0xff]
        %v3402 = vld [vmem:[%s4 + $0x98] sm:$0xff]
        %v3403 = vld [vmem:[%s4 + $0xa0] sm:$0xff]
        %v3405 = vsel %vm816, %v3369, 0
        %v3408 = vsel %vm816, %v3375, 0
        %v3411 = vsel %vm816, %v3381, 0
        %3413 = vmatprep.subr.mxu0 0.0
        %3414 = vmatpush1.msra.mxu0 %v3383
        %3415 = vmatprep.subr.mxu0 0.0
        %3416 = vmatpush1.msra.mxu0 %v3384
        %3417 = vmatprep.subr.mxu0 0.0
        %3418 = vmatpush1.msra.mxu0 %v3385
        %3419 = vmatprep.subr.mxu0 0.0
        %3420 = vmatpush1.msra.mxu0 %v3386
        %3421 = vmatprep.subr.mxu0 0.0
        %3422 = vmatpush1.msra.mxu0 %v3387
        %3423 = vmatprep.subr.mxu0 0.0
        %3424 = vmatpush1.msra.mxu0 %v3388
        %3425 = vmatprep.subr.mxu0 0.0
        %3426 = vmatpush1.msra.mxu0 %v3389
        %3427 = vmatprep.subr.mxu0 0.0
        %3428 = vmatpush1.msra.mxu0 %v3390
        %3429 = vmatprep.subr.mxu0 0.0
        %3430 = vmatpush1.msra.mxu0 %v3391
        %3431 = vmatprep.subr.mxu0 0.0
        %3432 = vmatpush1.msra.mxu0 %v3392
        %3433 = vmatprep.subr.mxu0 0.0
        %3434 = vmatpush1.msra.mxu0 %v3393
        %3435 = vmatprep.subr.mxu0 0.0
        %3436 = vmatpush1.msra.mxu0 %v3394
        %3437 = vmatprep.subr.mxu0 0.0
        %3438 = vmatpush1.msra.mxu0 %v3395
        %3439 = vmatprep.subr.mxu0 0.0
        %3440 = vmatpush1.msra.mxu0 %v3396
        %3441 = vmatprep.subr.mxu0 0.0
        %3442 = vmatpush1.msra.mxu0 %v3397
        %3443 = vmatprep.subr.mxu0 0.0
        %3444 = vmatpush1.msra.mxu0 %v3398
        %3445 = vmatprep.subr.mxu0 0.0
        %3446 = vmatpush1.msra.mxu0 %v3399
        %3447 = vmatprep.subr.mxu0 0.0
        %3448 = vmatpush1.msra.mxu0 %v3400
        %3449 = vmatprep.subr.mxu0 0.0
        %3450 = vmatpush1.msra.mxu0 %v3401
        %3451 = vmatprep.subr.mxu0 0.0
        %3452 = vmatpush1.msra.mxu0 %v3402
        %3453 = vmatprep.subr.mxu0 0.0
        %3454 = vmatpush1.msra.mxu0 %v3403
        %3455 = vmatprep.subr.mxu0 0.0
        %3456 = vmatpush1.msra.mxu0 0.0
        %3457 = vmatprep.subr.mxu0 0.0
        %3458 = vmatpush1.msra.mxu0 0.0
        %3459 = vmatprep.subr.mxu0 0.0
        %3460 = vmatpush1.msra.mxu0 0.0
        %3461 = vmatprep.subr.mxu0 0.0
        %3462 = vmatpush1.msra.mxu0 0.0
        %3463 = vmatprep.subr.mxu0 0.0
        %3464 = vmatpush1.msra.mxu0 0.0
        %3465 = vmatprep.subr.mxu0 0.0
        %3466 = vmatpush1.msra.mxu0 0.0
        %3467 = vmatprep.subr.mxu0 0.0
        %3468 = vmatpush1.msra.mxu0 0.0
        %3469 = vmatprep.subr.mxu0 0.0
        %3470 = vmatpush1.msra.mxu0 0.0
        %3471 = vmatprep.subr.mxu0 0.0
        %3472 = vmatpush1.msra.mxu0 0.0
        %3473 = vmatprep.subr.mxu0 0.0
        %3474 = vmatpush1.msra.mxu0 0.0
        %3475 = vmatprep.subr.mxu0 0.0
        %3476 = vmatpush1.msra.mxu0 0.0
        %3477 = vmatprep.mubr.f32.mxu0 %v3405
        %3478 = vmatmul.mubr.f32.gmra.mrb[0].mxu0 %v3367
        %v3479 = vpop.f32.mrb[0].mxu0
        %v3480 = vadd.f32 0.0, %v3479
        %v3481 = vpop.f32.mrb[0].mxu0
        %3482 = vmatprep.mubr.f32.mxu0 %v3408
        %3483 = vmatmul.mubr.f32.gmra.mrb[0].mxu0 %v3373
        %v3484 = vpop.f32.mrb[0].mxu0
        %v3485 = vadd.f32 0.0, %v3484
        %v3486 = vpop.f32.mrb[0].mxu0
        %3487 = vmatprep.mubr.f32.mxu0 %v3411
        %3488 = vmatmul.mubr.f32.gmra.mrb[0].mxu0 %v3379
        %v3489 = vpop.f32.mrb[0].mxu0
        %v3490 = vadd.f32 0.0, %v3489
        %v3491 = vpop.f32.mrb[0].mxu0
        %3492 = vdwg.mxu0
        %v3493 = vld [vmem:[%s5] sm:$0xff]
        %v3494 = vld [vmem:[%s5 + $0x8] sm:$0xff]
        %v3495 = vld [vmem:[%s5 + $0x10] sm:$0xff]
        %v3496 = vld [vmem:[%s5 + $0x18] sm:$0xff]
        %v3497 = vld [vmem:[%s5 + $0x20] sm:$0xff]
        %v3498 = vld [vmem:[%s5 + $0x28] sm:$0xff]
        %v3499 = vld [vmem:[%s5 + $0x30] sm:$0xff]
        %v3500 = vld [vmem:[%s5 + $0x38] sm:$0xff]
        %v3501 = vld [vmem:[%s5 + $0x40] sm:$0xff]
        %v3502 = vld [vmem:[%s5 + $0x48] sm:$0xff]
        %v3503 = vld [vmem:[%s5 + $0x50] sm:$0xff]
        %v3504 = vld [vmem:[%s5 + $0x58] sm:$0xff]
        %v3505 = vld [vmem:[%s5 + $0x60] sm:$0xff]
        %v3506 = vld [vmem:[%s5 + $0x68] sm:$0xff]
        %v3507 = vld [vmem:[%s5 + $0x70] sm:$0xff]
        %v3508 = vld [vmem:[%s5 + $0x78] sm:$0xff]
        %v3509 = vld [vmem:[%s5 + $0x80] sm:$0xff]
        %v3510 = vld [vmem:[%s5 + $0x88] sm:$0xff]
        %v3511 = vld [vmem:[%s5 + $0x90] sm:$0xff]
        %v3512 = vld [vmem:[%s5 + $0x98] sm:$0xff]
        %v3513 = vld [vmem:[%s5 + $0xa0] sm:$0xff]
        %v3514 = vld [vmem:[%s5 + $0xa8] sm:$0xff]
        %v3515 = vld [vmem:[%s5 + $0xb0] sm:$0xff]
        %v3516 = vld [vmem:[%s5 + $0xb8] sm:$0xff]
        %v3517 = vld [vmem:[%s5 + $0xc0] sm:$0xff]
        %v3518 = vld [vmem:[%s5 + $0xc8] sm:$0xff]
        %v3519 = vld [vmem:[%s5 + $0xd0] sm:$0xf]
        %v3520 = vld [vmem:[%s5 + $0xd8] sm:$0xf]
        %v3521 = vld [vmem:[%s934] sm:$0xff]
        %v3522 = vld [vmem:[%s934 + $0x8] sm:$0xff]
        %v3523 = vld [vmem:[%s934 + $0x10] sm:$0xff]
        %v3524 = vld [vmem:[%s934 + $0x18] sm:$0xff]
        %v3525 = vld [vmem:[%s934 + $0x20] sm:$0xff]
        %v3526 = vld [vmem:[%s934 + $0x28] sm:$0xff]
        %v3527 = vld [vmem:[%s934 + $0x30] sm:$0xff]
        %v3528 = vld [vmem:[%s934 + $0x38] sm:$0xff]
        %v3529 = vld [vmem:[%s934 + $0x40] sm:$0xff]
        %v3530 = vld [vmem:[%s934 + $0x48] sm:$0xff]
        %v3531 = vld [vmem:[%s934 + $0x50] sm:$0xff]
        %v3532 = vld [vmem:[%s934 + $0x58] sm:$0xff]
        %v3533 = vld [vmem:[%s934 + $0x60] sm:$0xff]
        %v3534 = vld [vmem:[%s934 + $0x68] sm:$0xff]
        %v3535 = vld [vmem:[%s934 + $0x70] sm:$0xff]
        %v3536 = vld [vmem:[%s934 + $0x78] sm:$0xff]
        %v3537 = vld [vmem:[%s934 + $0x80] sm:$0xff]
        %v3538 = vld [vmem:[%s934 + $0x88] sm:$0xff]
        %v3539 = vld [vmem:[%s934 + $0x90] sm:$0xff]
        %v3540 = vld [vmem:[%s934 + $0x98] sm:$0xff]
        %v3541 = vld [vmem:[%s934 + $0xa0] sm:$0xff]
        %v3542 = vld [vmem:[%s934 + $0xa8] sm:$0xff]
        %v3543 = vld [vmem:[%s934 + $0xb0] sm:$0xff]
        %v3544 = vld [vmem:[%s934 + $0xb8] sm:$0xff]
        %v3545 = vld [vmem:[%s934 + $0xc0] sm:$0xff]
        %v3546 = vld [vmem:[%s934 + $0xc8] sm:$0xff]
        %v3547 = vld [vmem:[%s934 + $0xd0] sm:$0xf]
        %v3548 = vld [vmem:[%s934 + $0xd8] sm:$0xf]
        %v3551 = vrot.slane %v3480, 1
        %v3552 = vrot.slane %v3485, 1
        %v3553 = vsel %vm965, %v3551, %v3552
        %v3554 = vsel %vm969, %v3553, 0
        %v3556 = vsel %vm969, %v3552, 0
        %v3559 = vsel %vm705, %v3547, 0
        %v3562 = vsel %vm705, %v3548, 0
        %3564 = vmatprep.subr.mxu0 %v3522
        %3565 = vmatpush1.msra.mxu0 %v3521
        %3566 = vmatprep.subr.mxu0 %v3524
        %3567 = vmatpush1.msra.mxu0 %v3523
        %3568 = vmatprep.subr.mxu0 %v3526
        %3569 = vmatpush1.msra.mxu0 %v3525
        %3570 = vmatprep.subr.mxu0 %v3528
        %3571 = vmatpush1.msra.mxu0 %v3527
        %3572 = vmatprep.subr.mxu0 %v3530
        %3573 = vmatpush1.msra.mxu0 %v3529
        %3574 = vmatprep.subr.mxu0 %v3532
        %3575 = vmatpush1.msra.mxu0 %v3531
        %3576 = vmatprep.subr.mxu0 %v3534
        %3577 = vmatpush1.msra.mxu0 %v3533
        %3578 = vmatprep.subr.mxu0 %v3536
        %3579 = vmatpush1.msra.mxu0 %v3535
        %3580 = vmatprep.subr.mxu0 %v3538
        %3581 = vmatpush1.msra.mxu0 %v3537
        %3582 = vmatprep.subr.mxu0 %v3540
        %3583 = vmatpush1.msra.mxu0 %v3539
        %3584 = vmatprep.subr.mxu0 %v3542
        %3585 = vmatpush1.msra.mxu0 %v3541
        %3586 = vmatprep.subr.mxu0 %v3544
        %3587 = vmatpush1.msra.mxu0 %v3543
        %3588 = vmatprep.subr.mxu0 %v3546
        %3589 = vmatpush1.msra.mxu0 %v3545
        %3590 = vmatprep.subr.mxu0 %v3562
        %3591 = vmatpush1.msra.mxu0 %v3559
        %3592 = vmatprep.subr.mxu0 0.0
        %3593 = vmatpush1.msra.mxu0 0.0
        %3594 = vmatprep.subr.mxu0 0.0
        %3595 = vmatpush1.msra.mxu0 0.0
        %3596 = vmatprep.subr.mxu0 0.0
        %3597 = vmatpush1.msra.mxu0 0.0
        %3598 = vmatprep.subr.mxu0 0.0
        %3599 = vmatpush1.msra.mxu0 0.0
        %3600 = vmatprep.subr.mxu0 0.0
        %3601 = vmatpush1.msra.mxu0 0.0
        %3602 = vmatprep.subr.mxu0 0.0
        %3603 = vmatpush1.msra.mxu0 0.0
        %3604 = vmatprep.subr.mxu0 0.0
        %3605 = vmatpush1.msra.mxu0 0.0
        %3606 = vmatprep.subr.mxu0 0.0
        %3607 = vmatpush1.msra.mxu0 0.0
        %3608 = vmatprep.subr.mxu0 0.0
        %3609 = vmatpush1.msra.mxu0 0.0
        %3610 = vmatprep.subr.mxu0 0.0
        %3611 = vmatpush1.msra.mxu0 0.0
        %3612 = vmatprep.subr.mxu0 0.0
        %3613 = vmatpush1.msra.mxu0 0.0
        %3614 = vmatprep.subr.mxu0 0.0
        %3615 = vmatpush1.msra.mxu0 0.0
        %3616 = vmatprep.subr.mxu0 0.0
        %3617 = vmatpush1.msra.mxu0 0.0
        %3618 = vmatprep.subr.mxu0 0.0
        %3619 = vmatpush1.msra.mxu0 0.0
        %3620 = vmatprep.subr.mxu0 0.0
        %3621 = vmatpush1.msra.mxu0 0.0
        %3622 = vmatprep.subr.mxu0 0.0
        %3623 = vmatpush1.msra.mxu0 0.0
        %3624 = vmatprep.subr.mxu0 0.0
        %3625 = vmatpush1.msra.mxu0 0.0
        %3626 = vmatprep.subr.mxu0 0.0
        %3627 = vmatpush1.msra.mxu0 0.0
        %3628 = vmatprep.mubr.f32.mxu0 0.0
        %3629 = vmatmul.mubr.f32.gmra.mrb[0].mxu0 %v3554
        %v3630 = vpop.f32.mrb[0].mxu0
        %v3631 = vadd.f32 0.0, %v3630
        %v3632 = vpop.f32.mrb[0].mxu0
        %v3633 = vadd.f32 0.0, %v3632
        %3634 = vmatprep.mubr.f32.mxu0 0.0
        %3635 = vmatmul.mubr.f32.gmra.mrb[0].mxu0 %v3556
        %v3636 = vpop.f32.mrb[0].mxu0
        %v3637 = vadd.f32 0.0, %v3636
        %v3638 = vpop.f32.mrb[0].mxu0
        %v3639 = vadd.f32 0.0, %v3638
        %3640 = vdwg.mxu0
        %v3641 = vsel %vm969, %v3480, 0
        %v3643 = vsel %vm969, %v3485, 0
        %v3646 = vsel %vm705, %v3519, 0
        %v3649 = vsel %vm705, %v3520, 0
        %3651 = vmatprep.subr.mxu0 %v3494
        %3652 = vmatpush1.msra.mxu0 %v3493
        %3653 = vmatprep.subr.mxu0 %v3496
        %3654 = vmatpush1.msra.mxu0 %v3495
        %3655 = vmatprep.subr.mxu0 %v3498
        %3656 = vmatpush1.msra.mxu0 %v3497
        %3657 = vmatprep.subr.mxu0 %v3500
        %3658 = vmatpush1.msra.mxu0 %v3499
        %3659 = vmatprep.subr.mxu0 %v3502
        %3660 = vmatpush1.msra.mxu0 %v3501
        %3661 = vmatprep.subr.mxu0 %v3504
        %3662 = vmatpush1.msra.mxu0 %v3503
        %3663 = vmatprep.subr.mxu0 %v3506
        %3664 = vmatpush1.msra.mxu0 %v3505
        %3665 = vmatprep.subr.mxu0 %v3508
        %3666 = vmatpush1.msra.mxu0 %v3507
        %3667 = vmatprep.subr.mxu0 %v3510
        %3668 = vmatpush1.msra.mxu0 %v3509
        %3669 = vmatprep.subr.mxu0 %v3512
        %3670 = vmatpush1.msra.mxu0 %v3511
        %3671 = vmatprep.subr.mxu0 %v3514
        %3672 = vmatpush1.msra.mxu0 %v3513
        %3673 = vmatprep.subr.mxu0 %v3516
        %3674 = vmatpush1.msra.mxu0 %v3515
        %3675 = vmatprep.subr.mxu0 %v3518
        %3676 = vmatpush1.msra.mxu0 %v3517
        %3677 = vmatprep.subr.mxu0 %v3649
        %3678 = vmatpush1.msra.mxu0 %v3646
        %3679 = vmatprep.subr.mxu0 0.0
        %3680 = vmatpush1.msra.mxu0 0.0
        %3681 = vmatprep.subr.mxu0 0.0
        %3682 = vmatpush1.msra.mxu0 0.0
        %3683 = vmatprep.subr.mxu0 0.0
        %3684 = vmatpush1.msra.mxu0 0.0
        %3685 = vmatprep.subr.mxu0 0.0
        %3686 = vmatpush1.msra.mxu0 0.0
        %3687 = vmatprep.subr.mxu0 0.0
        %3688 = vmatpush1.msra.mxu0 0.0
        %3689 = vmatprep.subr.mxu0 0.0
        %3690 = vmatpush1.msra.mxu0 0.0
        %3691 = vmatprep.subr.mxu0 0.0
        %3692 = vmatpush1.msra.mxu0 0.0
        %3693 = vmatprep.subr.mxu0 0.0
        %3694 = vmatpush1.msra.mxu0 0.0
        %3695 = vmatprep.subr.mxu0 0.0
        %3696 = vmatpush1.msra.mxu0 0.0
        %3697 = vmatprep.subr.mxu0 0.0
        %3698 = vmatpush1.msra.mxu0 0.0
        %3699 = vmatprep.subr.mxu0 0.0
        %3700 = vmatpush1.msra.mxu0 0.0
        %3701 = vmatprep.subr.mxu0 0.0
        %3702 = vmatpush1.msra.mxu0 0.0
        %3703 = vmatprep.subr.mxu0 0.0
        %3704 = vmatpush1.msra.mxu0 0.0
        %3705 = vmatprep.subr.mxu0 0.0
        %3706 = vmatpush1.msra.mxu0 0.0
        %3707 = vmatprep.subr.mxu0 0.0
        %3708 = vmatpush1.msra.mxu0 0.0
        %3709 = vmatprep.subr.mxu0 0.0
        %3710 = vmatpush1.msra.mxu0 0.0
        %3711 = vmatprep.subr.mxu0 0.0
        %3712 = vmatpush1.msra.mxu0 0.0
        %3713 = vmatprep.subr.mxu0 0.0
        %3714 = vmatpush1.msra.mxu0 0.0
        %3715 = vmatprep.mubr.f32.mxu0 0.0
        %3716 = vmatmul.mubr.f32.gmra.mrb[0].mxu0 %v3641
        %v3717 = vpop.f32.mrb[0].mxu0
        %v3718 = vadd.f32 %v3631, %v3717
        %v3719 = vpop.f32.mrb[0].mxu0
        %v3720 = vadd.f32 %v3633, %v3719
        %3721 = vmatprep.mubr.f32.mxu0 0.0
        %3722 = vmatmul.mubr.f32.gmra.mrb[0].mxu0 %v3643
        %v3723 = vpop.f32.mrb[0].mxu0
        %v3724 = vadd.f32 %v3637, %v3723
        %v3725 = vpop.f32.mrb[0].mxu0
        %v3726 = vadd.f32 %v3639, %v3725
        %3727 = vdwg.mxu0
        %v3728 = vld [vmem:[%s1144] sm:$0xff]
        %v3729 = vld [vmem:[%s1144 + $0x8] sm:$0xff]
        %v3730 = vld [vmem:[%s1144 + $0x10] sm:$0xff]
        %v3731 = vld [vmem:[%s1144 + $0x18] sm:$0xff]
        %v3732 = vld [vmem:[%s1144 + $0x20] sm:$0xff]
        %v3733 = vld [vmem:[%s1144 + $0x28] sm:$0xff]
        %v3734 = vld [vmem:[%s1144 + $0x30] sm:$0xff]
        %v3735 = vld [vmem:[%s1144 + $0x38] sm:$0xff]
        %v3736 = vld [vmem:[%s1144 + $0x40] sm:$0xff]
        %v3737 = vld [vmem:[%s1144 + $0x48] sm:$0xff]
        %v3738 = vld [vmem:[%s1144 + $0x50] sm:$0xff]
        %v3739 = vld [vmem:[%s1144 + $0x58] sm:$0xff]
        %v3740 = vld [vmem:[%s1144 + $0x60] sm:$0xff]
        %v3741 = vld [vmem:[%s1144 + $0x68] sm:$0xff]
        %v3742 = vld [vmem:[%s1144 + $0x70] sm:$0xff]
        %v3743 = vld [vmem:[%s1144 + $0x78] sm:$0xff]
        %v3744 = vld [vmem:[%s1144 + $0x80] sm:$0xff]
        %v3745 = vld [vmem:[%s1144 + $0x88] sm:$0xff]
        %v3746 = vld [vmem:[%s1144 + $0x90] sm:$0xff]
        %v3747 = vld [vmem:[%s1144 + $0x98] sm:$0xff]
        %v3748 = vld [vmem:[%s1144 + $0xa0] sm:$0xff]
        %v3749 = vld [vmem:[%s1144 + $0xa8] sm:$0xff]
        %v3750 = vld [vmem:[%s1144 + $0xb0] sm:$0xff]
        %v3751 = vld [vmem:[%s1144 + $0xb8] sm:$0xff]
        %v3752 = vld [vmem:[%s1144 + $0xc0] sm:$0xff]
        %v3753 = vld [vmem:[%s1144 + $0xc8] sm:$0xff]
        %v3754 = vld [vmem:[%s1144 + $0xd0] sm:$0xf]
        %v3755 = vld [vmem:[%s1144 + $0xd8] sm:$0xf]
        %v3756 = vrot.slane %v3480, 2
        %v3757 = vrot.slane %v3485, 2
        %v3758 = vsel %vm1173, %v3756, %v3757
        %v3759 = vsel %vm969, %v3758, 0
        %v3761 = vsel %vm969, %v3757, 0
        %v3764 = vsel %vm705, %v3754, 0
        %v3767 = vsel %vm705, %v3755, 0
        %3769 = vmatprep.subr.mxu0 %v3729
        %3770 = vmatpush1.msra.mxu0 %v3728
        %3771 = vmatprep.subr.mxu0 %v3731
        %3772 = vmatpush1.msra.mxu0 %v3730
        %3773 = vmatprep.subr.mxu0 %v3733
        %3774 = vmatpush1.msra.mxu0 %v3732
        %3775 = vmatprep.subr.mxu0 %v3735
        %3776 = vmatpush1.msra.mxu0 %v3734
        %3777 = vmatprep.subr.mxu0 %v3737
        %3778 = vmatpush1.msra.mxu0 %v3736
        %3779 = vmatprep.subr.mxu0 %v3739
        %3780 = vmatpush1.msra.mxu0 %v3738
        %3781 = vmatprep.subr.mxu0 %v3741
        %3782 = vmatpush1.msra.mxu0 %v3740
        %3783 = vmatprep.subr.mxu0 %v3743
        %3784 = vmatpush1.msra.mxu0 %v3742
        %3785 = vmatprep.subr.mxu0 %v3745
        %3786 = vmatpush1.msra.mxu0 %v3744
        %3787 = vmatprep.subr.mxu0 %v3747
        %3788 = vmatpush1.msra.mxu0 %v3746
        %3789 = vmatprep.subr.mxu0 %v3749
        %3790 = vmatpush1.msra.mxu0 %v3748
        %3791 = vmatprep.subr.mxu0 %v3751
        %3792 = vmatpush1.msra.mxu0 %v3750
        %3793 = vmatprep.subr.mxu0 %v3753
        %3794 = vmatpush1.msra.mxu0 %v3752
        %3795 = vmatprep.subr.mxu0 %v3767
        %3796 = vmatpush1.msra.mxu0 %v3764
        %3797 = vmatprep.subr.mxu0 0.0
        %3798 = vmatpush1.msra.mxu0 0.0
        %3799 = vmatprep.subr.mxu0 0.0
        %3800 = vmatpush1.msra.mxu0 0.0
        %3801 = vmatprep.subr.mxu0 0.0
        %3802 = vmatpush1.msra.mxu0 0.0
        %3803 = vmatprep.subr.mxu0 0.0
        %3804 = vmatpush1.msra.mxu0 0.0
        %3805 = vmatprep.subr.mxu0 0.0
        %3806 = vmatpush1.msra.mxu0 0.0
        %3807 = vmatprep.subr.mxu0 0.0
        %3808 = vmatpush1.msra.mxu0 0.0
        %3809 = vmatprep.subr.mxu0 0.0
        %3810 = vmatpush1.msra.mxu0 0.0
        %3811 = vmatprep.subr.mxu0 0.0
        %3812 = vmatpush1.msra.mxu0 0.0
        %3813 = vmatprep.subr.mxu0 0.0
        %3814 = vmatpush1.msra.mxu0 0.0
        %3815 = vmatprep.subr.mxu0 0.0
        %3816 = vmatpush1.msra.mxu0 0.0
        %3817 = vmatprep.subr.mxu0 0.0
        %3818 = vmatpush1.msra.mxu0 0.0
        %3819 = vmatprep.subr.mxu0 0.0
        %3820 = vmatpush1.msra.mxu0 0.0
        %3821 = vmatprep.subr.mxu0 0.0
        %3822 = vmatpush1.msra.mxu0 0.0
        %3823 = vmatprep.subr.mxu0 0.0
        %3824 = vmatpush1.msra.mxu0 0.0
        %3825 = vmatprep.subr.mxu0 0.0
        %3826 = vmatpush1.msra.mxu0 0.0
        %3827 = vmatprep.subr.mxu0 0.0
        %3828 = vmatpush1.msra.mxu0 0.0
        %3829 = vmatprep.subr.mxu0 0.0
        %3830 = vmatpush1.msra.mxu0 0.0
        %3831 = vmatprep.subr.mxu0 0.0
        %3832 = vmatpush1.msra.mxu0 0.0
        %3833 = vmatprep.mubr.f32.mxu0 0.0
        %3834 = vmatmul.mubr.f32.gmra.mrb[0].mxu0 %v3759
        %v3835 = vpop.f32.mrb[0].mxu0
        %v3836 = vadd.f32 0.0, %v3835
        %v3837 = vpop.f32.mrb[0].mxu0
        %v3838 = vadd.f32 0.0, %v3837
        %3839 = vmatprep.mubr.f32.mxu0 0.0
        %3840 = vmatmul.mubr.f32.gmra.mrb[0].mxu0 %v3761
        %v3841 = vpop.f32.mrb[0].mxu0
        %v3842 = vadd.f32 0.0, %v3841
        %v3843 = vpop.f32.mrb[0].mxu0
        %v3844 = vadd.f32 0.0, %v3843
        %3845 = vdwg.mxu0
        %v3846 = vadd.f32 %v3718, %v3836
        %v3847 = vadd.f32 %v3720, %v3838
        %v3848 = vadd.f32 %v3724, %v3842
        %v3849 = vadd.f32 %v3726, %v3844
        %v3850 = vld [vmem:[%s1268] sm:$0xff]
        %v3851 = vld [vmem:[%s1268 + $0x8] sm:$0xff]
        %v3852 = vld [vmem:[%s1268 + $0x10] sm:$0xff]
        %v3853 = vld [vmem:[%s1268 + $0x18] sm:$0xff]
        %v3854 = vld [vmem:[%s1268 + $0x20] sm:$0xff]
        %v3855 = vld [vmem:[%s1268 + $0x28] sm:$0xff]
        %v3856 = vld [vmem:[%s1268 + $0x30] sm:$0xff]
        %v3857 = vld [vmem:[%s1268 + $0x38] sm:$0xff]
        %v3858 = vld [vmem:[%s1268 + $0x40] sm:$0xff]
        %v3859 = vld [vmem:[%s1268 + $0x48] sm:$0xff]
        %v3860 = vld [vmem:[%s1268 + $0x50] sm:$0xff]
        %v3861 = vld [vmem:[%s1268 + $0x58] sm:$0xff]
        %v3862 = vld [vmem:[%s1268 + $0x60] sm:$0xff]
        %v3863 = vld [vmem:[%s1268 + $0x68] sm:$0xff]
        %v3864 = vld [vmem:[%s1268 + $0x70] sm:$0xff]
        %v3865 = vld [vmem:[%s1268 + $0x78] sm:$0xff]
        %v3866 = vld [vmem:[%s1268 + $0x80] sm:$0xff]
        %v3867 = vld [vmem:[%s1268 + $0x88] sm:$0xff]
        %v3868 = vld [vmem:[%s1268 + $0x90] sm:$0xff]
        %v3869 = vld [vmem:[%s1268 + $0x98] sm:$0xff]
        %v3870 = vld [vmem:[%s1268 + $0xa0] sm:$0xff]
        %v3871 = vld [vmem:[%s1268 + $0xa8] sm:$0xff]
        %v3872 = vld [vmem:[%s1268 + $0xb0] sm:$0xff]
        %v3873 = vld [vmem:[%s1268 + $0xb8] sm:$0xff]
        %v3874 = vld [vmem:[%s1268 + $0xc0] sm:$0xff]
        %v3875 = vld [vmem:[%s1268 + $0xc8] sm:$0xff]
        %v3876 = vld [vmem:[%s1268 + $0xd0] sm:$0xf]
        %v3877 = vld [vmem:[%s1268 + $0xd8] sm:$0xf]
        %v3879 = vrot.slane %v3480, 3
        %v3880 = vrot.slane %v3485, 3
        %v3881 = vsel %vm1298, %v3879, %v3880
        %v3882 = vrot.slane %v3490, 3
        %v3883 = vsel %vm1298, %v3880, %v3882
        %v3884 = vsel %vm969, %v3881, 0
        %v3886 = vsel %vm969, %v3883, 0
        %v3889 = vsel %vm705, %v3876, 0
        %v3892 = vsel %vm705, %v3877, 0
        %3894 = vmatprep.subr.mxu0 %v3851
        %3895 = vmatpush1.msra.mxu0 %v3850
        %3896 = vmatprep.subr.mxu0 %v3853
        %3897 = vmatpush1.msra.mxu0 %v3852
        %3898 = vmatprep.subr.mxu0 %v3855
        %3899 = vmatpush1.msra.mxu0 %v3854
        %3900 = vmatprep.subr.mxu0 %v3857
        %3901 = vmatpush1.msra.mxu0 %v3856
        %3902 = vmatprep.subr.mxu0 %v3859
        %3903 = vmatpush1.msra.mxu0 %v3858
        %3904 = vmatprep.subr.mxu0 %v3861
        %3905 = vmatpush1.msra.mxu0 %v3860
        %3906 = vmatprep.subr.mxu0 %v3863
        %3907 = vmatpush1.msra.mxu0 %v3862
        %3908 = vmatprep.subr.mxu0 %v3865
        %3909 = vmatpush1.msra.mxu0 %v3864
        %3910 = vmatprep.subr.mxu0 %v3867
        %3911 = vmatpush1.msra.mxu0 %v3866
        %3912 = vmatprep.subr.mxu0 %v3869
        %3913 = vmatpush1.msra.mxu0 %v3868
        %3914 = vmatprep.subr.mxu0 %v3871
        %3915 = vmatpush1.msra.mxu0 %v3870
        %3916 = vmatprep.subr.mxu0 %v3873
        %3917 = vmatpush1.msra.mxu0 %v3872
        %3918 = vmatprep.subr.mxu0 %v3875
        %3919 = vmatpush1.msra.mxu0 %v3874
        %3920 = vmatprep.subr.mxu0 %v3892
        %3921 = vmatpush1.msra.mxu0 %v3889
        %3922 = vmatprep.subr.mxu0 0.0
        %3923 = vmatpush1.msra.mxu0 0.0
        %3924 = vmatprep.subr.mxu0 0.0
        %3925 = vmatpush1.msra.mxu0 0.0
        %3926 = vmatprep.subr.mxu0 0.0
        %3927 = vmatpush1.msra.mxu0 0.0
        %3928 = vmatprep.subr.mxu0 0.0
        %3929 = vmatpush1.msra.mxu0 0.0
        %3930 = vmatprep.subr.mxu0 0.0
        %3931 = vmatpush1.msra.mxu0 0.0
        %3932 = vmatprep.subr.mxu0 0.0
        %3933 = vmatpush1.msra.mxu0 0.0
        %3934 = vmatprep.subr.mxu0 0.0
        %3935 = vmatpush1.msra.mxu0 0.0
        %3936 = vmatprep.subr.mxu0 0.0
        %3937 = vmatpush1.msra.mxu0 0.0
        %3938 = vmatprep.subr.mxu0 0.0
        %3939 = vmatpush1.msra.mxu0 0.0
        %3940 = vmatprep.subr.mxu0 0.0
        %3941 = vmatpush1.msra.mxu0 0.0
        %3942 = vmatprep.subr.mxu0 0.0
        %3943 = vmatpush1.msra.mxu0 0.0
        %3944 = vmatprep.subr.mxu0 0.0
        %3945 = vmatpush1.msra.mxu0 0.0
        %3946 = vmatprep.subr.mxu0 0.0
        %3947 = vmatpush1.msra.mxu0 0.0
        %3948 = vmatprep.subr.mxu0 0.0
        %3949 = vmatpush1.msra.mxu0 0.0
        %3950 = vmatprep.subr.mxu0 0.0
        %3951 = vmatpush1.msra.mxu0 0.0
        %3952 = vmatprep.subr.mxu0 0.0
        %3953 = vmatpush1.msra.mxu0 0.0
        %3954 = vmatprep.subr.mxu0 0.0
        %3955 = vmatpush1.msra.mxu0 0.0
        %3956 = vmatprep.subr.mxu0 0.0
        %3957 = vmatpush1.msra.mxu0 0.0
        %3958 = vmatprep.mubr.f32.mxu0 0.0
        %3959 = vmatmul.mubr.f32.gmra.mrb[0].mxu0 %v3884
        %v3960 = vpop.f32.mrb[0].mxu0
        %v3961 = vadd.f32 0.0, %v3960
        %v3962 = vpop.f32.mrb[0].mxu0
        %v3963 = vadd.f32 0.0, %v3962
        %3964 = vmatprep.mubr.f32.mxu0 0.0
        %3965 = vmatmul.mubr.f32.gmra.mrb[0].mxu0 %v3886
        %v3966 = vpop.f32.mrb[0].mxu0
        %v3967 = vadd.f32 0.0, %v3966
        %v3968 = vpop.f32.mrb[0].mxu0
        %v3969 = vadd.f32 0.0, %v3968
        %3970 = vdwg.mxu0
        %v3971 = vadd.f32 %v3846, %v3961
        %v3972 = vadd.f32 %v3847, %v3963
        %v3973 = vadd.f32 %v3848, %v3967
        %v3974 = vadd.f32 %v3849, %v3969
        %v3975 = vld [vmem:[%s1395] sm:$0xff]
        %v3976 = vld [vmem:[%s1395 + $0x8] sm:$0xff]
        %v3977 = vld [vmem:[%s1395 + $0x10] sm:$0xff]
        %v3978 = vld [vmem:[%s1395 + $0x18] sm:$0xff]
        %v3979 = vld [vmem:[%s1395 + $0x20] sm:$0xff]
        %v3980 = vld [vmem:[%s1395 + $0x28] sm:$0xff]
        %v3981 = vld [vmem:[%s1395 + $0x30] sm:$0xff]
        %v3982 = vld [vmem:[%s1395 + $0x38] sm:$0xff]
        %v3983 = vld [vmem:[%s1395 + $0x40] sm:$0xff]
        %v3984 = vld [vmem:[%s1395 + $0x48] sm:$0xff]
        %v3985 = vld [vmem:[%s1395 + $0x50] sm:$0xff]
        %v3986 = vld [vmem:[%s1395 + $0x58] sm:$0xff]
        %v3987 = vld [vmem:[%s1395 + $0x60] sm:$0xff]
        %v3988 = vld [vmem:[%s1395 + $0x68] sm:$0xff]
        %v3989 = vld [vmem:[%s1395 + $0x70] sm:$0xff]
        %v3990 = vld [vmem:[%s1395 + $0x78] sm:$0xff]
        %v3991 = vld [vmem:[%s1395 + $0x80] sm:$0xff]
        %v3992 = vld [vmem:[%s1395 + $0x88] sm:$0xff]
        %v3993 = vld [vmem:[%s1395 + $0x90] sm:$0xff]
        %v3994 = vld [vmem:[%s1395 + $0x98] sm:$0xff]
        %v3995 = vld [vmem:[%s1395 + $0xa0] sm:$0xff]
        %v3996 = vld [vmem:[%s1395 + $0xa8] sm:$0xff]
        %v3997 = vld [vmem:[%s1395 + $0xb0] sm:$0xff]
        %v3998 = vld [vmem:[%s1395 + $0xb8] sm:$0xff]
        %v3999 = vld [vmem:[%s1395 + $0xc0] sm:$0xff]
        %v4000 = vld [vmem:[%s1395 + $0xc8] sm:$0xff]
        %v4001 = vld [vmem:[%s1395 + $0xd0] sm:$0xf]
        %v4002 = vld [vmem:[%s1395 + $0xd8] sm:$0xf]
        %v4003 = vrot.slane %v3480, 4
        %v4004 = vrot.slane %v3485, 4
        %v4005 = vsel %vm705, %v4003, %v4004
        %v4006 = vrot.slane %v3490, 4
        %v4007 = vsel %vm705, %v4004, %v4006
        %v4008 = vsel %vm969, %v4005, 0
        %v4010 = vsel %vm969, %v4007, 0
        %v4013 = vsel %vm705, %v4001, 0
        %v4016 = vsel %vm705, %v4002, 0
        %4018 = vmatprep.subr.mxu0 %v3976
        %4019 = vmatpush1.msra.mxu0 %v3975
        %4020 = vmatprep.subr.mxu0 %v3978
        %4021 = vmatpush1.msra.mxu0 %v3977
        %4022 = vmatprep.subr.mxu0 %v3980
        %4023 = vmatpush1.msra.mxu0 %v3979
        %4024 = vmatprep.subr.mxu0 %v3982
        %4025 = vmatpush1.msra.mxu0 %v3981
        %4026 = vmatprep.subr.mxu0 %v3984
        %4027 = vmatpush1.msra.mxu0 %v3983
        %4028 = vmatprep.subr.mxu0 %v3986
        %4029 = vmatpush1.msra.mxu0 %v3985
        %4030 = vmatprep.subr.mxu0 %v3988
        %4031 = vmatpush1.msra.mxu0 %v3987
        %4032 = vmatprep.subr.mxu0 %v3990
        %4033 = vmatpush1.msra.mxu0 %v3989
        %4034 = vmatprep.subr.mxu0 %v3992
        %4035 = vmatpush1.msra.mxu0 %v3991
        %4036 = vmatprep.subr.mxu0 %v3994
        %4037 = vmatpush1.msra.mxu0 %v3993
        %4038 = vmatprep.subr.mxu0 %v3996
        %4039 = vmatpush1.msra.mxu0 %v3995
        %4040 = vmatprep.subr.mxu0 %v3998
        %4041 = vmatpush1.msra.mxu0 %v3997
        %4042 = vmatprep.subr.mxu0 %v4000
        %4043 = vmatpush1.msra.mxu0 %v3999
        %4044 = vmatprep.subr.mxu0 %v4016
        %4045 = vmatpush1.msra.mxu0 %v4013
        %4046 = vmatprep.subr.mxu0 0.0
        %4047 = vmatpush1.msra.mxu0 0.0
        %4048 = vmatprep.subr.mxu0 0.0
        %4049 = vmatpush1.msra.mxu0 0.0
        %4050 = vmatprep.subr.mxu0 0.0
        %4051 = vmatpush1.msra.mxu0 0.0
        %4052 = vmatprep.subr.mxu0 0.0
        %4053 = vmatpush1.msra.mxu0 0.0
        %4054 = vmatprep.subr.mxu0 0.0
        %4055 = vmatpush1.msra.mxu0 0.0
        %4056 = vmatprep.subr.mxu0 0.0
        %4057 = vmatpush1.msra.mxu0 0.0
        %4058 = vmatprep.subr.mxu0 0.0
        %4059 = vmatpush1.msra.mxu0 0.0
        %4060 = vmatprep.subr.mxu0 0.0
        %4061 = vmatpush1.msra.mxu0 0.0
        %4062 = vmatprep.subr.mxu0 0.0
        %4063 = vmatpush1.msra.mxu0 0.0
        %4064 = vmatprep.subr.mxu0 0.0
        %4065 = vmatpush1.msra.mxu0 0.0
        %4066 = vmatprep.subr.mxu0 0.0
        %4067 = vmatpush1.msra.mxu0 0.0
        %4068 = vmatprep.subr.mxu0 0.0
        %4069 = vmatpush1.msra.mxu0 0.0
        %4070 = vmatprep.subr.mxu0 0.0
        %4071 = vmatpush1.msra.mxu0 0.0
        %4072 = vmatprep.subr.mxu0 0.0
        %4073 = vmatpush1.msra.mxu0 0.0
        %4074 = vmatprep.subr.mxu0 0.0
        %4075 = vmatpush1.msra.mxu0 0.0
        %4076 = vmatprep.subr.mxu0 0.0
        %4077 = vmatpush1.msra.mxu0 0.0
        %4078 = vmatprep.subr.mxu0 0.0
        %4079 = vmatpush1.msra.mxu0 0.0
        %4080 = vmatprep.subr.mxu0 0.0
        %4081 = vmatpush1.msra.mxu0 0.0
        %4082 = vmatprep.mubr.f32.mxu0 0.0
        %4083 = vmatmul.mubr.f32.gmra.mrb[0].mxu0 %v4008
        %v4084 = vpop.f32.mrb[0].mxu0
        %v4085 = vadd.f32 0.0, %v4084
        %v4086 = vpop.f32.mrb[0].mxu0
        %v4087 = vadd.f32 0.0, %v4086
        %4088 = vmatprep.mubr.f32.mxu0 0.0
        %4089 = vmatmul.mubr.f32.gmra.mrb[0].mxu0 %v4010
        %v4090 = vpop.f32.mrb[0].mxu0
        %v4091 = vadd.f32 0.0, %v4090
        %v4092 = vpop.f32.mrb[0].mxu0
        %v4093 = vadd.f32 0.0, %v4092
        %4094 = vdwg.mxu0
        %v4095 = vadd.f32 %v3971, %v4085
        %v4096 = vadd.f32 %v3972, %v4087
        %v4097 = vadd.f32 %v3973, %v4091
        %v4098 = vadd.f32 %v3974, %v4093
        %v4099 = vld [vmem:[%s6] sm:$0x3]
        %v4101 = vlaneseq
        %v4102 = vshrl.u32 %v4101, 7
        %v4103 = vsub.s32 0, %v4102
        %v4104 = vrot.slane %v4099, %v4103
        %v4105 = vlaneseq
        %v4106 = vshrl.u32 %v4105, 7
        %v4107 = vsub.s32 1, %v4106
        %v4108 = vrot.slane %v4099, %v4107
        %v4111 = vadd.f32 %v4095, %v4104
        %v4112 = vadd.f32 %v4096, %v4108
        %v4113 = vadd.f32 %v4097, %v4104
        %v4114 = vadd.f32 %v4098, %v4108
        %v4115 = vmul.f32 %v4111, 0.5
        %v4116 = vmul.f32 %v4112, 0.5
        %v4117 = vmul.f32 %v4113, 0.5
        %v4118 = vmul.f32 %v4114, 0.5
        %v4119 = vtanh.pop %v4115
        %v4120 = vtanh.pop %v4116
        %v4121 = vtanh.pop %v4117
        %v4122 = vtanh.pop %v4118
        %v4123 = vadd.f32 %v4119, 1.0
        %v4124 = vadd.f32 %v4120, 1.0
        %v4125 = vadd.f32 %v4121, 1.0
        %v4126 = vadd.f32 %v4122, 1.0
        %v4127 = vmul.f32 %v4123, 0.5
        %v4128 = vmul.f32 %v4124, 0.5
        %v4129 = vmul.f32 %v4125, 0.5
        %v4130 = vmul.f32 %v4126, 0.5
        %v4131 = vld [vmem:[%s7] sm:$0x7f]
        %v4133 = vsel %vm1553, %v4131, 0
        %v4136 = vsel %vm1173, %v4129, 0
        %v4139 = vsel %vm1173, %v4130, 0
        %4141 = vmatprep.subr.mxu0 %v4128
        %4142 = vmatpush1.msra.mxu0 %v4127
        %4143 = vmatprep.subr.mxu0 %v4139
        %4144 = vmatpush1.msra.mxu0 %v4136
        %4145 = vmatprep.subr.mxu0 0.0
        %4146 = vmatpush1.msra.mxu0 0.0
        %4147 = vmatprep.subr.mxu0 0.0
        %4148 = vmatpush1.msra.mxu0 0.0
        %4149 = vmatprep.subr.mxu0 0.0
        %4150 = vmatpush1.msra.mxu0 0.0
        %4151 = vmatprep.subr.mxu0 0.0
        %4152 = vmatpush1.msra.mxu0 0.0
        %4153 = vmatprep.subr.mxu0 0.0
        %4154 = vmatpush1.msra.mxu0 0.0
        %4155 = vmatprep.subr.mxu0 0.0
        %4156 = vmatpush1.msra.mxu0 0.0
        %4157 = vmatprep.subr.mxu0 0.0
        %4158 = vmatpush1.msra.mxu0 0.0
        %4159 = vmatprep.subr.mxu0 0.0
        %4160 = vmatpush1.msra.mxu0 0.0
        %4161 = vmatprep.subr.mxu0 0.0
        %4162 = vmatpush1.msra.mxu0 0.0
        %4163 = vmatprep.subr.mxu0 0.0
        %4164 = vmatpush1.msra.mxu0 0.0
        %4165 = vmatprep.subr.mxu0 0.0
        %4166 = vmatpush1.msra.mxu0 0.0
        %4167 = vmatprep.subr.mxu0 0.0
        %4168 = vmatpush1.msra.mxu0 0.0
        %4169 = vmatprep.subr.mxu0 0.0
        %4170 = vmatpush1.msra.mxu0 0.0
        %4171 = vmatprep.subr.mxu0 0.0
        %4172 = vmatpush1.msra.mxu0 0.0
        %4173 = vmatprep.subr.mxu0 0.0
        %4174 = vmatpush1.msra.mxu0 0.0
        %4175 = vmatprep.subr.mxu0 0.0
        %4176 = vmatpush1.msra.mxu0 0.0
        %4177 = vmatprep.subr.mxu0 0.0
        %4178 = vmatpush1.msra.mxu0 0.0
        %4179 = vmatprep.subr.mxu0 0.0
        %4180 = vmatpush1.msra.mxu0 0.0
        %4181 = vmatprep.subr.mxu0 0.0
        %4182 = vmatpush1.msra.mxu0 0.0
        %4183 = vmatprep.subr.mxu0 0.0
        %4184 = vmatpush1.msra.mxu0 0.0
        %4185 = vmatprep.subr.mxu0 0.0
        %4186 = vmatpush1.msra.mxu0 0.0
        %4187 = vmatprep.subr.mxu0 0.0
        %4188 = vmatpush1.msra.mxu0 0.0
        %4189 = vmatprep.subr.mxu0 0.0
        %4190 = vmatpush1.msra.mxu0 0.0
        %4191 = vmatprep.subr.mxu0 0.0
        %4192 = vmatpush1.msra.mxu0 0.0
        %4193 = vmatprep.subr.mxu0 0.0
        %4194 = vmatpush1.msra.mxu0 0.0
        %4195 = vmatprep.subr.mxu0 0.0
        %4196 = vmatpush1.msra.mxu0 0.0
        %4197 = vmatprep.subr.mxu0 0.0
        %4198 = vmatpush1.msra.mxu0 0.0
        %4199 = vmatprep.subr.mxu0 0.0
        %4200 = vmatpush1.msra.mxu0 0.0
        %4201 = vmatprep.subr.mxu0 0.0
        %4202 = vmatpush1.msra.mxu0 0.0
        %4203 = vmatprep.subr.mxu0 0.0
        %4204 = vmatpush1.msra.mxu0 0.0
        %4205 = vmatprep.mubr.f32.mxu0 0.0
        %4206 = vmatmul.mubr.f32.gmra.mrb[0].mxu0 %v4133
        %v4207 = vpop.f32.mrb[0].mxu0
        %v4208 = vadd.f32 0.0, %v4207
        %v4209 = vpop.f32.mrb[0].mxu0
        %v4210 = vadd.f32 0.0, %v4209
        %4211 = vdwg.mxu0
        %v4212 = vld [vmem:[%s8] sm:$0xff]
        %v4213 = vld [vmem:[%s8 + $0x8] sm:$0xff]
        %v4214 = vld [vmem:[%s8 + $0x10] sm:$0xff]
        %v4215 = vld [vmem:[%s8 + $0x18] sm:$0xff]
        %v4216 = vld [vmem:[%s8 + $0x20] sm:$0xff]
        %v4217 = vld [vmem:[%s8 + $0x28] sm:$0xff]
        %v4218 = vld [vmem:[%s8 + $0x30] sm:$0xff]
        %v4219 = vld [vmem:[%s8 + $0x38] sm:$0xff]
        %v4220 = vld [vmem:[%s8 + $0x40] sm:$0xff]
        %v4221 = vld [vmem:[%s8 + $0x48] sm:$0xff]
        %v4222 = vld [vmem:[%s8 + $0x50] sm:$0xff]
        %v4223 = vld [vmem:[%s8 + $0x58] sm:$0xff]
        %v4224 = vld [vmem:[%s8 + $0x60] sm:$0xff]
        %v4225 = vld [vmem:[%s8 + $0x68] sm:$0xff]
        %v4226 = vld [vmem:[%s8 + $0x70] sm:$0xff]
        %v4227 = vld [vmem:[%s8 + $0x78] sm:$0xff]
        %v4228 = vld [vmem:[%s8 + $0x80] sm:$0xff]
        %v4229 = vld [vmem:[%s8 + $0x88] sm:$0xff]
        %v4230 = vld [vmem:[%s8 + $0x90] sm:$0xff]
        %v4231 = vld [vmem:[%s8 + $0x98] sm:$0xff]
        %v4232 = vld [vmem:[%s8 + $0xa0] sm:$0xff]
        %v4233 = vld [vmem:[%s8 + $0xa8] sm:$0xff]
        %v4234 = vld [vmem:[%s8 + $0xb0] sm:$0xff]
        %v4235 = vld [vmem:[%s8 + $0xb8] sm:$0xff]
        %v4236 = vld [vmem:[%s8 + $0xc0] sm:$0xff]
        %v4237 = vld [vmem:[%s8 + $0xc8] sm:$0xff]
        %v4238 = vld [vmem:[%s8 + $0xd0] sm:$0xff]
        %v4239 = vld [vmem:[%s8 + $0xd8] sm:$0xff]
        %v4241 = vsel %vm1662, %v4210, 0
        %4243 = vmatprep.subr.mxu0 0.0
        %4244 = vmatpush1.msra.mxu0 %v4212
        %4245 = vmatprep.subr.mxu0 0.0
        %4246 = vmatpush1.msra.mxu0 %v4213
        %4247 = vmatprep.subr.mxu0 0.0
        %4248 = vmatpush1.msra.mxu0 %v4214
        %4249 = vmatprep.subr.mxu0 0.0
        %4250 = vmatpush1.msra.mxu0 %v4215
        %4251 = vmatprep.subr.mxu0 0.0
        %4252 = vmatpush1.msra.mxu0 %v4216
        %4253 = vmatprep.subr.mxu0 0.0
        %4254 = vmatpush1.msra.mxu0 %v4217
        %4255 = vmatprep.subr.mxu0 0.0
        %4256 = vmatpush1.msra.mxu0 %v4218
        %4257 = vmatprep.subr.mxu0 0.0
        %4258 = vmatpush1.msra.mxu0 %v4219
        %4259 = vmatprep.subr.mxu0 0.0
        %4260 = vmatpush1.msra.mxu0 %v4220
        %4261 = vmatprep.subr.mxu0 0.0
        %4262 = vmatpush1.msra.mxu0 %v4221
        %4263 = vmatprep.subr.mxu0 0.0
        %4264 = vmatpush1.msra.mxu0 %v4222
        %4265 = vmatprep.subr.mxu0 0.0
        %4266 = vmatpush1.msra.mxu0 %v4223
        %4267 = vmatprep.subr.mxu0 0.0
        %4268 = vmatpush1.msra.mxu0 %v4224
        %4269 = vmatprep.subr.mxu0 0.0
        %4270 = vmatpush1.msra.mxu0 %v4225
        %4271 = vmatprep.subr.mxu0 0.0
        %4272 = vmatpush1.msra.mxu0 %v4226
        %4273 = vmatprep.subr.mxu0 0.0
        %4274 = vmatpush1.msra.mxu0 %v4227
        %4275 = vmatprep.subr.mxu0 0.0
        %4276 = vmatpush1.msra.mxu0 %v4228
        %4277 = vmatprep.subr.mxu0 0.0
        %4278 = vmatpush1.msra.mxu0 %v4229
        %4279 = vmatprep.subr.mxu0 0.0
        %4280 = vmatpush1.msra.mxu0 %v4230
        %4281 = vmatprep.subr.mxu0 0.0
        %4282 = vmatpush1.msra.mxu0 %v4231
        %4283 = vmatprep.subr.mxu0 0.0
        %4284 = vmatpush1.msra.mxu0 %v4232
        %4285 = vmatprep.subr.mxu0 0.0
        %4286 = vmatpush1.msra.mxu0 %v4233
        %4287 = vmatprep.subr.mxu0 0.0
        %4288 = vmatpush1.msra.mxu0 %v4234
        %4289 = vmatprep.subr.mxu0 0.0
        %4290 = vmatpush1.msra.mxu0 %v4235
        %4291 = vmatprep.subr.mxu0 0.0
        %4292 = vmatpush1.msra.mxu0 %v4236
        %4293 = vmatprep.subr.mxu0 0.0
        %4294 = vmatpush1.msra.mxu0 %v4237
        %4295 = vmatprep.subr.mxu0 0.0
        %4296 = vmatpush1.msra.mxu0 %v4238
        %4297 = vmatprep.subr.mxu0 0.0
        %4298 = vmatpush1.msra.mxu0 %v4239
        %4299 = vmatprep.subr.mxu0 0.0
        %4300 = vmatpush1.msra.mxu0 0.0
        %4301 = vmatprep.subr.mxu0 0.0
        %4302 = vmatpush1.msra.mxu0 0.0
        %4303 = vmatprep.subr.mxu0 0.0
        %4304 = vmatpush1.msra.mxu0 0.0
        %4305 = vmatprep.subr.mxu0 0.0
        %4306 = vmatpush1.msra.mxu0 0.0
        %4307 = vmatprep.mubr.f32.mxu0 %v4241
        %4308 = vmatmul.mubr.f32.gmra.mrb[0].mxu0 %v4208
        %v4309 = vpop.f32.mrb[0].mxu0
        %v4310 = vadd.f32 0.0, %v4309
        %v4311 = vpop.f32.mrb[0].mxu0
        %4312 = vdwg.mxu0
        %v4314 = vcombine.high %v4310, %v4310
        %v4316 = vunpack.c.l.s4 1966171168
        %v4317 = vunpack.c.0.s8 %v4316
        %v4318 = vlaneseq
        %v4319 = vshrl.u32 %v4318, 7
        %v4320 = vsub.s32 %v4317, %v4319
        %v4321 = vrot.slane %v4310, %v4320
        %v4323 = vunpack.c.l.s4 1966171168
        %v4324 = vunpack.c.0.s8 %v4323
        %v4325 = vlaneseq
        %v4326 = vshrl.u32 %v4325, 7
        %v4327 = vsub.s32 %v4324, %v4326
        %v4328 = vrot.slane %v4314, %v4327
        %v4329 = vcombine.high %v4321, %v4321
        %v4330 = vcombine.high %v4328, %v4328
        %v4332 = vunpack.c.l.s4 1966171168
        %v4333 = vunpack.c.0.s8 %v4332
        %v4334 = vlaneseq
        %v4335 = vshrl.u32 %v4334, 7
        %v4336 = vsub.s32 %v4333, %v4335
        %v4337 = vrot.slane %v4321, %v4336
        %v4339 = vunpack.c.l.s4 1966171168
        %v4340 = vunpack.c.0.s8 %v4339
        %v4341 = vlaneseq
        %v4342 = vshrl.u32 %v4341, 7
        %v4343 = vsub.s32 %v4340, %v4342
        %v4344 = vrot.slane %v4328, %v4343
        %v4346 = vunpack.c.l.s4 1966171168
        %v4347 = vunpack.c.0.s8 %v4346
        %v4348 = vlaneseq
        %v4349 = vshrl.u32 %v4348, 7
        %v4350 = vsub.s32 %v4347, %v4349
        %v4351 = vrot.slane %v4329, %v4350
        %v4353 = vunpack.c.l.s4 1966171168
        %v4354 = vunpack.c.0.s8 %v4353
        %v4355 = vlaneseq
        %v4356 = vshrl.u32 %v4355, 7
        %v4357 = vsub.s32 %v4354, %v4356
        %v4358 = vrot.slane %v4330, %v4357
        %v4359 = vcombine.high %v4337, %v4337
        %v4360 = vcombine.high %v4344, %v4344
        %v4361 = vcombine.high %v4351, %v4351
        %4369 = vst.msk [vmem:[#allocation2 + $0x2] sm:$0x1] %vm1792, %v4337
        %4370 = vst.msk [vmem:[#allocation2 + $0x6] sm:$0x1] %vm1792, %v4351
        %4371 = vst.msk [vmem:[#allocation2 + $0xa] sm:$0x1] %vm1792, %v4359
        %4372 = vst.msk [vmem:[#allocation2 + $0xe] sm:$0x1] %vm1792, %v4361
        %4373 = vst.msk [vmem:[#allocation2 + $0x12] sm:$0x1] %vm1792, %v4344
        %4374 = vst.msk [vmem:[#allocation2 + $0x16] sm:$0x1] %vm1792, %v4358
        %4375 = vst.msk [vmem:[#allocation2 + $0x1a] sm:$0x1] %vm1792, %v4360
        %s4376 = scalar_lea.vmem %s496, 192
        %v4377 = vld [vmem:[%s4376] sm:$0xff]
        %v4378 = vld [vmem:[%s4376 + $0x8] sm:$0xff]
        %v4379 = vld [vmem:[%s4376 + $0x10] sm:$0xff]
        %v4380 = vld [vmem:[%s4376 + $0x18] sm:$0xff]
        %v4381 = vld [vmem:[%s4376 + $0x20] sm:$0xff]
        %v4382 = vld [vmem:[%s4376 + $0x28] sm:$0xff]
        %v4383 = vld [vmem:[%s4376 + $0x30] sm:$0xf]
        %v4384 = vld [vmem:[%s4376 + $0x38] sm:$0xf]
        %v4385 = vld [vmem:[%s1] sm:$0xff]
        %v4386 = vld [vmem:[%s1 + $0x8] sm:$0xff]
        %v4387 = vld [vmem:[%s1 + $0x10] sm:$0xff]
        %v4388 = vld [vmem:[%s1 + $0x18] sm:$0xff]
        %v4389 = vld [vmem:[%s1 + $0x20] sm:$0xff]
        %v4390 = vld [vmem:[%s1 + $0x28] sm:$0xff]
        %v4391 = vld [vmem:[%s1 + $0x30] sm:$0xff]
        %v4392 = vld [vmem:[%s1 + $0x38] sm:$0xff]
        %v4393 = vld [vmem:[%s1 + $0x40] sm:$0xff]
        %v4394 = vld [vmem:[%s1 + $0x48] sm:$0xff]
        %v4395 = vld [vmem:[%s1 + $0x50] sm:$0xff]
        %v4396 = vld [vmem:[%s1 + $0x58] sm:$0xff]
        %v4397 = vld [vmem:[%s1 + $0x60] sm:$0xff]
        %v4398 = vld [vmem:[%s1 + $0x68] sm:$0xff]
        %v4399 = vld [vmem:[%s1 + $0x70] sm:$0xff]
        %v4400 = vld [vmem:[%s1 + $0x78] sm:$0xff]
        %v4401 = vld [vmem:[%s1 + $0x80] sm:$0xff]
        %v4402 = vld [vmem:[%s1 + $0x88] sm:$0xff]
        %v4403 = vld [vmem:[%s1 + $0x90] sm:$0xff]
        %v4404 = vld [vmem:[%s1 + $0x98] sm:$0xff]
        %v4405 = vld [vmem:[%s1 + $0xa0] sm:$0xff]
        %v4406 = vld [vmem:[%s1 + $0xa8] sm:$0xff]
        %v4407 = vld [vmem:[%s1 + $0xb0] sm:$0xff]
        %v4408 = vld [vmem:[%s1 + $0xb8] sm:$0xff]
        %v4409 = vld [vmem:[%s1 + $0xc0] sm:$0xff]
        %v4410 = vld [vmem:[%s1 + $0xc8] sm:$0xff]
        %v4411 = vld [vmem:[%s1 + $0xd0] sm:$0xff]
        %v4412 = vld [vmem:[%s1 + $0xd8] sm:$0xff]
        %v4413 = vld [vmem:[%s1 + $0xe0] sm:$0xff]
        %v4414 = vld [vmem:[%s1 + $0xe8] sm:$0xff]
        %v4415 = vld [vmem:[%s1 + $0xf0] sm:$0xff]
        %v4416 = vld [vmem:[%s1 + $0xf8] sm:$0xff]
        %v4417 = vld [vmem:[%s1 + $0x100] sm:$0xff]
        %v4418 = vld [vmem:[%s1 + $0x108] sm:$0xff]
        %v4419 = vld [vmem:[%s1 + $0x110] sm:$0xff]
        %v4420 = vld [vmem:[%s1 + $0x118] sm:$0xff]
        %v4421 = vld [vmem:[%s1 + $0x120] sm:$0xff]
        %v4422 = vld [vmem:[%s1 + $0x128] sm:$0xff]
        %v4423 = vld [vmem:[%s1 + $0x130] sm:$0xff]
        %v4424 = vld [vmem:[%s1 + $0x138] sm:$0xff]
        %v4425 = vld [vmem:[%s2] sm:$0x3]
        %v4427 = vlaneseq
        %v4428 = vshrl.u32 %v4427, 7
        %v4429 = vsub.s32 0, %v4428
        %v4430 = vrot.slane %v4425, %v4429
        %v4431 = vlaneseq
        %v4432 = vshrl.u32 %v4431, 7
        %v4433 = vsub.s32 1, %v4432
        %v4434 = vrot.slane %v4425, %v4433
        %v4438 = vsel %vm558, %v4378, 0
        %v4441 = vsel %vm558, %v4380, 0
        %v4444 = vsel %vm558, %v4382, 0
        %v4447 = vsel %vm558, %v4384, 0
        %4449 = vmatprep.subr.mxu0 %v4386
        %4450 = vmatpush1.msra.mxu0 %v4385
        %4451 = vmatprep.subr.mxu0 %v4388
        %4452 = vmatpush1.msra.mxu0 %v4387
        %4453 = vmatprep.subr.mxu0 %v4390
        %4454 = vmatpush1.msra.mxu0 %v4389
        %4455 = vmatprep.subr.mxu0 %v4392
        %4456 = vmatpush1.msra.mxu0 %v4391
        %4457 = vmatprep.subr.mxu0 %v4394
        %4458 = vmatpush1.msra.mxu0 %v4393
        %4459 = vmatprep.subr.mxu0 %v4396
        %4460 = vmatpush1.msra.mxu0 %v4395
        %4461 = vmatprep.subr.mxu0 %v4398
        %4462 = vmatpush1.msra.mxu0 %v4397
        %4463 = vmatprep.subr.mxu0 %v4400
        %4464 = vmatpush1.msra.mxu0 %v4399
        %4465 = vmatprep.subr.mxu0 %v4402
        %4466 = vmatpush1.msra.mxu0 %v4401
        %4467 = vmatprep.subr.mxu0 %v4404
        %4468 = vmatpush1.msra.mxu0 %v4403
        %4469 = vmatprep.subr.mxu0 %v4406
        %4470 = vmatpush1.msra.mxu0 %v4405
        %4471 = vmatprep.subr.mxu0 %v4408
        %4472 = vmatpush1.msra.mxu0 %v4407
        %4473 = vmatprep.subr.mxu0 %v4410
        %4474 = vmatpush1.msra.mxu0 %v4409
        %4475 = vmatprep.subr.mxu0 %v4412
        %4476 = vmatpush1.msra.mxu0 %v4411
        %4477 = vmatprep.subr.mxu0 %v4414
        %4478 = vmatpush1.msra.mxu0 %v4413
        %4479 = vmatprep.subr.mxu0 %v4416
        %4480 = vmatpush1.msra.mxu0 %v4415
        %4481 = vmatprep.subr.mxu0 %v4418
        %4482 = vmatpush1.msra.mxu0 %v4417
        %4483 = vmatprep.subr.mxu0 %v4420
        %4484 = vmatpush1.msra.mxu0 %v4419
        %4485 = vmatprep.subr.mxu0 %v4422
        %4486 = vmatpush1.msra.mxu0 %v4421
        %4487 = vmatprep.subr.mxu0 %v4424
        %4488 = vmatpush1.msra.mxu0 %v4423
        %4489 = vmatprep.subr.mxu0 0.0
        %4490 = vmatpush1.msra.mxu0 0.0
        %4491 = vmatprep.subr.mxu0 0.0
        %4492 = vmatpush1.msra.mxu0 0.0
        %4493 = vmatprep.subr.mxu0 0.0
        %4494 = vmatpush1.msra.mxu0 0.0
        %4495 = vmatprep.subr.mxu0 0.0
        %4496 = vmatpush1.msra.mxu0 0.0
        %4497 = vmatprep.subr.mxu0 0.0
        %4498 = vmatpush1.msra.mxu0 0.0
        %4499 = vmatprep.subr.mxu0 0.0
        %4500 = vmatpush1.msra.mxu0 0.0
        %4501 = vmatprep.subr.mxu0 0.0
        %4502 = vmatpush1.msra.mxu0 0.0
        %4503 = vmatprep.subr.mxu0 0.0
        %4504 = vmatpush1.msra.mxu0 0.0
        %4505 = vmatprep.subr.mxu0 0.0
        %4506 = vmatpush1.msra.mxu0 0.0
        %4507 = vmatprep.subr.mxu0 0.0
        %4508 = vmatpush1.msra.mxu0 0.0
        %4509 = vmatprep.subr.mxu0 0.0
        %4510 = vmatpush1.msra.mxu0 0.0
        %4511 = vmatprep.subr.mxu0 0.0
        %4512 = vmatpush1.msra.mxu0 0.0
        %4513 = vmatprep.mubr.f32.mxu0 %v4438
        %4514 = vmatmul.mubr.f32.gmra.mrb[0].mxu0 %v4377
        %v4515 = vpop.f32.mrb[0].mxu0
        %v4516 = vadd.f32 %v4430, %v4515
        %v4517 = vpop.f32.mrb[0].mxu0
        %v4518 = vadd.f32 %v4434, %v4517
        %4519 = vmatprep.mubr.f32.mxu0 %v4441
        %4520 = vmatmul.mubr.f32.gmra.mrb[0].mxu0 %v4379
        %v4521 = vpop.f32.mrb[0].mxu0
        %v4522 = vadd.f32 %v4430, %v4521
        %v4523 = vpop.f32.mrb[0].mxu0
        %v4524 = vadd.f32 %v4434, %v4523
        %4525 = vmatprep.mubr.f32.mxu0 %v4444
        %4526 = vmatmul.mubr.f32.gmra.mrb[0].mxu0 %v4381
        %v4527 = vpop.f32.mrb[0].mxu0
        %v4528 = vadd.f32 %v4430, %v4527
        %v4529 = vpop.f32.mrb[0].mxu0
        %v4530 = vadd.f32 %v4434, %v4529
        %4531 = vmatprep.mubr.f32.mxu0 %v4447
        %4532 = vmatmul.mubr.f32.gmra.mrb[0].mxu0 %v4383
        %v4533 = vpop.f32.mrb[0].mxu0
        %v4534 = vadd.f32 %v4430, %v4533
        %v4535 = vpop.f32.mrb[0].mxu0
        %v4536 = vadd.f32 %v4434, %v4535
        %4537 = vdwg.mxu0
        %v4538 = vmul.f32 %v4516, 0.5
        %v4539 = vmul.f32 %v4518, 0.5
        %v4540 = vmul.f32 %v4522, 0.5
        %v4541 = vmul.f32 %v4524, 0.5
        %v4542 = vmul.f32 %v4528, 0.5
        %v4543 = vmul.f32 %v4530, 0.5
        %v4544 = vmul.f32 %v4534, 0.5
        %v4545 = vmul.f32 %v4536, 0.5
        %v4546 = vtanh.pop %v4538
        %v4547 = vtanh.pop %v4539
        %v4548 = vtanh.pop %v4540
        %v4549 = vtanh.pop %v4541
        %v4550 = vtanh.pop %v4542
        %v4551 = vtanh.pop %v4543
        %v4552 = vtanh.pop %v4544
        %v4553 = vtanh.pop %v4545
        %v4554 = vadd.f32 %v4546, 1.0
        %v4555 = vadd.f32 %v4547, 1.0
        %v4556 = vadd.f32 %v4548, 1.0
        %v4557 = vadd.f32 %v4549, 1.0
        %v4558 = vadd.f32 %v4550, 1.0
        %v4559 = vadd.f32 %v4551, 1.0
        %v4560 = vadd.f32 %v4552, 1.0
        %v4561 = vadd.f32 %v4553, 1.0
        %v4562 = vmul.f32 %v4554, 0.5
        %v4563 = vmul.f32 %v4555, 0.5
        %v4564 = vmul.f32 %v4556, 0.5
        %v4565 = vmul.f32 %v4557, 0.5
        %v4566 = vmul.f32 %v4558, 0.5
        %v4567 = vmul.f32 %v4559, 0.5
        %v4568 = vmul.f32 %v4560, 0.5
        %v4569 = vmul.f32 %v4561, 0.5
        %v4570 = vld [vmem:[%s3] sm:$0xff]
        %v4571 = vld [vmem:[%s3 + $0x8] sm:$0xff]
        %v4572 = vld [vmem:[%s3 + $0x10] sm:$0x3]
        %v4574 = vsel %vm695, %v4570, 0
        %v4577 = vsel %vm695, %v4571, 0
        %v4580 = vsel %vm695, %v4572, 0
        %v4583 = vsel %vm705, %v4568, 0
        %v4586 = vsel %vm705, %v4569, 0
        %4588 = vmatprep.subr.mxu0 %v4563
        %4589 = vmatpush1.msra.mxu0 %v4562
        %4590 = vmatprep.subr.mxu0 %v4565
        %4591 = vmatpush1.msra.mxu0 %v4564
        %4592 = vmatprep.subr.mxu0 %v4567
        %4593 = vmatpush1.msra.mxu0 %v4566
        %4594 = vmatprep.subr.mxu0 %v4586
        %4595 = vmatpush1.msra.mxu0 %v4583
        %4596 = vmatprep.subr.mxu0 0.0
        %4597 = vmatpush1.msra.mxu0 0.0
        %4598 = vmatprep.subr.mxu0 0.0
        %4599 = vmatpush1.msra.mxu0 0.0
        %4600 = vmatprep.subr.mxu0 0.0
        %4601 = vmatpush1.msra.mxu0 0.0
        %4602 = vmatprep.subr.mxu0 0.0
        %4603 = vmatpush1.msra.mxu0 0.0
        %4604 = vmatprep.subr.mxu0 0.0
        %4605 = vmatpush1.msra.mxu0 0.0
        %4606 = vmatprep.subr.mxu0 0.0
        %4607 = vmatpush1.msra.mxu0 0.0
        %4608 = vmatprep.subr.mxu0 0.0
        %4609 = vmatpush1.msra.mxu0 0.0
        %4610 = vmatprep.subr.mxu0 0.0
        %4611 = vmatpush1.msra.mxu0 0.0
        %4612 = vmatprep.subr.mxu0 0.0
        %4613 = vmatpush1.msra.mxu0 0.0
        %4614 = vmatprep.subr.mxu0 0.0
        %4615 = vmatpush1.msra.mxu0 0.0
        %4616 = vmatprep.subr.mxu0 0.0
        %4617 = vmatpush1.msra.mxu0 0.0
        %4618 = vmatprep.subr.mxu0 0.0
        %4619 = vmatpush1.msra.mxu0 0.0
        %4620 = vmatprep.subr.mxu0 0.0
        %4621 = vmatpush1.msra.mxu0 0.0
        %4622 = vmatprep.subr.mxu0 0.0
        %4623 = vmatpush1.msra.mxu0 0.0
        %4624 = vmatprep.subr.mxu0 0.0
        %4625 = vmatpush1.msra.mxu0 0.0
        %4626 = vmatprep.subr.mxu0 0.0
        %4627 = vmatpush1.msra.mxu0 0.0
        %4628 = vmatprep.subr.mxu0 0.0
        %4629 = vmatpush1.msra.mxu0 0.0
        %4630 = vmatprep.subr.mxu0 0.0
        %4631 = vmatpush1.msra.mxu0 0.0
        %4632 = vmatprep.subr.mxu0 0.0
        %4633 = vmatpush1.msra.mxu0 0.0
        %4634 = vmatprep.subr.mxu0 0.0
        %4635 = vmatpush1.msra.mxu0 0.0
        %4636 = vmatprep.subr.mxu0 0.0
        %4637 = vmatpush1.msra.mxu0 0.0
        %4638 = vmatprep.subr.mxu0 0.0
        %4639 = vmatpush1.msra.mxu0 0.0
        %4640 = vmatprep.subr.mxu0 0.0
        %4641 = vmatpush1.msra.mxu0 0.0
        %4642 = vmatprep.subr.mxu0 0.0
        %4643 = vmatpush1.msra.mxu0 0.0
        %4644 = vmatprep.subr.mxu0 0.0
        %4645 = vmatpush1.msra.mxu0 0.0
        %4646 = vmatprep.subr.mxu0 0.0
        %4647 = vmatpush1.msra.mxu0 0.0
        %4648 = vmatprep.subr.mxu0 0.0
        %4649 = vmatpush1.msra.mxu0 0.0
        %4650 = vmatprep.subr.mxu0 0.0
        %4651 = vmatpush1.msra.mxu0 0.0
        %4652 = vmatprep.mubr.f32.mxu0 0.0
        %4653 = vmatmul.mubr.f32.gmra.mrb[0].mxu0 %v4574
        %v4654 = vpop.f32.mrb[0].mxu0
        %v4655 = vadd.f32 0.0, %v4654
        %v4656 = vpop.f32.mrb[0].mxu0
        %v4657 = vadd.f32 0.0, %v4656
        %4658 = vmatprep.mubr.f32.mxu0 0.0
        %4659 = vmatmul.mubr.f32.gmra.mrb[0].mxu0 %v4577
        %v4660 = vpop.f32.mrb[0].mxu0
        %v4661 = vadd.f32 0.0, %v4660
        %v4662 = vpop.f32.mrb[0].mxu0
        %v4663 = vadd.f32 0.0, %v4662
        %4664 = vmatprep.mubr.f32.mxu0 0.0
        %4665 = vmatmul.mubr.f32.gmra.mrb[0].mxu0 %v4580
        %v4666 = vpop.f32.mrb[0].mxu0
        %v4667 = vadd.f32 0.0, %v4666
        %v4668 = vpop.f32.mrb[0].mxu0
        %v4669 = vadd.f32 0.0, %v4668
        %4670 = vdwg.mxu0
        %v4671 = vld [vmem:[%s4] sm:$0xff]
        %v4672 = vld [vmem:[%s4 + $0x8] sm:$0xff]
        %v4673 = vld [vmem:[%s4 + $0x10] sm:$0xff]
        %v4674 = vld [vmem:[%s4 + $0x18] sm:$0xff]
        %v4675 = vld [vmem:[%s4 + $0x20] sm:$0xff]
        %v4676 = vld [vmem:[%s4 + $0x28] sm:$0xff]
        %v4677 = vld [vmem:[%s4 + $0x30] sm:$0xff]
        %v4678 = vld [vmem:[%s4 + $0x38] sm:$0xff]
        %v4679 = vld [vmem:[%s4 + $0x40] sm:$0xff]
        %v4680 = vld [vmem:[%s4 + $0x48] sm:$0xff]
        %v4681 = vld [vmem:[%s4 + $0x50] sm:$0xff]
        %v4682 = vld [vmem:[%s4 + $0x58] sm:$0xff]
        %v4683 = vld [vmem:[%s4 + $0x60] sm:$0xff]
        %v4684 = vld [vmem:[%s4 + $0x68] sm:$0xff]
        %v4685 = vld [vmem:[%s4 + $0x70] sm:$0xff]
        %v4686 = vld [vmem:[%s4 + $0x78] sm:$0xff]
        %v4687 = vld [vmem:[%s4 + $0x80] sm:$0xff]
        %v4688 = vld [vmem:[%s4 + $0x88] sm:$0xff]
        %v4689 = vld [vmem:[%s4 + $0x90] sm:$0xff]
        %v4690 = vld [vmem:[%s4 + $0x98] sm:$0xff]
        %v4691 = vld [vmem:[%s4 + $0xa0] sm:$0xff]
        %v4693 = vsel %vm816, %v4657, 0
        %v4696 = vsel %vm816, %v4663, 0
        %v4699 = vsel %vm816, %v4669, 0
        %4701 = vmatprep.subr.mxu0 0.0
        %4702 = vmatpush1.msra.mxu0 %v4671
        %4703 = vmatprep.subr.mxu0 0.0
        %4704 = vmatpush1.msra.mxu0 %v4672
        %4705 = vmatprep.subr.mxu0 0.0
        %4706 = vmatpush1.msra.mxu0 %v4673
        %4707 = vmatprep.subr.mxu0 0.0
        %4708 = vmatpush1.msra.mxu0 %v4674
        %4709 = vmatprep.subr.mxu0 0.0
        %4710 = vmatpush1.msra.mxu0 %v4675
        %4711 = vmatprep.subr.mxu0 0.0
        %4712 = vmatpush1.msra.mxu0 %v4676
        %4713 = vmatprep.subr.mxu0 0.0
        %4714 = vmatpush1.msra.mxu0 %v4677
        %4715 = vmatprep.subr.mxu0 0.0
        %4716 = vmatpush1.msra.mxu0 %v4678
        %4717 = vmatprep.subr.mxu0 0.0
        %4718 = vmatpush1.msra.mxu0 %v4679
        %4719 = vmatprep.subr.mxu0 0.0
        %4720 = vmatpush1.msra.mxu0 %v4680
        %4721 = vmatprep.subr.mxu0 0.0
        %4722 = vmatpush1.msra.mxu0 %v4681
        %4723 = vmatprep.subr.mxu0 0.0
        %4724 = vmatpush1.msra.mxu0 %v4682
        %4725 = vmatprep.subr.mxu0 0.0
        %4726 = vmatpush1.msra.mxu0 %v4683
        %4727 = vmatprep.subr.mxu0 0.0
        %4728 = vmatpush1.msra.mxu0 %v4684
        %4729 = vmatprep.subr.mxu0 0.0
        %4730 = vmatpush1.msra.mxu0 %v4685
        %4731 = vmatprep.subr.mxu0 0.0
        %4732 = vmatpush1.msra.mxu0 %v4686
        %4733 = vmatprep.subr.mxu0 0.0
        %4734 = vmatpush1.msra.mxu0 %v4687
        %4735 = vmatprep.subr.mxu0 0.0
        %4736 = vmatpush1.msra.mxu0 %v4688
        %4737 = vmatprep.subr.mxu0 0.0
        %4738 = vmatpush1.msra.mxu0 %v4689
        %4739 = vmatprep.subr.mxu0 0.0
        %4740 = vmatpush1.msra.mxu0 %v4690
        %4741 = vmatprep.subr.mxu0 0.0
        %4742 = vmatpush1.msra.mxu0 %v4691
        %4743 = vmatprep.subr.mxu0 0.0
        %4744 = vmatpush1.msra.mxu0 0.0
        %4745 = vmatprep.subr.mxu0 0.0
        %4746 = vmatpush1.msra.mxu0 0.0
        %4747 = vmatprep.subr.mxu0 0.0
        %4748 = vmatpush1.msra.mxu0 0.0
        %4749 = vmatprep.subr.mxu0 0.0
        %4750 = vmatpush1.msra.mxu0 0.0
        %4751 = vmatprep.subr.mxu0 0.0
        %4752 = vmatpush1.msra.mxu0 0.0
        %4753 = vmatprep.subr.mxu0 0.0
        %4754 = vmatpush1.msra.mxu0 0.0
        %4755 = vmatprep.subr.mxu0 0.0
        %4756 = vmatpush1.msra.mxu0 0.0
        %4757 = vmatprep.subr.mxu0 0.0
        %4758 = vmatpush1.msra.mxu0 0.0
        %4759 = vmatprep.subr.mxu0 0.0
        %4760 = vmatpush1.msra.mxu0 0.0
        %4761 = vmatprep.subr.mxu0 0.0
        %4762 = vmatpush1.msra.mxu0 0.0
        %4763 = vmatprep.subr.mxu0 0.0
        %4764 = vmatpush1.msra.mxu0 0.0
        %4765 = vmatprep.mubr.f32.mxu0 %v4693
        %4766 = vmatmul.mubr.f32.gmra.mrb[0].mxu0 %v4655
        %v4767 = vpop.f32.mrb[0].mxu0
        %v4768 = vadd.f32 0.0, %v4767
        %v4769 = vpop.f32.mrb[0].mxu0
        %4770 = vmatprep.mubr.f32.mxu0 %v4696
        %4771 = vmatmul.mubr.f32.gmra.mrb[0].mxu0 %v4661
        %v4772 = vpop.f32.mrb[0].mxu0
        %v4773 = vadd.f32 0.0, %v4772
        %v4774 = vpop.f32.mrb[0].mxu0
        %4775 = vmatprep.mubr.f32.mxu0 %v4699
        %4776 = vmatmul.mubr.f32.gmra.mrb[0].mxu0 %v4667
        %v4777 = vpop.f32.mrb[0].mxu0
        %v4778 = vadd.f32 0.0, %v4777
        %v4779 = vpop.f32.mrb[0].mxu0
        %4780 = vdwg.mxu0
        %v4781 = vld [vmem:[%s5] sm:$0xff]
        %v4782 = vld [vmem:[%s5 + $0x8] sm:$0xff]
        %v4783 = vld [vmem:[%s5 + $0x10] sm:$0xff]
        %v4784 = vld [vmem:[%s5 + $0x18] sm:$0xff]
        %v4785 = vld [vmem:[%s5 + $0x20] sm:$0xff]
        %v4786 = vld [vmem:[%s5 + $0x28] sm:$0xff]
        %v4787 = vld [vmem:[%s5 + $0x30] sm:$0xff]
        %v4788 = vld [vmem:[%s5 + $0x38] sm:$0xff]
        %v4789 = vld [vmem:[%s5 + $0x40] sm:$0xff]
        %v4790 = vld [vmem:[%s5 + $0x48] sm:$0xff]
        %v4791 = vld [vmem:[%s5 + $0x50] sm:$0xff]
        %v4792 = vld [vmem:[%s5 + $0x58] sm:$0xff]
        %v4793 = vld [vmem:[%s5 + $0x60] sm:$0xff]
        %v4794 = vld [vmem:[%s5 + $0x68] sm:$0xff]
        %v4795 = vld [vmem:[%s5 + $0x70] sm:$0xff]
        %v4796 = vld [vmem:[%s5 + $0x78] sm:$0xff]
        %v4797 = vld [vmem:[%s5 + $0x80] sm:$0xff]
        %v4798 = vld [vmem:[%s5 + $0x88] sm:$0xff]
        %v4799 = vld [vmem:[%s5 + $0x90] sm:$0xff]
        %v4800 = vld [vmem:[%s5 + $0x98] sm:$0xff]
        %v4801 = vld [vmem:[%s5 + $0xa0] sm:$0xff]
        %v4802 = vld [vmem:[%s5 + $0xa8] sm:$0xff]
        %v4803 = vld [vmem:[%s5 + $0xb0] sm:$0xff]
        %v4804 = vld [vmem:[%s5 + $0xb8] sm:$0xff]
        %v4805 = vld [vmem:[%s5 + $0xc0] sm:$0xff]
        %v4806 = vld [vmem:[%s5 + $0xc8] sm:$0xff]
        %v4807 = vld [vmem:[%s5 + $0xd0] sm:$0xf]
        %v4808 = vld [vmem:[%s5 + $0xd8] sm:$0xf]
        %v4809 = vld [vmem:[%s934] sm:$0xff]
        %v4810 = vld [vmem:[%s934 + $0x8] sm:$0xff]
        %v4811 = vld [vmem:[%s934 + $0x10] sm:$0xff]
        %v4812 = vld [vmem:[%s934 + $0x18] sm:$0xff]
        %v4813 = vld [vmem:[%s934 + $0x20] sm:$0xff]
        %v4814 = vld [vmem:[%s934 + $0x28] sm:$0xff]
        %v4815 = vld [vmem:[%s934 + $0x30] sm:$0xff]
        %v4816 = vld [vmem:[%s934 + $0x38] sm:$0xff]
        %v4817 = vld [vmem:[%s934 + $0x40] sm:$0xff]
        %v4818 = vld [vmem:[%s934 + $0x48] sm:$0xff]
        %v4819 = vld [vmem:[%s934 + $0x50] sm:$0xff]
        %v4820 = vld [vmem:[%s934 + $0x58] sm:$0xff]
        %v4821 = vld [vmem:[%s934 + $0x60] sm:$0xff]
        %v4822 = vld [vmem:[%s934 + $0x68] sm:$0xff]
        %v4823 = vld [vmem:[%s934 + $0x70] sm:$0xff]
        %v4824 = vld [vmem:[%s934 + $0x78] sm:$0xff]
        %v4825 = vld [vmem:[%s934 + $0x80] sm:$0xff]
        %v4826 = vld [vmem:[%s934 + $0x88] sm:$0xff]
        %v4827 = vld [vmem:[%s934 + $0x90] sm:$0xff]
        %v4828 = vld [vmem:[%s934 + $0x98] sm:$0xff]
        %v4829 = vld [vmem:[%s934 + $0xa0] sm:$0xff]
        %v4830 = vld [vmem:[%s934 + $0xa8] sm:$0xff]
        %v4831 = vld [vmem:[%s934 + $0xb0] sm:$0xff]
        %v4832 = vld [vmem:[%s934 + $0xb8] sm:$0xff]
        %v4833 = vld [vmem:[%s934 + $0xc0] sm:$0xff]
        %v4834 = vld [vmem:[%s934 + $0xc8] sm:$0xff]
        %v4835 = vld [vmem:[%s934 + $0xd0] sm:$0xf]
        %v4836 = vld [vmem:[%s934 + $0xd8] sm:$0xf]
        %v4839 = vrot.slane %v4768, 1
        %v4840 = vrot.slane %v4773, 1
        %v4841 = vsel %vm965, %v4839, %v4840
        %v4842 = vsel %vm969, %v4841, 0
        %v4844 = vsel %vm969, %v4840, 0
        %v4847 = vsel %vm705, %v4835, 0
        %v4850 = vsel %vm705, %v4836, 0
        %4852 = vmatprep.subr.mxu0 %v4810
        %4853 = vmatpush1.msra.mxu0 %v4809
        %4854 = vmatprep.subr.mxu0 %v4812
        %4855 = vmatpush1.msra.mxu0 %v4811
        %4856 = vmatprep.subr.mxu0 %v4814
        %4857 = vmatpush1.msra.mxu0 %v4813
        %4858 = vmatprep.subr.mxu0 %v4816
        %4859 = vmatpush1.msra.mxu0 %v4815
        %4860 = vmatprep.subr.mxu0 %v4818
        %4861 = vmatpush1.msra.mxu0 %v4817
        %4862 = vmatprep.subr.mxu0 %v4820
        %4863 = vmatpush1.msra.mxu0 %v4819
        %4864 = vmatprep.subr.mxu0 %v4822
        %4865 = vmatpush1.msra.mxu0 %v4821
        %4866 = vmatprep.subr.mxu0 %v4824
        %4867 = vmatpush1.msra.mxu0 %v4823
        %4868 = vmatprep.subr.mxu0 %v4826
        %4869 = vmatpush1.msra.mxu0 %v4825
        %4870 = vmatprep.subr.mxu0 %v4828
        %4871 = vmatpush1.msra.mxu0 %v4827
        %4872 = vmatprep.subr.mxu0 %v4830
        %4873 = vmatpush1.msra.mxu0 %v4829
        %4874 = vmatprep.subr.mxu0 %v4832
        %4875 = vmatpush1.msra.mxu0 %v4831
        %4876 = vmatprep.subr.mxu0 %v4834
        %4877 = vmatpush1.msra.mxu0 %v4833
        %4878 = vmatprep.subr.mxu0 %v4850
        %4879 = vmatpush1.msra.mxu0 %v4847
        %4880 = vmatprep.subr.mxu0 0.0
        %4881 = vmatpush1.msra.mxu0 0.0
        %4882 = vmatprep.subr.mxu0 0.0
        %4883 = vmatpush1.msra.mxu0 0.0
        %4884 = vmatprep.subr.mxu0 0.0
        %4885 = vmatpush1.msra.mxu0 0.0
        %4886 = vmatprep.subr.mxu0 0.0
        %4887 = vmatpush1.msra.mxu0 0.0
        %4888 = vmatprep.subr.mxu0 0.0
        %4889 = vmatpush1.msra.mxu0 0.0
        %4890 = vmatprep.subr.mxu0 0.0
        %4891 = vmatpush1.msra.mxu0 0.0
        %4892 = vmatprep.subr.mxu0 0.0
        %4893 = vmatpush1.msra.mxu0 0.0
        %4894 = vmatprep.subr.mxu0 0.0
        %4895 = vmatpush1.msra.mxu0 0.0
        %4896 = vmatprep.subr.mxu0 0.0
        %4897 = vmatpush1.msra.mxu0 0.0
        %4898 = vmatprep.subr.mxu0 0.0
        %4899 = vmatpush1.msra.mxu0 0.0
        %4900 = vmatprep.subr.mxu0 0.0
        %4901 = vmatpush1.msra.mxu0 0.0
        %4902 = vmatprep.subr.mxu0 0.0
        %4903 = vmatpush1.msra.mxu0 0.0
        %4904 = vmatprep.subr.mxu0 0.0
        %4905 = vmatpush1.msra.mxu0 0.0
        %4906 = vmatprep.subr.mxu0 0.0
        %4907 = vmatpush1.msra.mxu0 0.0
        %4908 = vmatprep.subr.mxu0 0.0
        %4909 = vmatpush1.msra.mxu0 0.0
        %4910 = vmatprep.subr.mxu0 0.0
        %4911 = vmatpush1.msra.mxu0 0.0
        %4912 = vmatprep.subr.mxu0 0.0
        %4913 = vmatpush1.msra.mxu0 0.0
        %4914 = vmatprep.subr.mxu0 0.0
        %4915 = vmatpush1.msra.mxu0 0.0
        %4916 = vmatprep.mubr.f32.mxu0 0.0
        %4917 = vmatmul.mubr.f32.gmra.mrb[0].mxu0 %v4842
        %v4918 = vpop.f32.mrb[0].mxu0
        %v4919 = vadd.f32 0.0, %v4918
        %v4920 = vpop.f32.mrb[0].mxu0
        %v4921 = vadd.f32 0.0, %v4920
        %4922 = vmatprep.mubr.f32.mxu0 0.0
        %4923 = vmatmul.mubr.f32.gmra.mrb[0].mxu0 %v4844
        %v4924 = vpop.f32.mrb[0].mxu0
        %v4925 = vadd.f32 0.0, %v4924
        %v4926 = vpop.f32.mrb[0].mxu0
        %v4927 = vadd.f32 0.0, %v4926
        %4928 = vdwg.mxu0
        %v4929 = vsel %vm969, %v4768, 0
        %v4931 = vsel %vm969, %v4773, 0
        %v4934 = vsel %vm705, %v4807, 0
        %v4937 = vsel %vm705, %v4808, 0
        %4939 = vmatprep.subr.mxu0 %v4782
        %4940 = vmatpush1.msra.mxu0 %v4781
        %4941 = vmatprep.subr.mxu0 %v4784
        %4942 = vmatpush1.msra.mxu0 %v4783
        %4943 = vmatprep.subr.mxu0 %v4786
        %4944 = vmatpush1.msra.mxu0 %v4785
        %4945 = vmatprep.subr.mxu0 %v4788
        %4946 = vmatpush1.msra.mxu0 %v4787
        %4947 = vmatprep.subr.mxu0 %v4790
        %4948 = vmatpush1.msra.mxu0 %v4789
        %4949 = vmatprep.subr.mxu0 %v4792
        %4950 = vmatpush1.msra.mxu0 %v4791
        %4951 = vmatprep.subr.mxu0 %v4794
        %4952 = vmatpush1.msra.mxu0 %v4793
        %4953 = vmatprep.subr.mxu0 %v4796
        %4954 = vmatpush1.msra.mxu0 %v4795
        %4955 = vmatprep.subr.mxu0 %v4798
        %4956 = vmatpush1.msra.mxu0 %v4797
        %4957 = vmatprep.subr.mxu0 %v4800
        %4958 = vmatpush1.msra.mxu0 %v4799
        %4959 = vmatprep.subr.mxu0 %v4802
        %4960 = vmatpush1.msra.mxu0 %v4801
        %4961 = vmatprep.subr.mxu0 %v4804
        %4962 = vmatpush1.msra.mxu0 %v4803
        %4963 = vmatprep.subr.mxu0 %v4806
        %4964 = vmatpush1.msra.mxu0 %v4805
        %4965 = vmatprep.subr.mxu0 %v4937
        %4966 = vmatpush1.msra.mxu0 %v4934
        %4967 = vmatprep.subr.mxu0 0.0
        %4968 = vmatpush1.msra.mxu0 0.0
        %4969 = vmatprep.subr.mxu0 0.0
        %4970 = vmatpush1.msra.mxu0 0.0
        %4971 = vmatprep.subr.mxu0 0.0
        %4972 = vmatpush1.msra.mxu0 0.0
        %4973 = vmatprep.subr.mxu0 0.0
        %4974 = vmatpush1.msra.mxu0 0.0
        %4975 = vmatprep.subr.mxu0 0.0
        %4976 = vmatpush1.msra.mxu0 0.0
        %4977 = vmatprep.subr.mxu0 0.0
        %4978 = vmatpush1.msra.mxu0 0.0
        %4979 = vmatprep.subr.mxu0 0.0
        %4980 = vmatpush1.msra.mxu0 0.0
        %4981 = vmatprep.subr.mxu0 0.0
        %4982 = vmatpush1.msra.mxu0 0.0
        %4983 = vmatprep.subr.mxu0 0.0
        %4984 = vmatpush1.msra.mxu0 0.0
        %4985 = vmatprep.subr.mxu0 0.0
        %4986 = vmatpush1.msra.mxu0 0.0
        %4987 = vmatprep.subr.mxu0 0.0
        %4988 = vmatpush1.msra.mxu0 0.0
        %4989 = vmatprep.subr.mxu0 0.0
        %4990 = vmatpush1.msra.mxu0 0.0
        %4991 = vmatprep.subr.mxu0 0.0
        %4992 = vmatpush1.msra.mxu0 0.0
        %4993 = vmatprep.subr.mxu0 0.0
        %4994 = vmatpush1.msra.mxu0 0.0
        %4995 = vmatprep.subr.mxu0 0.0
        %4996 = vmatpush1.msra.mxu0 0.0
        %4997 = vmatprep.subr.mxu0 0.0
        %4998 = vmatpush1.msra.mxu0 0.0
        %4999 = vmatprep.subr.mxu0 0.0
        %5000 = vmatpush1.msra.mxu0 0.0
        %5001 = vmatprep.subr.mxu0 0.0
        %5002 = vmatpush1.msra.mxu0 0.0
        %5003 = vmatprep.mubr.f32.mxu0 0.0
        %5004 = vmatmul.mubr.f32.gmra.mrb[0].mxu0 %v4929
        %v5005 = vpop.f32.mrb[0].mxu0
        %v5006 = vadd.f32 %v4919, %v5005
        %v5007 = vpop.f32.mrb[0].mxu0
        %v5008 = vadd.f32 %v4921, %v5007
        %5009 = vmatprep.mubr.f32.mxu0 0.0
        %5010 = vmatmul.mubr.f32.gmra.mrb[0].mxu0 %v4931
        %v5011 = vpop.f32.mrb[0].mxu0
        %v5012 = vadd.f32 %v4925, %v5011
        %v5013 = vpop.f32.mrb[0].mxu0
        %v5014 = vadd.f32 %v4927, %v5013
        %5015 = vdwg.mxu0
        %v5016 = vld [vmem:[%s1144] sm:$0xff]
        %v5017 = vld [vmem:[%s1144 + $0x8] sm:$0xff]
        %v5018 = vld [vmem:[%s1144 + $0x10] sm:$0xff]
        %v5019 = vld [vmem:[%s1144 + $0x18] sm:$0xff]
        %v5020 = vld [vmem:[%s1144 + $0x20] sm:$0xff]
        %v5021 = vld [vmem:[%s1144 + $0x28] sm:$0xff]
        %v5022 = vld [vmem:[%s1144 + $0x30] sm:$0xff]
        %v5023 = vld [vmem:[%s1144 + $0x38] sm:$0xff]
        %v5024 = vld [vmem:[%s1144 + $0x40] sm:$0xff]
        %v5025 = vld [vmem:[%s1144 + $0x48] sm:$0xff]
        %v5026 = vld [vmem:[%s1144 + $0x50] sm:$0xff]
        %v5027 = vld [vmem:[%s1144 + $0x58] sm:$0xff]
        %v5028 = vld [vmem:[%s1144 + $0x60] sm:$0xff]
        %v5029 = vld [vmem:[%s1144 + $0x68] sm:$0xff]
        %v5030 = vld [vmem:[%s1144 + $0x70] sm:$0xff]
        %v5031 = vld [vmem:[%s1144 + $0x78] sm:$0xff]
        %v5032 = vld [vmem:[%s1144 + $0x80] sm:$0xff]
        %v5033 = vld [vmem:[%s1144 + $0x88] sm:$0xff]
        %v5034 = vld [vmem:[%s1144 + $0x90] sm:$0xff]
        %v5035 = vld [vmem:[%s1144 + $0x98] sm:$0xff]
        %v5036 = vld [vmem:[%s1144 + $0xa0] sm:$0xff]
        %v5037 = vld [vmem:[%s1144 + $0xa8] sm:$0xff]
        %v5038 = vld [vmem:[%s1144 + $0xb0] sm:$0xff]
        %v5039 = vld [vmem:[%s1144 + $0xb8] sm:$0xff]
        %v5040 = vld [vmem:[%s1144 + $0xc0] sm:$0xff]
        %v5041 = vld [vmem:[%s1144 + $0xc8] sm:$0xff]
        %v5042 = vld [vmem:[%s1144 + $0xd0] sm:$0xf]
        %v5043 = vld [vmem:[%s1144 + $0xd8] sm:$0xf]
        %v5044 = vrot.slane %v4768, 2
        %v5045 = vrot.slane %v4773, 2
        %v5046 = vsel %vm1173, %v5044, %v5045
        %v5047 = vsel %vm969, %v5046, 0
        %v5049 = vsel %vm969, %v5045, 0
        %v5052 = vsel %vm705, %v5042, 0
        %v5055 = vsel %vm705, %v5043, 0
        %5057 = vmatprep.subr.mxu0 %v5017
        %5058 = vmatpush1.msra.mxu0 %v5016
        %5059 = vmatprep.subr.mxu0 %v5019
        %5060 = vmatpush1.msra.mxu0 %v5018
        %5061 = vmatprep.subr.mxu0 %v5021
        %5062 = vmatpush1.msra.mxu0 %v5020
        %5063 = vmatprep.subr.mxu0 %v5023
        %5064 = vmatpush1.msra.mxu0 %v5022
        %5065 = vmatprep.subr.mxu0 %v5025
        %5066 = vmatpush1.msra.mxu0 %v5024
        %5067 = vmatprep.subr.mxu0 %v5027
        %5068 = vmatpush1.msra.mxu0 %v5026
        %5069 = vmatprep.subr.mxu0 %v5029
        %5070 = vmatpush1.msra.mxu0 %v5028
        %5071 = vmatprep.subr.mxu0 %v5031
        %5072 = vmatpush1.msra.mxu0 %v5030
        %5073 = vmatprep.subr.mxu0 %v5033
        %5074 = vmatpush1.msra.mxu0 %v5032
        %5075 = vmatprep.subr.mxu0 %v5035
        %5076 = vmatpush1.msra.mxu0 %v5034
        %5077 = vmatprep.subr.mxu0 %v5037
        %5078 = vmatpush1.msra.mxu0 %v5036
        %5079 = vmatprep.subr.mxu0 %v5039
        %5080 = vmatpush1.msra.mxu0 %v5038
        %5081 = vmatprep.subr.mxu0 %v5041
        %5082 = vmatpush1.msra.mxu0 %v5040
        %5083 = vmatprep.subr.mxu0 %v5055
        %5084 = vmatpush1.msra.mxu0 %v5052
        %5085 = vmatprep.subr.mxu0 0.0
        %5086 = vmatpush1.msra.mxu0 0.0
        %5087 = vmatprep.subr.mxu0 0.0
        %5088 = vmatpush1.msra.mxu0 0.0
        %5089 = vmatprep.subr.mxu0 0.0
        %5090 = vmatpush1.msra.mxu0 0.0
        %5091 = vmatprep.subr.mxu0 0.0
        %5092 = vmatpush1.msra.mxu0 0.0
        %5093 = vmatprep.subr.mxu0 0.0
        %5094 = vmatpush1.msra.mxu0 0.0
        %5095 = vmatprep.subr.mxu0 0.0
        %5096 = vmatpush1.msra.mxu0 0.0
        %5097 = vmatprep.subr.mxu0 0.0
        %5098 = vmatpush1.msra.mxu0 0.0
        %5099 = vmatprep.subr.mxu0 0.0
        %5100 = vmatpush1.msra.mxu0 0.0
        %5101 = vmatprep.subr.mxu0 0.0
        %5102 = vmatpush1.msra.mxu0 0.0
        %5103 = vmatprep.subr.mxu0 0.0
        %5104 = vmatpush1.msra.mxu0 0.0
        %5105 = vmatprep.subr.mxu0 0.0
        %5106 = vmatpush1.msra.mxu0 0.0
        %5107 = vmatprep.subr.mxu0 0.0
        %5108 = vmatpush1.msra.mxu0 0.0
        %5109 = vmatprep.subr.mxu0 0.0
        %5110 = vmatpush1.msra.mxu0 0.0
        %5111 = vmatprep.subr.mxu0 0.0
        %5112 = vmatpush1.msra.mxu0 0.0
        %5113 = vmatprep.subr.mxu0 0.0
        %5114 = vmatpush1.msra.mxu0 0.0
        %5115 = vmatprep.subr.mxu0 0.0
        %5116 = vmatpush1.msra.mxu0 0.0
        %5117 = vmatprep.subr.mxu0 0.0
        %5118 = vmatpush1.msra.mxu0 0.0
        %5119 = vmatprep.subr.mxu0 0.0
        %5120 = vmatpush1.msra.mxu0 0.0
        %5121 = vmatprep.mubr.f32.mxu0 0.0
        %5122 = vmatmul.mubr.f32.gmra.mrb[0].mxu0 %v5047
        %v5123 = vpop.f32.mrb[0].mxu0
        %v5124 = vadd.f32 0.0, %v5123
        %v5125 = vpop.f32.mrb[0].mxu0
        %v5126 = vadd.f32 0.0, %v5125
        %5127 = vmatprep.mubr.f32.mxu0 0.0
        %5128 = vmatmul.mubr.f32.gmra.mrb[0].mxu0 %v5049
        %v5129 = vpop.f32.mrb[0].mxu0
        %v5130 = vadd.f32 0.0, %v5129
        %v5131 = vpop.f32.mrb[0].mxu0
        %v5132 = vadd.f32 0.0, %v5131
        %5133 = vdwg.mxu0
        %v5134 = vadd.f32 %v5006, %v5124
        %v5135 = vadd.f32 %v5008, %v5126
        %v5136 = vadd.f32 %v5012, %v5130
        %v5137 = vadd.f32 %v5014, %v5132
        %v5138 = vld [vmem:[%s1268] sm:$0xff]
        %v5139 = vld [vmem:[%s1268 + $0x8] sm:$0xff]
        %v5140 = vld [vmem:[%s1268 + $0x10] sm:$0xff]
        %v5141 = vld [vmem:[%s1268 + $0x18] sm:$0xff]
        %v5142 = vld [vmem:[%s1268 + $0x20] sm:$0xff]
        %v5143 = vld [vmem:[%s1268 + $0x28] sm:$0xff]
        %v5144 = vld [vmem:[%s1268 + $0x30] sm:$0xff]
        %v5145 = vld [vmem:[%s1268 + $0x38] sm:$0xff]
        %v5146 = vld [vmem:[%s1268 + $0x40] sm:$0xff]
        %v5147 = vld [vmem:[%s1268 + $0x48] sm:$0xff]
        %v5148 = vld [vmem:[%s1268 + $0x50] sm:$0xff]
        %v5149 = vld [vmem:[%s1268 + $0x58] sm:$0xff]
        %v5150 = vld [vmem:[%s1268 + $0x60] sm:$0xff]
        %v5151 = vld [vmem:[%s1268 + $0x68] sm:$0xff]
        %v5152 = vld [vmem:[%s1268 + $0x70] sm:$0xff]
        %v5153 = vld [vmem:[%s1268 + $0x78] sm:$0xff]
        %v5154 = vld [vmem:[%s1268 + $0x80] sm:$0xff]
        %v5155 = vld [vmem:[%s1268 + $0x88] sm:$0xff]
        %v5156 = vld [vmem:[%s1268 + $0x90] sm:$0xff]
        %v5157 = vld [vmem:[%s1268 + $0x98] sm:$0xff]
        %v5158 = vld [vmem:[%s1268 + $0xa0] sm:$0xff]
        %v5159 = vld [vmem:[%s1268 + $0xa8] sm:$0xff]
        %v5160 = vld [vmem:[%s1268 + $0xb0] sm:$0xff]
        %v5161 = vld [vmem:[%s1268 + $0xb8] sm:$0xff]
        %v5162 = vld [vmem:[%s1268 + $0xc0] sm:$0xff]
        %v5163 = vld [vmem:[%s1268 + $0xc8] sm:$0xff]
        %v5164 = vld [vmem:[%s1268 + $0xd0] sm:$0xf]
        %v5165 = vld [vmem:[%s1268 + $0xd8] sm:$0xf]
        %v5167 = vrot.slane %v4768, 3
        %v5168 = vrot.slane %v4773, 3
        %v5169 = vsel %vm1298, %v5167, %v5168
        %v5170 = vrot.slane %v4778, 3
        %v5171 = vsel %vm1298, %v5168, %v5170
        %v5172 = vsel %vm969, %v5169, 0
        %v5174 = vsel %vm969, %v5171, 0
        %v5177 = vsel %vm705, %v5164, 0
        %v5180 = vsel %vm705, %v5165, 0
        %5182 = vmatprep.subr.mxu0 %v5139
        %5183 = vmatpush1.msra.mxu0 %v5138
        %5184 = vmatprep.subr.mxu0 %v5141
        %5185 = vmatpush1.msra.mxu0 %v5140
        %5186 = vmatprep.subr.mxu0 %v5143
        %5187 = vmatpush1.msra.mxu0 %v5142
        %5188 = vmatprep.subr.mxu0 %v5145
        %5189 = vmatpush1.msra.mxu0 %v5144
        %5190 = vmatprep.subr.mxu0 %v5147
        %5191 = vmatpush1.msra.mxu0 %v5146
        %5192 = vmatprep.subr.mxu0 %v5149
        %5193 = vmatpush1.msra.mxu0 %v5148
        %5194 = vmatprep.subr.mxu0 %v5151
        %5195 = vmatpush1.msra.mxu0 %v5150
        %5196 = vmatprep.subr.mxu0 %v5153
        %5197 = vmatpush1.msra.mxu0 %v5152
        %5198 = vmatprep.subr.mxu0 %v5155
        %5199 = vmatpush1.msra.mxu0 %v5154
        %5200 = vmatprep.subr.mxu0 %v5157
        %5201 = vmatpush1.msra.mxu0 %v5156
        %5202 = vmatprep.subr.mxu0 %v5159
        %5203 = vmatpush1.msra.mxu0 %v5158
        %5204 = vmatprep.subr.mxu0 %v5161
        %5205 = vmatpush1.msra.mxu0 %v5160
        %5206 = vmatprep.subr.mxu0 %v5163
        %5207 = vmatpush1.msra.mxu0 %v5162
        %5208 = vmatprep.subr.mxu0 %v5180
        %5209 = vmatpush1.msra.mxu0 %v5177
        %5210 = vmatprep.subr.mxu0 0.0
        %5211 = vmatpush1.msra.mxu0 0.0
        %5212 = vmatprep.subr.mxu0 0.0
        %5213 = vmatpush1.msra.mxu0 0.0
        %5214 = vmatprep.subr.mxu0 0.0
        %5215 = vmatpush1.msra.mxu0 0.0
        %5216 = vmatprep.subr.mxu0 0.0
        %5217 = vmatpush1.msra.mxu0 0.0
        %5218 = vmatprep.subr.mxu0 0.0
        %5219 = vmatpush1.msra.mxu0 0.0
        %5220 = vmatprep.subr.mxu0 0.0
        %5221 = vmatpush1.msra.mxu0 0.0
        %5222 = vmatprep.subr.mxu0 0.0
        %5223 = vmatpush1.msra.mxu0 0.0
        %5224 = vmatprep.subr.mxu0 0.0
        %5225 = vmatpush1.msra.mxu0 0.0
        %5226 = vmatprep.subr.mxu0 0.0
        %5227 = vmatpush1.msra.mxu0 0.0
        %5228 = vmatprep.subr.mxu0 0.0
        %5229 = vmatpush1.msra.mxu0 0.0
        %5230 = vmatprep.subr.mxu0 0.0
        %5231 = vmatpush1.msra.mxu0 0.0
        %5232 = vmatprep.subr.mxu0 0.0
        %5233 = vmatpush1.msra.mxu0 0.0
        %5234 = vmatprep.subr.mxu0 0.0
        %5235 = vmatpush1.msra.mxu0 0.0
        %5236 = vmatprep.subr.mxu0 0.0
        %5237 = vmatpush1.msra.mxu0 0.0
        %5238 = vmatprep.subr.mxu0 0.0
        %5239 = vmatpush1.msra.mxu0 0.0
        %5240 = vmatprep.subr.mxu0 0.0
        %5241 = vmatpush1.msra.mxu0 0.0
        %5242 = vmatprep.subr.mxu0 0.0
        %5243 = vmatpush1.msra.mxu0 0.0
        %5244 = vmatprep.subr.mxu0 0.0
        %5245 = vmatpush1.msra.mxu0 0.0
        %5246 = vmatprep.mubr.f32.mxu0 0.0
        %5247 = vmatmul.mubr.f32.gmra.mrb[0].mxu0 %v5172
        %v5248 = vpop.f32.mrb[0].mxu0
        %v5249 = vadd.f32 0.0, %v5248
        %v5250 = vpop.f32.mrb[0].mxu0
        %v5251 = vadd.f32 0.0, %v5250
        %5252 = vmatprep.mubr.f32.mxu0 0.0
        %5253 = vmatmul.mubr.f32.gmra.mrb[0].mxu0 %v5174
        %v5254 = vpop.f32.mrb[0].mxu0
        %v5255 = vadd.f32 0.0, %v5254
        %v5256 = vpop.f32.mrb[0].mxu0
        %v5257 = vadd.f32 0.0, %v5256
        %5258 = vdwg.mxu0
        %v5259 = vadd.f32 %v5134, %v5249
        %v5260 = vadd.f32 %v5135, %v5251
        %v5261 = vadd.f32 %v5136, %v5255
        %v5262 = vadd.f32 %v5137, %v5257
        %v5263 = vld [vmem:[%s1395] sm:$0xff]
        %v5264 = vld [vmem:[%s1395 + $0x8] sm:$0xff]
        %v5265 = vld [vmem:[%s1395 + $0x10] sm:$0xff]
        %v5266 = vld [vmem:[%s1395 + $0x18] sm:$0xff]
        %v5267 = vld [vmem:[%s1395 + $0x20] sm:$0xff]
        %v5268 = vld [vmem:[%s1395 + $0x28] sm:$0xff]
        %v5269 = vld [vmem:[%s1395 + $0x30] sm:$0xff]
        %v5270 = vld [vmem:[%s1395 + $0x38] sm:$0xff]
        %v5271 = vld [vmem:[%s1395 + $0x40] sm:$0xff]
        %v5272 = vld [vmem:[%s1395 + $0x48] sm:$0xff]
        %v5273 = vld [vmem:[%s1395 + $0x50] sm:$0xff]
        %v5274 = vld [vmem:[%s1395 + $0x58] sm:$0xff]
        %v5275 = vld [vmem:[%s1395 + $0x60] sm:$0xff]
        %v5276 = vld [vmem:[%s1395 + $0x68] sm:$0xff]
        %v5277 = vld [vmem:[%s1395 + $0x70] sm:$0xff]
        %v5278 = vld [vmem:[%s1395 + $0x78] sm:$0xff]
        %v5279 = vld [vmem:[%s1395 + $0x80] sm:$0xff]
        %v5280 = vld [vmem:[%s1395 + $0x88] sm:$0xff]
        %v5281 = vld [vmem:[%s1395 + $0x90] sm:$0xff]
        %v5282 = vld [vmem:[%s1395 + $0x98] sm:$0xff]
        %v5283 = vld [vmem:[%s1395 + $0xa0] sm:$0xff]
        %v5284 = vld [vmem:[%s1395 + $0xa8] sm:$0xff]
        %v5285 = vld [vmem:[%s1395 + $0xb0] sm:$0xff]
        %v5286 = vld [vmem:[%s1395 + $0xb8] sm:$0xff]
        %v5287 = vld [vmem:[%s1395 + $0xc0] sm:$0xff]
        %v5288 = vld [vmem:[%s1395 + $0xc8] sm:$0xff]
        %v5289 = vld [vmem:[%s1395 + $0xd0] sm:$0xf]
        %v5290 = vld [vmem:[%s1395 + $0xd8] sm:$0xf]
        %v5291 = vrot.slane %v4768, 4
        %v5292 = vrot.slane %v4773, 4
        %v5293 = vsel %vm705, %v5291, %v5292
        %v5294 = vrot.slane %v4778, 4
        %v5295 = vsel %vm705, %v5292, %v5294
        %v5296 = vsel %vm969, %v5293, 0
        %v5298 = vsel %vm969, %v5295, 0
        %v5301 = vsel %vm705, %v5289, 0
        %v5304 = vsel %vm705, %v5290, 0
        %5306 = vmatprep.subr.mxu0 %v5264
        %5307 = vmatpush1.msra.mxu0 %v5263
        %5308 = vmatprep.subr.mxu0 %v5266
        %5309 = vmatpush1.msra.mxu0 %v5265
        %5310 = vmatprep.subr.mxu0 %v5268
        %5311 = vmatpush1.msra.mxu0 %v5267
        %5312 = vmatprep.subr.mxu0 %v5270
        %5313 = vmatpush1.msra.mxu0 %v5269
        %5314 = vmatprep.subr.mxu0 %v5272
        %5315 = vmatpush1.msra.mxu0 %v5271
        %5316 = vmatprep.subr.mxu0 %v5274
        %5317 = vmatpush1.msra.mxu0 %v5273
        %5318 = vmatprep.subr.mxu0 %v5276
        %5319 = vmatpush1.msra.mxu0 %v5275
        %5320 = vmatprep.subr.mxu0 %v5278
        %5321 = vmatpush1.msra.mxu0 %v5277
        %5322 = vmatprep.subr.mxu0 %v5280
        %5323 = vmatpush1.msra.mxu0 %v5279
        %5324 = vmatprep.subr.mxu0 %v5282
        %5325 = vmatpush1.msra.mxu0 %v5281
        %5326 = vmatprep.subr.mxu0 %v5284
        %5327 = vmatpush1.msra.mxu0 %v5283
        %5328 = vmatprep.subr.mxu0 %v5286
        %5329 = vmatpush1.msra.mxu0 %v5285
        %5330 = vmatprep.subr.mxu0 %v5288
        %5331 = vmatpush1.msra.mxu0 %v5287
        %5332 = vmatprep.subr.mxu0 %v5304
        %5333 = vmatpush1.msra.mxu0 %v5301
        %5334 = vmatprep.subr.mxu0 0.0
        %5335 = vmatpush1.msra.mxu0 0.0
        %5336 = vmatprep.subr.mxu0 0.0
        %5337 = vmatpush1.msra.mxu0 0.0
        %5338 = vmatprep.subr.mxu0 0.0
        %5339 = vmatpush1.msra.mxu0 0.0
        %5340 = vmatprep.subr.mxu0 0.0
        %5341 = vmatpush1.msra.mxu0 0.0
        %5342 = vmatprep.subr.mxu0 0.0
        %5343 = vmatpush1.msra.mxu0 0.0
        %5344 = vmatprep.subr.mxu0 0.0
        %5345 = vmatpush1.msra.mxu0 0.0
        %5346 = vmatprep.subr.mxu0 0.0
        %5347 = vmatpush1.msra.mxu0 0.0
        %5348 = vmatprep.subr.mxu0 0.0
        %5349 = vmatpush1.msra.mxu0 0.0
        %5350 = vmatprep.subr.mxu0 0.0
        %5351 = vmatpush1.msra.mxu0 0.0
        %5352 = vmatprep.subr.mxu0 0.0
        %5353 = vmatpush1.msra.mxu0 0.0
        %5354 = vmatprep.subr.mxu0 0.0
        %5355 = vmatpush1.msra.mxu0 0.0
        %5356 = vmatprep.subr.mxu0 0.0
        %5357 = vmatpush1.msra.mxu0 0.0
        %5358 = vmatprep.subr.mxu0 0.0
        %5359 = vmatpush1.msra.mxu0 0.0
        %5360 = vmatprep.subr.mxu0 0.0
        %5361 = vmatpush1.msra.mxu0 0.0
        %5362 = vmatprep.subr.mxu0 0.0
        %5363 = vmatpush1.msra.mxu0 0.0
        %5364 = vmatprep.subr.mxu0 0.0
        %5365 = vmatpush1.msra.mxu0 0.0
        %5366 = vmatprep.subr.mxu0 0.0
        %5367 = vmatpush1.msra.mxu0 0.0
        %5368 = vmatprep.subr.mxu0 0.0
        %5369 = vmatpush1.msra.mxu0 0.0
        %5370 = vmatprep.mubr.f32.mxu0 0.0
        %5371 = vmatmul.mubr.f32.gmra.mrb[0].mxu0 %v5296
        %v5372 = vpop.f32.mrb[0].mxu0
        %v5373 = vadd.f32 0.0, %v5372
        %v5374 = vpop.f32.mrb[0].mxu0
        %v5375 = vadd.f32 0.0, %v5374
        %5376 = vmatprep.mubr.f32.mxu0 0.0
        %5377 = vmatmul.mubr.f32.gmra.mrb[0].mxu0 %v5298
        %v5378 = vpop.f32.mrb[0].mxu0
        %v5379 = vadd.f32 0.0, %v5378
        %v5380 = vpop.f32.mrb[0].mxu0
        %v5381 = vadd.f32 0.0, %v5380
        %5382 = vdwg.mxu0
        %v5383 = vadd.f32 %v5259, %v5373
        %v5384 = vadd.f32 %v5260, %v5375
        %v5385 = vadd.f32 %v5261, %v5379
        %v5386 = vadd.f32 %v5262, %v5381
        %v5387 = vld [vmem:[%s6] sm:$0x3]
        %v5389 = vlaneseq
        %v5390 = vshrl.u32 %v5389, 7
        %v5391 = vsub.s32 0, %v5390
        %v5392 = vrot.slane %v5387, %v5391
        %v5393 = vlaneseq
        %v5394 = vshrl.u32 %v5393, 7
        %v5395 = vsub.s32 1, %v5394
        %v5396 = vrot.slane %v5387, %v5395
        %v5399 = vadd.f32 %v5383, %v5392
        %v5400 = vadd.f32 %v5384, %v5396
        %v5401 = vadd.f32 %v5385, %v5392
        %v5402 = vadd.f32 %v5386, %v5396
        %v5403 = vmul.f32 %v5399, 0.5
        %v5404 = vmul.f32 %v5400, 0.5
        %v5405 = vmul.f32 %v5401, 0.5
        %v5406 = vmul.f32 %v5402, 0.5
        %v5407 = vtanh.pop %v5403
        %v5408 = vtanh.pop %v5404
        %v5409 = vtanh.pop %v5405
        %v5410 = vtanh.pop %v5406
        %v5411 = vadd.f32 %v5407, 1.0
        %v5412 = vadd.f32 %v5408, 1.0
        %v5413 = vadd.f32 %v5409, 1.0
        %v5414 = vadd.f32 %v5410, 1.0
        %v5415 = vmul.f32 %v5411, 0.5
        %v5416 = vmul.f32 %v5412, 0.5
        %v5417 = vmul.f32 %v5413, 0.5
        %v5418 = vmul.f32 %v5414, 0.5
        %v5419 = vld [vmem:[%s7] sm:$0x7f]
        %v5421 = vsel %vm1553, %v5419, 0
        %v5424 = vsel %vm1173, %v5417, 0
        %v5427 = vsel %vm1173, %v5418, 0
        %5429 = vmatprep.subr.mxu0 %v5416
        %5430 = vmatpush1.msra.mxu0 %v5415
        %5431 = vmatprep.subr.mxu0 %v5427
        %5432 = vmatpush1.msra.mxu0 %v5424
        %5433 = vmatprep.subr.mxu0 0.0
        %5434 = vmatpush1.msra.mxu0 0.0
        %5435 = vmatprep.subr.mxu0 0.0
        %5436 = vmatpush1.msra.mxu0 0.0
        %5437 = vmatprep.subr.mxu0 0.0
        %5438 = vmatpush1.msra.mxu0 0.0
        %5439 = vmatprep.subr.mxu0 0.0
        %5440 = vmatpush1.msra.mxu0 0.0
        %5441 = vmatprep.subr.mxu0 0.0
        %5442 = vmatpush1.msra.mxu0 0.0
        %5443 = vmatprep.subr.mxu0 0.0
        %5444 = vmatpush1.msra.mxu0 0.0
        %5445 = vmatprep.subr.mxu0 0.0
        %5446 = vmatpush1.msra.mxu0 0.0
        %5447 = vmatprep.subr.mxu0 0.0
        %5448 = vmatpush1.msra.mxu0 0.0
        %5449 = vmatprep.subr.mxu0 0.0
        %5450 = vmatpush1.msra.mxu0 0.0
        %5451 = vmatprep.subr.mxu0 0.0
        %5452 = vmatpush1.msra.mxu0 0.0
        %5453 = vmatprep.subr.mxu0 0.0
        %5454 = vmatpush1.msra.mxu0 0.0
        %5455 = vmatprep.subr.mxu0 0.0
        %5456 = vmatpush1.msra.mxu0 0.0
        %5457 = vmatprep.subr.mxu0 0.0
        %5458 = vmatpush1.msra.mxu0 0.0
        %5459 = vmatprep.subr.mxu0 0.0
        %5460 = vmatpush1.msra.mxu0 0.0
        %5461 = vmatprep.subr.mxu0 0.0
        %5462 = vmatpush1.msra.mxu0 0.0
        %5463 = vmatprep.subr.mxu0 0.0
        %5464 = vmatpush1.msra.mxu0 0.0
        %5465 = vmatprep.subr.mxu0 0.0
        %5466 = vmatpush1.msra.mxu0 0.0
        %5467 = vmatprep.subr.mxu0 0.0
        %5468 = vmatpush1.msra.mxu0 0.0
        %5469 = vmatprep.subr.mxu0 0.0
        %5470 = vmatpush1.msra.mxu0 0.0
        %5471 = vmatprep.subr.mxu0 0.0
        %5472 = vmatpush1.msra.mxu0 0.0
        %5473 = vmatprep.subr.mxu0 0.0
        %5474 = vmatpush1.msra.mxu0 0.0
        %5475 = vmatprep.subr.mxu0 0.0
        %5476 = vmatpush1.msra.mxu0 0.0
        %5477 = vmatprep.subr.mxu0 0.0
        %5478 = vmatpush1.msra.mxu0 0.0
        %5479 = vmatprep.subr.mxu0 0.0
        %5480 = vmatpush1.msra.mxu0 0.0
        %5481 = vmatprep.subr.mxu0 0.0
        %5482 = vmatpush1.msra.mxu0 0.0
        %5483 = vmatprep.subr.mxu0 0.0
        %5484 = vmatpush1.msra.mxu0 0.0
        %5485 = vmatprep.subr.mxu0 0.0
        %5486 = vmatpush1.msra.mxu0 0.0
        %5487 = vmatprep.subr.mxu0 0.0
        %5488 = vmatpush1.msra.mxu0 0.0
        %5489 = vmatprep.subr.mxu0 0.0
        %5490 = vmatpush1.msra.mxu0 0.0
        %5491 = vmatprep.subr.mxu0 0.0
        %5492 = vmatpush1.msra.mxu0 0.0
        %5493 = vmatprep.mubr.f32.mxu0 0.0
        %5494 = vmatmul.mubr.f32.gmra.mrb[0].mxu0 %v5421
        %v5495 = vpop.f32.mrb[0].mxu0
        %v5496 = vadd.f32 0.0, %v5495
        %v5497 = vpop.f32.mrb[0].mxu0
        %v5498 = vadd.f32 0.0, %v5497
        %5499 = vdwg.mxu0
        %v5500 = vld [vmem:[%s8] sm:$0xff]
        %v5501 = vld [vmem:[%s8 + $0x8] sm:$0xff]
        %v5502 = vld [vmem:[%s8 + $0x10] sm:$0xff]
        %v5503 = vld [vmem:[%s8 + $0x18] sm:$0xff]
        %v5504 = vld [vmem:[%s8 + $0x20] sm:$0xff]
        %v5505 = vld [vmem:[%s8 + $0x28] sm:$0xff]
        %v5506 = vld [vmem:[%s8 + $0x30] sm:$0xff]
        %v5507 = vld [vmem:[%s8 + $0x38] sm:$0xff]
        %v5508 = vld [vmem:[%s8 + $0x40] sm:$0xff]
        %v5509 = vld [vmem:[%s8 + $0x48] sm:$0xff]
        %v5510 = vld [vmem:[%s8 + $0x50] sm:$0xff]
        %v5511 = vld [vmem:[%s8 + $0x58] sm:$0xff]
        %v5512 = vld [vmem:[%s8 + $0x60] sm:$0xff]
        %v5513 = vld [vmem:[%s8 + $0x68] sm:$0xff]
        %v5514 = vld [vmem:[%s8 + $0x70] sm:$0xff]
        %v5515 = vld [vmem:[%s8 + $0x78] sm:$0xff]
        %v5516 = vld [vmem:[%s8 + $0x80] sm:$0xff]
        %v5517 = vld [vmem:[%s8 + $0x88] sm:$0xff]
        %v5518 = vld [vmem:[%s8 + $0x90] sm:$0xff]
        %v5519 = vld [vmem:[%s8 + $0x98] sm:$0xff]
        %v5520 = vld [vmem:[%s8 + $0xa0] sm:$0xff]
        %v5521 = vld [vmem:[%s8 + $0xa8] sm:$0xff]
        %v5522 = vld [vmem:[%s8 + $0xb0] sm:$0xff]
        %v5523 = vld [vmem:[%s8 + $0xb8] sm:$0xff]
        %v5524 = vld [vmem:[%s8 + $0xc0] sm:$0xff]
        %v5525 = vld [vmem:[%s8 + $0xc8] sm:$0xff]
        %v5526 = vld [vmem:[%s8 + $0xd0] sm:$0xff]
        %v5527 = vld [vmem:[%s8 + $0xd8] sm:$0xff]
        %v5529 = vsel %vm1662, %v5498, 0
        %5531 = vmatprep.subr.mxu0 0.0
        %5532 = vmatpush1.msra.mxu0 %v5500
        %5533 = vmatprep.subr.mxu0 0.0
        %5534 = vmatpush1.msra.mxu0 %v5501
        %5535 = vmatprep.subr.mxu0 0.0
        %5536 = vmatpush1.msra.mxu0 %v5502
        %5537 = vmatprep.subr.mxu0 0.0
        %5538 = vmatpush1.msra.mxu0 %v5503
        %5539 = vmatprep.subr.mxu0 0.0
        %5540 = vmatpush1.msra.mxu0 %v5504
        %5541 = vmatprep.subr.mxu0 0.0
        %5542 = vmatpush1.msra.mxu0 %v5505
        %5543 = vmatprep.subr.mxu0 0.0
        %5544 = vmatpush1.msra.mxu0 %v5506
        %5545 = vmatprep.subr.mxu0 0.0
        %5546 = vmatpush1.msra.mxu0 %v5507
        %5547 = vmatprep.subr.mxu0 0.0
        %5548 = vmatpush1.msra.mxu0 %v5508
        %5549 = vmatprep.subr.mxu0 0.0
        %5550 = vmatpush1.msra.mxu0 %v5509
        %5551 = vmatprep.subr.mxu0 0.0
        %5552 = vmatpush1.msra.mxu0 %v5510
        %5553 = vmatprep.subr.mxu0 0.0
        %5554 = vmatpush1.msra.mxu0 %v5511
        %5555 = vmatprep.subr.mxu0 0.0
        %5556 = vmatpush1.msra.mxu0 %v5512
        %5557 = vmatprep.subr.mxu0 0.0
        %5558 = vmatpush1.msra.mxu0 %v5513
        %5559 = vmatprep.subr.mxu0 0.0
        %5560 = vmatpush1.msra.mxu0 %v5514
        %5561 = vmatprep.subr.mxu0 0.0
        %5562 = vmatpush1.msra.mxu0 %v5515
        %5563 = vmatprep.subr.mxu0 0.0
        %5564 = vmatpush1.msra.mxu0 %v5516
        %5565 = vmatprep.subr.mxu0 0.0
        %5566 = vmatpush1.msra.mxu0 %v5517
        %5567 = vmatprep.subr.mxu0 0.0
        %5568 = vmatpush1.msra.mxu0 %v5518
        %5569 = vmatprep.subr.mxu0 0.0
        %5570 = vmatpush1.msra.mxu0 %v5519
        %5571 = vmatprep.subr.mxu0 0.0
        %5572 = vmatpush1.msra.mxu0 %v5520
        %5573 = vmatprep.subr.mxu0 0.0
        %5574 = vmatpush1.msra.mxu0 %v5521
        %5575 = vmatprep.subr.mxu0 0.0
        %5576 = vmatpush1.msra.mxu0 %v5522
        %5577 = vmatprep.subr.mxu0 0.0
        %5578 = vmatpush1.msra.mxu0 %v5523
        %5579 = vmatprep.subr.mxu0 0.0
        %5580 = vmatpush1.msra.mxu0 %v5524
        %5581 = vmatprep.subr.mxu0 0.0
        %5582 = vmatpush1.msra.mxu0 %v5525
        %5583 = vmatprep.subr.mxu0 0.0
        %5584 = vmatpush1.msra.mxu0 %v5526
        %5585 = vmatprep.subr.mxu0 0.0
        %5586 = vmatpush1.msra.mxu0 %v5527
        %5587 = vmatprep.subr.mxu0 0.0
        %5588 = vmatpush1.msra.mxu0 0.0
        %5589 = vmatprep.subr.mxu0 0.0
        %5590 = vmatpush1.msra.mxu0 0.0
        %5591 = vmatprep.subr.mxu0 0.0
        %5592 = vmatpush1.msra.mxu0 0.0
        %5593 = vmatprep.subr.mxu0 0.0
        %5594 = vmatpush1.msra.mxu0 0.0
        %5595 = vmatprep.mubr.f32.mxu0 %v5529
        %5596 = vmatmul.mubr.f32.gmra.mrb[0].mxu0 %v5496
        %v5597 = vpop.f32.mrb[0].mxu0
        %v5598 = vadd.f32 0.0, %v5597
        %v5599 = vpop.f32.mrb[0].mxu0
        %5600 = vdwg.mxu0
        %v5602 = vcombine.high %v5598, %v5598
        %v5604 = vunpack.c.l.s4 1966171168
        %v5605 = vunpack.c.0.s8 %v5604
        %v5606 = vlaneseq
        %v5607 = vshrl.u32 %v5606, 7
        %v5608 = vsub.s32 %v5605, %v5607
        %v5609 = vrot.slane %v5598, %v5608
        %v5611 = vunpack.c.l.s4 1966171168
        %v5612 = vunpack.c.0.s8 %v5611
        %v5613 = vlaneseq
        %v5614 = vshrl.u32 %v5613, 7
        %v5615 = vsub.s32 %v5612, %v5614
        %v5616 = vrot.slane %v5602, %v5615
        %v5617 = vcombine.high %v5609, %v5609
        %v5618 = vcombine.high %v5616, %v5616
        %v5620 = vunpack.c.l.s4 1966171168
        %v5621 = vunpack.c.0.s8 %v5620
        %v5622 = vlaneseq
        %v5623 = vshrl.u32 %v5622, 7
        %v5624 = vsub.s32 %v5621, %v5623
        %v5625 = vrot.slane %v5609, %v5624
        %v5627 = vunpack.c.l.s4 1966171168
        %v5628 = vunpack.c.0.s8 %v5627
        %v5629 = vlaneseq
        %v5630 = vshrl.u32 %v5629, 7
        %v5631 = vsub.s32 %v5628, %v5630
        %v5632 = vrot.slane %v5616, %v5631
        %v5634 = vunpack.c.l.s4 1966171168
        %v5635 = vunpack.c.0.s8 %v5634
        %v5636 = vlaneseq
        %v5637 = vshrl.u32 %v5636, 7
        %v5638 = vsub.s32 %v5635, %v5637
        %v5639 = vrot.slane %v5617, %v5638
        %v5641 = vunpack.c.l.s4 1966171168
        %v5642 = vunpack.c.0.s8 %v5641
        %v5643 = vlaneseq
        %v5644 = vshrl.u32 %v5643, 7
        %v5645 = vsub.s32 %v5642, %v5644
        %v5646 = vrot.slane %v5618, %v5645
        %v5647 = vcombine.high %v5625, %v5625
        %v5648 = vcombine.high %v5632, %v5632
        %v5649 = vcombine.high %v5639, %v5639
        %5657 = vst.msk [vmem:[#allocation2 + $0x3] sm:$0x1] %vm1792, %v5625
        %5658 = vst.msk [vmem:[#allocation2 + $0x7] sm:$0x1] %vm1792, %v5639
        %5659 = vst.msk [vmem:[#allocation2 + $0xb] sm:$0x1] %vm1792, %v5647
        %5660 = vst.msk [vmem:[#allocation2 + $0xf] sm:$0x1] %vm1792, %v5649
        %5661 = vst.msk [vmem:[#allocation2 + $0x13] sm:$0x1] %vm1792, %v5632
        %5662 = vst.msk [vmem:[#allocation2 + $0x17] sm:$0x1] %vm1792, %v5646
        %5663 = vst.msk [vmem:[#allocation2 + $0x1b] sm:$0x1] %vm1792, %v5648
        %v5664 = vld [vmem:[#allocation2] sm:$0xf]
        %v5665 = vld [vmem:[%s9] sm:$0xff]
        %v5666 = vld [vmem:[%s9 + $0x8] sm:$0xff]
        %v5667 = vld [vmem:[%s9 + $0x10] sm:$0xff]
        %v5668 = vld [vmem:[%s9 + $0x18] sm:$0xff]
        %v5669 = vld [vmem:[%s9 + $0x20] sm:$0xff]
        %v5670 = vld [vmem:[%s9 + $0x28] sm:$0xff]
        %v5671 = vld [vmem:[%s9 + $0x30] sm:$0xff]
        %v5672 = vld [vmem:[%s9 + $0x38] sm:$0xff]
        %v5673 = vld [vmem:[%s9 + $0x40] sm:$0xff]
        %v5674 = vld [vmem:[%s9 + $0x48] sm:$0xff]
        %v5675 = vld [vmem:[%s9 + $0x50] sm:$0xff]
        %v5676 = vld [vmem:[%s9 + $0x58] sm:$0xff]
        %v5677 = vld [vmem:[%s9 + $0x60] sm:$0xff]
        %v5678 = vld [vmem:[%s9 + $0x68] sm:$0xff]
        %s5679 = scalar_lea.vmem [#allocation2], 4
        %v5680 = vld [vmem:[%s5679] sm:$0xf]
        %s5681 = scalar_lea.vmem %s9, 112
        %v5682 = vld [vmem:[%s5681] sm:$0xff]
        %v5683 = vld [vmem:[%s5681 + $0x8] sm:$0xff]
        %v5684 = vld [vmem:[%s5681 + $0x10] sm:$0xff]
        %v5685 = vld [vmem:[%s5681 + $0x18] sm:$0xff]
        %v5686 = vld [vmem:[%s5681 + $0x20] sm:$0xff]
        %v5687 = vld [vmem:[%s5681 + $0x28] sm:$0xff]
        %v5688 = vld [vmem:[%s5681 + $0x30] sm:$0xff]
        %v5689 = vld [vmem:[%s5681 + $0x38] sm:$0xff]
        %v5690 = vld [vmem:[%s5681 + $0x40] sm:$0xff]
        %v5691 = vld [vmem:[%s5681 + $0x48] sm:$0xff]
        %v5692 = vld [vmem:[%s5681 + $0x50] sm:$0xff]
        %v5693 = vld [vmem:[%s5681 + $0x58] sm:$0xff]
        %v5694 = vld [vmem:[%s5681 + $0x60] sm:$0xff]
        %v5695 = vld [vmem:[%s5681 + $0x68] sm:$0xff]
        %vm5696 = vcmask 916480
        %v5698 = vsel %vm5696, %v5680, 0
        %5700 = vmatprep.subr.mxu0 0.0
        %5701 = vmatpush1.msra.mxu0 %v5682
        %5702 = vmatprep.subr.mxu0 0.0
        %5703 = vmatpush1.msra.mxu0 %v5683
        %5704 = vmatprep.subr.mxu0 0.0
        %5705 = vmatpush1.msra.mxu0 %v5684
        %5706 = vmatprep.subr.mxu0 0.0
        %5707 = vmatpush1.msra.mxu0 %v5685
        %5708 = vmatprep.subr.mxu0 0.0
        %5709 = vmatpush1.msra.mxu0 %v5686
        %5710 = vmatprep.subr.mxu0 0.0
        %5711 = vmatpush1.msra.mxu0 %v5687
        %5712 = vmatprep.subr.mxu0 0.0
        %5713 = vmatpush1.msra.mxu0 %v5688
        %5714 = vmatprep.subr.mxu0 0.0
        %5715 = vmatpush1.msra.mxu0 %v5689
        %5716 = vmatprep.subr.mxu0 0.0
        %5717 = vmatpush1.msra.mxu0 %v5690
        %5718 = vmatprep.subr.mxu0 0.0
        %5719 = vmatpush1.msra.mxu0 %v5691
        %5720 = vmatprep.subr.mxu0 0.0
        %5721 = vmatpush1.msra.mxu0 %v5692
        %5722 = vmatprep.subr.mxu0 0.0
        %5723 = vmatpush1.msra.mxu0 %v5693
        %5724 = vmatprep.subr.mxu0 0.0
        %5725 = vmatpush1.msra.mxu0 %v5694
        %5726 = vmatprep.subr.mxu0 0.0
        %5727 = vmatpush1.msra.mxu0 %v5695
        %5728 = vmatprep.subr.mxu0 0.0
        %5729 = vmatpush1.msra.mxu0 0.0
        %5730 = vmatprep.subr.mxu0 0.0
        %5731 = vmatpush1.msra.mxu0 0.0
        %5732 = vmatprep.subr.mxu0 0.0
        %5733 = vmatpush1.msra.mxu0 0.0
        %5734 = vmatprep.subr.mxu0 0.0
        %5735 = vmatpush1.msra.mxu0 0.0
        %5736 = vmatprep.subr.mxu0 0.0
        %5737 = vmatpush1.msra.mxu0 0.0
        %5738 = vmatprep.subr.mxu0 0.0
        %5739 = vmatpush1.msra.mxu0 0.0
        %5740 = vmatprep.subr.mxu0 0.0
        %5741 = vmatpush1.msra.mxu0 0.0
        %5742 = vmatprep.subr.mxu0 0.0
        %5743 = vmatpush1.msra.mxu0 0.0
        %5744 = vmatprep.subr.mxu0 0.0
        %5745 = vmatpush1.msra.mxu0 0.0
        %5746 = vmatprep.subr.mxu0 0.0
        %5747 = vmatpush1.msra.mxu0 0.0
        %5748 = vmatprep.subr.mxu0 0.0
        %5749 = vmatpush1.msra.mxu0 0.0
        %5750 = vmatprep.subr.mxu0 0.0
        %5751 = vmatpush1.msra.mxu0 0.0
        %5752 = vmatprep.subr.mxu0 0.0
        %5753 = vmatpush1.msra.mxu0 0.0
        %5754 = vmatprep.subr.mxu0 0.0
        %5755 = vmatpush1.msra.mxu0 0.0
        %5756 = vmatprep.subr.mxu0 0.0
        %5757 = vmatpush1.msra.mxu0 0.0
        %5758 = vmatprep.subr.mxu0 0.0
        %5759 = vmatpush1.msra.mxu0 0.0
        %5760 = vmatprep.subr.mxu0 0.0
        %5761 = vmatpush1.msra.mxu0 0.0
        %5762 = vmatprep.subr.mxu0 0.0
        %5763 = vmatpush1.msra.mxu0 0.0
        %5764 = vmatprep.mubr.f32.mxu0 0.0
        %5765 = vmatmul.mubr.f32.gmra.mrb[0].mxu0 %v5698
        %v5766 = vpop.f32.mrb[0].mxu0
        %v5767 = vadd.f32 0.0, %v5766
        %v5768 = vpop.f32.mrb[0].mxu0
        %5769 = vdwg.mxu0
        %v5771 = vsel %vm5696, %v5664, 0
        %5773 = vmatprep.subr.mxu0 0.0
        %5774 = vmatpush1.msra.mxu0 %v5665
        %5775 = vmatprep.subr.mxu0 0.0
        %5776 = vmatpush1.msra.mxu0 %v5666
        %5777 = vmatprep.subr.mxu0 0.0
        %5778 = vmatpush1.msra.mxu0 %v5667
        %5779 = vmatprep.subr.mxu0 0.0
        %5780 = vmatpush1.msra.mxu0 %v5668
        %5781 = vmatprep.subr.mxu0 0.0
        %5782 = vmatpush1.msra.mxu0 %v5669
        %5783 = vmatprep.subr.mxu0 0.0
        %5784 = vmatpush1.msra.mxu0 %v5670
        %5785 = vmatprep.subr.mxu0 0.0
        %5786 = vmatpush1.msra.mxu0 %v5671
        %5787 = vmatprep.subr.mxu0 0.0
        %5788 = vmatpush1.msra.mxu0 %v5672
        %5789 = vmatprep.subr.mxu0 0.0
        %5790 = vmatpush1.msra.mxu0 %v5673
        %5791 = vmatprep.subr.mxu0 0.0
        %5792 = vmatpush1.msra.mxu0 %v5674
        %5793 = vmatprep.subr.mxu0 0.0
        %5794 = vmatpush1.msra.mxu0 %v5675
        %5795 = vmatprep.subr.mxu0 0.0
        %5796 = vmatpush1.msra.mxu0 %v5676
        %5797 = vmatprep.subr.mxu0 0.0
        %5798 = vmatpush1.msra.mxu0 %v5677
        %5799 = vmatprep.subr.mxu0 0.0
        %5800 = vmatpush1.msra.mxu0 %v5678
        %5801 = vmatprep.subr.mxu0 0.0
        %5802 = vmatpush1.msra.mxu0 0.0
        %5803 = vmatprep.subr.mxu0 0.0
        %5804 = vmatpush1.msra.mxu0 0.0
        %5805 = vmatprep.subr.mxu0 0.0
        %5806 = vmatpush1.msra.mxu0 0.0
        %5807 = vmatprep.subr.mxu0 0.0
        %5808 = vmatpush1.msra.mxu0 0.0
        %5809 = vmatprep.subr.mxu0 0.0
        %5810 = vmatpush1.msra.mxu0 0.0
        %5811 = vmatprep.subr.mxu0 0.0
        %5812 = vmatpush1.msra.mxu0 0.0
        %5813 = vmatprep.subr.mxu0 0.0
        %5814 = vmatpush1.msra.mxu0 0.0
        %5815 = vmatprep.subr.mxu0 0.0
        %5816 = vmatpush1.msra.mxu0 0.0
        %5817 = vmatprep.subr.mxu0 0.0
        %5818 = vmatpush1.msra.mxu0 0.0
        %5819 = vmatprep.subr.mxu0 0.0
        %5820 = vmatpush1.msra.mxu0 0.0
        %5821 = vmatprep.subr.mxu0 0.0
        %5822 = vmatpush1.msra.mxu0 0.0
        %5823 = vmatprep.subr.mxu0 0.0
        %5824 = vmatpush1.msra.mxu0 0.0
        %5825 = vmatprep.subr.mxu0 0.0
        %5826 = vmatpush1.msra.mxu0 0.0
        %5827 = vmatprep.subr.mxu0 0.0
        %5828 = vmatpush1.msra.mxu0 0.0
        %5829 = vmatprep.subr.mxu0 0.0
        %5830 = vmatpush1.msra.mxu0 0.0
        %5831 = vmatprep.subr.mxu0 0.0
        %5832 = vmatpush1.msra.mxu0 0.0
        %5833 = vmatprep.subr.mxu0 0.0
        %5834 = vmatpush1.msra.mxu0 0.0
        %5835 = vmatprep.subr.mxu0 0.0
        %5836 = vmatpush1.msra.mxu0 0.0
        %5837 = vmatprep.mubr.f32.mxu0 0.0
        %5838 = vmatmul.mubr.f32.gmra.mrb[0].mxu0 %v5771
        %v5839 = vpop.f32.mrb[0].mxu0
        %v5840 = vadd.f32 %v5767, %v5839
        %v5841 = vpop.f32.mrb[0].mxu0
        %5842 = vdwg.mxu0
        %s5843 = scalar_lea.vmem [#allocation2], 8
        %v5844 = vld [vmem:[%s5843] sm:$0xf]
        %s5845 = scalar_lea.vmem %s9, 224
        %v5846 = vld [vmem:[%s5845] sm:$0xff]
        %v5847 = vld [vmem:[%s5845 + $0x8] sm:$0xff]
        %v5848 = vld [vmem:[%s5845 + $0x10] sm:$0xff]
        %v5849 = vld [vmem:[%s5845 + $0x18] sm:$0xff]
        %v5850 = vld [vmem:[%s5845 + $0x20] sm:$0xff]
        %v5851 = vld [vmem:[%s5845 + $0x28] sm:$0xff]
        %v5852 = vld [vmem:[%s5845 + $0x30] sm:$0xff]
        %v5853 = vld [vmem:[%s5845 + $0x38] sm:$0xff]
        %v5854 = vld [vmem:[%s5845 + $0x40] sm:$0xff]
        %v5855 = vld [vmem:[%s5845 + $0x48] sm:$0xff]
        %v5856 = vld [vmem:[%s5845 + $0x50] sm:$0xff]
        %v5857 = vld [vmem:[%s5845 + $0x58] sm:$0xff]
        %v5858 = vld [vmem:[%s5845 + $0x60] sm:$0xff]
        %v5859 = vld [vmem:[%s5845 + $0x68] sm:$0xff]
        %v5861 = vsel %vm5696, %v5844, 0
        %5863 = vmatprep.subr.mxu0 0.0
        %5864 = vmatpush1.msra.mxu0 %v5846
        %5865 = vmatprep.subr.mxu0 0.0
        %5866 = vmatpush1.msra.mxu0 %v5847
        %5867 = vmatprep.subr.mxu0 0.0
        %5868 = vmatpush1.msra.mxu0 %v5848
        %5869 = vmatprep.subr.mxu0 0.0
        %5870 = vmatpush1.msra.mxu0 %v5849
        %5871 = vmatprep.subr.mxu0 0.0
        %5872 = vmatpush1.msra.mxu0 %v5850
        %5873 = vmatprep.subr.mxu0 0.0
        %5874 = vmatpush1.msra.mxu0 %v5851
        %5875 = vmatprep.subr.mxu0 0.0
        %5876 = vmatpush1.msra.mxu0 %v5852
        %5877 = vmatprep.subr.mxu0 0.0
        %5878 = vmatpush1.msra.mxu0 %v5853
        %5879 = vmatprep.subr.mxu0 0.0
        %5880 = vmatpush1.msra.mxu0 %v5854
        %5881 = vmatprep.subr.mxu0 0.0
        %5882 = vmatpush1.msra.mxu0 %v5855
        %5883 = vmatprep.subr.mxu0 0.0
        %5884 = vmatpush1.msra.mxu0 %v5856
        %5885 = vmatprep.subr.mxu0 0.0
        %5886 = vmatpush1.msra.mxu0 %v5857
        %5887 = vmatprep.subr.mxu0 0.0
        %5888 = vmatpush1.msra.mxu0 %v5858
        %5889 = vmatprep.subr.mxu0 0.0
        %5890 = vmatpush1.msra.mxu0 %v5859
        %5891 = vmatprep.subr.mxu0 0.0
        %5892 = vmatpush1.msra.mxu0 0.0
        %5893 = vmatprep.subr.mxu0 0.0
        %5894 = vmatpush1.msra.mxu0 0.0
        %5895 = vmatprep.subr.mxu0 0.0
        %5896 = vmatpush1.msra.mxu0 0.0
        %5897 = vmatprep.subr.mxu0 0.0
        %5898 = vmatpush1.msra.mxu0 0.0
        %5899 = vmatprep.subr.mxu0 0.0
        %5900 = vmatpush1.msra.mxu0 0.0
        %5901 = vmatprep.subr.mxu0 0.0
        %5902 = vmatpush1.msra.mxu0 0.0
        %5903 = vmatprep.subr.mxu0 0.0
        %5904 = vmatpush1.msra.mxu0 0.0
        %5905 = vmatprep.subr.mxu0 0.0
        %5906 = vmatpush1.msra.mxu0 0.0
        %5907 = vmatprep.subr.mxu0 0.0
        %5908 = vmatpush1.msra.mxu0 0.0
        %5909 = vmatprep.subr.mxu0 0.0
        %5910 = vmatpush1.msra.mxu0 0.0
        %5911 = vmatprep.subr.mxu0 0.0
        %5912 = vmatpush1.msra.mxu0 0.0
        %5913 = vmatprep.subr.mxu0 0.0
        %5914 = vmatpush1.msra.mxu0 0.0
        %5915 = vmatprep.subr.mxu0 0.0
        %5916 = vmatpush1.msra.mxu0 0.0
        %5917 = vmatprep.subr.mxu0 0.0
        %5918 = vmatpush1.msra.mxu0 0.0
        %5919 = vmatprep.subr.mxu0 0.0
        %5920 = vmatpush1.msra.mxu0 0.0
        %5921 = vmatprep.subr.mxu0 0.0
        %5922 = vmatpush1.msra.mxu0 0.0
        %5923 = vmatprep.subr.mxu0 0.0
        %5924 = vmatpush1.msra.mxu0 0.0
        %5925 = vmatprep.subr.mxu0 0.0
        %5926 = vmatpush1.msra.mxu0 0.0
        %5927 = vmatprep.mubr.f32.mxu0 0.0
        %5928 = vmatmul.mubr.f32.gmra.mrb[0].mxu0 %v5861
        %v5929 = vpop.f32.mrb[0].mxu0
        %v5930 = vadd.f32 0.0, %v5929
        %v5931 = vpop.f32.mrb[0].mxu0
        %5932 = vdwg.mxu0
        %v5933 = vadd.f32 %v5840, %v5930
        %s5934 = scalar_lea.vmem [#allocation2], 12
        %v5935 = vld [vmem:[%s5934] sm:$0xf]
        %s5936 = scalar_lea.vmem %s9, 336
        %v5937 = vld [vmem:[%s5936] sm:$0xff]
        %v5938 = vld [vmem:[%s5936 + $0x8] sm:$0xff]
        %v5939 = vld [vmem:[%s5936 + $0x10] sm:$0xff]
        %v5940 = vld [vmem:[%s5936 + $0x18] sm:$0xff]
        %v5941 = vld [vmem:[%s5936 + $0x20] sm:$0xff]
        %v5942 = vld [vmem:[%s5936 + $0x28] sm:$0xff]
        %v5943 = vld [vmem:[%s5936 + $0x30] sm:$0xff]
        %v5944 = vld [vmem:[%s5936 + $0x38] sm:$0xff]
        %v5945 = vld [vmem:[%s5936 + $0x40] sm:$0xff]
        %v5946 = vld [vmem:[%s5936 + $0x48] sm:$0xff]
        %v5947 = vld [vmem:[%s5936 + $0x50] sm:$0xff]
        %v5948 = vld [vmem:[%s5936 + $0x58] sm:$0xff]
        %v5949 = vld [vmem:[%s5936 + $0x60] sm:$0xff]
        %v5950 = vld [vmem:[%s5936 + $0x68] sm:$0xff]
        %v5952 = vsel %vm5696, %v5935, 0
        %5954 = vmatprep.subr.mxu0 0.0
        %5955 = vmatpush1.msra.mxu0 %v5937
        %5956 = vmatprep.subr.mxu0 0.0
        %5957 = vmatpush1.msra.mxu0 %v5938
        %5958 = vmatprep.subr.mxu0 0.0
        %5959 = vmatpush1.msra.mxu0 %v5939
        %5960 = vmatprep.subr.mxu0 0.0
        %5961 = vmatpush1.msra.mxu0 %v5940
        %5962 = vmatprep.subr.mxu0 0.0
        %5963 = vmatpush1.msra.mxu0 %v5941
        %5964 = vmatprep.subr.mxu0 0.0
        %5965 = vmatpush1.msra.mxu0 %v5942
        %5966 = vmatprep.subr.mxu0 0.0
        %5967 = vmatpush1.msra.mxu0 %v5943
        %5968 = vmatprep.subr.mxu0 0.0
        %5969 = vmatpush1.msra.mxu0 %v5944
        %5970 = vmatprep.subr.mxu0 0.0
        %5971 = vmatpush1.msra.mxu0 %v5945
        %5972 = vmatprep.subr.mxu0 0.0
        %5973 = vmatpush1.msra.mxu0 %v5946
        %5974 = vmatprep.subr.mxu0 0.0
        %5975 = vmatpush1.msra.mxu0 %v5947
        %5976 = vmatprep.subr.mxu0 0.0
        %5977 = vmatpush1.msra.mxu0 %v5948
        %5978 = vmatprep.subr.mxu0 0.0
        %5979 = vmatpush1.msra.mxu0 %v5949
        %5980 = vmatprep.subr.mxu0 0.0
        %5981 = vmatpush1.msra.mxu0 %v5950
        %5982 = vmatprep.subr.mxu0 0.0
        %5983 = vmatpush1.msra.mxu0 0.0
        %5984 = vmatprep.subr.mxu0 0.0
        %5985 = vmatpush1.msra.mxu0 0.0
        %5986 = vmatprep.subr.mxu0 0.0
        %5987 = vmatpush1.msra.mxu0 0.0
        %5988 = vmatprep.subr.mxu0 0.0
        %5989 = vmatpush1.msra.mxu0 0.0
        %5990 = vmatprep.subr.mxu0 0.0
        %5991 = vmatpush1.msra.mxu0 0.0
        %5992 = vmatprep.subr.mxu0 0.0
        %5993 = vmatpush1.msra.mxu0 0.0
        %5994 = vmatprep.subr.mxu0 0.0
        %5995 = vmatpush1.msra.mxu0 0.0
        %5996 = vmatprep.subr.mxu0 0.0
        %5997 = vmatpush1.msra.mxu0 0.0
        %5998 = vmatprep.subr.mxu0 0.0
        %5999 = vmatpush1.msra.mxu0 0.0
        %6000 = vmatprep.subr.mxu0 0.0
        %6001 = vmatpush1.msra.mxu0 0.0
        %6002 = vmatprep.subr.mxu0 0.0
        %6003 = vmatpush1.msra.mxu0 0.0
        %6004 = vmatprep.subr.mxu0 0.0
        %6005 = vmatpush1.msra.mxu0 0.0
        %6006 = vmatprep.subr.mxu0 0.0
        %6007 = vmatpush1.msra.mxu0 0.0
        %6008 = vmatprep.subr.mxu0 0.0
        %6009 = vmatpush1.msra.mxu0 0.0
        %6010 = vmatprep.subr.mxu0 0.0
        %6011 = vmatpush1.msra.mxu0 0.0
        %6012 = vmatprep.subr.mxu0 0.0
        %6013 = vmatpush1.msra.mxu0 0.0
        %6014 = vmatprep.subr.mxu0 0.0
        %6015 = vmatpush1.msra.mxu0 0.0
        %6016 = vmatprep.subr.mxu0 0.0
        %6017 = vmatpush1.msra.mxu0 0.0
        %6018 = vmatprep.mubr.f32.mxu0 0.0
        %6019 = vmatmul.mubr.f32.gmra.mrb[0].mxu0 %v5952
        %v6020 = vpop.f32.mrb[0].mxu0
        %v6021 = vadd.f32 0.0, %v6020
        %v6022 = vpop.f32.mrb[0].mxu0
        %6023 = vdwg.mxu0
        %v6024 = vadd.f32 %v5933, %v6021
        %s6025 = scalar_lea.vmem [#allocation2], 16
        %v6026 = vld [vmem:[%s6025] sm:$0xf]
        %s6027 = scalar_lea.vmem %s9, 448
        %v6028 = vld [vmem:[%s6027] sm:$0xff]
        %v6029 = vld [vmem:[%s6027 + $0x8] sm:$0xff]
        %v6030 = vld [vmem:[%s6027 + $0x10] sm:$0xff]
        %v6031 = vld [vmem:[%s6027 + $0x18] sm:$0xff]
        %v6032 = vld [vmem:[%s6027 + $0x20] sm:$0xff]
        %v6033 = vld [vmem:[%s6027 + $0x28] sm:$0xff]
        %v6034 = vld [vmem:[%s6027 + $0x30] sm:$0xff]
        %v6035 = vld [vmem:[%s6027 + $0x38] sm:$0xff]
        %v6036 = vld [vmem:[%s6027 + $0x40] sm:$0xff]
        %v6037 = vld [vmem:[%s6027 + $0x48] sm:$0xff]
        %v6038 = vld [vmem:[%s6027 + $0x50] sm:$0xff]
        %v6039 = vld [vmem:[%s6027 + $0x58] sm:$0xff]
        %v6040 = vld [vmem:[%s6027 + $0x60] sm:$0xff]
        %v6041 = vld [vmem:[%s6027 + $0x68] sm:$0xff]
        %v6043 = vsel %vm5696, %v6026, 0
        %6045 = vmatprep.subr.mxu0 0.0
        %6046 = vmatpush1.msra.mxu0 %v6028
        %6047 = vmatprep.subr.mxu0 0.0
        %6048 = vmatpush1.msra.mxu0 %v6029
        %6049 = vmatprep.subr.mxu0 0.0
        %6050 = vmatpush1.msra.mxu0 %v6030
        %6051 = vmatprep.subr.mxu0 0.0
        %6052 = vmatpush1.msra.mxu0 %v6031
        %6053 = vmatprep.subr.mxu0 0.0
        %6054 = vmatpush1.msra.mxu0 %v6032
        %6055 = vmatprep.subr.mxu0 0.0
        %6056 = vmatpush1.msra.mxu0 %v6033
        %6057 = vmatprep.subr.mxu0 0.0
        %6058 = vmatpush1.msra.mxu0 %v6034
        %6059 = vmatprep.subr.mxu0 0.0
        %6060 = vmatpush1.msra.mxu0 %v6035
        %6061 = vmatprep.subr.mxu0 0.0
        %6062 = vmatpush1.msra.mxu0 %v6036
        %6063 = vmatprep.subr.mxu0 0.0
        %6064 = vmatpush1.msra.mxu0 %v6037
        %6065 = vmatprep.subr.mxu0 0.0
        %6066 = vmatpush1.msra.mxu0 %v6038
        %6067 = vmatprep.subr.mxu0 0.0
        %6068 = vmatpush1.msra.mxu0 %v6039
        %6069 = vmatprep.subr.mxu0 0.0
        %6070 = vmatpush1.msra.mxu0 %v6040
        %6071 = vmatprep.subr.mxu0 0.0
        %6072 = vmatpush1.msra.mxu0 %v6041
        %6073 = vmatprep.subr.mxu0 0.0
        %6074 = vmatpush1.msra.mxu0 0.0
        %6075 = vmatprep.subr.mxu0 0.0
        %6076 = vmatpush1.msra.mxu0 0.0
        %6077 = vmatprep.subr.mxu0 0.0
        %6078 = vmatpush1.msra.mxu0 0.0
        %6079 = vmatprep.subr.mxu0 0.0
        %6080 = vmatpush1.msra.mxu0 0.0
        %6081 = vmatprep.subr.mxu0 0.0
        %6082 = vmatpush1.msra.mxu0 0.0
        %6083 = vmatprep.subr.mxu0 0.0
        %6084 = vmatpush1.msra.mxu0 0.0
        %6085 = vmatprep.subr.mxu0 0.0
        %6086 = vmatpush1.msra.mxu0 0.0
        %6087 = vmatprep.subr.mxu0 0.0
        %6088 = vmatpush1.msra.mxu0 0.0
        %6089 = vmatprep.subr.mxu0 0.0
        %6090 = vmatpush1.msra.mxu0 0.0
        %6091 = vmatprep.subr.mxu0 0.0
        %6092 = vmatpush1.msra.mxu0 0.0
        %6093 = vmatprep.subr.mxu0 0.0
        %6094 = vmatpush1.msra.mxu0 0.0
        %6095 = vmatprep.subr.mxu0 0.0
        %6096 = vmatpush1.msra.mxu0 0.0
        %6097 = vmatprep.subr.mxu0 0.0
        %6098 = vmatpush1.msra.mxu0 0.0
        %6099 = vmatprep.subr.mxu0 0.0
        %6100 = vmatpush1.msra.mxu0 0.0
        %6101 = vmatprep.subr.mxu0 0.0
        %6102 = vmatpush1.msra.mxu0 0.0
        %6103 = vmatprep.subr.mxu0 0.0
        %6104 = vmatpush1.msra.mxu0 0.0
        %6105 = vmatprep.subr.mxu0 0.0
        %6106 = vmatpush1.msra.mxu0 0.0
        %6107 = vmatprep.subr.mxu0 0.0
        %6108 = vmatpush1.msra.mxu0 0.0
        %6109 = vmatprep.mubr.f32.mxu0 0.0
        %6110 = vmatmul.mubr.f32.gmra.mrb[0].mxu0 %v6043
        %v6111 = vpop.f32.mrb[0].mxu0
        %v6112 = vadd.f32 0.0, %v6111
        %v6113 = vpop.f32.mrb[0].mxu0
        %6114 = vdwg.mxu0
        %v6115 = vadd.f32 %v6024, %v6112
        %s6116 = scalar_lea.vmem [#allocation2], 20
        %v6117 = vld [vmem:[%s6116] sm:$0xf]
        %s6118 = scalar_lea.vmem %s9, 560
        %v6119 = vld [vmem:[%s6118] sm:$0xff]
        %v6120 = vld [vmem:[%s6118 + $0x8] sm:$0xff]
        %v6121 = vld [vmem:[%s6118 + $0x10] sm:$0xff]
        %v6122 = vld [vmem:[%s6118 + $0x18] sm:$0xff]
        %v6123 = vld [vmem:[%s6118 + $0x20] sm:$0xff]
        %v6124 = vld [vmem:[%s6118 + $0x28] sm:$0xff]
        %v6125 = vld [vmem:[%s6118 + $0x30] sm:$0xff]
        %v6126 = vld [vmem:[%s6118 + $0x38] sm:$0xff]
        %v6127 = vld [vmem:[%s6118 + $0x40] sm:$0xff]
        %v6128 = vld [vmem:[%s6118 + $0x48] sm:$0xff]
        %v6129 = vld [vmem:[%s6118 + $0x50] sm:$0xff]
        %v6130 = vld [vmem:[%s6118 + $0x58] sm:$0xff]
        %v6131 = vld [vmem:[%s6118 + $0x60] sm:$0xff]
        %v6132 = vld [vmem:[%s6118 + $0x68] sm:$0xff]
        %v6134 = vsel %vm5696, %v6117, 0
        %6136 = vmatprep.subr.mxu0 0.0
        %6137 = vmatpush1.msra.mxu0 %v6119
        %6138 = vmatprep.subr.mxu0 0.0
        %6139 = vmatpush1.msra.mxu0 %v6120
        %6140 = vmatprep.subr.mxu0 0.0
        %6141 = vmatpush1.msra.mxu0 %v6121
        %6142 = vmatprep.subr.mxu0 0.0
        %6143 = vmatpush1.msra.mxu0 %v6122
        %6144 = vmatprep.subr.mxu0 0.0
        %6145 = vmatpush1.msra.mxu0 %v6123
        %6146 = vmatprep.subr.mxu0 0.0
        %6147 = vmatpush1.msra.mxu0 %v6124
        %6148 = vmatprep.subr.mxu0 0.0
        %6149 = vmatpush1.msra.mxu0 %v6125
        %6150 = vmatprep.subr.mxu0 0.0
        %6151 = vmatpush1.msra.mxu0 %v6126
        %6152 = vmatprep.subr.mxu0 0.0
        %6153 = vmatpush1.msra.mxu0 %v6127
        %6154 = vmatprep.subr.mxu0 0.0
        %6155 = vmatpush1.msra.mxu0 %v6128
        %6156 = vmatprep.subr.mxu0 0.0
        %6157 = vmatpush1.msra.mxu0 %v6129
        %6158 = vmatprep.subr.mxu0 0.0
        %6159 = vmatpush1.msra.mxu0 %v6130
        %6160 = vmatprep.subr.mxu0 0.0
        %6161 = vmatpush1.msra.mxu0 %v6131
        %6162 = vmatprep.subr.mxu0 0.0
        %6163 = vmatpush1.msra.mxu0 %v6132
        %6164 = vmatprep.subr.mxu0 0.0
        %6165 = vmatpush1.msra.mxu0 0.0
        %6166 = vmatprep.subr.mxu0 0.0
        %6167 = vmatpush1.msra.mxu0 0.0
        %6168 = vmatprep.subr.mxu0 0.0
        %6169 = vmatpush1.msra.mxu0 0.0
        %6170 = vmatprep.subr.mxu0 0.0
        %6171 = vmatpush1.msra.mxu0 0.0
        %6172 = vmatprep.subr.mxu0 0.0
        %6173 = vmatpush1.msra.mxu0 0.0
        %6174 = vmatprep.subr.mxu0 0.0
        %6175 = vmatpush1.msra.mxu0 0.0
        %6176 = vmatprep.subr.mxu0 0.0
        %6177 = vmatpush1.msra.mxu0 0.0
        %6178 = vmatprep.subr.mxu0 0.0
        %6179 = vmatpush1.msra.mxu0 0.0
        %6180 = vmatprep.subr.mxu0 0.0
        %6181 = vmatpush1.msra.mxu0 0.0
        %6182 = vmatprep.subr.mxu0 0.0
        %6183 = vmatpush1.msra.mxu0 0.0
        %6184 = vmatprep.subr.mxu0 0.0
        %6185 = vmatpush1.msra.mxu0 0.0
        %6186 = vmatprep.subr.mxu0 0.0
        %6187 = vmatpush1.msra.mxu0 0.0
        %6188 = vmatprep.subr.mxu0 0.0
        %6189 = vmatpush1.msra.mxu0 0.0
        %6190 = vmatprep.subr.mxu0 0.0
        %6191 = vmatpush1.msra.mxu0 0.0
        %6192 = vmatprep.subr.mxu0 0.0
        %6193 = vmatpush1.msra.mxu0 0.0
        %6194 = vmatprep.subr.mxu0 0.0
        %6195 = vmatpush1.msra.mxu0 0.0
        %6196 = vmatprep.subr.mxu0 0.0
        %6197 = vmatpush1.msra.mxu0 0.0
        %6198 = vmatprep.subr.mxu0 0.0
        %6199 = vmatpush1.msra.mxu0 0.0
        %6200 = vmatprep.mubr.f32.mxu0 0.0
        %6201 = vmatmul.mubr.f32.gmra.mrb[0].mxu0 %v6134
        %v6202 = vpop.f32.mrb[0].mxu0
        %v6203 = vadd.f32 0.0, %v6202
        %v6204 = vpop.f32.mrb[0].mxu0
        %6205 = vdwg.mxu0
        %v6206 = vadd.f32 %v6115, %v6203
        %s6207 = scalar_lea.vmem [#allocation2], 24
        %v6208 = vld [vmem:[%s6207] sm:$0xf]
        %s6209 = scalar_lea.vmem %s9, 672
        %v6210 = vld [vmem:[%s6209] sm:$0xff]
        %v6211 = vld [vmem:[%s6209 + $0x8] sm:$0xff]
        %v6212 = vld [vmem:[%s6209 + $0x10] sm:$0xff]
        %v6213 = vld [vmem:[%s6209 + $0x18] sm:$0xff]
        %v6214 = vld [vmem:[%s6209 + $0x20] sm:$0xff]
        %v6215 = vld [vmem:[%s6209 + $0x28] sm:$0xff]
        %v6216 = vld [vmem:[%s6209 + $0x30] sm:$0xff]
        %v6217 = vld [vmem:[%s6209 + $0x38] sm:$0xff]
        %v6218 = vld [vmem:[%s6209 + $0x40] sm:$0xff]
        %v6219 = vld [vmem:[%s6209 + $0x48] sm:$0xff]
        %v6220 = vld [vmem:[%s6209 + $0x50] sm:$0xff]
        %v6221 = vld [vmem:[%s6209 + $0x58] sm:$0xff]
        %v6222 = vld [vmem:[%s6209 + $0x60] sm:$0xff]
        %v6223 = vld [vmem:[%s6209 + $0x68] sm:$0xff]
        %v6225 = vsel %vm5696, %v6208, 0
        %6227 = vmatprep.subr.mxu0 0.0
        %6228 = vmatpush1.msra.mxu0 %v6210
        %6229 = vmatprep.subr.mxu0 0.0
        %6230 = vmatpush1.msra.mxu0 %v6211
        %6231 = vmatprep.subr.mxu0 0.0
        %6232 = vmatpush1.msra.mxu0 %v6212
        %6233 = vmatprep.subr.mxu0 0.0
        %6234 = vmatpush1.msra.mxu0 %v6213
        %6235 = vmatprep.subr.mxu0 0.0
        %6236 = vmatpush1.msra.mxu0 %v6214
        %6237 = vmatprep.subr.mxu0 0.0
        %6238 = vmatpush1.msra.mxu0 %v6215
        %6239 = vmatprep.subr.mxu0 0.0
        %6240 = vmatpush1.msra.mxu0 %v6216
        %6241 = vmatprep.subr.mxu0 0.0
        %6242 = vmatpush1.msra.mxu0 %v6217
        %6243 = vmatprep.subr.mxu0 0.0
        %6244 = vmatpush1.msra.mxu0 %v6218
        %6245 = vmatprep.subr.mxu0 0.0
        %6246 = vmatpush1.msra.mxu0 %v6219
        %6247 = vmatprep.subr.mxu0 0.0
        %6248 = vmatpush1.msra.mxu0 %v6220
        %6249 = vmatprep.subr.mxu0 0.0
        %6250 = vmatpush1.msra.mxu0 %v6221
        %6251 = vmatprep.subr.mxu0 0.0
        %6252 = vmatpush1.msra.mxu0 %v6222
        %6253 = vmatprep.subr.mxu0 0.0
        %6254 = vmatpush1.msra.mxu0 %v6223
        %6255 = vmatprep.subr.mxu0 0.0
        %6256 = vmatpush1.msra.mxu0 0.0
        %6257 = vmatprep.subr.mxu0 0.0
        %6258 = vmatpush1.msra.mxu0 0.0
        %6259 = vmatprep.subr.mxu0 0.0
        %6260 = vmatpush1.msra.mxu0 0.0
        %6261 = vmatprep.subr.mxu0 0.0
        %6262 = vmatpush1.msra.mxu0 0.0
        %6263 = vmatprep.subr.mxu0 0.0
        %6264 = vmatpush1.msra.mxu0 0.0
        %6265 = vmatprep.subr.mxu0 0.0
        %6266 = vmatpush1.msra.mxu0 0.0
        %6267 = vmatprep.subr.mxu0 0.0
        %6268 = vmatpush1.msra.mxu0 0.0
        %6269 = vmatprep.subr.mxu0 0.0
        %6270 = vmatpush1.msra.mxu0 0.0
        %6271 = vmatprep.subr.mxu0 0.0
        %6272 = vmatpush1.msra.mxu0 0.0
        %6273 = vmatprep.subr.mxu0 0.0
        %6274 = vmatpush1.msra.mxu0 0.0
        %6275 = vmatprep.subr.mxu0 0.0
        %6276 = vmatpush1.msra.mxu0 0.0
        %6277 = vmatprep.subr.mxu0 0.0
        %6278 = vmatpush1.msra.mxu0 0.0
        %6279 = vmatprep.subr.mxu0 0.0
        %6280 = vmatpush1.msra.mxu0 0.0
        %6281 = vmatprep.subr.mxu0 0.0
        %6282 = vmatpush1.msra.mxu0 0.0
        %6283 = vmatprep.subr.mxu0 0.0
        %6284 = vmatpush1.msra.mxu0 0.0
        %6285 = vmatprep.subr.mxu0 0.0
        %6286 = vmatpush1.msra.mxu0 0.0
        %6287 = vmatprep.subr.mxu0 0.0
        %6288 = vmatpush1.msra.mxu0 0.0
        %6289 = vmatprep.subr.mxu0 0.0
        %6290 = vmatpush1.msra.mxu0 0.0
        %6291 = vmatprep.mubr.f32.mxu0 0.0
        %6292 = vmatmul.mubr.f32.gmra.mrb[0].mxu0 %v6225
        %v6293 = vpop.f32.mrb[0].mxu0
        %v6294 = vadd.f32 0.0, %v6293
        %v6295 = vpop.f32.mrb[0].mxu0
        %6296 = vdwg.mxu0
        %v6297 = vadd.f32 %v6206, %v6294
        %v6298 = vld [vmem:[%s10] sm:$0x1]
        %v6300 = vlaneseq
        %v6301 = vshrl.u32 %v6300, 7
        %v6302 = vsub.s32 0, %v6301
        %v6303 = vrot.slane %v6298, %v6302
        %v6305 = vadd.f32 %v6297, %v6303
        %v6306 = vmul.f32 %v6305, 0.5
        %v6307 = vtanh.pop %v6306
        %v6308 = vadd.f32 %v6307, 1.0
        %v6309 = vmul.f32 %v6308, 0.5
        %v6310 = vld [vmem:[%s11] sm:$0xff]
        %v6311 = vld [vmem:[%s11 + $0x8] sm:$0xff]
        %v6312 = vld [vmem:[%s11 + $0x10] sm:$0xff]
        %v6313 = vld [vmem:[%s11 + $0x18] sm:$0xff]
        %v6314 = vld [vmem:[%s11 + $0x20] sm:$0xff]
        %v6315 = vld [vmem:[%s11 + $0x28] sm:$0xff]
        %v6316 = vld [vmem:[%s11 + $0x30] sm:$0xff]
        %v6317 = vld [vmem:[%s11 + $0x38] sm:$0xff]
        %v6318 = vld [vmem:[%s11 + $0x40] sm:$0xff]
        %v6319 = vld [vmem:[%s11 + $0x48] sm:$0xff]
        %v6320 = vld [vmem:[%s11 + $0x50] sm:$0xff]
        %v6321 = vld [vmem:[%s11 + $0x58] sm:$0xff]
        %v6322 = vld [vmem:[%s11 + $0x60] sm:$0xff]
        %v6323 = vld [vmem:[%s11 + $0x68] sm:$0xff]
        %v6324 = vld [vmem:[%s11 + $0x70] sm:$0xff]
        %v6325 = vld [vmem:[%s12] sm:$0x1]
        %v6327 = vlaneseq
        %v6328 = vshrl.u32 %v6327, 7
        %v6329 = vsub.s32 0, %v6328
        %v6330 = vrot.slane %v6325, %v6329
        %vm6332 = vcmask 982016
        %v6334 = vsel %vm6332, %v6309, 0
        %6336 = vmatprep.subr.mxu0 0.0
        %6337 = vmatpush1.msra.mxu0 %v6310
        %6338 = vmatprep.subr.mxu0 0.0
        %6339 = vmatpush1.msra.mxu0 %v6311
        %6340 = vmatprep.subr.mxu0 0.0
        %6341 = vmatpush1.msra.mxu0 %v6312
        %6342 = vmatprep.subr.mxu0 0.0
        %6343 = vmatpush1.msra.mxu0 %v6313
        %6344 = vmatprep.subr.mxu0 0.0
        %6345 = vmatpush1.msra.mxu0 %v6314
        %6346 = vmatprep.subr.mxu0 0.0
        %6347 = vmatpush1.msra.mxu0 %v6315
        %6348 = vmatprep.subr.mxu0 0.0
        %6349 = vmatpush1.msra.mxu0 %v6316
        %6350 = vmatprep.subr.mxu0 0.0
        %6351 = vmatpush1.msra.mxu0 %v6317
        %6352 = vmatprep.subr.mxu0 0.0
        %6353 = vmatpush1.msra.mxu0 %v6318
        %6354 = vmatprep.subr.mxu0 0.0
        %6355 = vmatpush1.msra.mxu0 %v6319
        %6356 = vmatprep.subr.mxu0 0.0
        %6357 = vmatpush1.msra.mxu0 %v6320
        %6358 = vmatprep.subr.mxu0 0.0
        %6359 = vmatpush1.msra.mxu0 %v6321
        %6360 = vmatprep.subr.mxu0 0.0
        %6361 = vmatpush1.msra.mxu0 %v6322
        %6362 = vmatprep.subr.mxu0 0.0
        %6363 = vmatpush1.msra.mxu0 %v6323
        %6364 = vmatprep.subr.mxu0 0.0
        %6365 = vmatpush1.msra.mxu0 %v6324
        %6366 = vmatprep.subr.mxu0 0.0
        %6367 = vmatpush1.msra.mxu0 0.0
        %6368 = vmatprep.subr.mxu0 0.0
        %6369 = vmatpush1.msra.mxu0 0.0
        %6370 = vmatprep.subr.mxu0 0.0
        %6371 = vmatpush1.msra.mxu0 0.0
        %6372 = vmatprep.subr.mxu0 0.0
        %6373 = vmatpush1.msra.mxu0 0.0
        %6374 = vmatprep.subr.mxu0 0.0
        %6375 = vmatpush1.msra.mxu0 0.0
        %6376 = vmatprep.subr.mxu0 0.0
        %6377 = vmatpush1.msra.mxu0 0.0
        %6378 = vmatprep.subr.mxu0 0.0
        %6379 = vmatpush1.msra.mxu0 0.0
        %6380 = vmatprep.subr.mxu0 0.0
        %6381 = vmatpush1.msra.mxu0 0.0
        %6382 = vmatprep.subr.mxu0 0.0
        %6383 = vmatpush1.msra.mxu0 0.0
        %6384 = vmatprep.subr.mxu0 0.0
        %6385 = vmatpush1.msra.mxu0 0.0
        %6386 = vmatprep.subr.mxu0 0.0
        %6387 = vmatpush1.msra.mxu0 0.0
        %6388 = vmatprep.subr.mxu0 0.0
        %6389 = vmatpush1.msra.mxu0 0.0
        %6390 = vmatprep.subr.mxu0 0.0
        %6391 = vmatpush1.msra.mxu0 0.0
        %6392 = vmatprep.subr.mxu0 0.0
        %6393 = vmatpush1.msra.mxu0 0.0
        %6394 = vmatprep.subr.mxu0 0.0
        %6395 = vmatpush1.msra.mxu0 0.0
        %6396 = vmatprep.subr.mxu0 0.0
        %6397 = vmatpush1.msra.mxu0 0.0
        %6398 = vmatprep.subr.mxu0 0.0
        %6399 = vmatpush1.msra.mxu0 0.0
        %6400 = vmatprep.mubr.f32.mxu0 0.0
        %6401 = vmatmul.mubr.f32.gmra.mrb[0].mxu0 %v6334
        %v6402 = vpop.f32.mrb[0].mxu0
        %v6403 = vadd.f32 %v6330, %v6402
        %v6404 = vpop.f32.mrb[0].mxu0
        %6405 = vdwg.mxu0
        %v6406 = vmul.f32 %v6403, 0.5
        %v6407 = vtanh.pop %v6406
        %v6408 = vadd.f32 %v6407, 1.0
        %v6409 = vmul.f32 %v6408, 0.5
        %v6410 = vld [vmem:[%s13] sm:$0xff]
        %v6411 = vld [vmem:[%s13 + $0x8] sm:$0xff]
        %v6412 = vld [vmem:[%s13 + $0x10] sm:$0xff]
        %v6413 = vld [vmem:[%s13 + $0x18] sm:$0xff]
        %v6414 = vld [vmem:[%s13 + $0x20] sm:$0xff]
        %v6415 = vld [vmem:[%s13 + $0x28] sm:$0xff]
        %v6416 = vld [vmem:[%s13 + $0x30] sm:$0xff]
        %v6417 = vld [vmem:[%s13 + $0x38] sm:$0xff]
        %v6418 = vld [vmem:[%s13 + $0x40] sm:$0xff]
        %v6419 = vld [vmem:[%s13 + $0x48] sm:$0xff]
        %v6420 = vld [vmem:[%s13 + $0x50] sm:$0xf]
        %v6421 = vld [vmem:[%s14] sm:$0x1]
        %v6423 = vlaneseq
        %v6424 = vshrl.u32 %v6423, 7
        %v6425 = vsub.s32 0, %v6424
        %v6426 = vrot.slane %v6421, %v6425
        %vm6428 = vcmask 687104
        %v6430 = vsel %vm6428, %v6409, 0
        %v6433 = vsel %vm705, %v6420, 0
        %6435 = vmatprep.subr.mxu0 0.0
        %6436 = vmatpush1.msra.mxu0 %v6410
        %6437 = vmatprep.subr.mxu0 0.0
        %6438 = vmatpush1.msra.mxu0 %v6411
        %6439 = vmatprep.subr.mxu0 0.0
        %6440 = vmatpush1.msra.mxu0 %v6412
        %6441 = vmatprep.subr.mxu0 0.0
        %6442 = vmatpush1.msra.mxu0 %v6413
        %6443 = vmatprep.subr.mxu0 0.0
        %6444 = vmatpush1.msra.mxu0 %v6414
        %6445 = vmatprep.subr.mxu0 0.0
        %6446 = vmatpush1.msra.mxu0 %v6415
        %6447 = vmatprep.subr.mxu0 0.0
        %6448 = vmatpush1.msra.mxu0 %v6416
        %6449 = vmatprep.subr.mxu0 0.0
        %6450 = vmatpush1.msra.mxu0 %v6417
        %6451 = vmatprep.subr.mxu0 0.0
        %6452 = vmatpush1.msra.mxu0 %v6418
        %6453 = vmatprep.subr.mxu0 0.0
        %6454 = vmatpush1.msra.mxu0 %v6419
        %6455 = vmatprep.subr.mxu0 0.0
        %6456 = vmatpush1.msra.mxu0 %v6433
        %6457 = vmatprep.subr.mxu0 0.0
        %6458 = vmatpush1.msra.mxu0 0.0
        %6459 = vmatprep.subr.mxu0 0.0
        %6460 = vmatpush1.msra.mxu0 0.0
        %6461 = vmatprep.subr.mxu0 0.0
        %6462 = vmatpush1.msra.mxu0 0.0
        %6463 = vmatprep.subr.mxu0 0.0
        %6464 = vmatpush1.msra.mxu0 0.0
        %6465 = vmatprep.subr.mxu0 0.0
        %6466 = vmatpush1.msra.mxu0 0.0
        %6467 = vmatprep.subr.mxu0 0.0
        %6468 = vmatpush1.msra.mxu0 0.0
        %6469 = vmatprep.subr.mxu0 0.0
        %6470 = vmatpush1.msra.mxu0 0.0
        %6471 = vmatprep.subr.mxu0 0.0
        %6472 = vmatpush1.msra.mxu0 0.0
        %6473 = vmatprep.subr.mxu0 0.0
        %6474 = vmatpush1.msra.mxu0 0.0
        %6475 = vmatprep.subr.mxu0 0.0
        %6476 = vmatpush1.msra.mxu0 0.0
        %6477 = vmatprep.subr.mxu0 0.0
        %6478 = vmatpush1.msra.mxu0 0.0
        %6479 = vmatprep.subr.mxu0 0.0
        %6480 = vmatpush1.msra.mxu0 0.0
        %6481 = vmatprep.subr.mxu0 0.0
        %6482 = vmatpush1.msra.mxu0 0.0
        %6483 = vmatprep.subr.mxu0 0.0
        %6484 = vmatpush1.msra.mxu0 0.0
        %6485 = vmatprep.subr.mxu0 0.0
        %6486 = vmatpush1.msra.mxu0 0.0
        %6487 = vmatprep.subr.mxu0 0.0
        %6488 = vmatpush1.msra.mxu0 0.0
        %6489 = vmatprep.subr.mxu0 0.0
        %6490 = vmatpush1.msra.mxu0 0.0
        %6491 = vmatprep.subr.mxu0 0.0
        %6492 = vmatpush1.msra.mxu0 0.0
        %6493 = vmatprep.subr.mxu0 0.0
        %6494 = vmatpush1.msra.mxu0 0.0
        %6495 = vmatprep.subr.mxu0 0.0
        %6496 = vmatpush1.msra.mxu0 0.0
        %6497 = vmatprep.subr.mxu0 0.0
        %6498 = vmatpush1.msra.mxu0 0.0
        %6499 = vmatprep.mubr.f32.mxu0 0.0
        %6500 = vmatmul.mubr.f32.gmra.mrb[0].mxu0 %v6430
        %v6501 = vpop.f32.mrb[0].mxu0
        %v6502 = vadd.f32 %v6426, %v6501
        %v6503 = vpop.f32.mrb[0].mxu0
        %6504 = vdwg.mxu0
        %6505 = vst [vmem:[%s490] sm:$0xf] %v6502
        %s6506 = sand.u32 %s357, 1
        %s6507 = scalar_lea.sflag [#allocation4], %s6506
        %s6508 = sand.u32 %s357, 1
        %s6509 = smul.addr %s6508, 4
        %s6510 = scalar_lea.vmem [#allocation3], %s6509
        // Predicated region
        $region81: #{lenet_forward.1} parent=79 // pred_check
          %p6511 = pneg %p367
        $region82: #{lenet_forward.1} parent=79 // pred_check_branch
          %6513 = sbr.rel (%p6511) target = $region84
        $region83: #{lenet_forward.1} parent=79 // pred_region
          %s6515 = ssub.s32 64, 64
          %6516 = vsyncadd %s6507, %s6515
          %s6517 = smul.addr %s29, 64
          %s6518 = scalar_lea.hbm %s15, %s6517
          %s6520 = sshll.u32 %s6510, 4
          %s6521 = int_to_ptr.vmem [resolvable:$true] %s6520
          %6523 = dma.vmem_to_hbm [thread:$0]  %s6521, 64, %s6518, %s6507
        $region84: #{lenet_forward.1} parent=79 // pred_fallthru
          _
      $region80: #{lenet_forward.1} parent=5 // pred_fallthru
        _
      %p6524 = scmp.le.s32.totalorder 2, %s24
      // Predicated region
      $region85: #{lenet_forward.1} parent=5 // pred_check
        %p6525 = pneg %p6524
      $region86: #{lenet_forward.1} parent=5 // pred_check_branch
        %6527 = sbr.rel (%p6525) target = $region88
      $region87: #{lenet_forward.1} parent=5 // pred_region
        %s6528 = ssub.s32 %s24, 2
        // Predicated region
        $region89: #{lenet_forward.1} parent=87 // pred_check
          %p6529 = pneg %p373
        $region90: #{lenet_forward.1} parent=87 // pred_check_branch
          %6531 = sbr.rel (%p6529) target = $region92
        $region91: #{lenet_forward.1} parent=87 // pred_region
          %s6532 = sand.u32 %s358, 1
          %s6533 = scalar_lea.sflag [#allocation4], %s6532
          %s6534 = sand.u32 %s358, 1
          %s6535 = smul.addr %s6534, 4
          %s6536 = scalar_lea.vmem [#allocation3], %s6535
          %6537 = dma.done %s6533, 64
        $region92: #{lenet_forward.1} parent=87 // pred_fallthru
          _
      $region88: #{lenet_forward.1} parent=5 // pred_fallthru
        _
    $region6: #{lenet_forward.1} parent=1 // loop_footer
      %s28 = sadd.s32 1, %s24
    $region7: #{lenet_forward.1} parent=1 // loop_footer_branch
      %23 = sbr.rel target = $region3
    $region8: #{lenet_forward.1} parent=1 // loop_exit
      _
    %6538 = vsyncpa [#allocation4], 1
    %s6539 = scalar_lea.sflag [#allocation4], 1
    %6540 = vsyncpa %s6539, 1

</llo_original>
